<compile_context>
chip_gen: v6e
topology: v6e:2x2x1
jax: 0.10.0
libtpu: 0.0.40
codegen_flags: <defaults>
</compile_context>

<pallas_src>
import jax
import jax.numpy as jnp
import numpy as np
from jax.experimental import pallas as pl
from jax.experimental.pallas import tpu as pltpu

# ---- model hyper-parameters (small, consistent with the module) ----
OBS_LEN = 8          # obs_len
PRED_LEN = 12        # predictions_steps
HID = 16             # traj_lstm_hidden_size / rela_embed_size
SAMPLE_BATCH = 4     # sample_batch (kept small for the demo)
NUM_H = 2            # number of agents per sample (num_agent)
BATCH = SAMPLE_BATCH * NUM_H
DT = 0.4             # unused: use_robot_model=False skips the robot-model branch


def trajectory_ar_goal_kernel(
    # data
    traj_rel_ref,      # (OBS_LEN, B, 2)
    obs_pos_ref,       # (OBS_LEN, B, 2)
    goal_ref,          # (B, 2)
    dsel_ref,          # (B*NUM_H, B)   static selector: dist_flat = dsel @ pos
    pool_mat_ref,      # (B, B*NUM_H)   masked-mean pooling matrix (from nei_index)
    # pre-processed weights (all (in, out)), biases (1, out)
    w_enc_in_ref, b_enc_in_ref,     # inputLayer_encoder: 2 -> 16
    w_enc_h_ref, b_enc_h_ref,       # Hist_Encoder stand-in head: 16 -> 16
    w_dec_ctx_ref, w_dec_out_ref, b_dec_ref,       # inputLayer_decoder split: 16->16, 2->16
    w_ih_ref, w_hh_ref, b_lstm_ref,                # LSTMCell: 16->64 each, b_ih + b_hh
    w_pool_r_ref, b_pool_r_ref,                    # Pooling_net rel embed: 2 -> 16
    w_pool_c_p_ref, w_pool_c_h_ref, b_pool_c_ref,  # Pooling_net context head split: 16->16 x2
    w_h2p1_h_ref, w_h2p1_g_ref, b_h2p1_ref,        # pred_hidden2pos1 split: 16->16, 2->16
    w_mu_ref, b_mu_ref,             # pred_hidden2pos2 mu columns only: 16 -> 2
    w_md_ref, b_md_ref,             # folded: w_mu @ w_dec_out (16->16), b_mu @ w_dec_out
    w_mp_ref, b_mp_ref,             # folded: w_mu @ w_pool_r (16->16), b_mu @ w_pool_r
    # outputs
    pred_ref,          # (PRED_LEN, B, 2)
    nll_ref,           # (B, 1)
):
    # ---------------- Hist_Encoder (batched prologue, off the AR chain) ----------------
    # TODO(synk): the original Hist_Encoder is an external transformer encoder (not
    # defined in this module); stand-in = per-step ReLU embed + mean pool + tanh head,
    # producing the same (B, 16) last-step hidden.
    traj = traj_rel_ref[...]                                      # (T, B, 2)
    w_enc_in = w_enc_in_ref[...]                                  # (2, H)
    emb = jnp.maximum(
        traj[..., 0:1] * w_enc_in[0:1, :]
        + traj[..., 1:2] * w_enc_in[1:2, :]
        + b_enc_in_ref[...], 0.0)                                 # (T, B, H)
    acc = jnp.sum(emb, axis=0) * (1.0 / OBS_LEN)                  # (B, H)
    enc_hist = jnp.tanh(
        jnp.dot(acc, w_enc_h_ref[...], preferred_element_type=jnp.float32)
        + b_enc_h_ref[...])                                       # (B, H)

    curr_pos_abs = obs_pos_ref[OBS_LEN - 1]                       # obs_traj_pos[-1]  (B, 2)
    rel_goal = goal_ref[...] - curr_pos_abs                       # sample_goal - pos (B, 2)
    # (the original module computes rel_goal once before the loop -> hoist is exact)

    # ---------------- hoisted loop invariants ----------------
    w_dec_ctx = w_dec_ctx_ref[...]
    w_dec_out = w_dec_out_ref[...]
    b_dec_b = jnp.broadcast_to(b_dec_ref[...], (BATCH, HID))
    w_ih = w_ih_ref[...]
    w_hh = w_hh_ref[...]
    b_lstm_b = jnp.broadcast_to(b_lstm_ref[...], (BATCH, 4 * HID))
    w_pool_r = w_pool_r_ref[...]
    b_pool_r_b = jnp.broadcast_to(b_pool_r_ref[...], (BATCH * NUM_H, HID))
    w_pool_c_p = w_pool_c_p_ref[...]
    w_pool_c_h = w_pool_c_h_ref[...]
    b_pool_c_b = jnp.broadcast_to(b_pool_c_ref[...], (BATCH, HID))
    w_h2p1_h = w_h2p1_h_ref[...]
    w_h2p1_g = w_h2p1_g_ref[...]
    w_mu = w_mu_ref[...]
    w_md = w_md_ref[...]
    b_md_b = jnp.broadcast_to(b_md_ref[...], (BATCH, HID))
    w_mp = w_mp_ref[...]
    b_mp_b = jnp.broadcast_to(b_mp_ref[...], (BATCH, HID))
    dsel = dsel_ref[...]
    pool_mat = pool_mat_ref[...]

    # loop-invariant goal projection (prologue K=2 broadcast-FMAs, off the chain)
    rel_goal_proj = (rel_goal[:, 0:1] * w_h2p1_g[0:1, :]
                     + rel_goal[:, 1:2] * w_h2p1_g[1:2, :]
                     + jnp.broadcast_to(b_h2p1_ref[...], (BATCH, HID)))

    # step-0 seeds (prologue, off the chain):
    #   decoder contribution from output_0 = traj_rel[obs_len-1]
    output0 = traj_rel_ref[OBS_LEN - 1]                            # (B, 2)
    dec_out_contrib = (output0[:, 0:1] * w_dec_out[0:1, :]
                       + output0[:, 1:2] * w_dec_out[1:2, :])      # (B, 16)
    #   pooling position embedding accumulator pos_emb_t = curr_pos_abs_t @ w_pool_r
    pos_emb = (curr_pos_abs[:, 0:1] * w_pool_r[0:1, :]
               + curr_pos_abs[:, 1:2] * w_pool_r[1:2, :])          # (B, 16)

    pred_lstm_hidden = enc_hist
    pred_lstm_c = jnp.zeros((BATCH, HID), jnp.float32)
    lstm_state_context = jnp.zeros((BATCH, HID), jnp.float32)

    h_list = []

    # ---------------- autoregressive decode (hot path, Python-unrolled) ----------------
    for _ in range(PRED_LEN):
        # inputLayer_decoder on [context, output]: concat eliminated via split matmul.
        # The `output` (= previous mu) term is carried pre-folded as h_{t-1} @ W_md.
        # dropout p=0.0 == identity; .detach() is a no-op for the forward pass.
        input_embedded = jnp.maximum(
            jnp.dot(lstm_state_context, w_dec_ctx, preferred_element_type=jnp.float32)
            + dec_out_contrib + b_dec_b, 0.0)                      # (B, 16)

        # nn.LSTMCell, split ih/hh matmuls (no lane concat on the dependent chain);
        # PyTorch gate order: i, f, g, o.  One sigmoid + one tanh over the full gates.
        gates = (jnp.dot(input_embedded, w_ih, preferred_element_type=jnp.float32)
                 + jnp.dot(pred_lstm_hidden, w_hh, preferred_element_type=jnp.float32)
                 + b_lstm_b)                                       # (B, 64)
        sig = jax.nn.sigmoid(gates)
        th = jnp.tanh(gates)
        i_g = sig[:, 0 * HID:1 * HID]
        f_g = sig[:, 1 * HID:2 * HID]
        g_g = th[:, 2 * HID:3 * HID]
        o_g = sig[:, 3 * HID:4 * HID]
        pred_lstm_c = f_g * pred_lstm_c + i_g * g_g
        pred_lstm_hidden = o_g * jnp.tanh(pred_lstm_c)

        # Pooling_net (ar_model=True)
        # TODO(synk): exact Pooling_net internals are external; stand-in = ReLU embed of
        # relative offsets, neighbor-masked mean (baked into pool_mat), fused with hidden.
        # Associativity: (dsel @ pos) @ W == dsel @ (pos @ W); pos @ W is the pos_emb
        # accumulator, so this branch only depends on h_{t-1} and overlaps the LSTM.
        e = jnp.maximum(
            jnp.dot(dsel, pos_emb, preferred_element_type=jnp.float32) + b_pool_r_b,
            0.0)                                                                 # (B*N, 16)
        pooled = jnp.dot(pool_mat, e, preferred_element_type=jnp.float32)        # (B, 16)
        lstm_state_context = jnp.maximum(
            jnp.dot(pooled, w_pool_c_p, preferred_element_type=jnp.float32)
            + jnp.dot(pred_lstm_hidden, w_pool_c_h, preferred_element_type=jnp.float32)
            + b_pool_c_b, 0.0)                                                   # (B, 16)

        concat_output = pred_lstm_hidden + lstm_state_context
        h = jnp.maximum(
            jnp.dot(concat_output, w_h2p1_h, preferred_element_type=jnp.float32)
            + rel_goal_proj, 0.0)                                                # (B, 16)
        h_list.append(h)

        # mean_pred=True -> output_pred == mu == h @ w_mu + b_mu exactly.  Fold it into
        # next step's two consumers instead of materialising it on the critical cycle:
        #   decoder `output` term  ->  h @ (w_mu @ w_dec_out) + b_mu @ w_dec_out
        #   curr_pos_abs update    ->  pos_emb += h @ (w_mu @ w_pool_r) + b_mu @ w_pool_r
        dec_out_contrib = jnp.dot(h, w_md, preferred_element_type=jnp.float32) + b_md_b
        pos_emb = pos_emb + jnp.dot(h, w_mp, preferred_element_type=jnp.float32) + b_mp_b

    # ---------------- epilogue (off the chain) ----------------
    # All 12 output_pred = h_t @ w_mu + b_mu as one stacked matmul + one full store.
    h_stack = jnp.concatenate(h_list, axis=0)                      # (PRED_LEN*B, 16)
    mu_all = (jnp.dot(h_stack, w_mu, preferred_element_type=jnp.float32)
              + jnp.broadcast_to(b_mu_ref[...], (PRED_LEN * BATCH, 2)))
    pred_ref[...] = mu_all.reshape(PRED_LEN, BATCH, 2)

    # nll == 0 for mean_pred=True / use_robot_model=False:
    # sample_noise == 0 -> output_pred == mu -> (mu - output_pred)^2 term vanishes,
    # and there is no extra log-scale / entropy term in the original accumulation.
    nll_ref[...] = jnp.zeros((BATCH, 1), jnp.float32)


def make_params(key):
    """Deterministic synthetic parameters (shapes from __init__), pre-transposed."""
    ks = jax.random.split(key, 20)
    s = 0.1

    def w(k, shape):
        return jax.random.normal(k, shape, jnp.float32) * s

    def b(k, n):
        return jax.random.normal(k, (1, n), jnp.float32) * s

    return dict(
        w_enc_in=w(ks[0], (2, HID)),        b_enc_in=b(ks[1], HID),
        w_enc_h=w(ks[2], (HID, HID)),       b_enc_h=b(ks[3], HID),
        w_dec=w(ks[4], (HID + 2, HID)),     b_dec=b(ks[5], HID),
        w_ih=w(ks[6], (HID, 4 * HID)),      b_ih=b(ks[7], 4 * HID),
        w_hh=w(ks[8], (HID, 4 * HID)),      b_hh=b(ks[9], 4 * HID),
        w_pool_r=w(ks[10], (2, HID)),       b_pool_r=b(ks[11], HID),
        w_pool_c=w(ks[12], (2 * HID, HID)), b_pool_c=b(ks[13], HID),
        w_h2p1=w(ks[14], (HID + 2, HID)),   b_h2p1=b(ks[15], HID),
        w_h2p2=w(ks[16], (HID, 4)),         b_h2p2=b(ks[17], 4),
    )


def fuse_params(p):
    """One-time host-side prep: split concat matmuls, pre-sum LSTM biases, keep mu
    columns, and fold w_mu into its next-step consumers (W_md, W_mp)."""
    w_mu = p['w_h2p2'][:, 0:2]
    b_mu = p['b_h2p2'][:, 0:2]
    w_dec_out = p['w_dec'][HID:, :]
    w_pool_r = p['w_pool_r']
    return dict(
        w_enc_in=p['w_enc_in'], b_enc_in=p['b_enc_in'],
        w_enc_h=p['w_enc_h'], b_enc_h=p['b_enc_h'],
        w_dec_ctx=p['w_dec'][:HID, :], w_dec_out=w_dec_out, b_dec=p['b_dec'],
        w_ih=p['w_ih'], w_hh=p['w_hh'], b_lstm=p['b_ih'] + p['b_hh'],
        w_pool_r=w_pool_r, b_pool_r=p['b_pool_r'],
        w_pool_c_p=p['w_pool_c'][:HID, :], w_pool_c_h=p['w_pool_c'][HID:, :],
        b_pool_c=p['b_pool_c'],
        w_h2p1_h=p['w_h2p1'][:HID, :], w_h2p1_g=p['w_h2p1'][HID:, :], b_h2p1=p['b_h2p1'],
        w_mu=w_mu, b_mu=b_mu,
        w_md=w_mu @ w_dec_out, b_md=b_mu @ w_dec_out,
        w_mp=w_mu @ w_pool_r, b_mp=b_mu @ w_pool_r,
    )


def build_static_selectors(nei_index):
    """Glue: build the static relative-position selector and the masked-mean pooling
    matrix (nei_index is constant across the AR loop, so this stays outside the kernel).
    Self rows could be dropped (they are zeroed by pool_mat) if SAMPLE_BATCH is scaled up."""
    dsel = np.zeros((BATCH * NUM_H, BATCH), np.float32)
    for b_ in range(BATCH):
        s = b_ // NUM_H
        for j in range(NUM_H):
            r = b_ * NUM_H + j
            dsel[r, b_] += 1.0                     # self position
            dsel[r, s * NUM_H + j] -= 1.0          # neighbor position
    mask = np.asarray(nei_index, np.float32)       # (B, NUM_H)
    denom = mask.sum(axis=1, keepdims=True) + 1e-6
    pool_mat = np.zeros((BATCH, BATCH * NUM_H), np.float32)
    for b_ in range(BATCH):
        for j in range(NUM_H):
            pool_mat[b_, b_ * NUM_H + j] = mask[b_, j] / denom[b_, 0]
    return jnp.asarray(dsel), jnp.asarray(pool_mat)


@jax.jit
def trajectory_generator_ar_goal(traj_rel, obs_traj_pos, sample_goal,
                                 dsel, pool_mat, kp):
    vm = pl.BlockSpec(memory_space=pltpu.MemorySpace.VMEM)
    ins = [traj_rel, obs_traj_pos, sample_goal, dsel, pool_mat,
           kp['w_enc_in'], kp['b_enc_in'], kp['w_enc_h'], kp['b_enc_h'],
           kp['w_dec_ctx'], kp['w_dec_out'], kp['b_dec'],
           kp['w_ih'], kp['w_hh'], kp['b_lstm'],
           kp['w_pool_r'], kp['b_pool_r'],
           kp['w_pool_c_p'], kp['w_pool_c_h'], kp['b_pool_c'],
           kp['w_h2p1_h'], kp['w_h2p1_g'], kp['b_h2p1'],
           kp['w_mu'], kp['b_mu'],
           kp['w_md'], kp['b_md'], kp['w_mp'], kp['b_mp']]
    # Footprint is a few KB -> whole-array VMEM specs, no grid/tiling (any grid over
    # the serial recurrence would just add per-step overhead to a latency-bound kernel).
    # TODO(synk): on v7x the SAMPLE_BATCH-independent rollouts could be split across the
    # two TensorCores once BATCH >= 16 (8 sublanes per core); at this demo size it buys
    # nothing because the 12-step serial chain is pure latency.
    cost = pl.CostEstimate(flops=800_000, transcendentals=14_000, bytes_accessed=20_480)
    pred, nll_rows = pl.pallas_call(
        trajectory_ar_goal_kernel,
        out_shape=(jax.ShapeDtypeStruct((PRED_LEN, BATCH, 2), jnp.float32),
                   jax.ShapeDtypeStruct((BATCH, 1), jnp.float32)),
        in_specs=[vm] * len(ins),
        out_specs=(vm, vm),
        cost_estimate=cost,
    )(*ins)
    return pred, nll_rows


if __name__ == "__main__":
    key = jax.random.PRNGKey(0)
    k_p, k_tr, k_pos, k_goal = jax.random.split(key, 4)

    params = make_params(k_p)
    kparams = fuse_params(params)

    # forward inputs
    traj_rel = jax.random.normal(k_tr, (OBS_LEN, BATCH, 2), jnp.float32) * 0.5
    obs_traj_pos = jax.random.normal(k_pos, (OBS_LEN, BATCH, 2), jnp.float32)
    sample_goal = jax.random.normal(k_goal, (BATCH, 2), jnp.float32) * 2.0

    # neighbor mask: everyone except self within each sample
    nei_index = np.ones((BATCH, NUM_H), np.float32)
    for b_ in range(BATCH):
        nei_index[b_, b_ % NUM_H] = 0.0
    dsel, pool_mat = build_static_selectors(nei_index)

    # robotID: last agent of each sample
    robot_ids = jnp.arange(NUM_H - 1, BATCH, NUM_H)

    pred_traj_rel, nll_rows = trajectory_generator_ar_goal(
        traj_rel, obs_traj_pos, sample_goal, dsel, pool_mat, kparams)
    jax.block_until_ready(pred_traj_rel)
    jax.block_until_ready(nll_rows)

    # mirror the module's return signature: (pred_traj_rel, clamped_action, nll)
    clamped_action = None                      # use_robot_model=False -> clamped_action = z
    nll = nll_rows[robot_ids, 0]               # per-robot accumulated nll (== 0 for mean_pred)

    assert pred_traj_rel.shape == (PRED_LEN, BATCH, 2)
    assert nll.shape == (SAMPLE_BATCH,)
    assert bool(jnp.all(jnp.isfinite(pred_traj_rel)))
    assert bool(jnp.all(nll == 0.0))
    print("KERNEL_OK")
</pallas_src>

<mosaic_0001>
module attributes {stable_mosaic.version = 11 : i64} {
  func.func @trajectory_ar_goal_kernel(%arg0: memref<8x8x2xf32, #tpu.memory_space<vmem>>, %arg1: memref<8x8x2xf32, #tpu.memory_space<vmem>>, %arg2: memref<8x2xf32, #tpu.memory_space<vmem>>, %arg3: memref<16x8xf32, #tpu.memory_space<vmem>>, %arg4: memref<8x16xf32, #tpu.memory_space<vmem>>, %arg5: memref<2x16xf32, #tpu.memory_space<vmem>>, %arg6: memref<1x16xf32, #tpu.memory_space<vmem>>, %arg7: memref<16x16xf32, #tpu.memory_space<vmem>>, %arg8: memref<1x16xf32, #tpu.memory_space<vmem>>, %arg9: memref<16x16xf32, #tpu.memory_space<vmem>>, %arg10: memref<2x16xf32, #tpu.memory_space<vmem>>, %arg11: memref<1x16xf32, #tpu.memory_space<vmem>>, %arg12: memref<16x64xf32, #tpu.memory_space<vmem>>, %arg13: memref<16x64xf32, #tpu.memory_space<vmem>>, %arg14: memref<1x64xf32, #tpu.memory_space<vmem>>, %arg15: memref<2x16xf32, #tpu.memory_space<vmem>>, %arg16: memref<1x16xf32, #tpu.memory_space<vmem>>, %arg17: memref<16x16xf32, #tpu.memory_space<vmem>>, %arg18: memref<16x16xf32, #tpu.memory_space<vmem>>, %arg19: memref<1x16xf32, #tpu.memory_space<vmem>>, %arg20: memref<16x16xf32, #tpu.memory_space<vmem>>, %arg21: memref<2x16xf32, #tpu.memory_space<vmem>>, %arg22: memref<1x16xf32, #tpu.memory_space<vmem>>, %arg23: memref<16x2xf32, #tpu.memory_space<vmem>>, %arg24: memref<1x2xf32, #tpu.memory_space<vmem>>, %arg25: memref<16x16xf32, #tpu.memory_space<vmem>>, %arg26: memref<1x16xf32, #tpu.memory_space<vmem>>, %arg27: memref<16x16xf32, #tpu.memory_space<vmem>>, %arg28: memref<1x16xf32, #tpu.memory_space<vmem>>, %arg29: memref<12x8x2xf32, #tpu.memory_space<vmem>>, %arg30: memref<8x1xf32, #tpu.memory_space<vmem>>) attributes {dimension_semantics = [], scalar_prefetch = 0 : i64, scratch_operands = 0 : i64, tpu.core_type = #tpu.core_type<tc>} {
    %c0 = arith.constant 0 : index
    %c0_0 = arith.constant 0 : index
    %c0_1 = arith.constant 0 : index
    %0 = vector.load %arg0[%c0, %c0_0, %c0_1] : memref<8x8x2xf32, #tpu.memory_space<vmem>>, vector<8x8x2xf32>
    %c0_2 = arith.constant 0 : index
    %c0_3 = arith.constant 0 : index
    %1 = vector.load %arg5[%c0_2, %c0_3] : memref<2x16xf32, #tpu.memory_space<vmem>>, vector<2x16xf32>
    %2 = vector.extract_strided_slice %0 {offsets = [0, 0, 0], sizes = [8, 8, 1], strides = [1, 1, 1]} : vector<8x8x2xf32> to vector<8x8x1xf32>
    %3 = vector.extract_strided_slice %1 {offsets = [0, 0], sizes = [1, 16], strides = [1, 1]} : vector<2x16xf32> to vector<1x16xf32>
    %4 = vector.shape_cast %3 : vector<1x16xf32> to vector<1x1x16xf32>
    %5 = vector.broadcast %2 : vector<8x8x1xf32> to vector<8x8x16xf32>
    %6 = vector.broadcast %4 : vector<1x1x16xf32> to vector<8x8x16xf32>
    %7 = arith.mulf %5, %6 : vector<8x8x16xf32>
    %8 = vector.extract_strided_slice %0 {offsets = [0, 0, 1], sizes = [8, 8, 1], strides = [1, 1, 1]} : vector<8x8x2xf32> to vector<8x8x1xf32>
    %9 = vector.extract_strided_slice %1 {offsets = [1, 0], sizes = [1, 16], strides = [1, 1]} : vector<2x16xf32> to vector<1x16xf32>
    %10 = vector.shape_cast %9 : vector<1x16xf32> to vector<1x1x16xf32>
    %11 = vector.broadcast %8 : vector<8x8x1xf32> to vector<8x8x16xf32>
    %12 = vector.broadcast %10 : vector<1x1x16xf32> to vector<8x8x16xf32>
    %13 = arith.mulf %11, %12 : vector<8x8x16xf32>
    %14 = arith.addf %7, %13 : vector<8x8x16xf32>
    %c0_4 = arith.constant 0 : index
    %c0_5 = arith.constant 0 : index
    %15 = vector.load %arg6[%c0_4, %c0_5] : memref<1x16xf32, #tpu.memory_space<vmem>>, vector<1x16xf32>
    %16 = vector.shape_cast %15 : vector<1x16xf32> to vector<1x1x16xf32>
    %17 = vector.broadcast %16 : vector<1x1x16xf32> to vector<8x8x16xf32>
    %18 = arith.addf %14, %17 : vector<8x8x16xf32>
    %cst = arith.constant 0.000000e+00 : f32
    %19 = vector.broadcast %cst : f32 to vector<8x8x16xf32>
    %20 = arith.maximumf %18, %19 : vector<8x8x16xf32>
    %cst_6 = arith.constant dense<0.000000e+00> : vector<8x16xf32>
    %21 = vector.multi_reduction <add>, %20, %cst_6 [0] : vector<8x8x16xf32> to vector<8x16xf32>
    %cst_7 = arith.constant 1.250000e-01 : f32
    %22 = vector.broadcast %cst_7 : f32 to vector<8x16xf32>
    %23 = arith.mulf %21, %22 : vector<8x16xf32>
    %c0_8 = arith.constant 0 : index
    %c0_9 = arith.constant 0 : index
    %24 = vector.load %arg7[%c0_8, %c0_9] : memref<16x16xf32, #tpu.memory_space<vmem>>, vector<16x16xf32>
    %cst_10 = arith.constant dense<0.000000e+00> : vector<8x16xf32>
    %25 = tpu.matmul %23, %24, %cst_10 {dimension_numbers = #tpu.dot_dimension_numbers<[1], [0], [0], [1], [0, 0, 1, 1], [], []>} : vector<8x16xf32>, vector<16x16xf32>, vector<8x16xf32> -> vector<8x16xf32>
    %c0_11 = arith.constant 0 : index
    %c0_12 = arith.constant 0 : index
    %26 = vector.load %arg8[%c0_11, %c0_12] : memref<1x16xf32, #tpu.memory_space<vmem>>, vector<1x16xf32>
    %27 = vector.broadcast %26 : vector<1x16xf32> to vector<8x16xf32>
    %28 = arith.addf %25, %27 : vector<8x16xf32>
    %29 = math.tanh %28 : vector<8x16xf32>
    %c7 = arith.constant 7 : index
    %c0_13 = arith.constant 0 : index
    %c0_14 = arith.constant 0 : index
    %30 = vector.load %arg1[%c7, %c0_13, %c0_14] : memref<8x8x2xf32, #tpu.memory_space<vmem>>, vector<1x8x2xf32>
    %31 = vector.shape_cast %30 : vector<1x8x2xf32> to vector<8x2xf32>
    %c0_15 = arith.constant 0 : index
    %c0_16 = arith.constant 0 : index
    %32 = vector.load %arg2[%c0_15, %c0_16] : memref<8x2xf32, #tpu.memory_space<vmem>>, vector<8x2xf32>
    %33 = arith.subf %32, %31 : vector<8x2xf32>
    %c0_17 = arith.constant 0 : index
    %c0_18 = arith.constant 0 : index
    %34 = vector.load %arg9[%c0_17, %c0_18] : memref<16x16xf32, #tpu.memory_space<vmem>>, vector<16x16xf32>
    %c0_19 = arith.constant 0 : index
    %c0_20 = arith.constant 0 : index
    %35 = vector.load %arg10[%c0_19, %c0_20] : memref<2x16xf32, #tpu.memory_space<vmem>>, vector<2x16xf32>
    %c0_21 = arith.constant 0 : index
    %c0_22 = arith.constant 0 : index
    %36 = vector.load %arg11[%c0_21, %c0_22] : memref<1x16xf32, #tpu.memory_space<vmem>>, vector<1x16xf32>
    %37 = vector.shape_cast %36 : vector<1x16xf32> to vector<1x16xf32>
    %38 = vector.broadcast %37 : vector<1x16xf32> to vector<8x16xf32>
    %c0_23 = arith.constant 0 : index
    %c0_24 = arith.constant 0 : index
    %39 = vector.load %arg12[%c0_23, %c0_24] : memref<16x64xf32, #tpu.memory_space<vmem>>, vector<16x64xf32>
    %c0_25 = arith.constant 0 : index
    %c0_26 = arith.constant 0 : index
    %40 = vector.load %arg13[%c0_25, %c0_26] : memref<16x64xf32, #tpu.memory_space<vmem>>, vector<16x64xf32>
    %c0_27 = arith.constant 0 : index
    %c0_28 = arith.constant 0 : index
    %41 = vector.load %arg14[%c0_27, %c0_28] : memref<1x64xf32, #tpu.memory_space<vmem>>, vector<1x64xf32>
    %42 = vector.shape_cast %41 : vector<1x64xf32> to vector<1x64xf32>
    %43 = vector.broadcast %42 : vector<1x64xf32> to vector<8x64xf32>
    %c0_29 = arith.constant 0 : index
    %c0_30 = arith.constant 0 : index
    %44 = vector.load %arg15[%c0_29, %c0_30] : memref<2x16xf32, #tpu.memory_space<vmem>>, vector<2x16xf32>
    %c0_31 = arith.constant 0 : index
    %c0_32 = arith.constant 0 : index
    %45 = vector.load %arg16[%c0_31, %c0_32] : memref<1x16xf32, #tpu.memory_space<vmem>>, vector<1x16xf32>
    %46 = vector.shape_cast %45 : vector<1x16xf32> to vector<1x16xf32>
    %47 = vector.broadcast %46 : vector<1x16xf32> to vector<16x16xf32>
    %c0_33 = arith.constant 0 : index
    %c0_34 = arith.constant 0 : index
    %48 = vector.load %arg17[%c0_33, %c0_34] : memref<16x16xf32, #tpu.memory_space<vmem>>, vector<16x16xf32>
    %c0_35 = arith.constant 0 : index
    %c0_36 = arith.constant 0 : index
    %49 = vector.load %arg18[%c0_35, %c0_36] : memref<16x16xf32, #tpu.memory_space<vmem>>, vector<16x16xf32>
    %c0_37 = arith.constant 0 : index
    %c0_38 = arith.constant 0 : index
    %50 = vector.load %arg19[%c0_37, %c0_38] : memref<1x16xf32, #tpu.memory_space<vmem>>, vector<1x16xf32>
    %51 = vector.shape_cast %50 : vector<1x16xf32> to vector<1x16xf32>
    %52 = vector.broadcast %51 : vector<1x16xf32> to vector<8x16xf32>
    %c0_39 = arith.constant 0 : index
    %c0_40 = arith.constant 0 : index
    %53 = vector.load %arg20[%c0_39, %c0_40] : memref<16x16xf32, #tpu.memory_space<vmem>>, vector<16x16xf32>
    %c0_41 = arith.constant 0 : index
    %c0_42 = arith.constant 0 : index
    %54 = vector.load %arg21[%c0_41, %c0_42] : memref<2x16xf32, #tpu.memory_space<vmem>>, vector<2x16xf32>
    %c0_43 = arith.constant 0 : index
    %c0_44 = arith.constant 0 : index
    %55 = vector.load %arg23[%c0_43, %c0_44] : memref<16x2xf32, #tpu.memory_space<vmem>>, vector<16x2xf32>
    %c0_45 = arith.constant 0 : index
    %c0_46 = arith.constant 0 : index
    %56 = vector.load %arg25[%c0_45, %c0_46] : memref<16x16xf32, #tpu.memory_space<vmem>>, vector<16x16xf32>
    %c0_47 = arith.constant 0 : index
    %c0_48 = arith.constant 0 : index
    %57 = vector.load %arg26[%c0_47, %c0_48] : memref<1x16xf32, #tpu.memory_space<vmem>>, vector<1x16xf32>
    %58 = vector.shape_cast %57 : vector<1x16xf32> to vector<1x16xf32>
    %59 = vector.broadcast %58 : vector<1x16xf32> to vector<8x16xf32>
    %c0_49 = arith.constant 0 : index
    %c0_50 = arith.constant 0 : index
    %60 = vector.load %arg27[%c0_49, %c0_50] : memref<16x16xf32, #tpu.memory_space<vmem>>, vector<16x16xf32>
    %c0_51 = arith.constant 0 : index
    %c0_52 = arith.constant 0 : index
    %61 = vector.load %arg28[%c0_51, %c0_52] : memref<1x16xf32, #tpu.memory_space<vmem>>, vector<1x16xf32>
    %62 = vector.shape_cast %61 : vector<1x16xf32> to vector<1x16xf32>
    %63 = vector.broadcast %62 : vector<1x16xf32> to vector<8x16xf32>
    %c0_53 = arith.constant 0 : index
    %c0_54 = arith.constant 0 : index
    %64 = vector.load %arg3[%c0_53, %c0_54] : memref<16x8xf32, #tpu.memory_space<vmem>>, vector<16x8xf32>
    %c0_55 = arith.constant 0 : index
    %c0_56 = arith.constant 0 : index
    %65 = vector.load %arg4[%c0_55, %c0_56] : memref<8x16xf32, #tpu.memory_space<vmem>>, vector<8x16xf32>
    %66 = vector.extract_strided_slice %33 {offsets = [0, 0], sizes = [8, 1], strides = [1, 1]} : vector<8x2xf32> to vector<8x1xf32>
    %67 = vector.extract_strided_slice %54 {offsets = [0, 0], sizes = [1, 16], strides = [1, 1]} : vector<2x16xf32> to vector<1x16xf32>
    %68 = vector.broadcast %66 : vector<8x1xf32> to vector<8x16xf32>
    %69 = vector.broadcast %67 : vector<1x16xf32> to vector<8x16xf32>
    %70 = arith.mulf %68, %69 : vector<8x16xf32>
    %71 = vector.extract_strided_slice %33 {offsets = [0, 1], sizes = [8, 1], strides = [1, 1]} : vector<8x2xf32> to vector<8x1xf32>
    %72 = vector.extract_strided_slice %54 {offsets = [1, 0], sizes = [1, 16], strides = [1, 1]} : vector<2x16xf32> to vector<1x16xf32>
    %73 = vector.broadcast %71 : vector<8x1xf32> to vector<8x16xf32>
    %74 = vector.broadcast %72 : vector<1x16xf32> to vector<8x16xf32>
    %75 = arith.mulf %73, %74 : vector<8x16xf32>
    %76 = arith.addf %70, %75 : vector<8x16xf32>
    %c0_57 = arith.constant 0 : index
    %c0_58 = arith.constant 0 : index
    %77 = vector.load %arg22[%c0_57, %c0_58] : memref<1x16xf32, #tpu.memory_space<vmem>>, vector<1x16xf32>
    %78 = vector.shape_cast %77 : vector<1x16xf32> to vector<1x16xf32>
    %79 = vector.broadcast %78 : vector<1x16xf32> to vector<8x16xf32>
    %80 = arith.addf %76, %79 : vector<8x16xf32>
    %c7_59 = arith.constant 7 : index
    %c0_60 = arith.constant 0 : index
    %c0_61 = arith.constant 0 : index
    %81 = vector.load %arg0[%c7_59, %c0_60, %c0_61] : memref<8x8x2xf32, #tpu.memory_space<vmem>>, vector<1x8x2xf32>
    %82 = vector.shape_cast %81 : vector<1x8x2xf32> to vector<8x2xf32>
    %83 = vector.extract_strided_slice %82 {offsets = [0, 0], sizes = [8, 1], strides = [1, 1]} : vector<8x2xf32> to vector<8x1xf32>
    %84 = vector.extract_strided_slice %35 {offsets = [0, 0], sizes = [1, 16], strides = [1, 1]} : vector<2x16xf32> to vector<1x16xf32>
    %85 = vector.broadcast %83 : vector<8x1xf32> to vector<8x16xf32>
    %86 = vector.broadcast %84 : vector<1x16xf32> to vector<8x16xf32>
    %87 = arith.mulf %85, %86 : vector<8x16xf32>
    %88 = vector.extract_strided_slice %82 {offsets = [0, 1], sizes = [8, 1], strides = [1, 1]} : vector<8x2xf32> to vector<8x1xf32>
    %89 = vector.extract_strided_slice %35 {offsets = [1, 0], sizes = [1, 16], strides = [1, 1]} : vector<2x16xf32> to vector<1x16xf32>
    %90 = vector.broadcast %88 : vector<8x1xf32> to vector<8x16xf32>
    %91 = vector.broadcast %89 : vector<1x16xf32> to vector<8x16xf32>
    %92 = arith.mulf %90, %91 : vector<8x16xf32>
    %93 = arith.addf %87, %92 : vector<8x16xf32>
    %94 = vector.extract_strided_slice %31 {offsets = [0, 0], sizes = [8, 1], strides = [1, 1]} : vector<8x2xf32> to vector<8x1xf32>
    %95 = vector.extract_strided_slice %44 {offsets = [0, 0], sizes = [1, 16], strides = [1, 1]} : vector<2x16xf32> to vector<1x16xf32>
    %96 = vector.broadcast %94 : vector<8x1xf32> to vector<8x16xf32>
    %97 = vector.broadcast %95 : vector<1x16xf32> to vector<8x16xf32>
    %98 = arith.mulf %96, %97 : vector<8x16xf32>
    %99 = vector.extract_strided_slice %31 {offsets = [0, 1], sizes = [8, 1], strides = [1, 1]} : vector<8x2xf32> to vector<8x1xf32>
    %100 = vector.extract_strided_slice %44 {offsets = [1, 0], sizes = [1, 16], strides = [1, 1]} : vector<2x16xf32> to vector<1x16xf32>
    %101 = vector.broadcast %99 : vector<8x1xf32> to vector<8x16xf32>
    %102 = vector.broadcast %100 : vector<1x16xf32> to vector<8x16xf32>
    %103 = arith.mulf %101, %102 : vector<8x16xf32>
    %104 = arith.addf %98, %103 : vector<8x16xf32>
    %cst_62 = arith.constant 0.000000e+00 : f32
    %105 = vector.broadcast %cst_62 : f32 to vector<8x16xf32>
    %cst_63 = arith.constant 0.000000e+00 : f32
    %106 = vector.broadcast %cst_63 : f32 to vector<8x16xf32>
    %cst_64 = arith.constant dense<0.000000e+00> : vector<8x16xf32>
    %107 = tpu.matmul %106, %34, %cst_64 {dimension_numbers = #tpu.dot_dimension_numbers<[1], [0], [0], [1], [0, 0, 1, 1], [], []>} : vector<8x16xf32>, vector<16x16xf32>, vector<8x16xf32> -> vector<8x16xf32>
    %108 = arith.addf %107, %93 : vector<8x16xf32>
    %109 = arith.addf %108, %38 : vector<8x16xf32>
    %cst_65 = arith.constant 0.000000e+00 : f32
    %110 = vector.broadcast %cst_65 : f32 to vector<8x16xf32>
    %111 = arith.maximumf %109, %110 : vector<8x16xf32>
    %cst_66 = arith.constant dense<0.000000e+00> : vector<8x64xf32>
    %112 = tpu.matmul %111, %39, %cst_66 {dimension_numbers = #tpu.dot_dimension_numbers<[1], [0], [0], [1], [0, 0, 1, 1], [], []>} : vector<8x16xf32>, vector<16x64xf32>, vector<8x64xf32> -> vector<8x64xf32>
    %cst_67 = arith.constant dense<0.000000e+00> : vector<8x64xf32>
    %113 = tpu.matmul %29, %40, %cst_67 {dimension_numbers = #tpu.dot_dimension_numbers<[1], [0], [0], [1], [0, 0, 1, 1], [], []>} : vector<8x16xf32>, vector<16x64xf32>, vector<8x64xf32> -> vector<8x64xf32>
    %114 = arith.addf %112, %113 : vector<8x64xf32>
    %115 = arith.addf %114, %43 : vector<8x64xf32>
    %116 = arith.negf %115 : vector<8x64xf32>
    %117 = math.exp %116 : vector<8x64xf32>
    %cst_68 = arith.constant 1.000000e+00 : f32
    %118 = vector.broadcast %cst_68 : f32 to vector<8x64xf32>
    %119 = arith.addf %118, %117 : vector<8x64xf32>
    %120 = arith.divf %118, %119 : vector<8x64xf32>
    %121 = math.tanh %115 : vector<8x64xf32>
    %122 = vector.extract_strided_slice %120 {offsets = [0, 0], sizes = [8, 16], strides = [1, 1]} : vector<8x64xf32> to vector<8x16xf32>
    %123 = vector.extract_strided_slice %120 {offsets = [0, 16], sizes = [8, 16], strides = [1, 1]} : vector<8x64xf32> to vector<8x16xf32>
    %124 = vector.extract_strided_slice %121 {offsets = [0, 32], sizes = [8, 16], strides = [1, 1]} : vector<8x64xf32> to vector<8x16xf32>
    %125 = vector.extract_strided_slice %120 {offsets = [0, 48], sizes = [8, 16], strides = [1, 1]} : vector<8x64xf32> to vector<8x16xf32>
    %126 = arith.mulf %123, %105 : vector<8x16xf32>
    %127 = arith.mulf %122, %124 : vector<8x16xf32>
    %128 = arith.addf %126, %127 : vector<8x16xf32>
    %129 = math.tanh %128 : vector<8x16xf32>
    %130 = arith.mulf %125, %129 : vector<8x16xf32>
    %cst_69 = arith.constant dense<0.000000e+00> : vector<16x16xf32>
    %131 = tpu.matmul %64, %104, %cst_69 {dimension_numbers = #tpu.dot_dimension_numbers<[1], [0], [0], [1], [0, 0, 1, 1], [], []>} : vector<16x8xf32>, vector<8x16xf32>, vector<16x16xf32> -> vector<16x16xf32>
    %132 = arith.addf %131, %47 : vector<16x16xf32>
    %cst_70 = arith.constant 0.000000e+00 : f32
    %133 = vector.broadcast %cst_70 : f32 to vector<16x16xf32>
    %134 = arith.maximumf %132, %133 : vector<16x16xf32>
    %cst_71 = arith.constant dense<0.000000e+00> : vector<8x16xf32>
    %135 = tpu.matmul %65, %134, %cst_71 {dimension_numbers = #tpu.dot_dimension_numbers<[1], [0], [0], [1], [0, 0, 1, 1], [], []>} : vector<8x16xf32>, vector<16x16xf32>, vector<8x16xf32> -> vector<8x16xf32>
    %cst_72 = arith.constant dense<0.000000e+00> : vector<8x16xf32>
    %136 = tpu.matmul %135, %48, %cst_72 {dimension_numbers = #tpu.dot_dimension_numbers<[1], [0], [0], [1], [0, 0, 1, 1], [], []>} : vector<8x16xf32>, vector<16x16xf32>, vector<8x16xf32> -> vector<8x16xf32>
    %cst_73 = arith.constant dense<0.000000e+00> : vector<8x16xf32>
    %137 = tpu.matmul %130, %49, %cst_73 {dimension_numbers = #tpu.dot_dimension_numbers<[1], [0], [0], [1], [0, 0, 1, 1], [], []>} : vector<8x16xf32>, vector<16x16xf32>, vector<8x16xf32> -> vector<8x16xf32>
    %138 = arith.addf %136, %137 : vector<8x16xf32>
    %139 = arith.addf %138, %52 : vector<8x16xf32>
    %cst_74 = arith.constant 0.000000e+00 : f32
    %140 = vector.broadcast %cst_74 : f32 to vector<8x16xf32>
    %141 = arith.maximumf %139, %140 : vector<8x16xf32>
    %142 = arith.addf %130, %141 : vector<8x16xf32>
    %cst_75 = arith.constant dense<0.000000e+00> : vector<8x16xf32>
    %143 = tpu.matmul %142, %53, %cst_75 {dimension_numbers = #tpu.dot_dimension_numbers<[1], [0], [0], [1], [0, 0, 1, 1], [], []>} : vector<8x16xf32>, vector<16x16xf32>, vector<8x16xf32> -> vector<8x16xf32>
    %144 = arith.addf %143, %80 : vector<8x16xf32>
    %cst_76 = arith.constant 0.000000e+00 : f32
    %145 = vector.broadcast %cst_76 : f32 to vector<8x16xf32>
    %146 = arith.maximumf %144, %145 : vector<8x16xf32>
    %cst_77 = arith.constant dense<0.000000e+00> : vector<8x16xf32>
    %147 = tpu.matmul %146, %56, %cst_77 {dimension_numbers = #tpu.dot_dimension_numbers<[1], [0], [0], [1], [0, 0, 1, 1], [], []>} : vector<8x16xf32>, vector<16x16xf32>, vector<8x16xf32> -> vector<8x16xf32>
    %148 = arith.addf %147, %59 : vector<8x16xf32>
    %cst_78 = arith.constant dense<0.000000e+00> : vector<8x16xf32>
    %149 = tpu.matmul %146, %60, %cst_78 {dimension_numbers = #tpu.dot_dimension_numbers<[1], [0], [0], [1], [0, 0, 1, 1], [], []>} : vector<8x16xf32>, vector<16x16xf32>, vector<8x16xf32> -> vector<8x16xf32>
    %150 = arith.addf %104, %149 : vector<8x16xf32>
    %151 = arith.addf %150, %63 : vector<8x16xf32>
    %cst_79 = arith.constant dense<0.000000e+00> : vector<8x16xf32>
    %152 = tpu.matmul %141, %34, %cst_79 {dimension_numbers = #tpu.dot_dimension_numbers<[1], [0], [0], [1], [0, 0, 1, 1], [], []>} : vector<8x16xf32>, vector<16x16xf32>, vector<8x16xf32> -> vector<8x16xf32>
    %153 = arith.addf %152, %148 : vector<8x16xf32>
    %154 = arith.addf %153, %38 : vector<8x16xf32>
    %cst_80 = arith.constant 0.000000e+00 : f32
    %155 = vector.broadcast %cst_80 : f32 to vector<8x16xf32>
    %156 = arith.maximumf %154, %155 : vector<8x16xf32>
    %cst_81 = arith.constant dense<0.000000e+00> : vector<8x64xf32>
    %157 = tpu.matmul %156, %39, %cst_81 {dimension_numbers = #tpu.dot_dimension_numbers<[1], [0], [0], [1], [0, 0, 1, 1], [], []>} : vector<8x16xf32>, vector<16x64xf32>, vector<8x64xf32> -> vector<8x64xf32>
    %cst_82 = arith.constant dense<0.000000e+00> : vector<8x64xf32>
    %158 = tpu.matmul %130, %40, %cst_82 {dimension_numbers = #tpu.dot_dimension_numbers<[1], [0], [0], [1], [0, 0, 1, 1], [], []>} : vector<8x16xf32>, vector<16x64xf32>, vector<8x64xf32> -> vector<8x64xf32>
    %159 = arith.addf %157, %158 : vector<8x64xf32>
    %160 = arith.addf %159, %43 : vector<8x64xf32>
    %161 = arith.negf %160 : vector<8x64xf32>
    %162 = math.exp %161 : vector<8x64xf32>
    %cst_83 = arith.constant 1.000000e+00 : f32
    %163 = vector.broadcast %cst_83 : f32 to vector<8x64xf32>
    %164 = arith.addf %163, %162 : vector<8x64xf32>
    %165 = arith.divf %163, %164 : vector<8x64xf32>
    %166 = math.tanh %160 : vector<8x64xf32>
    %167 = vector.extract_strided_slice %165 {offsets = [0, 0], sizes = [8, 16], strides = [1, 1]} : vector<8x64xf32> to vector<8x16xf32>
    %168 = vector.extract_strided_slice %165 {offsets = [0, 16], sizes = [8, 16], strides = [1, 1]} : vector<8x64xf32> to vector<8x16xf32>
    %169 = vector.extract_strided_slice %166 {offsets = [0, 32], sizes = [8, 16], strides = [1, 1]} : vector<8x64xf32> to vector<8x16xf32>
    %170 = vector.extract_strided_slice %165 {offsets = [0, 48], sizes = [8, 16], strides = [1, 1]} : vector<8x64xf32> to vector<8x16xf32>
    %171 = arith.mulf %168, %128 : vector<8x16xf32>
    %172 = arith.mulf %167, %169 : vector<8x16xf32>
    %173 = arith.addf %171, %172 : vector<8x16xf32>
    %174 = math.tanh %173 : vector<8x16xf32>
    %175 = arith.mulf %170, %174 : vector<8x16xf32>
    %cst_84 = arith.constant dense<0.000000e+00> : vector<16x16xf32>
    %176 = tpu.matmul %64, %151, %cst_84 {dimension_numbers = #tpu.dot_dimension_numbers<[1], [0], [0], [1], [0, 0, 1, 1], [], []>} : vector<16x8xf32>, vector<8x16xf32>, vector<16x16xf32> -> vector<16x16xf32>
    %177 = arith.addf %176, %47 : vector<16x16xf32>
    %cst_85 = arith.constant 0.000000e+00 : f32
    %178 = vector.broadcast %cst_85 : f32 to vector<16x16xf32>
    %179 = arith.maximumf %177, %178 : vector<16x16xf32>
    %cst_86 = arith.constant dense<0.000000e+00> : vector<8x16xf32>
    %180 = tpu.matmul %65, %179, %cst_86 {dimension_numbers = #tpu.dot_dimension_numbers<[1], [0], [0], [1], [0, 0, 1, 1], [], []>} : vector<8x16xf32>, vector<16x16xf32>, vector<8x16xf32> -> vector<8x16xf32>
    %cst_87 = arith.constant dense<0.000000e+00> : vector<8x16xf32>
    %181 = tpu.matmul %180, %48, %cst_87 {dimension_numbers = #tpu.dot_dimension_numbers<[1], [0], [0], [1], [0, 0, 1, 1], [], []>} : vector<8x16xf32>, vector<16x16xf32>, vector<8x16xf32> -> vector<8x16xf32>
    %cst_88 = arith.constant dense<0.000000e+00> : vector<8x16xf32>
    %182 = tpu.matmul %175, %49, %cst_88 {dimension_numbers = #tpu.dot_dimension_numbers<[1], [0], [0], [1], [0, 0, 1, 1], [], []>} : vector<8x16xf32>, vector<16x16xf32>, vector<8x16xf32> -> vector<8x16xf32>
    %183 = arith.addf %181, %182 : vector<8x16xf32>
    %184 = arith.addf %183, %52 : vector<8x16xf32>
    %cst_89 = arith.constant 0.000000e+00 : f32
    %185 = vector.broadcast %cst_89 : f32 to vector<8x16xf32>
    %186 = arith.maximumf %184, %185 : vector<8x16xf32>
    %187 = arith.addf %175, %186 : vector<8x16xf32>
    %cst_90 = arith.constant dense<0.000000e+00> : vector<8x16xf32>
    %188 = tpu.matmul %187, %53, %cst_90 {dimension_numbers = #tpu.dot_dimension_numbers<[1], [0], [0], [1], [0, 0, 1, 1], [], []>} : vector<8x16xf32>, vector<16x16xf32>, vector<8x16xf32> -> vector<8x16xf32>
    %189 = arith.addf %188, %80 : vector<8x16xf32>
    %cst_91 = arith.constant 0.000000e+00 : f32
    %190 = vector.broadcast %cst_91 : f32 to vector<8x16xf32>
    %191 = arith.maximumf %189, %190 : vector<8x16xf32>
    %cst_92 = arith.constant dense<0.000000e+00> : vector<8x16xf32>
    %192 = tpu.matmul %191, %56, %cst_92 {dimension_numbers = #tpu.dot_dimension_numbers<[1], [0], [0], [1], [0, 0, 1, 1], [], []>} : vector<8x16xf32>, vector<16x16xf32>, vector<8x16xf32> -> vector<8x16xf32>
    %193 = arith.addf %192, %59 : vector<8x16xf32>
    %cst_93 = arith.constant dense<0.000000e+00> : vector<8x16xf32>
    %194 = tpu.matmul %191, %60, %cst_93 {dimension_numbers = #tpu.dot_dimension_numbers<[1], [0], [0], [1], [0, 0, 1, 1], [], []>} : vector<8x16xf32>, vector<16x16xf32>, vector<8x16xf32> -> vector<8x16xf32>
    %195 = arith.addf %151, %194 : vector<8x16xf32>
    %196 = arith.addf %195, %63 : vector<8x16xf32>
    %cst_94 = arith.constant dense<0.000000e+00> : vector<8x16xf32>
    %197 = tpu.matmul %186, %34, %cst_94 {dimension_numbers = #tpu.dot_dimension_numbers<[1], [0], [0], [1], [0, 0, 1, 1], [], []>} : vector<8x16xf32>, vector<16x16xf32>, vector<8x16xf32> -> vector<8x16xf32>
    %198 = arith.addf %197, %193 : vector<8x16xf32>
    %199 = arith.addf %198, %38 : vector<8x16xf32>
    %cst_95 = arith.constant 0.000000e+00 : f32
    %200 = vector.broadcast %cst_95 : f32 to vector<8x16xf32>
    %201 = arith.maximumf %199, %200 : vector<8x16xf32>
    %cst_96 = arith.constant dense<0.000000e+00> : vector<8x64xf32>
    %202 = tpu.matmul %201, %39, %cst_96 {dimension_numbers = #tpu.dot_dimension_numbers<[1], [0], [0], [1], [0, 0, 1, 1], [], []>} : vector<8x16xf32>, vector<16x64xf32>, vector<8x64xf32> -> vector<8x64xf32>
    %cst_97 = arith.constant dense<0.000000e+00> : vector<8x64xf32>
    %203 = tpu.matmul %175, %40, %cst_97 {dimension_numbers = #tpu.dot_dimension_numbers<[1], [0], [0], [1], [0, 0, 1, 1], [], []>} : vector<8x16xf32>, vector<16x64xf32>, vector<8x64xf32> -> vector<8x64xf32>
    %204 = arith.addf %202, %203 : vector<8x64xf32>
    %205 = arith.addf %204, %43 : vector<8x64xf32>
    %206 = arith.negf %205 : vector<8x64xf32>
    %207 = math.exp %206 : vector<8x64xf32>
    %cst_98 = arith.constant 1.000000e+00 : f32
    %208 = vector.broadcast %cst_98 : f32 to vector<8x64xf32>
    %209 = arith.addf %208, %207 : vector<8x64xf32>
    %210 = arith.divf %208, %209 : vector<8x64xf32>
    %211 = math.tanh %205 : vector<8x64xf32>
    %212 = vector.extract_strided_slice %210 {offsets = [0, 0], sizes = [8, 16], strides = [1, 1]} : vector<8x64xf32> to vector<8x16xf32>
    %213 = vector.extract_strided_slice %210 {offsets = [0, 16], sizes = [8, 16], strides = [1, 1]} : vector<8x64xf32> to vector<8x16xf32>
    %214 = vector.extract_strided_slice %211 {offsets = [0, 32], sizes = [8, 16], strides = [1, 1]} : vector<8x64xf32> to vector<8x16xf32>
    %215 = vector.extract_strided_slice %210 {offsets = [0, 48], sizes = [8, 16], strides = [1, 1]} : vector<8x64xf32> to vector<8x16xf32>
    %216 = arith.mulf %213, %173 : vector<8x16xf32>
    %217 = arith.mulf %212, %214 : vector<8x16xf32>
    %218 = arith.addf %216, %217 : vector<8x16xf32>
    %219 = math.tanh %218 : vector<8x16xf32>
    %220 = arith.mulf %215, %219 : vector<8x16xf32>
    %cst_99 = arith.constant dense<0.000000e+00> : vector<16x16xf32>
    %221 = tpu.matmul %64, %196, %cst_99 {dimension_numbers = #tpu.dot_dimension_numbers<[1], [0], [0], [1], [0, 0, 1, 1], [], []>} : vector<16x8xf32>, vector<8x16xf32>, vector<16x16xf32> -> vector<16x16xf32>
    %222 = arith.addf %221, %47 : vector<16x16xf32>
    %cst_100 = arith.constant 0.000000e+00 : f32
    %223 = vector.broadcast %cst_100 : f32 to vector<16x16xf32>
    %224 = arith.maximumf %222, %223 : vector<16x16xf32>
    %cst_101 = arith.constant dense<0.000000e+00> : vector<8x16xf32>
    %225 = tpu.matmul %65, %224, %cst_101 {dimension_numbers = #tpu.dot_dimension_numbers<[1], [0], [0], [1], [0, 0, 1, 1], [], []>} : vector<8x16xf32>, vector<16x16xf32>, vector<8x16xf32> -> vector<8x16xf32>
    %cst_102 = arith.constant dense<0.000000e+00> : vector<8x16xf32>
    %226 = tpu.matmul %225, %48, %cst_102 {dimension_numbers = #tpu.dot_dimension_numbers<[1], [0], [0], [1], [0, 0, 1, 1], [], []>} : vector<8x16xf32>, vector<16x16xf32>, vector<8x16xf32> -> vector<8x16xf32>
    %cst_103 = arith.constant dense<0.000000e+00> : vector<8x16xf32>
    %227 = tpu.matmul %220, %49, %cst_103 {dimension_numbers = #tpu.dot_dimension_numbers<[1], [0], [0], [1], [0, 0, 1, 1], [], []>} : vector<8x16xf32>, vector<16x16xf32>, vector<8x16xf32> -> vector<8x16xf32>
    %228 = arith.addf %226, %227 : vector<8x16xf32>
    %229 = arith.addf %228, %52 : vector<8x16xf32>
    %cst_104 = arith.constant 0.000000e+00 : f32
    %230 = vector.broadcast %cst_104 : f32 to vector<8x16xf32>
    %231 = arith.maximumf %229, %230 : vector<8x16xf32>
    %232 = arith.addf %220, %231 : vector<8x16xf32>
    %cst_105 = arith.constant dense<0.000000e+00> : vector<8x16xf32>
    %233 = tpu.matmul %232, %53, %cst_105 {dimension_numbers = #tpu.dot_dimension_numbers<[1], [0], [0], [1], [0, 0, 1, 1], [], []>} : vector<8x16xf32>, vector<16x16xf32>, vector<8x16xf32> -> vector<8x16xf32>
    %234 = arith.addf %233, %80 : vector<8x16xf32>
    %cst_106 = arith.constant 0.000000e+00 : f32
    %235 = vector.broadcast %cst_106 : f32 to vector<8x16xf32>
    %236 = arith.maximumf %234, %235 : vector<8x16xf32>
    %cst_107 = arith.constant dense<0.000000e+00> : vector<8x16xf32>
    %237 = tpu.matmul %236, %56, %cst_107 {dimension_numbers = #tpu.dot_dimension_numbers<[1], [0], [0], [1], [0, 0, 1, 1], [], []>} : vector<8x16xf32>, vector<16x16xf32>, vector<8x16xf32> -> vector<8x16xf32>
    %238 = arith.addf %237, %59 : vector<8x16xf32>
    %cst_108 = arith.constant dense<0.000000e+00> : vector<8x16xf32>
    %239 = tpu.matmul %236, %60, %cst_108 {dimension_numbers = #tpu.dot_dimension_numbers<[1], [0], [0], [1], [0, 0, 1, 1], [], []>} : vector<8x16xf32>, vector<16x16xf32>, vector<8x16xf32> -> vector<8x16xf32>
    %240 = arith.addf %196, %239 : vector<8x16xf32>
    %241 = arith.addf %240, %63 : vector<8x16xf32>
    %cst_109 = arith.constant dense<0.000000e+00> : vector<8x16xf32>
    %242 = tpu.matmul %231, %34, %cst_109 {dimension_numbers = #tpu.dot_dimension_numbers<[1], [0], [0], [1], [0, 0, 1, 1], [], []>} : vector<8x16xf32>, vector<16x16xf32>, vector<8x16xf32> -> vector<8x16xf32>
    %243 = arith.addf %242, %238 : vector<8x16xf32>
    %244 = arith.addf %243, %38 : vector<8x16xf32>
    %cst_110 = arith.constant 0.000000e+00 : f32
    %245 = vector.broadcast %cst_110 : f32 to vector<8x16xf32>
    %246 = arith.maximumf %244, %245 : vector<8x16xf32>
    %cst_111 = arith.constant dense<0.000000e+00> : vector<8x64xf32>
    %247 = tpu.matmul %246, %39, %cst_111 {dimension_numbers = #tpu.dot_dimension_numbers<[1], [0], [0], [1], [0, 0, 1, 1], [], []>} : vector<8x16xf32>, vector<16x64xf32>, vector<8x64xf32> -> vector<8x64xf32>
    %cst_112 = arith.constant dense<0.000000e+00> : vector<8x64xf32>
    %248 = tpu.matmul %220, %40, %cst_112 {dimension_numbers = #tpu.dot_dimension_numbers<[1], [0], [0], [1], [0, 0, 1, 1], [], []>} : vector<8x16xf32>, vector<16x64xf32>, vector<8x64xf32> -> vector<8x64xf32>
    %249 = arith.addf %247, %248 : vector<8x64xf32>
    %250 = arith.addf %249, %43 : vector<8x64xf32>
    %251 = arith.negf %250 : vector<8x64xf32>
    %252 = math.exp %251 : vector<8x64xf32>
    %cst_113 = arith.constant 1.000000e+00 : f32
    %253 = vector.broadcast %cst_113 : f32 to vector<8x64xf32>
    %254 = arith.addf %253, %252 : vector<8x64xf32>
    %255 = arith.divf %253, %254 : vector<8x64xf32>
    %256 = math.tanh %250 : vector<8x64xf32>
    %257 = vector.extract_strided_slice %255 {offsets = [0, 0], sizes = [8, 16], strides = [1, 1]} : vector<8x64xf32> to vector<8x16xf32>
    %258 = vector.extract_strided_slice %255 {offsets = [0, 16], sizes = [8, 16], strides = [1, 1]} : vector<8x64xf32> to vector<8x16xf32>
    %259 = vector.extract_strided_slice %256 {offsets = [0, 32], sizes = [8, 16], strides = [1, 1]} : vector<8x64xf32> to vector<8x16xf32>
    %260 = vector.extract_strided_slice %255 {offsets = [0, 48], sizes = [8, 16], strides = [1, 1]} : vector<8x64xf32> to vector<8x16xf32>
    %261 = arith.mulf %258, %218 : vector<8x16xf32>
    %262 = arith.mulf %257, %259 : vector<8x16xf32>
    %263 = arith.addf %261, %262 : vector<8x16xf32>
    %264 = math.tanh %263 : vector<8x16xf32>
    %265 = arith.mulf %260, %264 : vector<8x16xf32>
    %cst_114 = arith.constant dense<0.000000e+00> : vector<16x16xf32>
    %266 = tpu.matmul %64, %241, %cst_114 {dimension_numbers = #tpu.dot_dimension_numbers<[1], [0], [0], [1], [0, 0, 1, 1], [], []>} : vector<16x8xf32>, vector<8x16xf32>, vector<16x16xf32> -> vector<16x16xf32>
    %267 = arith.addf %266, %47 : vector<16x16xf32>
    %cst_115 = arith.constant 0.000000e+00 : f32
    %268 = vector.broadcast %cst_115 : f32 to vector<16x16xf32>
    %269 = arith.maximumf %267, %268 : vector<16x16xf32>
    %cst_116 = arith.constant dense<0.000000e+00> : vector<8x16xf32>
    %270 = tpu.matmul %65, %269, %cst_116 {dimension_numbers = #tpu.dot_dimension_numbers<[1], [0], [0], [1], [0, 0, 1, 1], [], []>} : vector<8x16xf32>, vector<16x16xf32>, vector<8x16xf32> -> vector<8x16xf32>
    %cst_117 = arith.constant dense<0.000000e+00> : vector<8x16xf32>
    %271 = tpu.matmul %270, %48, %cst_117 {dimension_numbers = #tpu.dot_dimension_numbers<[1], [0], [0], [1], [0, 0, 1, 1], [], []>} : vector<8x16xf32>, vector<16x16xf32>, vector<8x16xf32> -> vector<8x16xf32>
    %cst_118 = arith.constant dense<0.000000e+00> : vector<8x16xf32>
    %272 = tpu.matmul %265, %49, %cst_118 {dimension_numbers = #tpu.dot_dimension_numbers<[1], [0], [0], [1], [0, 0, 1, 1], [], []>} : vector<8x16xf32>, vector<16x16xf32>, vector<8x16xf32> -> vector<8x16xf32>
    %273 = arith.addf %271, %272 : vector<8x16xf32>
    %274 = arith.addf %273, %52 : vector<8x16xf32>
    %cst_119 = arith.constant 0.000000e+00 : f32
    %275 = vector.broadcast %cst_119 : f32 to vector<8x16xf32>
    %276 = arith.maximumf %274, %275 : vector<8x16xf32>
    %277 = arith.addf %265, %276 : vector<8x16xf32>
    %cst_120 = arith.constant dense<0.000000e+00> : vector<8x16xf32>
    %278 = tpu.matmul %277, %53, %cst_120 {dimension_numbers = #tpu.dot_dimension_numbers<[1], [0], [0], [1], [0, 0, 1, 1], [], []>} : vector<8x16xf32>, vector<16x16xf32>, vector<8x16xf32> -> vector<8x16xf32>
    %279 = arith.addf %278, %80 : vector<8x16xf32>
    %cst_121 = arith.constant 0.000000e+00 : f32
    %280 = vector.broadcast %cst_121 : f32 to vector<8x16xf32>
    %281 = arith.maximumf %279, %280 : vector<8x16xf32>
    %cst_122 = arith.constant dense<0.000000e+00> : vector<8x16xf32>
    %282 = tpu.matmul %281, %56, %cst_122 {dimension_numbers = #tpu.dot_dimension_numbers<[1], [0], [0], [1], [0, 0, 1, 1], [], []>} : vector<8x16xf32>, vector<16x16xf32>, vector<8x16xf32> -> vector<8x16xf32>
    %283 = arith.addf %282, %59 : vector<8x16xf32>
    %cst_123 = arith.constant dense<0.000000e+00> : vector<8x16xf32>
    %284 = tpu.matmul %281, %60, %cst_123 {dimension_numbers = #tpu.dot_dimension_numbers<[1], [0], [0], [1], [0, 0, 1, 1], [], []>} : vector<8x16xf32>, vector<16x16xf32>, vector<8x16xf32> -> vector<8x16xf32>
    %285 = arith.addf %241, %284 : vector<8x16xf32>
    %286 = arith.addf %285, %63 : vector<8x16xf32>
    %cst_124 = arith.constant dense<0.000000e+00> : vector<8x16xf32>
    %287 = tpu.matmul %276, %34, %cst_124 {dimension_numbers = #tpu.dot_dimension_numbers<[1], [0], [0], [1], [0, 0, 1, 1], [], []>} : vector<8x16xf32>, vector<16x16xf32>, vector<8x16xf32> -> vector<8x16xf32>
    %288 = arith.addf %287, %283 : vector<8x16xf32>
    %289 = arith.addf %288, %38 : vector<8x16xf32>
    %cst_125 = arith.constant 0.000000e+00 : f32
    %290 = vector.broadcast %cst_125 : f32 to vector<8x16xf32>
    %291 = arith.maximumf %289, %290 : vector<8x16xf32>
    %cst_126 = arith.constant dense<0.000000e+00> : vector<8x64xf32>
    %292 = tpu.matmul %291, %39, %cst_126 {dimension_numbers = #tpu.dot_dimension_numbers<[1], [0], [0], [1], [0, 0, 1, 1], [], []>} : vector<8x16xf32>, vector<16x64xf32>, vector<8x64xf32> -> vector<8x64xf32>
    %cst_127 = arith.constant dense<0.000000e+00> : vector<8x64xf32>
    %293 = tpu.matmul %265, %40, %cst_127 {dimension_numbers = #tpu.dot_dimension_numbers<[1], [0], [0], [1], [0, 0, 1, 1], [], []>} : vector<8x16xf32>, vector<16x64xf32>, vector<8x64xf32> -> vector<8x64xf32>
    %294 = arith.addf %292, %293 : vector<8x64xf32>
    %295 = arith.addf %294, %43 : vector<8x64xf32>
    %296 = arith.negf %295 : vector<8x64xf32>
    %297 = math.exp %296 : vector<8x64xf32>
    %cst_128 = arith.constant 1.000000e+00 : f32
    %298 = vector.broadcast %cst_128 : f32 to vector<8x64xf32>
    %299 = arith.addf %298, %297 : vector<8x64xf32>
    %300 = arith.divf %298, %299 : vector<8x64xf32>
    %301 = math.tanh %295 : vector<8x64xf32>
    %302 = vector.extract_strided_slice %300 {offsets = [0, 0], sizes = [8, 16], strides = [1, 1]} : vector<8x64xf32> to vector<8x16xf32>
    %303 = vector.extract_strided_slice %300 {offsets = [0, 16], sizes = [8, 16], strides = [1, 1]} : vector<8x64xf32> to vector<8x16xf32>
    %304 = vector.extract_strided_slice %301 {offsets = [0, 32], sizes = [8, 16], strides = [1, 1]} : vector<8x64xf32> to vector<8x16xf32>
    %305 = vector.extract_strided_slice %300 {offsets = [0, 48], sizes = [8, 16], strides = [1, 1]} : vector<8x64xf32> to vector<8x16xf32>
    %306 = arith.mulf %303, %263 : vector<8x16xf32>
    %307 = arith.mulf %302, %304 : vector<8x16xf32>
    %308 = arith.addf %306, %307 : vector<8x16xf32>
    %309 = math.tanh %308 : vector<8x16xf32>
    %310 = arith.mulf %305, %309 : vector<8x16xf32>
    %cst_129 = arith.constant dense<0.000000e+00> : vector<16x16xf32>
    %311 = tpu.matmul %64, %286, %cst_129 {dimension_numbers = #tpu.dot_dimension_numbers<[1], [0], [0], [1], [0, 0, 1, 1], [], []>} : vector<16x8xf32>, vector<8x16xf32>, vector<16x16xf32> -> vector<16x16xf32>
    %312 = arith.addf %311, %47 : vector<16x16xf32>
    %cst_130 = arith.constant 0.000000e+00 : f32
    %313 = vector.broadcast %cst_130 : f32 to vector<16x16xf32>
    %314 = arith.maximumf %312, %313 : vector<16x16xf32>
    %cst_131 = arith.constant dense<0.000000e+00> : vector<8x16xf32>
    %315 = tpu.matmul %65, %314, %cst_131 {dimension_numbers = #tpu.dot_dimension_numbers<[1], [0], [0], [1], [0, 0, 1, 1], [], []>} : vector<8x16xf32>, vector<16x16xf32>, vector<8x16xf32> -> vector<8x16xf32>
    %cst_132 = arith.constant dense<0.000000e+00> : vector<8x16xf32>
    %316 = tpu.matmul %315, %48, %cst_132 {dimension_numbers = #tpu.dot_dimension_numbers<[1], [0], [0], [1], [0, 0, 1, 1], [], []>} : vector<8x16xf32>, vector<16x16xf32>, vector<8x16xf32> -> vector<8x16xf32>
    %cst_133 = arith.constant dense<0.000000e+00> : vector<8x16xf32>
    %317 = tpu.matmul %310, %49, %cst_133 {dimension_numbers = #tpu.dot_dimension_numbers<[1], [0], [0], [1], [0, 0, 1, 1], [], []>} : vector<8x16xf32>, vector<16x16xf32>, vector<8x16xf32> -> vector<8x16xf32>
    %318 = arith.addf %316, %317 : vector<8x16xf32>
    %319 = arith.addf %318, %52 : vector<8x16xf32>
    %cst_134 = arith.constant 0.000000e+00 : f32
    %320 = vector.broadcast %cst_134 : f32 to vector<8x16xf32>
    %321 = arith.maximumf %319, %320 : vector<8x16xf32>
    %322 = arith.addf %310, %321 : vector<8x16xf32>
    %cst_135 = arith.constant dense<0.000000e+00> : vector<8x16xf32>
    %323 = tpu.matmul %322, %53, %cst_135 {dimension_numbers = #tpu.dot_dimension_numbers<[1], [0], [0], [1], [0, 0, 1, 1], [], []>} : vector<8x16xf32>, vector<16x16xf32>, vector<8x16xf32> -> vector<8x16xf32>
    %324 = arith.addf %323, %80 : vector<8x16xf32>
    %cst_136 = arith.constant 0.000000e+00 : f32
    %325 = vector.broadcast %cst_136 : f32 to vector<8x16xf32>
    %326 = arith.maximumf %324, %325 : vector<8x16xf32>
    %cst_137 = arith.constant dense<0.000000e+00> : vector<8x16xf32>
    %327 = tpu.matmul %326, %56, %cst_137 {dimension_numbers = #tpu.dot_dimension_numbers<[1], [0], [0], [1], [0, 0, 1, 1], [], []>} : vector<8x16xf32>, vector<16x16xf32>, vector<8x16xf32> -> vector<8x16xf32>
    %328 = arith.addf %327, %59 : vector<8x16xf32>
    %cst_138 = arith.constant dense<0.000000e+00> : vector<8x16xf32>
    %329 = tpu.matmul %326, %60, %cst_138 {dimension_numbers = #tpu.dot_dimension_numbers<[1], [0], [0], [1], [0, 0, 1, 1], [], []>} : vector<8x16xf32>, vector<16x16xf32>, vector<8x16xf32> -> vector<8x16xf32>
    %330 = arith.addf %286, %329 : vector<8x16xf32>
    %331 = arith.addf %330, %63 : vector<8x16xf32>
    %cst_139 = arith.constant dense<0.000000e+00> : vector<8x16xf32>
    %332 = tpu.matmul %321, %34, %cst_139 {dimension_numbers = #tpu.dot_dimension_numbers<[1], [0], [0], [1], [0, 0, 1, 1], [], []>} : vector<8x16xf32>, vector<16x16xf32>, vector<8x16xf32> -> vector<8x16xf32>
    %333 = arith.addf %332, %328 : vector<8x16xf32>
    %334 = arith.addf %333, %38 : vector<8x16xf32>
    %cst_140 = arith.constant 0.000000e+00 : f32
    %335 = vector.broadcast %cst_140 : f32 to vector<8x16xf32>
    %336 = arith.maximumf %334, %335 : vector<8x16xf32>
    %cst_141 = arith.constant dense<0.000000e+00> : vector<8x64xf32>
    %337 = tpu.matmul %336, %39, %cst_141 {dimension_numbers = #tpu.dot_dimension_numbers<[1], [0], [0], [1], [0, 0, 1, 1], [], []>} : vector<8x16xf32>, vector<16x64xf32>, vector<8x64xf32> -> vector<8x64xf32>
    %cst_142 = arith.constant dense<0.000000e+00> : vector<8x64xf32>
    %338 = tpu.matmul %310, %40, %cst_142 {dimension_numbers = #tpu.dot_dimension_numbers<[1], [0], [0], [1], [0, 0, 1, 1], [], []>} : vector<8x16xf32>, vector<16x64xf32>, vector<8x64xf32> -> vector<8x64xf32>
    %339 = arith.addf %337, %338 : vector<8x64xf32>
    %340 = arith.addf %339, %43 : vector<8x64xf32>
    %341 = arith.negf %340 : vector<8x64xf32>
    %342 = math.exp %341 : vector<8x64xf32>
    %cst_143 = arith.constant 1.000000e+00 : f32
    %343 = vector.broadcast %cst_143 : f32 to vector<8x64xf32>
    %344 = arith.addf %343, %342 : vector<8x64xf32>
    %345 = arith.divf %343, %344 : vector<8x64xf32>
    %346 = math.tanh %340 : vector<8x64xf32>
    %347 = vector.extract_strided_slice %345 {offsets = [0, 0], sizes = [8, 16], strides = [1, 1]} : vector<8x64xf32> to vector<8x16xf32>
    %348 = vector.extract_strided_slice %345 {offsets = [0, 16], sizes = [8, 16], strides = [1, 1]} : vector<8x64xf32> to vector<8x16xf32>
    %349 = vector.extract_strided_slice %346 {offsets = [0, 32], sizes = [8, 16], strides = [1, 1]} : vector<8x64xf32> to vector<8x16xf32>
    %350 = vector.extract_strided_slice %345 {offsets = [0, 48], sizes = [8, 16], strides = [1, 1]} : vector<8x64xf32> to vector<8x16xf32>
    %351 = arith.mulf %348, %308 : vector<8x16xf32>
    %352 = arith.mulf %347, %349 : vector<8x16xf32>
    %353 = arith.addf %351, %352 : vector<8x16xf32>
    %354 = math.tanh %353 : vector<8x16xf32>
    %355 = arith.mulf %350, %354 : vector<8x16xf32>
    %cst_144 = arith.constant dense<0.000000e+00> : vector<16x16xf32>
    %356 = tpu.matmul %64, %331, %cst_144 {dimension_numbers = #tpu.dot_dimension_numbers<[1], [0], [0], [1], [0, 0, 1, 1], [], []>} : vector<16x8xf32>, vector<8x16xf32>, vector<16x16xf32> -> vector<16x16xf32>
    %357 = arith.addf %356, %47 : vector<16x16xf32>
    %cst_145 = arith.constant 0.000000e+00 : f32
    %358 = vector.broadcast %cst_145 : f32 to vector<16x16xf32>
    %359 = arith.maximumf %357, %358 : vector<16x16xf32>
    %cst_146 = arith.constant dense<0.000000e+00> : vector<8x16xf32>
    %360 = tpu.matmul %65, %359, %cst_146 {dimension_numbers = #tpu.dot_dimension_numbers<[1], [0], [0], [1], [0, 0, 1, 1], [], []>} : vector<8x16xf32>, vector<16x16xf32>, vector<8x16xf32> -> vector<8x16xf32>
    %cst_147 = arith.constant dense<0.000000e+00> : vector<8x16xf32>
    %361 = tpu.matmul %360, %48, %cst_147 {dimension_numbers = #tpu.dot_dimension_numbers<[1], [0], [0], [1], [0, 0, 1, 1], [], []>} : vector<8x16xf32>, vector<16x16xf32>, vector<8x16xf32> -> vector<8x16xf32>
    %cst_148 = arith.constant dense<0.000000e+00> : vector<8x16xf32>
    %362 = tpu.matmul %355, %49, %cst_148 {dimension_numbers = #tpu.dot_dimension_numbers<[1], [0], [0], [1], [0, 0, 1, 1], [], []>} : vector<8x16xf32>, vector<16x16xf32>, vector<8x16xf32> -> vector<8x16xf32>
    %363 = arith.addf %361, %362 : vector<8x16xf32>
    %364 = arith.addf %363, %52 : vector<8x16xf32>
    %cst_149 = arith.constant 0.000000e+00 : f32
    %365 = vector.broadcast %cst_149 : f32 to vector<8x16xf32>
    %366 = arith.maximumf %364, %365 : vector<8x16xf32>
    %367 = arith.addf %355, %366 : vector<8x16xf32>
    %cst_150 = arith.constant dense<0.000000e+00> : vector<8x16xf32>
    %368 = tpu.matmul %367, %53, %cst_150 {dimension_numbers = #tpu.dot_dimension_numbers<[1], [0], [0], [1], [0, 0, 1, 1], [], []>} : vector<8x16xf32>, vector<16x16xf32>, vector<8x16xf32> -> vector<8x16xf32>
    %369 = arith.addf %368, %80 : vector<8x16xf32>
    %cst_151 = arith.constant 0.000000e+00 : f32
    %370 = vector.broadcast %cst_151 : f32 to vector<8x16xf32>
    %371 = arith.maximumf %369, %370 : vector<8x16xf32>
    %cst_152 = arith.constant dense<0.000000e+00> : vector<8x16xf32>
    %372 = tpu.matmul %371, %56, %cst_152 {dimension_numbers = #tpu.dot_dimension_numbers<[1], [0], [0], [1], [0, 0, 1, 1], [], []>} : vector<8x16xf32>, vector<16x16xf32>, vector<8x16xf32> -> vector<8x16xf32>
    %373 = arith.addf %372, %59 : vector<8x16xf32>
    %cst_153 = arith.constant dense<0.000000e+00> : vector<8x16xf32>
    %374 = tpu.matmul %371, %60, %cst_153 {dimension_numbers = #tpu.dot_dimension_numbers<[1], [0], [0], [1], [0, 0, 1, 1], [], []>} : vector<8x16xf32>, vector<16x16xf32>, vector<8x16xf32> -> vector<8x16xf32>
    %375 = arith.addf %331, %374 : vector<8x16xf32>
    %376 = arith.addf %375, %63 : vector<8x16xf32>
    %cst_154 = arith.constant dense<0.000000e+00> : vector<8x16xf32>
    %377 = tpu.matmul %366, %34, %cst_154 {dimension_numbers = #tpu.dot_dimension_numbers<[1], [0], [0], [1], [0, 0, 1, 1], [], []>} : vector<8x16xf32>, vector<16x16xf32>, vector<8x16xf32> -> vector<8x16xf32>
    %378 = arith.addf %377, %373 : vector<8x16xf32>
    %379 = arith.addf %378, %38 : vector<8x16xf32>
    %cst_155 = arith.constant 0.000000e+00 : f32
    %380 = vector.broadcast %cst_155 : f32 to vector<8x16xf32>
    %381 = arith.maximumf %379, %380 : vector<8x16xf32>
    %cst_156 = arith.constant dense<0.000000e+00> : vector<8x64xf32>
    %382 = tpu.matmul %381, %39, %cst_156 {dimension_numbers = #tpu.dot_dimension_numbers<[1], [0], [0], [1], [0, 0, 1, 1], [], []>} : vector<8x16xf32>, vector<16x64xf32>, vector<8x64xf32> -> vector<8x64xf32>
    %cst_157 = arith.constant dense<0.000000e+00> : vector<8x64xf32>
    %383 = tpu.matmul %355, %40, %cst_157 {dimension_numbers = #tpu.dot_dimension_numbers<[1], [0], [0], [1], [0, 0, 1, 1], [], []>} : vector<8x16xf32>, vector<16x64xf32>, vector<8x64xf32> -> vector<8x64xf32>
    %384 = arith.addf %382, %383 : vector<8x64xf32>
    %385 = arith.addf %384, %43 : vector<8x64xf32>
    %386 = arith.negf %385 : vector<8x64xf32>
    %387 = math.exp %386 : vector<8x64xf32>
    %cst_158 = arith.constant 1.000000e+00 : f32
    %388 = vector.broadcast %cst_158 : f32 to vector<8x64xf32>
    %389 = arith.addf %388, %387 : vector<8x64xf32>
    %390 = arith.divf %388, %389 : vector<8x64xf32>
    %391 = math.tanh %385 : vector<8x64xf32>
    %392 = vector.extract_strided_slice %390 {offsets = [0, 0], sizes = [8, 16], strides = [1, 1]} : vector<8x64xf32> to vector<8x16xf32>
    %393 = vector.extract_strided_slice %390 {offsets = [0, 16], sizes = [8, 16], strides = [1, 1]} : vector<8x64xf32> to vector<8x16xf32>
    %394 = vector.extract_strided_slice %391 {offsets = [0, 32], sizes = [8, 16], strides = [1, 1]} : vector<8x64xf32> to vector<8x16xf32>
    %395 = vector.extract_strided_slice %390 {offsets = [0, 48], sizes = [8, 16], strides = [1, 1]} : vector<8x64xf32> to vector<8x16xf32>
    %396 = arith.mulf %393, %353 : vector<8x16xf32>
    %397 = arith.mulf %392, %394 : vector<8x16xf32>
    %398 = arith.addf %396, %397 : vector<8x16xf32>
    %399 = math.tanh %398 : vector<8x16xf32>
    %400 = arith.mulf %395, %399 : vector<8x16xf32>
    %cst_159 = arith.constant dense<0.000000e+00> : vector<16x16xf32>
    %401 = tpu.matmul %64, %376, %cst_159 {dimension_numbers = #tpu.dot_dimension_numbers<[1], [0], [0], [1], [0, 0, 1, 1], [], []>} : vector<16x8xf32>, vector<8x16xf32>, vector<16x16xf32> -> vector<16x16xf32>
    %402 = arith.addf %401, %47 : vector<16x16xf32>
    %cst_160 = arith.constant 0.000000e+00 : f32
    %403 = vector.broadcast %cst_160 : f32 to vector<16x16xf32>
    %404 = arith.maximumf %402, %403 : vector<16x16xf32>
    %cst_161 = arith.constant dense<0.000000e+00> : vector<8x16xf32>
    %405 = tpu.matmul %65, %404, %cst_161 {dimension_numbers = #tpu.dot_dimension_numbers<[1], [0], [0], [1], [0, 0, 1, 1], [], []>} : vector<8x16xf32>, vector<16x16xf32>, vector<8x16xf32> -> vector<8x16xf32>
    %cst_162 = arith.constant dense<0.000000e+00> : vector<8x16xf32>
    %406 = tpu.matmul %405, %48, %cst_162 {dimension_numbers = #tpu.dot_dimension_numbers<[1], [0], [0], [1], [0, 0, 1, 1], [], []>} : vector<8x16xf32>, vector<16x16xf32>, vector<8x16xf32> -> vector<8x16xf32>
    %cst_163 = arith.constant dense<0.000000e+00> : vector<8x16xf32>
    %407 = tpu.matmul %400, %49, %cst_163 {dimension_numbers = #tpu.dot_dimension_numbers<[1], [0], [0], [1], [0, 0, 1, 1], [], []>} : vector<8x16xf32>, vector<16x16xf32>, vector<8x16xf32> -> vector<8x16xf32>
    %408 = arith.addf %406, %407 : vector<8x16xf32>
    %409 = arith.addf %408, %52 : vector<8x16xf32>
    %cst_164 = arith.constant 0.000000e+00 : f32
    %410 = vector.broadcast %cst_164 : f32 to vector<8x16xf32>
    %411 = arith.maximumf %409, %410 : vector<8x16xf32>
    %412 = arith.addf %400, %411 : vector<8x16xf32>
    %cst_165 = arith.constant dense<0.000000e+00> : vector<8x16xf32>
    %413 = tpu.matmul %412, %53, %cst_165 {dimension_numbers = #tpu.dot_dimension_numbers<[1], [0], [0], [1], [0, 0, 1, 1], [], []>} : vector<8x16xf32>, vector<16x16xf32>, vector<8x16xf32> -> vector<8x16xf32>
    %414 = arith.addf %413, %80 : vector<8x16xf32>
    %cst_166 = arith.constant 0.000000e+00 : f32
    %415 = vector.broadcast %cst_166 : f32 to vector<8x16xf32>
    %416 = arith.maximumf %414, %415 : vector<8x16xf32>
    %cst_167 = arith.constant dense<0.000000e+00> : vector<8x16xf32>
    %417 = tpu.matmul %416, %56, %cst_167 {dimension_numbers = #tpu.dot_dimension_numbers<[1], [0], [0], [1], [0, 0, 1, 1], [], []>} : vector<8x16xf32>, vector<16x16xf32>, vector<8x16xf32> -> vector<8x16xf32>
    %418 = arith.addf %417, %59 : vector<8x16xf32>
    %cst_168 = arith.constant dense<0.000000e+00> : vector<8x16xf32>
    %419 = tpu.matmul %416, %60, %cst_168 {dimension_numbers = #tpu.dot_dimension_numbers<[1], [0], [0], [1], [0, 0, 1, 1], [], []>} : vector<8x16xf32>, vector<16x16xf32>, vector<8x16xf32> -> vector<8x16xf32>
    %420 = arith.addf %376, %419 : vector<8x16xf32>
    %421 = arith.addf %420, %63 : vector<8x16xf32>
    %cst_169 = arith.constant dense<0.000000e+00> : vector<8x16xf32>
    %422 = tpu.matmul %411, %34, %cst_169 {dimension_numbers = #tpu.dot_dimension_numbers<[1], [0], [0], [1], [0, 0, 1, 1], [], []>} : vector<8x16xf32>, vector<16x16xf32>, vector<8x16xf32> -> vector<8x16xf32>
    %423 = arith.addf %422, %418 : vector<8x16xf32>
    %424 = arith.addf %423, %38 : vector<8x16xf32>
    %cst_170 = arith.constant 0.000000e+00 : f32
    %425 = vector.broadcast %cst_170 : f32 to vector<8x16xf32>
    %426 = arith.maximumf %424, %425 : vector<8x16xf32>
    %cst_171 = arith.constant dense<0.000000e+00> : vector<8x64xf32>
    %427 = tpu.matmul %426, %39, %cst_171 {dimension_numbers = #tpu.dot_dimension_numbers<[1], [0], [0], [1], [0, 0, 1, 1], [], []>} : vector<8x16xf32>, vector<16x64xf32>, vector<8x64xf32> -> vector<8x64xf32>
    %cst_172 = arith.constant dense<0.000000e+00> : vector<8x64xf32>
    %428 = tpu.matmul %400, %40, %cst_172 {dimension_numbers = #tpu.dot_dimension_numbers<[1], [0], [0], [1], [0, 0, 1, 1], [], []>} : vector<8x16xf32>, vector<16x64xf32>, vector<8x64xf32> -> vector<8x64xf32>
    %429 = arith.addf %427, %428 : vector<8x64xf32>
    %430 = arith.addf %429, %43 : vector<8x64xf32>
    %431 = arith.negf %430 : vector<8x64xf32>
    %432 = math.exp %431 : vector<8x64xf32>
    %cst_173 = arith.constant 1.000000e+00 : f32
    %433 = vector.broadcast %cst_173 : f32 to vector<8x64xf32>
    %434 = arith.addf %433, %432 : vector<8x64xf32>
    %435 = arith.divf %433, %434 : vector<8x64xf32>
    %436 = math.tanh %430 : vector<8x64xf32>
    %437 = vector.extract_strided_slice %435 {offsets = [0, 0], sizes = [8, 16], strides = [1, 1]} : vector<8x64xf32> to vector<8x16xf32>
    %438 = vector.extract_strided_slice %435 {offsets = [0, 16], sizes = [8, 16], strides = [1, 1]} : vector<8x64xf32> to vector<8x16xf32>
    %439 = vector.extract_strided_slice %436 {offsets = [0, 32], sizes = [8, 16], strides = [1, 1]} : vector<8x64xf32> to vector<8x16xf32>
    %440 = vector.extract_strided_slice %435 {offsets = [0, 48], sizes = [8, 16], strides = [1, 1]} : vector<8x64xf32> to vector<8x16xf32>
    %441 = arith.mulf %438, %398 : vector<8x16xf32>
    %442 = arith.mulf %437, %439 : vector<8x16xf32>
    %443 = arith.addf %441, %442 : vector<8x16xf32>
    %444 = math.tanh %443 : vector<8x16xf32>
    %445 = arith.mulf %440, %444 : vector<8x16xf32>
    %cst_174 = arith.constant dense<0.000000e+00> : vector<16x16xf32>
    %446 = tpu.matmul %64, %421, %cst_174 {dimension_numbers = #tpu.dot_dimension_numbers<[1], [0], [0], [1], [0, 0, 1, 1], [], []>} : vector<16x8xf32>, vector<8x16xf32>, vector<16x16xf32> -> vector<16x16xf32>
    %447 = arith.addf %446, %47 : vector<16x16xf32>
    %cst_175 = arith.constant 0.000000e+00 : f32
    %448 = vector.broadcast %cst_175 : f32 to vector<16x16xf32>
    %449 = arith.maximumf %447, %448 : vector<16x16xf32>
    %cst_176 = arith.constant dense<0.000000e+00> : vector<8x16xf32>
    %450 = tpu.matmul %65, %449, %cst_176 {dimension_numbers = #tpu.dot_dimension_numbers<[1], [0], [0], [1], [0, 0, 1, 1], [], []>} : vector<8x16xf32>, vector<16x16xf32>, vector<8x16xf32> -> vector<8x16xf32>
    %cst_177 = arith.constant dense<0.000000e+00> : vector<8x16xf32>
    %451 = tpu.matmul %450, %48, %cst_177 {dimension_numbers = #tpu.dot_dimension_numbers<[1], [0], [0], [1], [0, 0, 1, 1], [], []>} : vector<8x16xf32>, vector<16x16xf32>, vector<8x16xf32> -> vector<8x16xf32>
    %cst_178 = arith.constant dense<0.000000e+00> : vector<8x16xf32>
    %452 = tpu.matmul %445, %49, %cst_178 {dimension_numbers = #tpu.dot_dimension_numbers<[1], [0], [0], [1], [0, 0, 1, 1], [], []>} : vector<8x16xf32>, vector<16x16xf32>, vector<8x16xf32> -> vector<8x16xf32>
    %453 = arith.addf %451, %452 : vector<8x16xf32>
    %454 = arith.addf %453, %52 : vector<8x16xf32>
    %cst_179 = arith.constant 0.000000e+00 : f32
    %455 = vector.broadcast %cst_179 : f32 to vector<8x16xf32>
    %456 = arith.maximumf %454, %455 : vector<8x16xf32>
    %457 = arith.addf %445, %456 : vector<8x16xf32>
    %cst_180 = arith.constant dense<0.000000e+00> : vector<8x16xf32>
    %458 = tpu.matmul %457, %53, %cst_180 {dimension_numbers = #tpu.dot_dimension_numbers<[1], [0], [0], [1], [0, 0, 1, 1], [], []>} : vector<8x16xf32>, vector<16x16xf32>, vector<8x16xf32> -> vector<8x16xf32>
    %459 = arith.addf %458, %80 : vector<8x16xf32>
    %cst_181 = arith.constant 0.000000e+00 : f32
    %460 = vector.broadcast %cst_181 : f32 to vector<8x16xf32>
    %461 = arith.maximumf %459, %460 : vector<8x16xf32>
    %cst_182 = arith.constant dense<0.000000e+00> : vector<8x16xf32>
    %462 = tpu.matmul %461, %56, %cst_182 {dimension_numbers = #tpu.dot_dimension_numbers<[1], [0], [0], [1], [0, 0, 1, 1], [], []>} : vector<8x16xf32>, vector<16x16xf32>, vector<8x16xf32> -> vector<8x16xf32>
    %463 = arith.addf %462, %59 : vector<8x16xf32>
    %cst_183 = arith.constant dense<0.000000e+00> : vector<8x16xf32>
    %464 = tpu.matmul %461, %60, %cst_183 {dimension_numbers = #tpu.dot_dimension_numbers<[1], [0], [0], [1], [0, 0, 1, 1], [], []>} : vector<8x16xf32>, vector<16x16xf32>, vector<8x16xf32> -> vector<8x16xf32>
    %465 = arith.addf %421, %464 : vector<8x16xf32>
    %466 = arith.addf %465, %63 : vector<8x16xf32>
    %cst_184 = arith.constant dense<0.000000e+00> : vector<8x16xf32>
    %467 = tpu.matmul %456, %34, %cst_184 {dimension_numbers = #tpu.dot_dimension_numbers<[1], [0], [0], [1], [0, 0, 1, 1], [], []>} : vector<8x16xf32>, vector<16x16xf32>, vector<8x16xf32> -> vector<8x16xf32>
    %468 = arith.addf %467, %463 : vector<8x16xf32>
    %469 = arith.addf %468, %38 : vector<8x16xf32>
    %cst_185 = arith.constant 0.000000e+00 : f32
    %470 = vector.broadcast %cst_185 : f32 to vector<8x16xf32>
    %471 = arith.maximumf %469, %470 : vector<8x16xf32>
    %cst_186 = arith.constant dense<0.000000e+00> : vector<8x64xf32>
    %472 = tpu.matmul %471, %39, %cst_186 {dimension_numbers = #tpu.dot_dimension_numbers<[1], [0], [0], [1], [0, 0, 1, 1], [], []>} : vector<8x16xf32>, vector<16x64xf32>, vector<8x64xf32> -> vector<8x64xf32>
    %cst_187 = arith.constant dense<0.000000e+00> : vector<8x64xf32>
    %473 = tpu.matmul %445, %40, %cst_187 {dimension_numbers = #tpu.dot_dimension_numbers<[1], [0], [0], [1], [0, 0, 1, 1], [], []>} : vector<8x16xf32>, vector<16x64xf32>, vector<8x64xf32> -> vector<8x64xf32>
    %474 = arith.addf %472, %473 : vector<8x64xf32>
    %475 = arith.addf %474, %43 : vector<8x64xf32>
    %476 = arith.negf %475 : vector<8x64xf32>
    %477 = math.exp %476 : vector<8x64xf32>
    %cst_188 = arith.constant 1.000000e+00 : f32
    %478 = vector.broadcast %cst_188 : f32 to vector<8x64xf32>
    %479 = arith.addf %478, %477 : vector<8x64xf32>
    %480 = arith.divf %478, %479 : vector<8x64xf32>
    %481 = math.tanh %475 : vector<8x64xf32>
    %482 = vector.extract_strided_slice %480 {offsets = [0, 0], sizes = [8, 16], strides = [1, 1]} : vector<8x64xf32> to vector<8x16xf32>
    %483 = vector.extract_strided_slice %480 {offsets = [0, 16], sizes = [8, 16], strides = [1, 1]} : vector<8x64xf32> to vector<8x16xf32>
    %484 = vector.extract_strided_slice %481 {offsets = [0, 32], sizes = [8, 16], strides = [1, 1]} : vector<8x64xf32> to vector<8x16xf32>
    %485 = vector.extract_strided_slice %480 {offsets = [0, 48], sizes = [8, 16], strides = [1, 1]} : vector<8x64xf32> to vector<8x16xf32>
    %486 = arith.mulf %483, %443 : vector<8x16xf32>
    %487 = arith.mulf %482, %484 : vector<8x16xf32>
    %488 = arith.addf %486, %487 : vector<8x16xf32>
    %489 = math.tanh %488 : vector<8x16xf32>
    %490 = arith.mulf %485, %489 : vector<8x16xf32>
    %cst_189 = arith.constant dense<0.000000e+00> : vector<16x16xf32>
    %491 = tpu.matmul %64, %466, %cst_189 {dimension_numbers = #tpu.dot_dimension_numbers<[1], [0], [0], [1], [0, 0, 1, 1], [], []>} : vector<16x8xf32>, vector<8x16xf32>, vector<16x16xf32> -> vector<16x16xf32>
    %492 = arith.addf %491, %47 : vector<16x16xf32>
    %cst_190 = arith.constant 0.000000e+00 : f32
    %493 = vector.broadcast %cst_190 : f32 to vector<16x16xf32>
    %494 = arith.maximumf %492, %493 : vector<16x16xf32>
    %cst_191 = arith.constant dense<0.000000e+00> : vector<8x16xf32>
    %495 = tpu.matmul %65, %494, %cst_191 {dimension_numbers = #tpu.dot_dimension_numbers<[1], [0], [0], [1], [0, 0, 1, 1], [], []>} : vector<8x16xf32>, vector<16x16xf32>, vector<8x16xf32> -> vector<8x16xf32>
    %cst_192 = arith.constant dense<0.000000e+00> : vector<8x16xf32>
    %496 = tpu.matmul %495, %48, %cst_192 {dimension_numbers = #tpu.dot_dimension_numbers<[1], [0], [0], [1], [0, 0, 1, 1], [], []>} : vector<8x16xf32>, vector<16x16xf32>, vector<8x16xf32> -> vector<8x16xf32>
    %cst_193 = arith.constant dense<0.000000e+00> : vector<8x16xf32>
    %497 = tpu.matmul %490, %49, %cst_193 {dimension_numbers = #tpu.dot_dimension_numbers<[1], [0], [0], [1], [0, 0, 1, 1], [], []>} : vector<8x16xf32>, vector<16x16xf32>, vector<8x16xf32> -> vector<8x16xf32>
    %498 = arith.addf %496, %497 : vector<8x16xf32>
    %499 = arith.addf %498, %52 : vector<8x16xf32>
    %cst_194 = arith.constant 0.000000e+00 : f32
    %500 = vector.broadcast %cst_194 : f32 to vector<8x16xf32>
    %501 = arith.maximumf %499, %500 : vector<8x16xf32>
    %502 = arith.addf %490, %501 : vector<8x16xf32>
    %cst_195 = arith.constant dense<0.000000e+00> : vector<8x16xf32>
    %503 = tpu.matmul %502, %53, %cst_195 {dimension_numbers = #tpu.dot_dimension_numbers<[1], [0], [0], [1], [0, 0, 1, 1], [], []>} : vector<8x16xf32>, vector<16x16xf32>, vector<8x16xf32> -> vector<8x16xf32>
    %504 = arith.addf %503, %80 : vector<8x16xf32>
    %cst_196 = arith.constant 0.000000e+00 : f32
    %505 = vector.broadcast %cst_196 : f32 to vector<8x16xf32>
    %506 = arith.maximumf %504, %505 : vector<8x16xf32>
    %cst_197 = arith.constant dense<0.000000e+00> : vector<8x16xf32>
    %507 = tpu.matmul %506, %56, %cst_197 {dimension_numbers = #tpu.dot_dimension_numbers<[1], [0], [0], [1], [0, 0, 1, 1], [], []>} : vector<8x16xf32>, vector<16x16xf32>, vector<8x16xf32> -> vector<8x16xf32>
    %508 = arith.addf %507, %59 : vector<8x16xf32>
    %cst_198 = arith.constant dense<0.000000e+00> : vector<8x16xf32>
    %509 = tpu.matmul %506, %60, %cst_198 {dimension_numbers = #tpu.dot_dimension_numbers<[1], [0], [0], [1], [0, 0, 1, 1], [], []>} : vector<8x16xf32>, vector<16x16xf32>, vector<8x16xf32> -> vector<8x16xf32>
    %510 = arith.addf %466, %509 : vector<8x16xf32>
    %511 = arith.addf %510, %63 : vector<8x16xf32>
    %cst_199 = arith.constant dense<0.000000e+00> : vector<8x16xf32>
    %512 = tpu.matmul %501, %34, %cst_199 {dimension_numbers = #tpu.dot_dimension_numbers<[1], [0], [0], [1], [0, 0, 1, 1], [], []>} : vector<8x16xf32>, vector<16x16xf32>, vector<8x16xf32> -> vector<8x16xf32>
    %513 = arith.addf %512, %508 : vector<8x16xf32>
    %514 = arith.addf %513, %38 : vector<8x16xf32>
    %cst_200 = arith.constant 0.000000e+00 : f32
    %515 = vector.broadcast %cst_200 : f32 to vector<8x16xf32>
    %516 = arith.maximumf %514, %515 : vector<8x16xf32>
    %cst_201 = arith.constant dense<0.000000e+00> : vector<8x64xf32>
    %517 = tpu.matmul %516, %39, %cst_201 {dimension_numbers = #tpu.dot_dimension_numbers<[1], [0], [0], [1], [0, 0, 1, 1], [], []>} : vector<8x16xf32>, vector<16x64xf32>, vector<8x64xf32> -> vector<8x64xf32>
    %cst_202 = arith.constant dense<0.000000e+00> : vector<8x64xf32>
    %518 = tpu.matmul %490, %40, %cst_202 {dimension_numbers = #tpu.dot_dimension_numbers<[1], [0], [0], [1], [0, 0, 1, 1], [], []>} : vector<8x16xf32>, vector<16x64xf32>, vector<8x64xf32> -> vector<8x64xf32>
    %519 = arith.addf %517, %518 : vector<8x64xf32>
    %520 = arith.addf %519, %43 : vector<8x64xf32>
    %521 = arith.negf %520 : vector<8x64xf32>
    %522 = math.exp %521 : vector<8x64xf32>
    %cst_203 = arith.constant 1.000000e+00 : f32
    %523 = vector.broadcast %cst_203 : f32 to vector<8x64xf32>
    %524 = arith.addf %523, %522 : vector<8x64xf32>
    %525 = arith.divf %523, %524 : vector<8x64xf32>
    %526 = math.tanh %520 : vector<8x64xf32>
    %527 = vector.extract_strided_slice %525 {offsets = [0, 0], sizes = [8, 16], strides = [1, 1]} : vector<8x64xf32> to vector<8x16xf32>
    %528 = vector.extract_strided_slice %525 {offsets = [0, 16], sizes = [8, 16], strides = [1, 1]} : vector<8x64xf32> to vector<8x16xf32>
    %529 = vector.extract_strided_slice %526 {offsets = [0, 32], sizes = [8, 16], strides = [1, 1]} : vector<8x64xf32> to vector<8x16xf32>
    %530 = vector.extract_strided_slice %525 {offsets = [0, 48], sizes = [8, 16], strides = [1, 1]} : vector<8x64xf32> to vector<8x16xf32>
    %531 = arith.mulf %528, %488 : vector<8x16xf32>
    %532 = arith.mulf %527, %529 : vector<8x16xf32>
    %533 = arith.addf %531, %532 : vector<8x16xf32>
    %534 = math.tanh %533 : vector<8x16xf32>
    %535 = arith.mulf %530, %534 : vector<8x16xf32>
    %cst_204 = arith.constant dense<0.000000e+00> : vector<16x16xf32>
    %536 = tpu.matmul %64, %511, %cst_204 {dimension_numbers = #tpu.dot_dimension_numbers<[1], [0], [0], [1], [0, 0, 1, 1], [], []>} : vector<16x8xf32>, vector<8x16xf32>, vector<16x16xf32> -> vector<16x16xf32>
    %537 = arith.addf %536, %47 : vector<16x16xf32>
    %cst_205 = arith.constant 0.000000e+00 : f32
    %538 = vector.broadcast %cst_205 : f32 to vector<16x16xf32>
    %539 = arith.maximumf %537, %538 : vector<16x16xf32>
    %cst_206 = arith.constant dense<0.000000e+00> : vector<8x16xf32>
    %540 = tpu.matmul %65, %539, %cst_206 {dimension_numbers = #tpu.dot_dimension_numbers<[1], [0], [0], [1], [0, 0, 1, 1], [], []>} : vector<8x16xf32>, vector<16x16xf32>, vector<8x16xf32> -> vector<8x16xf32>
    %cst_207 = arith.constant dense<0.000000e+00> : vector<8x16xf32>
    %541 = tpu.matmul %540, %48, %cst_207 {dimension_numbers = #tpu.dot_dimension_numbers<[1], [0], [0], [1], [0, 0, 1, 1], [], []>} : vector<8x16xf32>, vector<16x16xf32>, vector<8x16xf32> -> vector<8x16xf32>
    %cst_208 = arith.constant dense<0.000000e+00> : vector<8x16xf32>
    %542 = tpu.matmul %535, %49, %cst_208 {dimension_numbers = #tpu.dot_dimension_numbers<[1], [0], [0], [1], [0, 0, 1, 1], [], []>} : vector<8x16xf32>, vector<16x16xf32>, vector<8x16xf32> -> vector<8x16xf32>
    %543 = arith.addf %541, %542 : vector<8x16xf32>
    %544 = arith.addf %543, %52 : vector<8x16xf32>
    %cst_209 = arith.constant 0.000000e+00 : f32
    %545 = vector.broadcast %cst_209 : f32 to vector<8x16xf32>
    %546 = arith.maximumf %544, %545 : vector<8x16xf32>
    %547 = arith.addf %535, %546 : vector<8x16xf32>
    %cst_210 = arith.constant dense<0.000000e+00> : vector<8x16xf32>
    %548 = tpu.matmul %547, %53, %cst_210 {dimension_numbers = #tpu.dot_dimension_numbers<[1], [0], [0], [1], [0, 0, 1, 1], [], []>} : vector<8x16xf32>, vector<16x16xf32>, vector<8x16xf32> -> vector<8x16xf32>
    %549 = arith.addf %548, %80 : vector<8x16xf32>
    %cst_211 = arith.constant 0.000000e+00 : f32
    %550 = vector.broadcast %cst_211 : f32 to vector<8x16xf32>
    %551 = arith.maximumf %549, %550 : vector<8x16xf32>
    %cst_212 = arith.constant dense<0.000000e+00> : vector<8x16xf32>
    %552 = tpu.matmul %551, %56, %cst_212 {dimension_numbers = #tpu.dot_dimension_numbers<[1], [0], [0], [1], [0, 0, 1, 1], [], []>} : vector<8x16xf32>, vector<16x16xf32>, vector<8x16xf32> -> vector<8x16xf32>
    %553 = arith.addf %552, %59 : vector<8x16xf32>
    %cst_213 = arith.constant dense<0.000000e+00> : vector<8x16xf32>
    %554 = tpu.matmul %551, %60, %cst_213 {dimension_numbers = #tpu.dot_dimension_numbers<[1], [0], [0], [1], [0, 0, 1, 1], [], []>} : vector<8x16xf32>, vector<16x16xf32>, vector<8x16xf32> -> vector<8x16xf32>
    %555 = arith.addf %511, %554 : vector<8x16xf32>
    %556 = arith.addf %555, %63 : vector<8x16xf32>
    %cst_214 = arith.constant dense<0.000000e+00> : vector<8x16xf32>
    %557 = tpu.matmul %546, %34, %cst_214 {dimension_numbers = #tpu.dot_dimension_numbers<[1], [0], [0], [1], [0, 0, 1, 1], [], []>} : vector<8x16xf32>, vector<16x16xf32>, vector<8x16xf32> -> vector<8x16xf32>
    %558 = arith.addf %557, %553 : vector<8x16xf32>
    %559 = arith.addf %558, %38 : vector<8x16xf32>
    %cst_215 = arith.constant 0.000000e+00 : f32
    %560 = vector.broadcast %cst_215 : f32 to vector<8x16xf32>
    %561 = arith.maximumf %559, %560 : vector<8x16xf32>
    %cst_216 = arith.constant dense<0.000000e+00> : vector<8x64xf32>
    %562 = tpu.matmul %561, %39, %cst_216 {dimension_numbers = #tpu.dot_dimension_numbers<[1], [0], [0], [1], [0, 0, 1, 1], [], []>} : vector<8x16xf32>, vector<16x64xf32>, vector<8x64xf32> -> vector<8x64xf32>
    %cst_217 = arith.constant dense<0.000000e+00> : vector<8x64xf32>
    %563 = tpu.matmul %535, %40, %cst_217 {dimension_numbers = #tpu.dot_dimension_numbers<[1], [0], [0], [1], [0, 0, 1, 1], [], []>} : vector<8x16xf32>, vector<16x64xf32>, vector<8x64xf32> -> vector<8x64xf32>
    %564 = arith.addf %562, %563 : vector<8x64xf32>
    %565 = arith.addf %564, %43 : vector<8x64xf32>
    %566 = arith.negf %565 : vector<8x64xf32>
    %567 = math.exp %566 : vector<8x64xf32>
    %cst_218 = arith.constant 1.000000e+00 : f32
    %568 = vector.broadcast %cst_218 : f32 to vector<8x64xf32>
    %569 = arith.addf %568, %567 : vector<8x64xf32>
    %570 = arith.divf %568, %569 : vector<8x64xf32>
    %571 = math.tanh %565 : vector<8x64xf32>
    %572 = vector.extract_strided_slice %570 {offsets = [0, 0], sizes = [8, 16], strides = [1, 1]} : vector<8x64xf32> to vector<8x16xf32>
    %573 = vector.extract_strided_slice %570 {offsets = [0, 16], sizes = [8, 16], strides = [1, 1]} : vector<8x64xf32> to vector<8x16xf32>
    %574 = vector.extract_strided_slice %571 {offsets = [0, 32], sizes = [8, 16], strides = [1, 1]} : vector<8x64xf32> to vector<8x16xf32>
    %575 = vector.extract_strided_slice %570 {offsets = [0, 48], sizes = [8, 16], strides = [1, 1]} : vector<8x64xf32> to vector<8x16xf32>
    %576 = arith.mulf %573, %533 : vector<8x16xf32>
    %577 = arith.mulf %572, %574 : vector<8x16xf32>
    %578 = arith.addf %576, %577 : vector<8x16xf32>
    %579 = math.tanh %578 : vector<8x16xf32>
    %580 = arith.mulf %575, %579 : vector<8x16xf32>
    %cst_219 = arith.constant dense<0.000000e+00> : vector<16x16xf32>
    %581 = tpu.matmul %64, %556, %cst_219 {dimension_numbers = #tpu.dot_dimension_numbers<[1], [0], [0], [1], [0, 0, 1, 1], [], []>} : vector<16x8xf32>, vector<8x16xf32>, vector<16x16xf32> -> vector<16x16xf32>
    %582 = arith.addf %581, %47 : vector<16x16xf32>
    %cst_220 = arith.constant 0.000000e+00 : f32
    %583 = vector.broadcast %cst_220 : f32 to vector<16x16xf32>
    %584 = arith.maximumf %582, %583 : vector<16x16xf32>
    %cst_221 = arith.constant dense<0.000000e+00> : vector<8x16xf32>
    %585 = tpu.matmul %65, %584, %cst_221 {dimension_numbers = #tpu.dot_dimension_numbers<[1], [0], [0], [1], [0, 0, 1, 1], [], []>} : vector<8x16xf32>, vector<16x16xf32>, vector<8x16xf32> -> vector<8x16xf32>
    %cst_222 = arith.constant dense<0.000000e+00> : vector<8x16xf32>
    %586 = tpu.matmul %585, %48, %cst_222 {dimension_numbers = #tpu.dot_dimension_numbers<[1], [0], [0], [1], [0, 0, 1, 1], [], []>} : vector<8x16xf32>, vector<16x16xf32>, vector<8x16xf32> -> vector<8x16xf32>
    %cst_223 = arith.constant dense<0.000000e+00> : vector<8x16xf32>
    %587 = tpu.matmul %580, %49, %cst_223 {dimension_numbers = #tpu.dot_dimension_numbers<[1], [0], [0], [1], [0, 0, 1, 1], [], []>} : vector<8x16xf32>, vector<16x16xf32>, vector<8x16xf32> -> vector<8x16xf32>
    %588 = arith.addf %586, %587 : vector<8x16xf32>
    %589 = arith.addf %588, %52 : vector<8x16xf32>
    %cst_224 = arith.constant 0.000000e+00 : f32
    %590 = vector.broadcast %cst_224 : f32 to vector<8x16xf32>
    %591 = arith.maximumf %589, %590 : vector<8x16xf32>
    %592 = arith.addf %580, %591 : vector<8x16xf32>
    %cst_225 = arith.constant dense<0.000000e+00> : vector<8x16xf32>
    %593 = tpu.matmul %592, %53, %cst_225 {dimension_numbers = #tpu.dot_dimension_numbers<[1], [0], [0], [1], [0, 0, 1, 1], [], []>} : vector<8x16xf32>, vector<16x16xf32>, vector<8x16xf32> -> vector<8x16xf32>
    %594 = arith.addf %593, %80 : vector<8x16xf32>
    %cst_226 = arith.constant 0.000000e+00 : f32
    %595 = vector.broadcast %cst_226 : f32 to vector<8x16xf32>
    %596 = arith.maximumf %594, %595 : vector<8x16xf32>
    %cst_227 = arith.constant dense<0.000000e+00> : vector<8x16xf32>
    %597 = tpu.matmul %596, %56, %cst_227 {dimension_numbers = #tpu.dot_dimension_numbers<[1], [0], [0], [1], [0, 0, 1, 1], [], []>} : vector<8x16xf32>, vector<16x16xf32>, vector<8x16xf32> -> vector<8x16xf32>
    %598 = arith.addf %597, %59 : vector<8x16xf32>
    %cst_228 = arith.constant dense<0.000000e+00> : vector<8x16xf32>
    %599 = tpu.matmul %596, %60, %cst_228 {dimension_numbers = #tpu.dot_dimension_numbers<[1], [0], [0], [1], [0, 0, 1, 1], [], []>} : vector<8x16xf32>, vector<16x16xf32>, vector<8x16xf32> -> vector<8x16xf32>
    %600 = arith.addf %556, %599 : vector<8x16xf32>
    %601 = arith.addf %600, %63 : vector<8x16xf32>
    %cst_229 = arith.constant dense<0.000000e+00> : vector<8x16xf32>
    %602 = tpu.matmul %591, %34, %cst_229 {dimension_numbers = #tpu.dot_dimension_numbers<[1], [0], [0], [1], [0, 0, 1, 1], [], []>} : vector<8x16xf32>, vector<16x16xf32>, vector<8x16xf32> -> vector<8x16xf32>
    %603 = arith.addf %602, %598 : vector<8x16xf32>
    %604 = arith.addf %603, %38 : vector<8x16xf32>
    %cst_230 = arith.constant 0.000000e+00 : f32
    %605 = vector.broadcast %cst_230 : f32 to vector<8x16xf32>
    %606 = arith.maximumf %604, %605 : vector<8x16xf32>
    %cst_231 = arith.constant dense<0.000000e+00> : vector<8x64xf32>
    %607 = tpu.matmul %606, %39, %cst_231 {dimension_numbers = #tpu.dot_dimension_numbers<[1], [0], [0], [1], [0, 0, 1, 1], [], []>} : vector<8x16xf32>, vector<16x64xf32>, vector<8x64xf32> -> vector<8x64xf32>
    %cst_232 = arith.constant dense<0.000000e+00> : vector<8x64xf32>
    %608 = tpu.matmul %580, %40, %cst_232 {dimension_numbers = #tpu.dot_dimension_numbers<[1], [0], [0], [1], [0, 0, 1, 1], [], []>} : vector<8x16xf32>, vector<16x64xf32>, vector<8x64xf32> -> vector<8x64xf32>
    %609 = arith.addf %607, %608 : vector<8x64xf32>
    %610 = arith.addf %609, %43 : vector<8x64xf32>
    %611 = arith.negf %610 : vector<8x64xf32>
    %612 = math.exp %611 : vector<8x64xf32>
    %cst_233 = arith.constant 1.000000e+00 : f32
    %613 = vector.broadcast %cst_233 : f32 to vector<8x64xf32>
    %614 = arith.addf %613, %612 : vector<8x64xf32>
    %615 = arith.divf %613, %614 : vector<8x64xf32>
    %616 = math.tanh %610 : vector<8x64xf32>
    %617 = vector.extract_strided_slice %615 {offsets = [0, 0], sizes = [8, 16], strides = [1, 1]} : vector<8x64xf32> to vector<8x16xf32>
    %618 = vector.extract_strided_slice %615 {offsets = [0, 16], sizes = [8, 16], strides = [1, 1]} : vector<8x64xf32> to vector<8x16xf32>
    %619 = vector.extract_strided_slice %616 {offsets = [0, 32], sizes = [8, 16], strides = [1, 1]} : vector<8x64xf32> to vector<8x16xf32>
    %620 = vector.extract_strided_slice %615 {offsets = [0, 48], sizes = [8, 16], strides = [1, 1]} : vector<8x64xf32> to vector<8x16xf32>
    %621 = arith.mulf %618, %578 : vector<8x16xf32>
    %622 = arith.mulf %617, %619 : vector<8x16xf32>
    %623 = arith.addf %621, %622 : vector<8x16xf32>
    %624 = math.tanh %623 : vector<8x16xf32>
    %625 = arith.mulf %620, %624 : vector<8x16xf32>
    %cst_234 = arith.constant dense<0.000000e+00> : vector<16x16xf32>
    %626 = tpu.matmul %64, %601, %cst_234 {dimension_numbers = #tpu.dot_dimension_numbers<[1], [0], [0], [1], [0, 0, 1, 1], [], []>} : vector<16x8xf32>, vector<8x16xf32>, vector<16x16xf32> -> vector<16x16xf32>
    %627 = arith.addf %626, %47 : vector<16x16xf32>
    %cst_235 = arith.constant 0.000000e+00 : f32
    %628 = vector.broadcast %cst_235 : f32 to vector<16x16xf32>
    %629 = arith.maximumf %627, %628 : vector<16x16xf32>
    %cst_236 = arith.constant dense<0.000000e+00> : vector<8x16xf32>
    %630 = tpu.matmul %65, %629, %cst_236 {dimension_numbers = #tpu.dot_dimension_numbers<[1], [0], [0], [1], [0, 0, 1, 1], [], []>} : vector<8x16xf32>, vector<16x16xf32>, vector<8x16xf32> -> vector<8x16xf32>
    %cst_237 = arith.constant dense<0.000000e+00> : vector<8x16xf32>
    %631 = tpu.matmul %630, %48, %cst_237 {dimension_numbers = #tpu.dot_dimension_numbers<[1], [0], [0], [1], [0, 0, 1, 1], [], []>} : vector<8x16xf32>, vector<16x16xf32>, vector<8x16xf32> -> vector<8x16xf32>
    %cst_238 = arith.constant dense<0.000000e+00> : vector<8x16xf32>
    %632 = tpu.matmul %625, %49, %cst_238 {dimension_numbers = #tpu.dot_dimension_numbers<[1], [0], [0], [1], [0, 0, 1, 1], [], []>} : vector<8x16xf32>, vector<16x16xf32>, vector<8x16xf32> -> vector<8x16xf32>
    %633 = arith.addf %631, %632 : vector<8x16xf32>
    %634 = arith.addf %633, %52 : vector<8x16xf32>
    %cst_239 = arith.constant 0.000000e+00 : f32
    %635 = vector.broadcast %cst_239 : f32 to vector<8x16xf32>
    %636 = arith.maximumf %634, %635 : vector<8x16xf32>
    %637 = arith.addf %625, %636 : vector<8x16xf32>
    %cst_240 = arith.constant dense<0.000000e+00> : vector<8x16xf32>
    %638 = tpu.matmul %637, %53, %cst_240 {dimension_numbers = #tpu.dot_dimension_numbers<[1], [0], [0], [1], [0, 0, 1, 1], [], []>} : vector<8x16xf32>, vector<16x16xf32>, vector<8x16xf32> -> vector<8x16xf32>
    %639 = arith.addf %638, %80 : vector<8x16xf32>
    %cst_241 = arith.constant 0.000000e+00 : f32
    %640 = vector.broadcast %cst_241 : f32 to vector<8x16xf32>
    %641 = arith.maximumf %639, %640 : vector<8x16xf32>
    %642 = tpu.concatenate %146, %191, %236, %281, %326, %371, %416, %461, %506, %551, %596, %641 in 0 : vector<8x16xf32>, vector<8x16xf32>, vector<8x16xf32>, vector<8x16xf32>, vector<8x16xf32>, vector<8x16xf32>, vector<8x16xf32>, vector<8x16xf32>, vector<8x16xf32>, vector<8x16xf32>, vector<8x16xf32>, vector<8x16xf32> -> vector<96x16xf32>
    %cst_242 = arith.constant dense<0.000000e+00> : vector<96x2xf32>
    %643 = tpu.matmul %642, %55, %cst_242 {dimension_numbers = #tpu.dot_dimension_numbers<[1], [0], [0], [1], [0, 0, 1, 1], [], []>} : vector<96x16xf32>, vector<16x2xf32>, vector<96x2xf32> -> vector<96x2xf32>
    %c0_243 = arith.constant 0 : index
    %c0_244 = arith.constant 0 : index
    %644 = vector.load %arg24[%c0_243, %c0_244] : memref<1x2xf32, #tpu.memory_space<vmem>>, vector<1x2xf32>
    %645 = vector.shape_cast %644 : vector<1x2xf32> to vector<1x2xf32>
    %646 = vector.broadcast %645 : vector<1x2xf32> to vector<96x2xf32>
    %647 = arith.addf %643, %646 : vector<96x2xf32>
    %648 = vector.shape_cast %647 : vector<96x2xf32> to vector<12x8x2xf32>
    %c0_245 = arith.constant 0 : index
    %c0_246 = arith.constant 0 : index
    %c0_247 = arith.constant 0 : index
    %649 = vector.load %arg29[%c0_245, %c0_246, %c0_247] : memref<12x8x2xf32, #tpu.memory_space<vmem>>, vector<12x8x2xf32>
    tpu.vector_store %arg29[%c0_245, %c0_246, %c0_247], %648 {strides = array<i32>} : memref<12x8x2xf32, #tpu.memory_space<vmem>>, vector<12x8x2xf32>,
    %cst_248 = arith.constant 0.000000e+00 : f32
    %650 = vector.broadcast %cst_248 : f32 to vector<8x1xf32>
    %c0_249 = arith.constant 0 : index
    %c0_250 = arith.constant 0 : index
    %651 = vector.load %arg30[%c0_249, %c0_250] : memref<8x1xf32, #tpu.memory_space<vmem>>, vector<8x1xf32>
    tpu.vector_store %arg30[%c0_249, %c0_250], %650 {strides = array<i32>} : memref<8x1xf32, #tpu.memory_space<vmem>>, vector<8x1xf32>,
    return
  }
}

</mosaic_0001>

<llo_original>
// kernel: trajectory_generator_ar_goal.1
$region0: #{trajectory_generator_ar_goal.1}
  #allocation0 [shape = 'u32[]', space=smem, size = 0x4, offset = 0x4, fixed_abs, tag = 'smem constant byte address 0x4 - core index']
  #allocation1 [shape = 'u32[144,128]{1,0:T(1,128)}', space=vmem, size = 0x12000, scoped, tag = 'internal scratch']
  %s0 = inlined_call_operand.smem [shape: u32[31], index: -1, kind: input, shape index: {}]
  %s1 = sld [smem:[%s0]]
  %s2 = scalar_lea.smem %s0, 1
  %s3 = sld [smem:[%s2]]
  %s4 = scalar_lea.smem %s0, 2
  %s5 = sld [smem:[%s4]]
  %s6 = scalar_lea.smem %s0, 3
  %s7 = sld [smem:[%s6]]
  %s8 = scalar_lea.smem %s0, 4
  %s9 = sld [smem:[%s8]]
  %s10 = scalar_lea.smem %s0, 5
  %s11 = sld [smem:[%s10]]
  %s12 = scalar_lea.smem %s0, 6
  %s13 = sld [smem:[%s12]]
  %s14 = scalar_lea.smem %s0, 7
  %s15 = sld [smem:[%s14]]
  %s16 = scalar_lea.smem %s0, 8
  %s17 = sld [smem:[%s16]]
  %s18 = scalar_lea.smem %s0, 9
  %s19 = sld [smem:[%s18]]
  %s20 = scalar_lea.smem %s0, 10
  %s21 = sld [smem:[%s20]]
  %s22 = scalar_lea.smem %s0, 11
  %s23 = sld [smem:[%s22]]
  %s24 = scalar_lea.smem %s0, 12
  %s25 = sld [smem:[%s24]]
  %s26 = scalar_lea.smem %s0, 13
  %s27 = sld [smem:[%s26]]
  %s28 = scalar_lea.smem %s0, 14
  %s29 = sld [smem:[%s28]]
  %s30 = scalar_lea.smem %s0, 15
  %s31 = sld [smem:[%s30]]
  %s32 = scalar_lea.smem %s0, 16
  %s33 = sld [smem:[%s32]]
  %s34 = scalar_lea.smem %s0, 17
  %s35 = sld [smem:[%s34]]
  %s36 = scalar_lea.smem %s0, 18
  %s37 = sld [smem:[%s36]]
  %s38 = scalar_lea.smem %s0, 19
  %s39 = sld [smem:[%s38]]
  %s40 = scalar_lea.smem %s0, 20
  %s41 = sld [smem:[%s40]]
  %s42 = scalar_lea.smem %s0, 21
  %s43 = sld [smem:[%s42]]
  %s44 = scalar_lea.smem %s0, 22
  %s45 = sld [smem:[%s44]]
  %s46 = scalar_lea.smem %s0, 23
  %s47 = sld [smem:[%s46]]
  %s48 = scalar_lea.smem %s0, 24
  %s49 = sld [smem:[%s48]]
  %s50 = scalar_lea.smem %s0, 25
  %s51 = sld [smem:[%s50]]
  %s52 = scalar_lea.smem %s0, 26
  %s53 = sld [smem:[%s52]]
  %s54 = scalar_lea.smem %s0, 27
  %s55 = sld [smem:[%s54]]
  %s56 = scalar_lea.smem %s0, 28
  %s57 = sld [smem:[%s56]]
  %s58 = scalar_lea.smem %s0, 29
  %s59 = sld [smem:[%s58]]
  %s60 = scalar_lea.smem %s0, 30
  %s61 = sld [smem:[%s60]]
  %62 = xla_tuple %s59, %s61
  %s63 = sld [smem:[#allocation0]]
  $region134: #{trajectory_generator_ar_goal.1} parent=0
    _
  %s65 = ssub.s32 1, %s63
  %s66 = scalar_select 0, %s65, %s63
  // Predicated region
  $region2: #{trajectory_generator_ar_goal.1} parent=0 // pred_check
    _
  $region3: #{trajectory_generator_ar_goal.1} parent=0 // pred_check_branch
    %68 = sbr.rel (0) target = $region5
  $region4: #{trajectory_generator_ar_goal.1} parent=0 // pred_region
    _
  $region5: #{trajectory_generator_ar_goal.1} parent=0 // pred_fallthru
    _
  // Predicated region
  $region6: #{trajectory_generator_ar_goal.1} parent=0 // pred_check
    _
  $region7: #{trajectory_generator_ar_goal.1} parent=0 // pred_check_branch
    %70 = sbr.rel (0) target = $region9
  $region8: #{trajectory_generator_ar_goal.1} parent=0 // pred_region
    _
  $region9: #{trajectory_generator_ar_goal.1} parent=0 // pred_fallthru
    _
  // Predicated region
  $region10: #{trajectory_generator_ar_goal.1} parent=0 // pred_check
    _
  $region11: #{trajectory_generator_ar_goal.1} parent=0 // pred_check_branch
    %72 = sbr.rel (0) target = $region13
  $region12: #{trajectory_generator_ar_goal.1} parent=0 // pred_region
    _
  $region13: #{trajectory_generator_ar_goal.1} parent=0 // pred_fallthru
    _
  // Predicated region
  $region14: #{trajectory_generator_ar_goal.1} parent=0 // pred_check
    _
  $region15: #{trajectory_generator_ar_goal.1} parent=0 // pred_check_branch
    %74 = sbr.rel (0) target = $region17
  $region16: #{trajectory_generator_ar_goal.1} parent=0 // pred_region
    _
  $region17: #{trajectory_generator_ar_goal.1} parent=0 // pred_fallthru
    _
  // Predicated region
  $region18: #{trajectory_generator_ar_goal.1} parent=0 // pred_check
    _
  $region19: #{trajectory_generator_ar_goal.1} parent=0 // pred_check_branch
    %76 = sbr.rel (0) target = $region21
  $region20: #{trajectory_generator_ar_goal.1} parent=0 // pred_region
    _
  $region21: #{trajectory_generator_ar_goal.1} parent=0 // pred_fallthru
    _
  // Predicated region
  $region22: #{trajectory_generator_ar_goal.1} parent=0 // pred_check
    _
  $region23: #{trajectory_generator_ar_goal.1} parent=0 // pred_check_branch
    %78 = sbr.rel (0) target = $region25
  $region24: #{trajectory_generator_ar_goal.1} parent=0 // pred_region
    _
  $region25: #{trajectory_generator_ar_goal.1} parent=0 // pred_fallthru
    _
  // Predicated region
  $region26: #{trajectory_generator_ar_goal.1} parent=0 // pred_check
    _
  $region27: #{trajectory_generator_ar_goal.1} parent=0 // pred_check_branch
    %80 = sbr.rel (0) target = $region29
  $region28: #{trajectory_generator_ar_goal.1} parent=0 // pred_region
    _
  $region29: #{trajectory_generator_ar_goal.1} parent=0 // pred_fallthru
    _
  // Predicated region
  $region30: #{trajectory_generator_ar_goal.1} parent=0 // pred_check
    _
  $region31: #{trajectory_generator_ar_goal.1} parent=0 // pred_check_branch
    %82 = sbr.rel (0) target = $region33
  $region32: #{trajectory_generator_ar_goal.1} parent=0 // pred_region
    _
  $region33: #{trajectory_generator_ar_goal.1} parent=0 // pred_fallthru
    _
  // Predicated region
  $region34: #{trajectory_generator_ar_goal.1} parent=0 // pred_check
    _
  $region35: #{trajectory_generator_ar_goal.1} parent=0 // pred_check_branch
    %84 = sbr.rel (0) target = $region37
  $region36: #{trajectory_generator_ar_goal.1} parent=0 // pred_region
    _
  $region37: #{trajectory_generator_ar_goal.1} parent=0 // pred_fallthru
    _
  // Predicated region
  $region38: #{trajectory_generator_ar_goal.1} parent=0 // pred_check
    _
  $region39: #{trajectory_generator_ar_goal.1} parent=0 // pred_check_branch
    %86 = sbr.rel (0) target = $region41
  $region40: #{trajectory_generator_ar_goal.1} parent=0 // pred_region
    _
  $region41: #{trajectory_generator_ar_goal.1} parent=0 // pred_fallthru
    _
  // Predicated region
  $region42: #{trajectory_generator_ar_goal.1} parent=0 // pred_check
    _
  $region43: #{trajectory_generator_ar_goal.1} parent=0 // pred_check_branch
    %88 = sbr.rel (0) target = $region45
  $region44: #{trajectory_generator_ar_goal.1} parent=0 // pred_region
    _
  $region45: #{trajectory_generator_ar_goal.1} parent=0 // pred_fallthru
    _
  // Predicated region
  $region46: #{trajectory_generator_ar_goal.1} parent=0 // pred_check
    _
  $region47: #{trajectory_generator_ar_goal.1} parent=0 // pred_check_branch
    %90 = sbr.rel (0) target = $region49
  $region48: #{trajectory_generator_ar_goal.1} parent=0 // pred_region
    _
  $region49: #{trajectory_generator_ar_goal.1} parent=0 // pred_fallthru
    _
  // Predicated region
  $region50: #{trajectory_generator_ar_goal.1} parent=0 // pred_check
    _
  $region51: #{trajectory_generator_ar_goal.1} parent=0 // pred_check_branch
    %92 = sbr.rel (0) target = $region53
  $region52: #{trajectory_generator_ar_goal.1} parent=0 // pred_region
    _
  $region53: #{trajectory_generator_ar_goal.1} parent=0 // pred_fallthru
    _
  // Predicated region
  $region54: #{trajectory_generator_ar_goal.1} parent=0 // pred_check
    _
  $region55: #{trajectory_generator_ar_goal.1} parent=0 // pred_check_branch
    %94 = sbr.rel (0) target = $region57
  $region56: #{trajectory_generator_ar_goal.1} parent=0 // pred_region
    _
  $region57: #{trajectory_generator_ar_goal.1} parent=0 // pred_fallthru
    _
  // Predicated region
  $region58: #{trajectory_generator_ar_goal.1} parent=0 // pred_check
    _
  $region59: #{trajectory_generator_ar_goal.1} parent=0 // pred_check_branch
    %96 = sbr.rel (0) target = $region61
  $region60: #{trajectory_generator_ar_goal.1} parent=0 // pred_region
    _
  $region61: #{trajectory_generator_ar_goal.1} parent=0 // pred_fallthru
    _
  // Predicated region
  $region62: #{trajectory_generator_ar_goal.1} parent=0 // pred_check
    _
  $region63: #{trajectory_generator_ar_goal.1} parent=0 // pred_check_branch
    %98 = sbr.rel (0) target = $region65
  $region64: #{trajectory_generator_ar_goal.1} parent=0 // pred_region
    _
  $region65: #{trajectory_generator_ar_goal.1} parent=0 // pred_fallthru
    _
  // Predicated region
  $region66: #{trajectory_generator_ar_goal.1} parent=0 // pred_check
    _
  $region67: #{trajectory_generator_ar_goal.1} parent=0 // pred_check_branch
    %100 = sbr.rel (0) target = $region69
  $region68: #{trajectory_generator_ar_goal.1} parent=0 // pred_region
    _
  $region69: #{trajectory_generator_ar_goal.1} parent=0 // pred_fallthru
    _
  // Predicated region
  $region70: #{trajectory_generator_ar_goal.1} parent=0 // pred_check
    _
  $region71: #{trajectory_generator_ar_goal.1} parent=0 // pred_check_branch
    %102 = sbr.rel (0) target = $region73
  $region72: #{trajectory_generator_ar_goal.1} parent=0 // pred_region
    _
  $region73: #{trajectory_generator_ar_goal.1} parent=0 // pred_fallthru
    _
  // Predicated region
  $region74: #{trajectory_generator_ar_goal.1} parent=0 // pred_check
    _
  $region75: #{trajectory_generator_ar_goal.1} parent=0 // pred_check_branch
    %104 = sbr.rel (0) target = $region77
  $region76: #{trajectory_generator_ar_goal.1} parent=0 // pred_region
    _
  $region77: #{trajectory_generator_ar_goal.1} parent=0 // pred_fallthru
    _
  // Predicated region
  $region78: #{trajectory_generator_ar_goal.1} parent=0 // pred_check
    _
  $region79: #{trajectory_generator_ar_goal.1} parent=0 // pred_check_branch
    %106 = sbr.rel (0) target = $region81
  $region80: #{trajectory_generator_ar_goal.1} parent=0 // pred_region
    _
  $region81: #{trajectory_generator_ar_goal.1} parent=0 // pred_fallthru
    _
  // Predicated region
  $region82: #{trajectory_generator_ar_goal.1} parent=0 // pred_check
    _
  $region83: #{trajectory_generator_ar_goal.1} parent=0 // pred_check_branch
    %108 = sbr.rel (0) target = $region85
  $region84: #{trajectory_generator_ar_goal.1} parent=0 // pred_region
    _
  $region85: #{trajectory_generator_ar_goal.1} parent=0 // pred_fallthru
    _
  // Predicated region
  $region86: #{trajectory_generator_ar_goal.1} parent=0 // pred_check
    _
  $region87: #{trajectory_generator_ar_goal.1} parent=0 // pred_check_branch
    %110 = sbr.rel (0) target = $region89
  $region88: #{trajectory_generator_ar_goal.1} parent=0 // pred_region
    _
  $region89: #{trajectory_generator_ar_goal.1} parent=0 // pred_fallthru
    _
  // Predicated region
  $region90: #{trajectory_generator_ar_goal.1} parent=0 // pred_check
    _
  $region91: #{trajectory_generator_ar_goal.1} parent=0 // pred_check_branch
    %112 = sbr.rel (0) target = $region93
  $region92: #{trajectory_generator_ar_goal.1} parent=0 // pred_region
    _
  $region93: #{trajectory_generator_ar_goal.1} parent=0 // pred_fallthru
    _
  // Predicated region
  $region94: #{trajectory_generator_ar_goal.1} parent=0 // pred_check
    _
  $region95: #{trajectory_generator_ar_goal.1} parent=0 // pred_check_branch
    %114 = sbr.rel (0) target = $region97
  $region96: #{trajectory_generator_ar_goal.1} parent=0 // pred_region
    _
  $region97: #{trajectory_generator_ar_goal.1} parent=0 // pred_fallthru
    _
  // Predicated region
  $region98: #{trajectory_generator_ar_goal.1} parent=0 // pred_check
    _
  $region99: #{trajectory_generator_ar_goal.1} parent=0 // pred_check_branch
    %116 = sbr.rel (0) target = $region101
  $region100: #{trajectory_generator_ar_goal.1} parent=0 // pred_region
    _
  $region101: #{trajectory_generator_ar_goal.1} parent=0 // pred_fallthru
    _
  // Predicated region
  $region102: #{trajectory_generator_ar_goal.1} parent=0 // pred_check
    _
  $region103: #{trajectory_generator_ar_goal.1} parent=0 // pred_check_branch
    %118 = sbr.rel (0) target = $region105
  $region104: #{trajectory_generator_ar_goal.1} parent=0 // pred_region
    _
  $region105: #{trajectory_generator_ar_goal.1} parent=0 // pred_fallthru
    _
  // Predicated region
  $region106: #{trajectory_generator_ar_goal.1} parent=0 // pred_check
    _
  $region107: #{trajectory_generator_ar_goal.1} parent=0 // pred_check_branch
    %120 = sbr.rel (0) target = $region109
  $region108: #{trajectory_generator_ar_goal.1} parent=0 // pred_region
    _
  $region109: #{trajectory_generator_ar_goal.1} parent=0 // pred_fallthru
    _
  // Predicated region
  $region110: #{trajectory_generator_ar_goal.1} parent=0 // pred_check
    _
  $region111: #{trajectory_generator_ar_goal.1} parent=0 // pred_check_branch
    %122 = sbr.rel (0) target = $region113
  $region112: #{trajectory_generator_ar_goal.1} parent=0 // pred_region
    _
  $region113: #{trajectory_generator_ar_goal.1} parent=0 // pred_fallthru
    _
  // Predicated region
  $region114: #{trajectory_generator_ar_goal.1} parent=0 // pred_check
    _
  $region115: #{trajectory_generator_ar_goal.1} parent=0 // pred_check_branch
    %124 = sbr.rel (0) target = $region117
  $region116: #{trajectory_generator_ar_goal.1} parent=0 // pred_region
    _
  $region117: #{trajectory_generator_ar_goal.1} parent=0 // pred_fallthru
    _
  %v125 = vld [vmem:[%s1] sm:$0xff]
  %v126 = vld [vmem:[%s1 + $0x8] sm:$0xff]
  %v127 = vld [vmem:[%s1 + $0x10] sm:$0xff]
  %v128 = vld [vmem:[%s1 + $0x18] sm:$0xff]
  %v129 = vld [vmem:[%s1 + $0x20] sm:$0xff]
  %v130 = vld [vmem:[%s1 + $0x28] sm:$0xff]
  %v131 = vld [vmem:[%s1 + $0x30] sm:$0xff]
  %v132 = vld [vmem:[%s1 + $0x38] sm:$0xff]
  %v133 = vld [vmem:[%s11] sm:$0x3]
  %135 = vset.pattern.permute.xlu0 0
  %136 = vperm.xlu0 %135, %v125
  %v137 = vpop.permute.xlu0 %136
  %140 = vset.pattern.permute.xlu0 0
  %141 = vperm.xlu0 %140, %v126
  %v142 = vpop.permute.xlu0 %141
  %145 = vset.pattern.permute.xlu0 0
  %146 = vperm.xlu0 %145, %v127
  %v147 = vpop.permute.xlu0 %146
  %150 = vset.pattern.permute.xlu0 0
  %151 = vperm.xlu0 %150, %v128
  %v152 = vpop.permute.xlu0 %151
  %155 = vset.pattern.permute.xlu0 0
  %156 = vperm.xlu0 %155, %v129
  %v157 = vpop.permute.xlu0 %156
  %160 = vset.pattern.permute.xlu0 0
  %161 = vperm.xlu0 %160, %v130
  %v162 = vpop.permute.xlu0 %161
  %165 = vset.pattern.permute.xlu0 0
  %166 = vperm.xlu0 %165, %v131
  %v167 = vpop.permute.xlu0 %166
  %170 = vset.pattern.permute.xlu0 0
  %171 = vperm.xlu0 %170, %v132
  %v172 = vpop.permute.xlu0 %171
  %v174 = vlaneseq
  %v175 = vshrl.u32 %v174, 7
  %v176 = vsub.s32 0, %v175
  %v177 = vrot.slane %v133, %v176
  %v178 = vmul.f32 %v137, %v177
  %v179 = vmul.f32 %v142, %v177
  %v180 = vmul.f32 %v147, %v177
  %v181 = vmul.f32 %v152, %v177
  %v182 = vmul.f32 %v157, %v177
  %v183 = vmul.f32 %v162, %v177
  %v184 = vmul.f32 %v167, %v177
  %v185 = vmul.f32 %v172, %v177
  %186 = vset.pattern.permute.xlu0 1
  %187 = vperm.xlu0 %186, %v125
  %v188 = vpop.permute.xlu0 %187
  %190 = vset.pattern.permute.xlu0 1
  %191 = vperm.xlu0 %190, %v126
  %v192 = vpop.permute.xlu0 %191
  %194 = vset.pattern.permute.xlu0 1
  %195 = vperm.xlu0 %194, %v127
  %v196 = vpop.permute.xlu0 %195
  %198 = vset.pattern.permute.xlu0 1
  %199 = vperm.xlu0 %198, %v128
  %v200 = vpop.permute.xlu0 %199
  %202 = vset.pattern.permute.xlu0 1
  %203 = vperm.xlu0 %202, %v129
  %v204 = vpop.permute.xlu0 %203
  %206 = vset.pattern.permute.xlu0 1
  %207 = vperm.xlu0 %206, %v130
  %v208 = vpop.permute.xlu0 %207
  %210 = vset.pattern.permute.xlu0 1
  %211 = vperm.xlu0 %210, %v131
  %v212 = vpop.permute.xlu0 %211
  %214 = vset.pattern.permute.xlu0 1
  %215 = vperm.xlu0 %214, %v132
  %v216 = vpop.permute.xlu0 %215
  %v218 = vlaneseq
  %v219 = vshrl.u32 %v218, 7
  %v220 = vsub.s32 1, %v219
  %v221 = vrot.slane %v133, %v220
  %v222 = vmul.f32 %v188, %v221
  %v223 = vmul.f32 %v192, %v221
  %v224 = vmul.f32 %v196, %v221
  %v225 = vmul.f32 %v200, %v221
  %v226 = vmul.f32 %v204, %v221
  %v227 = vmul.f32 %v208, %v221
  %v228 = vmul.f32 %v212, %v221
  %v229 = vmul.f32 %v216, %v221
  %v230 = vadd.f32 %v178, %v222
  %v231 = vadd.f32 %v179, %v223
  %v232 = vadd.f32 %v180, %v224
  %v233 = vadd.f32 %v181, %v225
  %v234 = vadd.f32 %v182, %v226
  %v235 = vadd.f32 %v183, %v227
  %v236 = vadd.f32 %v184, %v228
  %v237 = vadd.f32 %v185, %v229
  %v238 = vld [vmem:[%s13] sm:$0x1]
  %v240 = vlaneseq
  %v241 = vshrl.u32 %v240, 7
  %v242 = vsub.s32 0, %v241
  %v243 = vrot.slane %v238, %v242
  %v245 = vadd.f32 %v230, %v243
  %v246 = vadd.f32 %v231, %v243
  %v247 = vadd.f32 %v232, %v243
  %v248 = vadd.f32 %v233, %v243
  %v249 = vadd.f32 %v234, %v243
  %v250 = vadd.f32 %v235, %v243
  %v251 = vadd.f32 %v236, %v243
  %v252 = vadd.f32 %v237, %v243
  %v253 = vmax.f32 %v245, 0.0
  %v254 = vmax.f32 %v246, 0.0
  %v255 = vmax.f32 %v247, 0.0
  %v256 = vmax.f32 %v248, 0.0
  %v257 = vmax.f32 %v249, 0.0
  %v258 = vmax.f32 %v250, 0.0
  %v259 = vmax.f32 %v251, 0.0
  %v260 = vmax.f32 %v252, 0.0
  %vm261 = vcmask 130048
  %v262 = vsel %vm261, %v253, 0.0
  %v263 = vsel %vm261, %v254, 0.0
  %v264 = vadd.f32 %v262, %v263
  %v265 = vsel %vm261, %v255, 0.0
  %v266 = vadd.f32 %v264, %v265
  %v267 = vsel %vm261, %v256, 0.0
  %v268 = vadd.f32 %v266, %v267
  %v269 = vsel %vm261, %v257, 0.0
  %v270 = vadd.f32 %v268, %v269
  %v271 = vsel %vm261, %v258, 0.0
  %v272 = vadd.f32 %v270, %v271
  %v273 = vsel %vm261, %v259, 0.0
  %v274 = vadd.f32 %v272, %v273
  %v275 = vsel %vm261, %v260, 0.0
  %v276 = vadd.f32 %v274, %v275
  %v277 = vmul.f32 %v276, 0.125
  %v278 = vld [vmem:[%s15] sm:$0xff]
  %v279 = vld [vmem:[%s15 + $0x8] sm:$0xff]
  %v280 = vld [vmem:[%s17] sm:$0x1]
  %v282 = vlaneseq
  %v283 = vshrl.u32 %v282, 7
  %v284 = vsub.s32 0, %v283
  %v285 = vrot.slane %v280, %v284
  %v288 = vsel %vm261, %v277, 0
  %290 = vmatprep.subr.mxu0 0.0
  %291 = vmatpush1.msra.mxu0 0.0
  %292 = vmatprep.subr.mxu0 0.0
  %293 = vmatpush1.msra.mxu0 0.0
  %294 = vmatprep.subr.mxu0 0.0
  %295 = vmatpush1.msra.mxu0 0.0
  %296 = vmatprep.subr.mxu0 0.0
  %297 = vmatpush1.msra.mxu0 0.0
  %298 = vmatprep.subr.mxu0 0.0
  %299 = vmatpush1.msra.mxu0 0.0
  %300 = vmatprep.subr.mxu0 0.0
  %301 = vmatpush1.msra.mxu0 0.0
  %302 = vmatprep.subr.mxu0 0.0
  %303 = vmatpush1.msra.mxu0 0.0
  %304 = vmatprep.subr.mxu0 0.0
  %305 = vmatpush1.msra.mxu0 0.0
  %306 = vmatprep.subr.mxu0 0.0
  %307 = vmatpush1.msra.mxu0 0.0
  %308 = vmatprep.subr.mxu0 0.0
  %309 = vmatpush1.msra.mxu0 0.0
  %310 = vmatprep.subr.mxu0 0.0
  %311 = vmatpush1.msra.mxu0 0.0
  %312 = vmatprep.subr.mxu0 0.0
  %313 = vmatpush1.msra.mxu0 0.0
  %314 = vmatprep.subr.mxu0 0.0
  %315 = vmatpush1.msra.mxu0 0.0
  %316 = vmatprep.subr.mxu0 0.0
  %317 = vmatpush1.msra.mxu0 0.0
  %318 = vmatprep.subr.mxu0 0.0
  %319 = vmatpush1.msra.mxu0 %v279
  %320 = vmatprep.subr.mxu0 0.0
  %321 = vmatpush1.msra.mxu0 %v278
  %322 = vmatprep.subr.mxu0 0.0
  %323 = vmatpush2.msra.mxu0 0.0
  %324 = vmatprep.subr.mxu0 0.0
  %325 = vmatpush2.msra.mxu0 0.0
  %326 = vmatprep.subr.mxu0 0.0
  %327 = vmatpush2.msra.mxu0 0.0
  %328 = vmatprep.subr.mxu0 0.0
  %329 = vmatpush2.msra.mxu0 0.0
  %330 = vmatprep.subr.mxu0 0.0
  %331 = vmatpush2.msra.mxu0 0.0
  %332 = vmatprep.subr.mxu0 0.0
  %333 = vmatpush2.msra.mxu0 0.0
  %334 = vmatprep.subr.mxu0 0.0
  %335 = vmatpush2.msra.mxu0 0.0
  %336 = vmatprep.subr.mxu0 0.0
  %337 = vmatpush2.msra.mxu0 0.0
  %338 = vmatprep.subr.mxu0 0.0
  %339 = vmatpush2.msra.mxu0 0.0
  %340 = vmatprep.subr.mxu0 0.0
  %341 = vmatpush2.msra.mxu0 0.0
  %342 = vmatprep.subr.mxu0 0.0
  %343 = vmatpush2.msra.mxu0 0.0
  %344 = vmatprep.subr.mxu0 0.0
  %345 = vmatpush2.msra.mxu0 0.0
  %346 = vmatprep.subr.mxu0 0.0
  %347 = vmatpush2.msra.mxu0 0.0
  %348 = vmatprep.subr.mxu0 0.0
  %349 = vmatpush2.msra.mxu0 0.0
  %350 = vmatprep.subr.mxu0 0.0
  %351 = vmatpush2.msra.mxu0 0.0
  %352 = vmatprep.subr.mxu0 0.0
  %353 = vmatpush2.msra.mxu0 0.0
  %354 = vmatprep.mubr.f32.mxu0 0.0
  %355 = vmatmul.mubr.f32.gmra.mxu0 %v288
  %v356 = vpop.f32.mrf.mxu0
  %v357 = vadd.f32 %v285, %v356
  %v358 = vpop.f32.mrf.mxu0
  %359 = vdwg.mxu0
  %v360 = vtanh.pop %v357
  %s361 = scalar_lea.vmem %s3, 56
  %v362 = vld [vmem:[%s361] sm:$0xff]
  %v363 = vld [vmem:[%s5] sm:$0xff]
  %v364 = vsub.f32 %v363, %v362
  %v365 = vld [vmem:[%s19] sm:$0xff]
  %v366 = vld [vmem:[%s19 + $0x8] sm:$0xff]
  %v367 = vld [vmem:[%s21] sm:$0x3]
  %v368 = vld [vmem:[%s23] sm:$0x1]
  %v370 = vlaneseq
  %v371 = vshrl.u32 %v370, 7
  %v372 = vsub.s32 0, %v371
  %v373 = vrot.slane %v368, %v372
  %v375 = vld [vmem:[%s25] sm:$0xff]
  %v376 = vld [vmem:[%s25 + $0x8] sm:$0xff]
  %v377 = vld [vmem:[%s27] sm:$0xff]
  %v378 = vld [vmem:[%s27 + $0x8] sm:$0xff]
  %v379 = vld [vmem:[%s29] sm:$0x1]
  %v381 = vlaneseq
  %v382 = vshrl.u32 %v381, 7
  %v383 = vsub.s32 0, %v382
  %v384 = vrot.slane %v379, %v383
  %v386 = vld [vmem:[%s31] sm:$0x3]
  %v387 = vld [vmem:[%s33] sm:$0x1]
  %v389 = vlaneseq
  %v390 = vshrl.u32 %v389, 7
  %v391 = vsub.s32 0, %v390
  %v392 = vrot.slane %v387, %v391
  %v394 = vld [vmem:[%s35] sm:$0xff]
  %v395 = vld [vmem:[%s35 + $0x8] sm:$0xff]
  %v396 = vld [vmem:[%s37] sm:$0xff]
  %v397 = vld [vmem:[%s37 + $0x8] sm:$0xff]
  %v398 = vld [vmem:[%s39] sm:$0x1]
  %v400 = vlaneseq
  %v401 = vshrl.u32 %v400, 7
  %v402 = vsub.s32 0, %v401
  %v403 = vrot.slane %v398, %v402
  %v405 = vld [vmem:[%s41] sm:$0xff]
  %v406 = vld [vmem:[%s41 + $0x8] sm:$0xff]
  %v407 = vld [vmem:[%s43] sm:$0x3]
  %v408 = vld [vmem:[%s47] sm:$0xff]
  %v409 = vld [vmem:[%s47 + $0x8] sm:$0xff]
  %v410 = vld [vmem:[%s51] sm:$0xff]
  %v411 = vld [vmem:[%s51 + $0x8] sm:$0xff]
  %v412 = vld [vmem:[%s53] sm:$0x1]
  %v414 = vlaneseq
  %v415 = vshrl.u32 %v414, 7
  %v416 = vsub.s32 0, %v415
  %v417 = vrot.slane %v412, %v416
  %v419 = vld [vmem:[%s55] sm:$0xff]
  %v420 = vld [vmem:[%s55 + $0x8] sm:$0xff]
  %v421 = vld [vmem:[%s57] sm:$0x1]
  %v423 = vlaneseq
  %v424 = vshrl.u32 %v423, 7
  %v425 = vsub.s32 0, %v424
  %v426 = vrot.slane %v421, %v425
  %v428 = vld [vmem:[%s7] sm:$0xff]
  %v429 = vld [vmem:[%s7 + $0x8] sm:$0xff]
  %v430 = vld [vmem:[%s9] sm:$0xff]
  %432 = vset.pattern.permute.xlu0 0
  %433 = vperm.xlu0 %432, %v364
  %v434 = vpop.permute.xlu0 %433
  %v436 = vlaneseq
  %v437 = vshrl.u32 %v436, 7
  %v438 = vsub.s32 0, %v437
  %v439 = vrot.slane %v407, %v438
  %v440 = vmul.f32 %v434, %v439
  %441 = vset.pattern.permute.xlu0 1
  %442 = vperm.xlu0 %441, %v364
  %v443 = vpop.permute.xlu0 %442
  %v445 = vlaneseq
  %v446 = vshrl.u32 %v445, 7
  %v447 = vsub.s32 1, %v446
  %v448 = vrot.slane %v407, %v447
  %v449 = vmul.f32 %v443, %v448
  %v450 = vadd.f32 %v440, %v449
  %v451 = vld [vmem:[%s45] sm:$0x1]
  %v453 = vlaneseq
  %v454 = vshrl.u32 %v453, 7
  %v455 = vsub.s32 0, %v454
  %v456 = vrot.slane %v451, %v455
  %v458 = vadd.f32 %v450, %v456
  %s459 = scalar_lea.vmem %s1, 56
  %v460 = vld [vmem:[%s459] sm:$0xff]
  %462 = vset.pattern.permute.xlu0 0
  %463 = vperm.xlu0 %462, %v460
  %v464 = vpop.permute.xlu0 %463
  %v466 = vlaneseq
  %v467 = vshrl.u32 %v466, 7
  %v468 = vsub.s32 0, %v467
  %v469 = vrot.slane %v367, %v468
  %v470 = vmul.f32 %v464, %v469
  %471 = vset.pattern.permute.xlu0 1
  %472 = vperm.xlu0 %471, %v460
  %v473 = vpop.permute.xlu0 %472
  %v475 = vlaneseq
  %v476 = vshrl.u32 %v475, 7
  %v477 = vsub.s32 1, %v476
  %v478 = vrot.slane %v367, %v477
  %v479 = vmul.f32 %v473, %v478
  %v480 = vadd.f32 %v470, %v479
  %482 = vset.pattern.permute.xlu0 0
  %483 = vperm.xlu0 %482, %v362
  %v484 = vpop.permute.xlu0 %483
  %v486 = vlaneseq
  %v487 = vshrl.u32 %v486, 7
  %v488 = vsub.s32 0, %v487
  %v489 = vrot.slane %v386, %v488
  %v490 = vmul.f32 %v484, %v489
  %491 = vset.pattern.permute.xlu0 1
  %492 = vperm.xlu0 %491, %v362
  %v493 = vpop.permute.xlu0 %492
  %v495 = vlaneseq
  %v496 = vshrl.u32 %v495, 7
  %v497 = vsub.s32 1, %v496
  %v498 = vrot.slane %v386, %v497
  %v499 = vmul.f32 %v493, %v498
  %v500 = vadd.f32 %v490, %v499
  %v502 = vsel %vm261, 0.0, 0
  %504 = vmatprep.subr.mxu0 0.0
  %505 = vmatpush1.msra.mxu0 0.0
  %506 = vmatprep.subr.mxu0 0.0
  %507 = vmatpush1.msra.mxu0 0.0
  %508 = vmatprep.subr.mxu0 0.0
  %509 = vmatpush1.msra.mxu0 0.0
  %510 = vmatprep.subr.mxu0 0.0
  %511 = vmatpush1.msra.mxu0 0.0
  %512 = vmatprep.subr.mxu0 0.0
  %513 = vmatpush1.msra.mxu0 0.0
  %514 = vmatprep.subr.mxu0 0.0
  %515 = vmatpush1.msra.mxu0 0.0
  %516 = vmatprep.subr.mxu0 0.0
  %517 = vmatpush1.msra.mxu0 0.0
  %518 = vmatprep.subr.mxu0 0.0
  %519 = vmatpush1.msra.mxu0 0.0
  %520 = vmatprep.subr.mxu0 0.0
  %521 = vmatpush1.msra.mxu0 0.0
  %522 = vmatprep.subr.mxu0 0.0
  %523 = vmatpush1.msra.mxu0 0.0
  %524 = vmatprep.subr.mxu0 0.0
  %525 = vmatpush1.msra.mxu0 0.0
  %526 = vmatprep.subr.mxu0 0.0
  %527 = vmatpush1.msra.mxu0 0.0
  %528 = vmatprep.subr.mxu0 0.0
  %529 = vmatpush1.msra.mxu0 0.0
  %530 = vmatprep.subr.mxu0 0.0
  %531 = vmatpush1.msra.mxu0 0.0
  %532 = vmatprep.subr.mxu0 0.0
  %533 = vmatpush1.msra.mxu0 %v366
  %534 = vmatprep.subr.mxu0 0.0
  %535 = vmatpush1.msra.mxu0 %v365
  %536 = vmatprep.subr.mxu0 0.0
  %537 = vmatpush2.msra.mxu0 0.0
  %538 = vmatprep.subr.mxu0 0.0
  %539 = vmatpush2.msra.mxu0 0.0
  %540 = vmatprep.subr.mxu0 0.0
  %541 = vmatpush2.msra.mxu0 0.0
  %542 = vmatprep.subr.mxu0 0.0
  %543 = vmatpush2.msra.mxu0 0.0
  %544 = vmatprep.subr.mxu0 0.0
  %545 = vmatpush2.msra.mxu0 0.0
  %546 = vmatprep.subr.mxu0 0.0
  %547 = vmatpush2.msra.mxu0 0.0
  %548 = vmatprep.subr.mxu0 0.0
  %549 = vmatpush2.msra.mxu0 0.0
  %550 = vmatprep.subr.mxu0 0.0
  %551 = vmatpush2.msra.mxu0 0.0
  %552 = vmatprep.subr.mxu0 0.0
  %553 = vmatpush2.msra.mxu0 0.0
  %554 = vmatprep.subr.mxu0 0.0
  %555 = vmatpush2.msra.mxu0 0.0
  %556 = vmatprep.subr.mxu0 0.0
  %557 = vmatpush2.msra.mxu0 0.0
  %558 = vmatprep.subr.mxu0 0.0
  %559 = vmatpush2.msra.mxu0 0.0
  %560 = vmatprep.subr.mxu0 0.0
  %561 = vmatpush2.msra.mxu0 0.0
  %562 = vmatprep.subr.mxu0 0.0
  %563 = vmatpush2.msra.mxu0 0.0
  %564 = vmatprep.subr.mxu0 0.0
  %565 = vmatpush2.msra.mxu0 0.0
  %566 = vmatprep.subr.mxu0 0.0
  %567 = vmatpush2.msra.mxu0 0.0
  %568 = vmatprep.mubr.f32.mxu0 0.0
  %569 = vmatmul.mubr.f32.gmra.mxu0 %v502
  %v570 = vpop.f32.mrf.mxu0
  %v571 = vadd.f32 %v480, %v570
  %v572 = vpop.f32.mrf.mxu0
  %573 = vdwg.mxu0
  %v574 = vadd.f32 %v571, %v373
  %v575 = vmax.f32 %v574, 0.0
  %v577 = vsel %vm261, %v360, 0
  %579 = vmatprep.subr.mxu0 0.0
  %580 = vmatpush1.msra.mxu0 0.0
  %581 = vmatprep.subr.mxu0 0.0
  %582 = vmatpush1.msra.mxu0 0.0
  %583 = vmatprep.subr.mxu0 0.0
  %584 = vmatpush1.msra.mxu0 0.0
  %585 = vmatprep.subr.mxu0 0.0
  %586 = vmatpush1.msra.mxu0 0.0
  %587 = vmatprep.subr.mxu0 0.0
  %588 = vmatpush1.msra.mxu0 0.0
  %589 = vmatprep.subr.mxu0 0.0
  %590 = vmatpush1.msra.mxu0 0.0
  %591 = vmatprep.subr.mxu0 0.0
  %592 = vmatpush1.msra.mxu0 0.0
  %593 = vmatprep.subr.mxu0 0.0
  %594 = vmatpush1.msra.mxu0 0.0
  %595 = vmatprep.subr.mxu0 0.0
  %596 = vmatpush1.msra.mxu0 0.0
  %597 = vmatprep.subr.mxu0 0.0
  %598 = vmatpush1.msra.mxu0 0.0
  %599 = vmatprep.subr.mxu0 0.0
  %600 = vmatpush1.msra.mxu0 0.0
  %601 = vmatprep.subr.mxu0 0.0
  %602 = vmatpush1.msra.mxu0 0.0
  %603 = vmatprep.subr.mxu0 0.0
  %604 = vmatpush1.msra.mxu0 0.0
  %605 = vmatprep.subr.mxu0 0.0
  %606 = vmatpush1.msra.mxu0 0.0
  %607 = vmatprep.subr.mxu0 0.0
  %608 = vmatpush1.msra.mxu0 %v378
  %609 = vmatprep.subr.mxu0 0.0
  %610 = vmatpush1.msra.mxu0 %v377
  %611 = vmatprep.subr.mxu0 0.0
  %612 = vmatpush2.msra.mxu0 0.0
  %613 = vmatprep.subr.mxu0 0.0
  %614 = vmatpush2.msra.mxu0 0.0
  %615 = vmatprep.subr.mxu0 0.0
  %616 = vmatpush2.msra.mxu0 0.0
  %617 = vmatprep.subr.mxu0 0.0
  %618 = vmatpush2.msra.mxu0 0.0
  %619 = vmatprep.subr.mxu0 0.0
  %620 = vmatpush2.msra.mxu0 0.0
  %621 = vmatprep.subr.mxu0 0.0
  %622 = vmatpush2.msra.mxu0 0.0
  %623 = vmatprep.subr.mxu0 0.0
  %624 = vmatpush2.msra.mxu0 0.0
  %625 = vmatprep.subr.mxu0 0.0
  %626 = vmatpush2.msra.mxu0 0.0
  %627 = vmatprep.subr.mxu0 0.0
  %628 = vmatpush2.msra.mxu0 0.0
  %629 = vmatprep.subr.mxu0 0.0
  %630 = vmatpush2.msra.mxu0 0.0
  %631 = vmatprep.subr.mxu0 0.0
  %632 = vmatpush2.msra.mxu0 0.0
  %633 = vmatprep.subr.mxu0 0.0
  %634 = vmatpush2.msra.mxu0 0.0
  %635 = vmatprep.subr.mxu0 0.0
  %636 = vmatpush2.msra.mxu0 0.0
  %637 = vmatprep.subr.mxu0 0.0
  %638 = vmatpush2.msra.mxu0 0.0
  %639 = vmatprep.subr.mxu0 0.0
  %640 = vmatpush2.msra.mxu0 0.0
  %641 = vmatprep.subr.mxu0 0.0
  %642 = vmatpush2.msra.mxu0 0.0
  %643 = vmatprep.mubr.f32.mxu0 0.0
  %644 = vmatmul.mubr.f32.gmra.mxu0 %v577
  %v645 = vpop.f32.mrf.mxu0
  %v646 = vadd.f32 0.0, %v645
  %v647 = vpop.f32.mrf.mxu0
  %648 = vdwg.mxu0
  %v650 = vsel %vm261, %v575, 0
  %652 = vmatprep.subr.mxu0 0.0
  %653 = vmatpush1.msra.mxu0 0.0
  %654 = vmatprep.subr.mxu0 0.0
  %655 = vmatpush1.msra.mxu0 0.0
  %656 = vmatprep.subr.mxu0 0.0
  %657 = vmatpush1.msra.mxu0 0.0
  %658 = vmatprep.subr.mxu0 0.0
  %659 = vmatpush1.msra.mxu0 0.0
  %660 = vmatprep.subr.mxu0 0.0
  %661 = vmatpush1.msra.mxu0 0.0
  %662 = vmatprep.subr.mxu0 0.0
  %663 = vmatpush1.msra.mxu0 0.0
  %664 = vmatprep.subr.mxu0 0.0
  %665 = vmatpush1.msra.mxu0 0.0
  %666 = vmatprep.subr.mxu0 0.0
  %667 = vmatpush1.msra.mxu0 0.0
  %668 = vmatprep.subr.mxu0 0.0
  %669 = vmatpush1.msra.mxu0 0.0
  %670 = vmatprep.subr.mxu0 0.0
  %671 = vmatpush1.msra.mxu0 0.0
  %672 = vmatprep.subr.mxu0 0.0
  %673 = vmatpush1.msra.mxu0 0.0
  %674 = vmatprep.subr.mxu0 0.0
  %675 = vmatpush1.msra.mxu0 0.0
  %676 = vmatprep.subr.mxu0 0.0
  %677 = vmatpush1.msra.mxu0 0.0
  %678 = vmatprep.subr.mxu0 0.0
  %679 = vmatpush1.msra.mxu0 0.0
  %680 = vmatprep.subr.mxu0 0.0
  %681 = vmatpush1.msra.mxu0 %v376
  %682 = vmatprep.subr.mxu0 0.0
  %683 = vmatpush1.msra.mxu0 %v375
  %684 = vmatprep.subr.mxu0 0.0
  %685 = vmatpush2.msra.mxu0 0.0
  %686 = vmatprep.subr.mxu0 0.0
  %687 = vmatpush2.msra.mxu0 0.0
  %688 = vmatprep.subr.mxu0 0.0
  %689 = vmatpush2.msra.mxu0 0.0
  %690 = vmatprep.subr.mxu0 0.0
  %691 = vmatpush2.msra.mxu0 0.0
  %692 = vmatprep.subr.mxu0 0.0
  %693 = vmatpush2.msra.mxu0 0.0
  %694 = vmatprep.subr.mxu0 0.0
  %695 = vmatpush2.msra.mxu0 0.0
  %696 = vmatprep.subr.mxu0 0.0
  %697 = vmatpush2.msra.mxu0 0.0
  %698 = vmatprep.subr.mxu0 0.0
  %699 = vmatpush2.msra.mxu0 0.0
  %700 = vmatprep.subr.mxu0 0.0
  %701 = vmatpush2.msra.mxu0 0.0
  %702 = vmatprep.subr.mxu0 0.0
  %703 = vmatpush2.msra.mxu0 0.0
  %704 = vmatprep.subr.mxu0 0.0
  %705 = vmatpush2.msra.mxu0 0.0
  %706 = vmatprep.subr.mxu0 0.0
  %707 = vmatpush2.msra.mxu0 0.0
  %708 = vmatprep.subr.mxu0 0.0
  %709 = vmatpush2.msra.mxu0 0.0
  %710 = vmatprep.subr.mxu0 0.0
  %711 = vmatpush2.msra.mxu0 0.0
  %712 = vmatprep.subr.mxu0 0.0
  %713 = vmatpush2.msra.mxu0 0.0
  %714 = vmatprep.subr.mxu0 0.0
  %715 = vmatpush2.msra.mxu0 0.0
  %716 = vmatprep.mubr.f32.mxu0 0.0
  %717 = vmatmul.mubr.f32.gmra.mxu0 %v650
  %v718 = vpop.f32.mrf.mxu0
  %v719 = vadd.f32 %v646, %v718
  %v720 = vpop.f32.mrf.mxu0
  %721 = vdwg.mxu0
  %v722 = vadd.f32 %v719, %v384
  %v723 = vxor.u32 %v722, 2147483648
  %v724 = vmul.f32 %v723, 1.442695
  %v725 = vpow.pop %v724
  %v726 = vadd.f32 %v725, 1.0
  %v727 = vrcp.pop %v726
  %v728 = vmul.f32 1.0, %v727
  %v729 = vtanh.pop %v722
  %v730 = vmul.f32 %v728, 0.0
  %732 = vrot.lane.b32.xlu0 %v729, 96
  %v733 = vpop.permute.xlu0 %732
  %v735 = vmul.f32 %v728, %v733
  %737 = vrot.lane.b32.xlu0 %v735, 16
  %v738 = vpop.permute.xlu0 %737
  %v740 = vadd.f32 %v730, %v738
  %v741 = vtanh.pop %v740
  %743 = vrot.lane.b32.xlu0 %v741, 32
  %v744 = vpop.permute.xlu0 %743
  %v746 = vmul.f32 %v728, %v744
  %vm747 = vcmask 64512
  %v749 = vsel %vm747, %v428, 0
  %v752 = vsel %vm747, %v429, 0
  %754 = vmatprep.subr.mxu0 0.0
  %755 = vmatpush1.msra.mxu0 0.0
  %756 = vmatprep.subr.mxu0 0.0
  %757 = vmatpush1.msra.mxu0 0.0
  %758 = vmatprep.subr.mxu0 0.0
  %759 = vmatpush1.msra.mxu0 0.0
  %760 = vmatprep.subr.mxu0 0.0
  %761 = vmatpush1.msra.mxu0 0.0
  %762 = vmatprep.subr.mxu0 0.0
  %763 = vmatpush1.msra.mxu0 0.0
  %764 = vmatprep.subr.mxu0 0.0
  %765 = vmatpush1.msra.mxu0 0.0
  %766 = vmatprep.subr.mxu0 0.0
  %767 = vmatpush1.msra.mxu0 0.0
  %768 = vmatprep.subr.mxu0 0.0
  %769 = vmatpush1.msra.mxu0 0.0
  %770 = vmatprep.subr.mxu0 0.0
  %771 = vmatpush1.msra.mxu0 0.0
  %772 = vmatprep.subr.mxu0 0.0
  %773 = vmatpush1.msra.mxu0 0.0
  %774 = vmatprep.subr.mxu0 0.0
  %775 = vmatpush1.msra.mxu0 0.0
  %776 = vmatprep.subr.mxu0 0.0
  %777 = vmatpush1.msra.mxu0 0.0
  %778 = vmatprep.subr.mxu0 0.0
  %779 = vmatpush1.msra.mxu0 0.0
  %780 = vmatprep.subr.mxu0 0.0
  %781 = vmatpush1.msra.mxu0 0.0
  %782 = vmatprep.subr.mxu0 0.0
  %783 = vmatpush1.msra.mxu0 0.0
  %784 = vmatprep.subr.mxu0 0.0
  %785 = vmatpush1.msra.mxu0 %v500
  %786 = vmatprep.subr.mxu0 0.0
  %787 = vmatpush2.msra.mxu0 0.0
  %788 = vmatprep.subr.mxu0 0.0
  %789 = vmatpush2.msra.mxu0 0.0
  %790 = vmatprep.subr.mxu0 0.0
  %791 = vmatpush2.msra.mxu0 0.0
  %792 = vmatprep.subr.mxu0 0.0
  %793 = vmatpush2.msra.mxu0 0.0
  %794 = vmatprep.subr.mxu0 0.0
  %795 = vmatpush2.msra.mxu0 0.0
  %796 = vmatprep.subr.mxu0 0.0
  %797 = vmatpush2.msra.mxu0 0.0
  %798 = vmatprep.subr.mxu0 0.0
  %799 = vmatpush2.msra.mxu0 0.0
  %800 = vmatprep.subr.mxu0 0.0
  %801 = vmatpush2.msra.mxu0 0.0
  %802 = vmatprep.subr.mxu0 0.0
  %803 = vmatpush2.msra.mxu0 0.0
  %804 = vmatprep.subr.mxu0 0.0
  %805 = vmatpush2.msra.mxu0 0.0
  %806 = vmatprep.subr.mxu0 0.0
  %807 = vmatpush2.msra.mxu0 0.0
  %808 = vmatprep.subr.mxu0 0.0
  %809 = vmatpush2.msra.mxu0 0.0
  %810 = vmatprep.subr.mxu0 0.0
  %811 = vmatpush2.msra.mxu0 0.0
  %812 = vmatprep.subr.mxu0 0.0
  %813 = vmatpush2.msra.mxu0 0.0
  %814 = vmatprep.subr.mxu0 0.0
  %815 = vmatpush2.msra.mxu0 0.0
  %816 = vmatprep.subr.mxu0 0.0
  %817 = vmatpush2.msra.mxu0 0.0
  %818 = vmatprep.mubr.f32.mxu0 0.0
  %819 = vmatmul.mubr.f32.gmra.mxu0 %v749
  %v820 = vpop.f32.mrf.mxu0
  %v821 = vadd.f32 %v392, %v820
  %v822 = vpop.f32.mrf.mxu0
  %823 = vmatprep.mubr.f32.mxu0 0.0
  %824 = vmatmul.mubr.f32.gmra.mxu0 %v752
  %v825 = vpop.f32.mrf.mxu0
  %v826 = vadd.f32 %v392, %v825
  %v827 = vpop.f32.mrf.mxu0
  %828 = vdwg.mxu0
  %v829 = vmax.f32 %v821, 0.0
  %v830 = vmax.f32 %v826, 0.0
  %v832 = vsel %vm261, %v430, 0
  %834 = vmatprep.subr.mxu0 0.0
  %835 = vmatpush1.msra.mxu0 0.0
  %836 = vmatprep.subr.mxu0 0.0
  %837 = vmatpush1.msra.mxu0 0.0
  %838 = vmatprep.subr.mxu0 0.0
  %839 = vmatpush1.msra.mxu0 0.0
  %840 = vmatprep.subr.mxu0 0.0
  %841 = vmatpush1.msra.mxu0 0.0
  %842 = vmatprep.subr.mxu0 0.0
  %843 = vmatpush1.msra.mxu0 0.0
  %844 = vmatprep.subr.mxu0 0.0
  %845 = vmatpush1.msra.mxu0 0.0
  %846 = vmatprep.subr.mxu0 0.0
  %847 = vmatpush1.msra.mxu0 0.0
  %848 = vmatprep.subr.mxu0 0.0
  %849 = vmatpush1.msra.mxu0 0.0
  %850 = vmatprep.subr.mxu0 0.0
  %851 = vmatpush1.msra.mxu0 0.0
  %852 = vmatprep.subr.mxu0 0.0
  %853 = vmatpush1.msra.mxu0 0.0
  %854 = vmatprep.subr.mxu0 0.0
  %855 = vmatpush1.msra.mxu0 0.0
  %856 = vmatprep.subr.mxu0 0.0
  %857 = vmatpush1.msra.mxu0 0.0
  %858 = vmatprep.subr.mxu0 0.0
  %859 = vmatpush1.msra.mxu0 0.0
  %860 = vmatprep.subr.mxu0 0.0
  %861 = vmatpush1.msra.mxu0 0.0
  %862 = vmatprep.subr.mxu0 0.0
  %863 = vmatpush1.msra.mxu0 %v830
  %864 = vmatprep.subr.mxu0 0.0
  %865 = vmatpush1.msra.mxu0 %v829
  %866 = vmatprep.subr.mxu0 0.0
  %867 = vmatpush2.msra.mxu0 0.0
  %868 = vmatprep.subr.mxu0 0.0
  %869 = vmatpush2.msra.mxu0 0.0
  %870 = vmatprep.subr.mxu0 0.0
  %871 = vmatpush2.msra.mxu0 0.0
  %872 = vmatprep.subr.mxu0 0.0
  %873 = vmatpush2.msra.mxu0 0.0
  %874 = vmatprep.subr.mxu0 0.0
  %875 = vmatpush2.msra.mxu0 0.0
  %876 = vmatprep.subr.mxu0 0.0
  %877 = vmatpush2.msra.mxu0 0.0
  %878 = vmatprep.subr.mxu0 0.0
  %879 = vmatpush2.msra.mxu0 0.0
  %880 = vmatprep.subr.mxu0 0.0
  %881 = vmatpush2.msra.mxu0 0.0
  %882 = vmatprep.subr.mxu0 0.0
  %883 = vmatpush2.msra.mxu0 0.0
  %884 = vmatprep.subr.mxu0 0.0
  %885 = vmatpush2.msra.mxu0 0.0
  %886 = vmatprep.subr.mxu0 0.0
  %887 = vmatpush2.msra.mxu0 0.0
  %888 = vmatprep.subr.mxu0 0.0
  %889 = vmatpush2.msra.mxu0 0.0
  %890 = vmatprep.subr.mxu0 0.0
  %891 = vmatpush2.msra.mxu0 0.0
  %892 = vmatprep.subr.mxu0 0.0
  %893 = vmatpush2.msra.mxu0 0.0
  %894 = vmatprep.subr.mxu0 0.0
  %895 = vmatpush2.msra.mxu0 0.0
  %896 = vmatprep.subr.mxu0 0.0
  %897 = vmatpush2.msra.mxu0 0.0
  %898 = vmatprep.mubr.f32.mxu0 0.0
  %899 = vmatmul.mubr.f32.gmra.mxu0 %v832
  %v900 = vpop.f32.mrf.mxu0
  %v901 = vadd.f32 0.0, %v900
  %v902 = vpop.f32.mrf.mxu0
  %903 = vdwg.mxu0
  %905 = vrot.lane.b32.xlu0 %v746, 80
  %v906 = vpop.permute.xlu0 %905
  %v907 = vsel %vm261, %v906, 0
  %909 = vmatprep.subr.mxu0 0.0
  %910 = vmatpush1.msra.mxu0 0.0
  %911 = vmatprep.subr.mxu0 0.0
  %912 = vmatpush1.msra.mxu0 0.0
  %913 = vmatprep.subr.mxu0 0.0
  %914 = vmatpush1.msra.mxu0 0.0
  %915 = vmatprep.subr.mxu0 0.0
  %916 = vmatpush1.msra.mxu0 0.0
  %917 = vmatprep.subr.mxu0 0.0
  %918 = vmatpush1.msra.mxu0 0.0
  %919 = vmatprep.subr.mxu0 0.0
  %920 = vmatpush1.msra.mxu0 0.0
  %921 = vmatprep.subr.mxu0 0.0
  %922 = vmatpush1.msra.mxu0 0.0
  %923 = vmatprep.subr.mxu0 0.0
  %924 = vmatpush1.msra.mxu0 0.0
  %925 = vmatprep.subr.mxu0 0.0
  %926 = vmatpush1.msra.mxu0 0.0
  %927 = vmatprep.subr.mxu0 0.0
  %928 = vmatpush1.msra.mxu0 0.0
  %929 = vmatprep.subr.mxu0 0.0
  %930 = vmatpush1.msra.mxu0 0.0
  %931 = vmatprep.subr.mxu0 0.0
  %932 = vmatpush1.msra.mxu0 0.0
  %933 = vmatprep.subr.mxu0 0.0
  %934 = vmatpush1.msra.mxu0 0.0
  %935 = vmatprep.subr.mxu0 0.0
  %936 = vmatpush1.msra.mxu0 0.0
  %937 = vmatprep.subr.mxu0 0.0
  %938 = vmatpush1.msra.mxu0 %v397
  %939 = vmatprep.subr.mxu0 0.0
  %940 = vmatpush1.msra.mxu0 %v396
  %941 = vmatprep.subr.mxu0 0.0
  %942 = vmatpush2.msra.mxu0 0.0
  %943 = vmatprep.subr.mxu0 0.0
  %944 = vmatpush2.msra.mxu0 0.0
  %945 = vmatprep.subr.mxu0 0.0
  %946 = vmatpush2.msra.mxu0 0.0
  %947 = vmatprep.subr.mxu0 0.0
  %948 = vmatpush2.msra.mxu0 0.0
  %949 = vmatprep.subr.mxu0 0.0
  %950 = vmatpush2.msra.mxu0 0.0
  %951 = vmatprep.subr.mxu0 0.0
  %952 = vmatpush2.msra.mxu0 0.0
  %953 = vmatprep.subr.mxu0 0.0
  %954 = vmatpush2.msra.mxu0 0.0
  %955 = vmatprep.subr.mxu0 0.0
  %956 = vmatpush2.msra.mxu0 0.0
  %957 = vmatprep.subr.mxu0 0.0
  %958 = vmatpush2.msra.mxu0 0.0
  %959 = vmatprep.subr.mxu0 0.0
  %960 = vmatpush2.msra.mxu0 0.0
  %961 = vmatprep.subr.mxu0 0.0
  %962 = vmatpush2.msra.mxu0 0.0
  %963 = vmatprep.subr.mxu0 0.0
  %964 = vmatpush2.msra.mxu0 0.0
  %965 = vmatprep.subr.mxu0 0.0
  %966 = vmatpush2.msra.mxu0 0.0
  %967 = vmatprep.subr.mxu0 0.0
  %968 = vmatpush2.msra.mxu0 0.0
  %969 = vmatprep.subr.mxu0 0.0
  %970 = vmatpush2.msra.mxu0 0.0
  %971 = vmatprep.subr.mxu0 0.0
  %972 = vmatpush2.msra.mxu0 0.0
  %973 = vmatprep.mubr.f32.mxu0 0.0
  %974 = vmatmul.mubr.f32.gmra.mxu0 %v907
  %v975 = vpop.f32.mrf.mxu0
  %v976 = vadd.f32 0.0, %v975
  %v977 = vpop.f32.mrf.mxu0
  %978 = vdwg.mxu0
  %v980 = vsel %vm261, %v901, 0
  %982 = vmatprep.subr.mxu0 0.0
  %983 = vmatpush1.msra.mxu0 0.0
  %984 = vmatprep.subr.mxu0 0.0
  %985 = vmatpush1.msra.mxu0 0.0
  %986 = vmatprep.subr.mxu0 0.0
  %987 = vmatpush1.msra.mxu0 0.0
  %988 = vmatprep.subr.mxu0 0.0
  %989 = vmatpush1.msra.mxu0 0.0
  %990 = vmatprep.subr.mxu0 0.0
  %991 = vmatpush1.msra.mxu0 0.0
  %992 = vmatprep.subr.mxu0 0.0
  %993 = vmatpush1.msra.mxu0 0.0
  %994 = vmatprep.subr.mxu0 0.0
  %995 = vmatpush1.msra.mxu0 0.0
  %996 = vmatprep.subr.mxu0 0.0
  %997 = vmatpush1.msra.mxu0 0.0
  %998 = vmatprep.subr.mxu0 0.0
  %999 = vmatpush1.msra.mxu0 0.0
  %1000 = vmatprep.subr.mxu0 0.0
  %1001 = vmatpush1.msra.mxu0 0.0
  %1002 = vmatprep.subr.mxu0 0.0
  %1003 = vmatpush1.msra.mxu0 0.0
  %1004 = vmatprep.subr.mxu0 0.0
  %1005 = vmatpush1.msra.mxu0 0.0
  %1006 = vmatprep.subr.mxu0 0.0
  %1007 = vmatpush1.msra.mxu0 0.0
  %1008 = vmatprep.subr.mxu0 0.0
  %1009 = vmatpush1.msra.mxu0 0.0
  %1010 = vmatprep.subr.mxu0 0.0
  %1011 = vmatpush1.msra.mxu0 %v395
  %1012 = vmatprep.subr.mxu0 0.0
  %1013 = vmatpush1.msra.mxu0 %v394
  %1014 = vmatprep.subr.mxu0 0.0
  %1015 = vmatpush2.msra.mxu0 0.0
  %1016 = vmatprep.subr.mxu0 0.0
  %1017 = vmatpush2.msra.mxu0 0.0
  %1018 = vmatprep.subr.mxu0 0.0
  %1019 = vmatpush2.msra.mxu0 0.0
  %1020 = vmatprep.subr.mxu0 0.0
  %1021 = vmatpush2.msra.mxu0 0.0
  %1022 = vmatprep.subr.mxu0 0.0
  %1023 = vmatpush2.msra.mxu0 0.0
  %1024 = vmatprep.subr.mxu0 0.0
  %1025 = vmatpush2.msra.mxu0 0.0
  %1026 = vmatprep.subr.mxu0 0.0
  %1027 = vmatpush2.msra.mxu0 0.0
  %1028 = vmatprep.subr.mxu0 0.0
  %1029 = vmatpush2.msra.mxu0 0.0
  %1030 = vmatprep.subr.mxu0 0.0
  %1031 = vmatpush2.msra.mxu0 0.0
  %1032 = vmatprep.subr.mxu0 0.0
  %1033 = vmatpush2.msra.mxu0 0.0
  %1034 = vmatprep.subr.mxu0 0.0
  %1035 = vmatpush2.msra.mxu0 0.0
  %1036 = vmatprep.subr.mxu0 0.0
  %1037 = vmatpush2.msra.mxu0 0.0
  %1038 = vmatprep.subr.mxu0 0.0
  %1039 = vmatpush2.msra.mxu0 0.0
  %1040 = vmatprep.subr.mxu0 0.0
  %1041 = vmatpush2.msra.mxu0 0.0
  %1042 = vmatprep.subr.mxu0 0.0
  %1043 = vmatpush2.msra.mxu0 0.0
  %1044 = vmatprep.subr.mxu0 0.0
  %1045 = vmatpush2.msra.mxu0 0.0
  %1046 = vmatprep.mubr.f32.mxu0 0.0
  %1047 = vmatmul.mubr.f32.gmra.mxu0 %v980
  %v1048 = vpop.f32.mrf.mxu0
  %v1049 = vadd.f32 %v976, %v1048
  %v1050 = vpop.f32.mrf.mxu0
  %1051 = vdwg.mxu0
  %v1052 = vadd.f32 %v1049, %v403
  %v1053 = vmax.f32 %v1052, 0.0
  %1055 = vrot.lane.b32.xlu0 %v1053, 48
  %v1056 = vpop.permute.xlu0 %1055
  %v1058 = vadd.f32 %v746, %v1056
  %1060 = vrot.lane.b32.xlu0 %v1058, 80
  %v1061 = vpop.permute.xlu0 %1060
  %v1062 = vsel %vm261, %v1061, 0
  %1064 = vmatprep.subr.mxu0 0.0
  %1065 = vmatpush1.msra.mxu0 0.0
  %1066 = vmatprep.subr.mxu0 0.0
  %1067 = vmatpush1.msra.mxu0 0.0
  %1068 = vmatprep.subr.mxu0 0.0
  %1069 = vmatpush1.msra.mxu0 0.0
  %1070 = vmatprep.subr.mxu0 0.0
  %1071 = vmatpush1.msra.mxu0 0.0
  %1072 = vmatprep.subr.mxu0 0.0
  %1073 = vmatpush1.msra.mxu0 0.0
  %1074 = vmatprep.subr.mxu0 0.0
  %1075 = vmatpush1.msra.mxu0 0.0
  %1076 = vmatprep.subr.mxu0 0.0
  %1077 = vmatpush1.msra.mxu0 0.0
  %1078 = vmatprep.subr.mxu0 0.0
  %1079 = vmatpush1.msra.mxu0 0.0
  %1080 = vmatprep.subr.mxu0 0.0
  %1081 = vmatpush1.msra.mxu0 0.0
  %1082 = vmatprep.subr.mxu0 0.0
  %1083 = vmatpush1.msra.mxu0 0.0
  %1084 = vmatprep.subr.mxu0 0.0
  %1085 = vmatpush1.msra.mxu0 0.0
  %1086 = vmatprep.subr.mxu0 0.0
  %1087 = vmatpush1.msra.mxu0 0.0
  %1088 = vmatprep.subr.mxu0 0.0
  %1089 = vmatpush1.msra.mxu0 0.0
  %1090 = vmatprep.subr.mxu0 0.0
  %1091 = vmatpush1.msra.mxu0 0.0
  %1092 = vmatprep.subr.mxu0 0.0
  %1093 = vmatpush1.msra.mxu0 %v406
  %1094 = vmatprep.subr.mxu0 0.0
  %1095 = vmatpush1.msra.mxu0 %v405
  %1096 = vmatprep.subr.mxu0 0.0
  %1097 = vmatpush2.msra.mxu0 0.0
  %1098 = vmatprep.subr.mxu0 0.0
  %1099 = vmatpush2.msra.mxu0 0.0
  %1100 = vmatprep.subr.mxu0 0.0
  %1101 = vmatpush2.msra.mxu0 0.0
  %1102 = vmatprep.subr.mxu0 0.0
  %1103 = vmatpush2.msra.mxu0 0.0
  %1104 = vmatprep.subr.mxu0 0.0
  %1105 = vmatpush2.msra.mxu0 0.0
  %1106 = vmatprep.subr.mxu0 0.0
  %1107 = vmatpush2.msra.mxu0 0.0
  %1108 = vmatprep.subr.mxu0 0.0
  %1109 = vmatpush2.msra.mxu0 0.0
  %1110 = vmatprep.subr.mxu0 0.0
  %1111 = vmatpush2.msra.mxu0 0.0
  %1112 = vmatprep.subr.mxu0 0.0
  %1113 = vmatpush2.msra.mxu0 0.0
  %1114 = vmatprep.subr.mxu0 0.0
  %1115 = vmatpush2.msra.mxu0 0.0
  %1116 = vmatprep.subr.mxu0 0.0
  %1117 = vmatpush2.msra.mxu0 0.0
  %1118 = vmatprep.subr.mxu0 0.0
  %1119 = vmatpush2.msra.mxu0 0.0
  %1120 = vmatprep.subr.mxu0 0.0
  %1121 = vmatpush2.msra.mxu0 0.0
  %1122 = vmatprep.subr.mxu0 0.0
  %1123 = vmatpush2.msra.mxu0 0.0
  %1124 = vmatprep.subr.mxu0 0.0
  %1125 = vmatpush2.msra.mxu0 0.0
  %1126 = vmatprep.subr.mxu0 0.0
  %1127 = vmatpush2.msra.mxu0 0.0
  %1128 = vmatprep.mubr.f32.mxu0 0.0
  %1129 = vmatmul.mubr.f32.gmra.mxu0 %v1062
  %v1130 = vpop.f32.mrf.mxu0
  %v1131 = vadd.f32 %v458, %v1130
  %v1132 = vpop.f32.mrf.mxu0
  %1133 = vdwg.mxu0
  %v1134 = vmax.f32 %v1131, 0.0
  %v1136 = vsel %vm261, %v1134, 0
  %1138 = vmatprep.subr.mxu0 0.0
  %1139 = vmatpush1.msra.mxu0 0.0
  %1140 = vmatprep.subr.mxu0 0.0
  %1141 = vmatpush1.msra.mxu0 0.0
  %1142 = vmatprep.subr.mxu0 0.0
  %1143 = vmatpush1.msra.mxu0 0.0
  %1144 = vmatprep.subr.mxu0 0.0
  %1145 = vmatpush1.msra.mxu0 0.0
  %1146 = vmatprep.subr.mxu0 0.0
  %1147 = vmatpush1.msra.mxu0 0.0
  %1148 = vmatprep.subr.mxu0 0.0
  %1149 = vmatpush1.msra.mxu0 0.0
  %1150 = vmatprep.subr.mxu0 0.0
  %1151 = vmatpush1.msra.mxu0 0.0
  %1152 = vmatprep.subr.mxu0 0.0
  %1153 = vmatpush1.msra.mxu0 0.0
  %1154 = vmatprep.subr.mxu0 0.0
  %1155 = vmatpush1.msra.mxu0 0.0
  %1156 = vmatprep.subr.mxu0 0.0
  %1157 = vmatpush1.msra.mxu0 0.0
  %1158 = vmatprep.subr.mxu0 0.0
  %1159 = vmatpush1.msra.mxu0 0.0
  %1160 = vmatprep.subr.mxu0 0.0
  %1161 = vmatpush1.msra.mxu0 0.0
  %1162 = vmatprep.subr.mxu0 0.0
  %1163 = vmatpush1.msra.mxu0 0.0
  %1164 = vmatprep.subr.mxu0 0.0
  %1165 = vmatpush1.msra.mxu0 0.0
  %1166 = vmatprep.subr.mxu0 0.0
  %1167 = vmatpush1.msra.mxu0 %v411
  %1168 = vmatprep.subr.mxu0 0.0
  %1169 = vmatpush1.msra.mxu0 %v410
  %1170 = vmatprep.subr.mxu0 0.0
  %1171 = vmatpush2.msra.mxu0 0.0
  %1172 = vmatprep.subr.mxu0 0.0
  %1173 = vmatpush2.msra.mxu0 0.0
  %1174 = vmatprep.subr.mxu0 0.0
  %1175 = vmatpush2.msra.mxu0 0.0
  %1176 = vmatprep.subr.mxu0 0.0
  %1177 = vmatpush2.msra.mxu0 0.0
  %1178 = vmatprep.subr.mxu0 0.0
  %1179 = vmatpush2.msra.mxu0 0.0
  %1180 = vmatprep.subr.mxu0 0.0
  %1181 = vmatpush2.msra.mxu0 0.0
  %1182 = vmatprep.subr.mxu0 0.0
  %1183 = vmatpush2.msra.mxu0 0.0
  %1184 = vmatprep.subr.mxu0 0.0
  %1185 = vmatpush2.msra.mxu0 0.0
  %1186 = vmatprep.subr.mxu0 0.0
  %1187 = vmatpush2.msra.mxu0 0.0
  %1188 = vmatprep.subr.mxu0 0.0
  %1189 = vmatpush2.msra.mxu0 0.0
  %1190 = vmatprep.subr.mxu0 0.0
  %1191 = vmatpush2.msra.mxu0 0.0
  %1192 = vmatprep.subr.mxu0 0.0
  %1193 = vmatpush2.msra.mxu0 0.0
  %1194 = vmatprep.subr.mxu0 0.0
  %1195 = vmatpush2.msra.mxu0 0.0
  %1196 = vmatprep.subr.mxu0 0.0
  %1197 = vmatpush2.msra.mxu0 0.0
  %1198 = vmatprep.subr.mxu0 0.0
  %1199 = vmatpush2.msra.mxu0 0.0
  %1200 = vmatprep.subr.mxu0 0.0
  %1201 = vmatpush2.msra.mxu0 0.0
  %1202 = vmatprep.mubr.f32.mxu0 0.0
  %1203 = vmatmul.mubr.f32.gmra.mxu0 %v1136
  %v1204 = vpop.f32.mrf.mxu0
  %v1205 = vadd.f32 %v417, %v1204
  %v1206 = vpop.f32.mrf.mxu0
  %1207 = vdwg.mxu0
  %1208 = vmatprep.subr.mxu0 0.0
  %1209 = vmatpush1.msra.mxu0 0.0
  %1210 = vmatprep.subr.mxu0 0.0
  %1211 = vmatpush1.msra.mxu0 0.0
  %1212 = vmatprep.subr.mxu0 0.0
  %1213 = vmatpush1.msra.mxu0 0.0
  %1214 = vmatprep.subr.mxu0 0.0
  %1215 = vmatpush1.msra.mxu0 0.0
  %1216 = vmatprep.subr.mxu0 0.0
  %1217 = vmatpush1.msra.mxu0 0.0
  %1218 = vmatprep.subr.mxu0 0.0
  %1219 = vmatpush1.msra.mxu0 0.0
  %1220 = vmatprep.subr.mxu0 0.0
  %1221 = vmatpush1.msra.mxu0 0.0
  %1222 = vmatprep.subr.mxu0 0.0
  %1223 = vmatpush1.msra.mxu0 0.0
  %1224 = vmatprep.subr.mxu0 0.0
  %1225 = vmatpush1.msra.mxu0 0.0
  %1226 = vmatprep.subr.mxu0 0.0
  %1227 = vmatpush1.msra.mxu0 0.0
  %1228 = vmatprep.subr.mxu0 0.0
  %1229 = vmatpush1.msra.mxu0 0.0
  %1230 = vmatprep.subr.mxu0 0.0
  %1231 = vmatpush1.msra.mxu0 0.0
  %1232 = vmatprep.subr.mxu0 0.0
  %1233 = vmatpush1.msra.mxu0 0.0
  %1234 = vmatprep.subr.mxu0 0.0
  %1235 = vmatpush1.msra.mxu0 0.0
  %1236 = vmatprep.subr.mxu0 0.0
  %1237 = vmatpush1.msra.mxu0 %v420
  %1238 = vmatprep.subr.mxu0 0.0
  %1239 = vmatpush1.msra.mxu0 %v419
  %1240 = vmatprep.subr.mxu0 0.0
  %1241 = vmatpush2.msra.mxu0 0.0
  %1242 = vmatprep.subr.mxu0 0.0
  %1243 = vmatpush2.msra.mxu0 0.0
  %1244 = vmatprep.subr.mxu0 0.0
  %1245 = vmatpush2.msra.mxu0 0.0
  %1246 = vmatprep.subr.mxu0 0.0
  %1247 = vmatpush2.msra.mxu0 0.0
  %1248 = vmatprep.subr.mxu0 0.0
  %1249 = vmatpush2.msra.mxu0 0.0
  %1250 = vmatprep.subr.mxu0 0.0
  %1251 = vmatpush2.msra.mxu0 0.0
  %1252 = vmatprep.subr.mxu0 0.0
  %1253 = vmatpush2.msra.mxu0 0.0
  %1254 = vmatprep.subr.mxu0 0.0
  %1255 = vmatpush2.msra.mxu0 0.0
  %1256 = vmatprep.subr.mxu0 0.0
  %1257 = vmatpush2.msra.mxu0 0.0
  %1258 = vmatprep.subr.mxu0 0.0
  %1259 = vmatpush2.msra.mxu0 0.0
  %1260 = vmatprep.subr.mxu0 0.0
  %1261 = vmatpush2.msra.mxu0 0.0
  %1262 = vmatprep.subr.mxu0 0.0
  %1263 = vmatpush2.msra.mxu0 0.0
  %1264 = vmatprep.subr.mxu0 0.0
  %1265 = vmatpush2.msra.mxu0 0.0
  %1266 = vmatprep.subr.mxu0 0.0
  %1267 = vmatpush2.msra.mxu0 0.0
  %1268 = vmatprep.subr.mxu0 0.0
  %1269 = vmatpush2.msra.mxu0 0.0
  %1270 = vmatprep.subr.mxu0 0.0
  %1271 = vmatpush2.msra.mxu0 0.0
  %1272 = vmatprep.mubr.f32.mxu0 0.0
  %1273 = vmatmul.mubr.f32.gmra.mxu0 %v1136
  %v1274 = vpop.f32.mrf.mxu0
  %v1275 = vadd.f32 0.0, %v1274
  %v1276 = vpop.f32.mrf.mxu0
  %1277 = vdwg.mxu0
  %v1278 = vadd.f32 %v500, %v1275
  %v1279 = vadd.f32 %v1278, %v426
  %v1280 = vsel %vm261, %v1053, 0
  %1282 = vmatprep.subr.mxu0 0.0
  %1283 = vmatpush1.msra.mxu0 0.0
  %1284 = vmatprep.subr.mxu0 0.0
  %1285 = vmatpush1.msra.mxu0 0.0
  %1286 = vmatprep.subr.mxu0 0.0
  %1287 = vmatpush1.msra.mxu0 0.0
  %1288 = vmatprep.subr.mxu0 0.0
  %1289 = vmatpush1.msra.mxu0 0.0
  %1290 = vmatprep.subr.mxu0 0.0
  %1291 = vmatpush1.msra.mxu0 0.0
  %1292 = vmatprep.subr.mxu0 0.0
  %1293 = vmatpush1.msra.mxu0 0.0
  %1294 = vmatprep.subr.mxu0 0.0
  %1295 = vmatpush1.msra.mxu0 0.0
  %1296 = vmatprep.subr.mxu0 0.0
  %1297 = vmatpush1.msra.mxu0 0.0
  %1298 = vmatprep.subr.mxu0 0.0
  %1299 = vmatpush1.msra.mxu0 0.0
  %1300 = vmatprep.subr.mxu0 0.0
  %1301 = vmatpush1.msra.mxu0 0.0
  %1302 = vmatprep.subr.mxu0 0.0
  %1303 = vmatpush1.msra.mxu0 0.0
  %1304 = vmatprep.subr.mxu0 0.0
  %1305 = vmatpush1.msra.mxu0 0.0
  %1306 = vmatprep.subr.mxu0 0.0
  %1307 = vmatpush1.msra.mxu0 0.0
  %1308 = vmatprep.subr.mxu0 0.0
  %1309 = vmatpush1.msra.mxu0 0.0
  %1310 = vmatprep.subr.mxu0 0.0
  %1311 = vmatpush1.msra.mxu0 %v366
  %1312 = vmatprep.subr.mxu0 0.0
  %1313 = vmatpush1.msra.mxu0 %v365
  %1314 = vmatprep.subr.mxu0 0.0
  %1315 = vmatpush2.msra.mxu0 0.0
  %1316 = vmatprep.subr.mxu0 0.0
  %1317 = vmatpush2.msra.mxu0 0.0
  %1318 = vmatprep.subr.mxu0 0.0
  %1319 = vmatpush2.msra.mxu0 0.0
  %1320 = vmatprep.subr.mxu0 0.0
  %1321 = vmatpush2.msra.mxu0 0.0
  %1322 = vmatprep.subr.mxu0 0.0
  %1323 = vmatpush2.msra.mxu0 0.0
  %1324 = vmatprep.subr.mxu0 0.0
  %1325 = vmatpush2.msra.mxu0 0.0
  %1326 = vmatprep.subr.mxu0 0.0
  %1327 = vmatpush2.msra.mxu0 0.0
  %1328 = vmatprep.subr.mxu0 0.0
  %1329 = vmatpush2.msra.mxu0 0.0
  %1330 = vmatprep.subr.mxu0 0.0
  %1331 = vmatpush2.msra.mxu0 0.0
  %1332 = vmatprep.subr.mxu0 0.0
  %1333 = vmatpush2.msra.mxu0 0.0
  %1334 = vmatprep.subr.mxu0 0.0
  %1335 = vmatpush2.msra.mxu0 0.0
  %1336 = vmatprep.subr.mxu0 0.0
  %1337 = vmatpush2.msra.mxu0 0.0
  %1338 = vmatprep.subr.mxu0 0.0
  %1339 = vmatpush2.msra.mxu0 0.0
  %1340 = vmatprep.subr.mxu0 0.0
  %1341 = vmatpush2.msra.mxu0 0.0
  %1342 = vmatprep.subr.mxu0 0.0
  %1343 = vmatpush2.msra.mxu0 0.0
  %1344 = vmatprep.subr.mxu0 0.0
  %1345 = vmatpush2.msra.mxu0 0.0
  %1346 = vmatprep.mubr.f32.mxu0 0.0
  %1347 = vmatmul.mubr.f32.gmra.mxu0 %v1280
  %v1348 = vpop.f32.mrf.mxu0
  %v1349 = vadd.f32 %v1205, %v1348
  %v1350 = vpop.f32.mrf.mxu0
  %1351 = vdwg.mxu0
  %v1352 = vadd.f32 %v1349, %v373
  %v1353 = vmax.f32 %v1352, 0.0
  %1354 = vmatprep.subr.mxu0 0.0
  %1355 = vmatpush1.msra.mxu0 0.0
  %1356 = vmatprep.subr.mxu0 0.0
  %1357 = vmatpush1.msra.mxu0 0.0
  %1358 = vmatprep.subr.mxu0 0.0
  %1359 = vmatpush1.msra.mxu0 0.0
  %1360 = vmatprep.subr.mxu0 0.0
  %1361 = vmatpush1.msra.mxu0 0.0
  %1362 = vmatprep.subr.mxu0 0.0
  %1363 = vmatpush1.msra.mxu0 0.0
  %1364 = vmatprep.subr.mxu0 0.0
  %1365 = vmatpush1.msra.mxu0 0.0
  %1366 = vmatprep.subr.mxu0 0.0
  %1367 = vmatpush1.msra.mxu0 0.0
  %1368 = vmatprep.subr.mxu0 0.0
  %1369 = vmatpush1.msra.mxu0 0.0
  %1370 = vmatprep.subr.mxu0 0.0
  %1371 = vmatpush1.msra.mxu0 0.0
  %1372 = vmatprep.subr.mxu0 0.0
  %1373 = vmatpush1.msra.mxu0 0.0
  %1374 = vmatprep.subr.mxu0 0.0
  %1375 = vmatpush1.msra.mxu0 0.0
  %1376 = vmatprep.subr.mxu0 0.0
  %1377 = vmatpush1.msra.mxu0 0.0
  %1378 = vmatprep.subr.mxu0 0.0
  %1379 = vmatpush1.msra.mxu0 0.0
  %1380 = vmatprep.subr.mxu0 0.0
  %1381 = vmatpush1.msra.mxu0 0.0
  %1382 = vmatprep.subr.mxu0 0.0
  %1383 = vmatpush1.msra.mxu0 %v378
  %1384 = vmatprep.subr.mxu0 0.0
  %1385 = vmatpush1.msra.mxu0 %v377
  %1386 = vmatprep.subr.mxu0 0.0
  %1387 = vmatpush2.msra.mxu0 0.0
  %1388 = vmatprep.subr.mxu0 0.0
  %1389 = vmatpush2.msra.mxu0 0.0
  %1390 = vmatprep.subr.mxu0 0.0
  %1391 = vmatpush2.msra.mxu0 0.0
  %1392 = vmatprep.subr.mxu0 0.0
  %1393 = vmatpush2.msra.mxu0 0.0
  %1394 = vmatprep.subr.mxu0 0.0
  %1395 = vmatpush2.msra.mxu0 0.0
  %1396 = vmatprep.subr.mxu0 0.0
  %1397 = vmatpush2.msra.mxu0 0.0
  %1398 = vmatprep.subr.mxu0 0.0
  %1399 = vmatpush2.msra.mxu0 0.0
  %1400 = vmatprep.subr.mxu0 0.0
  %1401 = vmatpush2.msra.mxu0 0.0
  %1402 = vmatprep.subr.mxu0 0.0
  %1403 = vmatpush2.msra.mxu0 0.0
  %1404 = vmatprep.subr.mxu0 0.0
  %1405 = vmatpush2.msra.mxu0 0.0
  %1406 = vmatprep.subr.mxu0 0.0
  %1407 = vmatpush2.msra.mxu0 0.0
  %1408 = vmatprep.subr.mxu0 0.0
  %1409 = vmatpush2.msra.mxu0 0.0
  %1410 = vmatprep.subr.mxu0 0.0
  %1411 = vmatpush2.msra.mxu0 0.0
  %1412 = vmatprep.subr.mxu0 0.0
  %1413 = vmatpush2.msra.mxu0 0.0
  %1414 = vmatprep.subr.mxu0 0.0
  %1415 = vmatpush2.msra.mxu0 0.0
  %1416 = vmatprep.subr.mxu0 0.0
  %1417 = vmatpush2.msra.mxu0 0.0
  %1418 = vmatprep.mubr.f32.mxu0 0.0
  %1419 = vmatmul.mubr.f32.gmra.mxu0 %v907
  %v1420 = vpop.f32.mrf.mxu0
  %v1421 = vadd.f32 0.0, %v1420
  %v1422 = vpop.f32.mrf.mxu0
  %1423 = vdwg.mxu0
  %v1425 = vsel %vm261, %v1353, 0
  %1427 = vmatprep.subr.mxu0 0.0
  %1428 = vmatpush1.msra.mxu0 0.0
  %1429 = vmatprep.subr.mxu0 0.0
  %1430 = vmatpush1.msra.mxu0 0.0
  %1431 = vmatprep.subr.mxu0 0.0
  %1432 = vmatpush1.msra.mxu0 0.0
  %1433 = vmatprep.subr.mxu0 0.0
  %1434 = vmatpush1.msra.mxu0 0.0
  %1435 = vmatprep.subr.mxu0 0.0
  %1436 = vmatpush1.msra.mxu0 0.0
  %1437 = vmatprep.subr.mxu0 0.0
  %1438 = vmatpush1.msra.mxu0 0.0
  %1439 = vmatprep.subr.mxu0 0.0
  %1440 = vmatpush1.msra.mxu0 0.0
  %1441 = vmatprep.subr.mxu0 0.0
  %1442 = vmatpush1.msra.mxu0 0.0
  %1443 = vmatprep.subr.mxu0 0.0
  %1444 = vmatpush1.msra.mxu0 0.0
  %1445 = vmatprep.subr.mxu0 0.0
  %1446 = vmatpush1.msra.mxu0 0.0
  %1447 = vmatprep.subr.mxu0 0.0
  %1448 = vmatpush1.msra.mxu0 0.0
  %1449 = vmatprep.subr.mxu0 0.0
  %1450 = vmatpush1.msra.mxu0 0.0
  %1451 = vmatprep.subr.mxu0 0.0
  %1452 = vmatpush1.msra.mxu0 0.0
  %1453 = vmatprep.subr.mxu0 0.0
  %1454 = vmatpush1.msra.mxu0 0.0
  %1455 = vmatprep.subr.mxu0 0.0
  %1456 = vmatpush1.msra.mxu0 %v376
  %1457 = vmatprep.subr.mxu0 0.0
  %1458 = vmatpush1.msra.mxu0 %v375
  %1459 = vmatprep.subr.mxu0 0.0
  %1460 = vmatpush2.msra.mxu0 0.0
  %1461 = vmatprep.subr.mxu0 0.0
  %1462 = vmatpush2.msra.mxu0 0.0
  %1463 = vmatprep.subr.mxu0 0.0
  %1464 = vmatpush2.msra.mxu0 0.0
  %1465 = vmatprep.subr.mxu0 0.0
  %1466 = vmatpush2.msra.mxu0 0.0
  %1467 = vmatprep.subr.mxu0 0.0
  %1468 = vmatpush2.msra.mxu0 0.0
  %1469 = vmatprep.subr.mxu0 0.0
  %1470 = vmatpush2.msra.mxu0 0.0
  %1471 = vmatprep.subr.mxu0 0.0
  %1472 = vmatpush2.msra.mxu0 0.0
  %1473 = vmatprep.subr.mxu0 0.0
  %1474 = vmatpush2.msra.mxu0 0.0
  %1475 = vmatprep.subr.mxu0 0.0
  %1476 = vmatpush2.msra.mxu0 0.0
  %1477 = vmatprep.subr.mxu0 0.0
  %1478 = vmatpush2.msra.mxu0 0.0
  %1479 = vmatprep.subr.mxu0 0.0
  %1480 = vmatpush2.msra.mxu0 0.0
  %1481 = vmatprep.subr.mxu0 0.0
  %1482 = vmatpush2.msra.mxu0 0.0
  %1483 = vmatprep.subr.mxu0 0.0
  %1484 = vmatpush2.msra.mxu0 0.0
  %1485 = vmatprep.subr.mxu0 0.0
  %1486 = vmatpush2.msra.mxu0 0.0
  %1487 = vmatprep.subr.mxu0 0.0
  %1488 = vmatpush2.msra.mxu0 0.0
  %1489 = vmatprep.subr.mxu0 0.0
  %1490 = vmatpush2.msra.mxu0 0.0
  %1491 = vmatprep.mubr.f32.mxu0 0.0
  %1492 = vmatmul.mubr.f32.gmra.mxu0 %v1425
  %v1493 = vpop.f32.mrf.mxu0
  %v1494 = vadd.f32 %v1421, %v1493
  %v1495 = vpop.f32.mrf.mxu0
  %1496 = vdwg.mxu0
  %v1497 = vadd.f32 %v1494, %v384
  %v1498 = vxor.u32 %v1497, 2147483648
  %v1499 = vmul.f32 %v1498, 1.442695
  %v1500 = vpow.pop %v1499
  %v1501 = vadd.f32 %v1500, 1.0
  %v1502 = vrcp.pop %v1501
  %v1503 = vmul.f32 1.0, %v1502
  %v1504 = vtanh.pop %v1497
  %v1505 = vmul.f32 %v1503, %v740
  %1507 = vrot.lane.b32.xlu0 %v1504, 96
  %v1508 = vpop.permute.xlu0 %1507
  %v1510 = vmul.f32 %v1503, %v1508
  %1512 = vrot.lane.b32.xlu0 %v1510, 16
  %v1513 = vpop.permute.xlu0 %1512
  %v1515 = vadd.f32 %v1505, %v1513
  %v1516 = vtanh.pop %v1515
  %1518 = vrot.lane.b32.xlu0 %v1516, 32
  %v1519 = vpop.permute.xlu0 %1518
  %v1521 = vmul.f32 %v1503, %v1519
  %1522 = vmatprep.subr.mxu0 0.0
  %1523 = vmatpush1.msra.mxu0 0.0
  %1524 = vmatprep.subr.mxu0 0.0
  %1525 = vmatpush1.msra.mxu0 0.0
  %1526 = vmatprep.subr.mxu0 0.0
  %1527 = vmatpush1.msra.mxu0 0.0
  %1528 = vmatprep.subr.mxu0 0.0
  %1529 = vmatpush1.msra.mxu0 0.0
  %1530 = vmatprep.subr.mxu0 0.0
  %1531 = vmatpush1.msra.mxu0 0.0
  %1532 = vmatprep.subr.mxu0 0.0
  %1533 = vmatpush1.msra.mxu0 0.0
  %1534 = vmatprep.subr.mxu0 0.0
  %1535 = vmatpush1.msra.mxu0 0.0
  %1536 = vmatprep.subr.mxu0 0.0
  %1537 = vmatpush1.msra.mxu0 0.0
  %1538 = vmatprep.subr.mxu0 0.0
  %1539 = vmatpush1.msra.mxu0 0.0
  %1540 = vmatprep.subr.mxu0 0.0
  %1541 = vmatpush1.msra.mxu0 0.0
  %1542 = vmatprep.subr.mxu0 0.0
  %1543 = vmatpush1.msra.mxu0 0.0
  %1544 = vmatprep.subr.mxu0 0.0
  %1545 = vmatpush1.msra.mxu0 0.0
  %1546 = vmatprep.subr.mxu0 0.0
  %1547 = vmatpush1.msra.mxu0 0.0
  %1548 = vmatprep.subr.mxu0 0.0
  %1549 = vmatpush1.msra.mxu0 0.0
  %1550 = vmatprep.subr.mxu0 0.0
  %1551 = vmatpush1.msra.mxu0 0.0
  %1552 = vmatprep.subr.mxu0 0.0
  %1553 = vmatpush1.msra.mxu0 %v1279
  %1554 = vmatprep.subr.mxu0 0.0
  %1555 = vmatpush2.msra.mxu0 0.0
  %1556 = vmatprep.subr.mxu0 0.0
  %1557 = vmatpush2.msra.mxu0 0.0
  %1558 = vmatprep.subr.mxu0 0.0
  %1559 = vmatpush2.msra.mxu0 0.0
  %1560 = vmatprep.subr.mxu0 0.0
  %1561 = vmatpush2.msra.mxu0 0.0
  %1562 = vmatprep.subr.mxu0 0.0
  %1563 = vmatpush2.msra.mxu0 0.0
  %1564 = vmatprep.subr.mxu0 0.0
  %1565 = vmatpush2.msra.mxu0 0.0
  %1566 = vmatprep.subr.mxu0 0.0
  %1567 = vmatpush2.msra.mxu0 0.0
  %1568 = vmatprep.subr.mxu0 0.0
  %1569 = vmatpush2.msra.mxu0 0.0
  %1570 = vmatprep.subr.mxu0 0.0
  %1571 = vmatpush2.msra.mxu0 0.0
  %1572 = vmatprep.subr.mxu0 0.0
  %1573 = vmatpush2.msra.mxu0 0.0
  %1574 = vmatprep.subr.mxu0 0.0
  %1575 = vmatpush2.msra.mxu0 0.0
  %1576 = vmatprep.subr.mxu0 0.0
  %1577 = vmatpush2.msra.mxu0 0.0
  %1578 = vmatprep.subr.mxu0 0.0
  %1579 = vmatpush2.msra.mxu0 0.0
  %1580 = vmatprep.subr.mxu0 0.0
  %1581 = vmatpush2.msra.mxu0 0.0
  %1582 = vmatprep.subr.mxu0 0.0
  %1583 = vmatpush2.msra.mxu0 0.0
  %1584 = vmatprep.subr.mxu0 0.0
  %1585 = vmatpush2.msra.mxu0 0.0
  %1586 = vmatprep.mubr.f32.mxu0 0.0
  %1587 = vmatmul.mubr.f32.gmra.mxu0 %v749
  %v1588 = vpop.f32.mrf.mxu0
  %v1589 = vadd.f32 %v392, %v1588
  %v1590 = vpop.f32.mrf.mxu0
  %1591 = vmatprep.mubr.f32.mxu0 0.0
  %1592 = vmatmul.mubr.f32.gmra.mxu0 %v752
  %v1593 = vpop.f32.mrf.mxu0
  %v1594 = vadd.f32 %v392, %v1593
  %v1595 = vpop.f32.mrf.mxu0
  %1596 = vdwg.mxu0
  %v1597 = vmax.f32 %v1589, 0.0
  %v1598 = vmax.f32 %v1594, 0.0
  %1599 = vmatprep.subr.mxu0 0.0
  %1600 = vmatpush1.msra.mxu0 0.0
  %1601 = vmatprep.subr.mxu0 0.0
  %1602 = vmatpush1.msra.mxu0 0.0
  %1603 = vmatprep.subr.mxu0 0.0
  %1604 = vmatpush1.msra.mxu0 0.0
  %1605 = vmatprep.subr.mxu0 0.0
  %1606 = vmatpush1.msra.mxu0 0.0
  %1607 = vmatprep.subr.mxu0 0.0
  %1608 = vmatpush1.msra.mxu0 0.0
  %1609 = vmatprep.subr.mxu0 0.0
  %1610 = vmatpush1.msra.mxu0 0.0
  %1611 = vmatprep.subr.mxu0 0.0
  %1612 = vmatpush1.msra.mxu0 0.0
  %1613 = vmatprep.subr.mxu0 0.0
  %1614 = vmatpush1.msra.mxu0 0.0
  %1615 = vmatprep.subr.mxu0 0.0
  %1616 = vmatpush1.msra.mxu0 0.0
  %1617 = vmatprep.subr.mxu0 0.0
  %1618 = vmatpush1.msra.mxu0 0.0
  %1619 = vmatprep.subr.mxu0 0.0
  %1620 = vmatpush1.msra.mxu0 0.0
  %1621 = vmatprep.subr.mxu0 0.0
  %1622 = vmatpush1.msra.mxu0 0.0
  %1623 = vmatprep.subr.mxu0 0.0
  %1624 = vmatpush1.msra.mxu0 0.0
  %1625 = vmatprep.subr.mxu0 0.0
  %1626 = vmatpush1.msra.mxu0 0.0
  %1627 = vmatprep.subr.mxu0 0.0
  %1628 = vmatpush1.msra.mxu0 %v1598
  %1629 = vmatprep.subr.mxu0 0.0
  %1630 = vmatpush1.msra.mxu0 %v1597
  %1631 = vmatprep.subr.mxu0 0.0
  %1632 = vmatpush2.msra.mxu0 0.0
  %1633 = vmatprep.subr.mxu0 0.0
  %1634 = vmatpush2.msra.mxu0 0.0
  %1635 = vmatprep.subr.mxu0 0.0
  %1636 = vmatpush2.msra.mxu0 0.0
  %1637 = vmatprep.subr.mxu0 0.0
  %1638 = vmatpush2.msra.mxu0 0.0
  %1639 = vmatprep.subr.mxu0 0.0
  %1640 = vmatpush2.msra.mxu0 0.0
  %1641 = vmatprep.subr.mxu0 0.0
  %1642 = vmatpush2.msra.mxu0 0.0
  %1643 = vmatprep.subr.mxu0 0.0
  %1644 = vmatpush2.msra.mxu0 0.0
  %1645 = vmatprep.subr.mxu0 0.0
  %1646 = vmatpush2.msra.mxu0 0.0
  %1647 = vmatprep.subr.mxu0 0.0
  %1648 = vmatpush2.msra.mxu0 0.0
  %1649 = vmatprep.subr.mxu0 0.0
  %1650 = vmatpush2.msra.mxu0 0.0
  %1651 = vmatprep.subr.mxu0 0.0
  %1652 = vmatpush2.msra.mxu0 0.0
  %1653 = vmatprep.subr.mxu0 0.0
  %1654 = vmatpush2.msra.mxu0 0.0
  %1655 = vmatprep.subr.mxu0 0.0
  %1656 = vmatpush2.msra.mxu0 0.0
  %1657 = vmatprep.subr.mxu0 0.0
  %1658 = vmatpush2.msra.mxu0 0.0
  %1659 = vmatprep.subr.mxu0 0.0
  %1660 = vmatpush2.msra.mxu0 0.0
  %1661 = vmatprep.subr.mxu0 0.0
  %1662 = vmatpush2.msra.mxu0 0.0
  %1663 = vmatprep.mubr.f32.mxu0 0.0
  %1664 = vmatmul.mubr.f32.gmra.mxu0 %v832
  %v1665 = vpop.f32.mrf.mxu0
  %v1666 = vadd.f32 0.0, %v1665
  %v1667 = vpop.f32.mrf.mxu0
  %1668 = vdwg.mxu0
  %1670 = vrot.lane.b32.xlu0 %v1521, 80
  %v1671 = vpop.permute.xlu0 %1670
  %v1672 = vsel %vm261, %v1671, 0
  %1674 = vmatprep.subr.mxu0 0.0
  %1675 = vmatpush1.msra.mxu0 0.0
  %1676 = vmatprep.subr.mxu0 0.0
  %1677 = vmatpush1.msra.mxu0 0.0
  %1678 = vmatprep.subr.mxu0 0.0
  %1679 = vmatpush1.msra.mxu0 0.0
  %1680 = vmatprep.subr.mxu0 0.0
  %1681 = vmatpush1.msra.mxu0 0.0
  %1682 = vmatprep.subr.mxu0 0.0
  %1683 = vmatpush1.msra.mxu0 0.0
  %1684 = vmatprep.subr.mxu0 0.0
  %1685 = vmatpush1.msra.mxu0 0.0
  %1686 = vmatprep.subr.mxu0 0.0
  %1687 = vmatpush1.msra.mxu0 0.0
  %1688 = vmatprep.subr.mxu0 0.0
  %1689 = vmatpush1.msra.mxu0 0.0
  %1690 = vmatprep.subr.mxu0 0.0
  %1691 = vmatpush1.msra.mxu0 0.0
  %1692 = vmatprep.subr.mxu0 0.0
  %1693 = vmatpush1.msra.mxu0 0.0
  %1694 = vmatprep.subr.mxu0 0.0
  %1695 = vmatpush1.msra.mxu0 0.0
  %1696 = vmatprep.subr.mxu0 0.0
  %1697 = vmatpush1.msra.mxu0 0.0
  %1698 = vmatprep.subr.mxu0 0.0
  %1699 = vmatpush1.msra.mxu0 0.0
  %1700 = vmatprep.subr.mxu0 0.0
  %1701 = vmatpush1.msra.mxu0 0.0
  %1702 = vmatprep.subr.mxu0 0.0
  %1703 = vmatpush1.msra.mxu0 %v397
  %1704 = vmatprep.subr.mxu0 0.0
  %1705 = vmatpush1.msra.mxu0 %v396
  %1706 = vmatprep.subr.mxu0 0.0
  %1707 = vmatpush2.msra.mxu0 0.0
  %1708 = vmatprep.subr.mxu0 0.0
  %1709 = vmatpush2.msra.mxu0 0.0
  %1710 = vmatprep.subr.mxu0 0.0
  %1711 = vmatpush2.msra.mxu0 0.0
  %1712 = vmatprep.subr.mxu0 0.0
  %1713 = vmatpush2.msra.mxu0 0.0
  %1714 = vmatprep.subr.mxu0 0.0
  %1715 = vmatpush2.msra.mxu0 0.0
  %1716 = vmatprep.subr.mxu0 0.0
  %1717 = vmatpush2.msra.mxu0 0.0
  %1718 = vmatprep.subr.mxu0 0.0
  %1719 = vmatpush2.msra.mxu0 0.0
  %1720 = vmatprep.subr.mxu0 0.0
  %1721 = vmatpush2.msra.mxu0 0.0
  %1722 = vmatprep.subr.mxu0 0.0
  %1723 = vmatpush2.msra.mxu0 0.0
  %1724 = vmatprep.subr.mxu0 0.0
  %1725 = vmatpush2.msra.mxu0 0.0
  %1726 = vmatprep.subr.mxu0 0.0
  %1727 = vmatpush2.msra.mxu0 0.0
  %1728 = vmatprep.subr.mxu0 0.0
  %1729 = vmatpush2.msra.mxu0 0.0
  %1730 = vmatprep.subr.mxu0 0.0
  %1731 = vmatpush2.msra.mxu0 0.0
  %1732 = vmatprep.subr.mxu0 0.0
  %1733 = vmatpush2.msra.mxu0 0.0
  %1734 = vmatprep.subr.mxu0 0.0
  %1735 = vmatpush2.msra.mxu0 0.0
  %1736 = vmatprep.subr.mxu0 0.0
  %1737 = vmatpush2.msra.mxu0 0.0
  %1738 = vmatprep.mubr.f32.mxu0 0.0
  %1739 = vmatmul.mubr.f32.gmra.mxu0 %v1672
  %v1740 = vpop.f32.mrf.mxu0
  %v1741 = vadd.f32 0.0, %v1740
  %v1742 = vpop.f32.mrf.mxu0
  %1743 = vdwg.mxu0
  %v1745 = vsel %vm261, %v1666, 0
  %1747 = vmatprep.subr.mxu0 0.0
  %1748 = vmatpush1.msra.mxu0 0.0
  %1749 = vmatprep.subr.mxu0 0.0
  %1750 = vmatpush1.msra.mxu0 0.0
  %1751 = vmatprep.subr.mxu0 0.0
  %1752 = vmatpush1.msra.mxu0 0.0
  %1753 = vmatprep.subr.mxu0 0.0
  %1754 = vmatpush1.msra.mxu0 0.0
  %1755 = vmatprep.subr.mxu0 0.0
  %1756 = vmatpush1.msra.mxu0 0.0
  %1757 = vmatprep.subr.mxu0 0.0
  %1758 = vmatpush1.msra.mxu0 0.0
  %1759 = vmatprep.subr.mxu0 0.0
  %1760 = vmatpush1.msra.mxu0 0.0
  %1761 = vmatprep.subr.mxu0 0.0
  %1762 = vmatpush1.msra.mxu0 0.0
  %1763 = vmatprep.subr.mxu0 0.0
  %1764 = vmatpush1.msra.mxu0 0.0
  %1765 = vmatprep.subr.mxu0 0.0
  %1766 = vmatpush1.msra.mxu0 0.0
  %1767 = vmatprep.subr.mxu0 0.0
  %1768 = vmatpush1.msra.mxu0 0.0
  %1769 = vmatprep.subr.mxu0 0.0
  %1770 = vmatpush1.msra.mxu0 0.0
  %1771 = vmatprep.subr.mxu0 0.0
  %1772 = vmatpush1.msra.mxu0 0.0
  %1773 = vmatprep.subr.mxu0 0.0
  %1774 = vmatpush1.msra.mxu0 0.0
  %1775 = vmatprep.subr.mxu0 0.0
  %1776 = vmatpush1.msra.mxu0 %v395
  %1777 = vmatprep.subr.mxu0 0.0
  %1778 = vmatpush1.msra.mxu0 %v394
  %1779 = vmatprep.subr.mxu0 0.0
  %1780 = vmatpush2.msra.mxu0 0.0
  %1781 = vmatprep.subr.mxu0 0.0
  %1782 = vmatpush2.msra.mxu0 0.0
  %1783 = vmatprep.subr.mxu0 0.0
  %1784 = vmatpush2.msra.mxu0 0.0
  %1785 = vmatprep.subr.mxu0 0.0
  %1786 = vmatpush2.msra.mxu0 0.0
  %1787 = vmatprep.subr.mxu0 0.0
  %1788 = vmatpush2.msra.mxu0 0.0
  %1789 = vmatprep.subr.mxu0 0.0
  %1790 = vmatpush2.msra.mxu0 0.0
  %1791 = vmatprep.subr.mxu0 0.0
  %1792 = vmatpush2.msra.mxu0 0.0
  %1793 = vmatprep.subr.mxu0 0.0
  %1794 = vmatpush2.msra.mxu0 0.0
  %1795 = vmatprep.subr.mxu0 0.0
  %1796 = vmatpush2.msra.mxu0 0.0
  %1797 = vmatprep.subr.mxu0 0.0
  %1798 = vmatpush2.msra.mxu0 0.0
  %1799 = vmatprep.subr.mxu0 0.0
  %1800 = vmatpush2.msra.mxu0 0.0
  %1801 = vmatprep.subr.mxu0 0.0
  %1802 = vmatpush2.msra.mxu0 0.0
  %1803 = vmatprep.subr.mxu0 0.0
  %1804 = vmatpush2.msra.mxu0 0.0
  %1805 = vmatprep.subr.mxu0 0.0
  %1806 = vmatpush2.msra.mxu0 0.0
  %1807 = vmatprep.subr.mxu0 0.0
  %1808 = vmatpush2.msra.mxu0 0.0
  %1809 = vmatprep.subr.mxu0 0.0
  %1810 = vmatpush2.msra.mxu0 0.0
  %1811 = vmatprep.mubr.f32.mxu0 0.0
  %1812 = vmatmul.mubr.f32.gmra.mxu0 %v1745
  %v1813 = vpop.f32.mrf.mxu0
  %v1814 = vadd.f32 %v1741, %v1813
  %v1815 = vpop.f32.mrf.mxu0
  %1816 = vdwg.mxu0
  %v1817 = vadd.f32 %v1814, %v403
  %v1818 = vmax.f32 %v1817, 0.0
  %1820 = vrot.lane.b32.xlu0 %v1818, 48
  %v1821 = vpop.permute.xlu0 %1820
  %v1823 = vadd.f32 %v1521, %v1821
  %1825 = vrot.lane.b32.xlu0 %v1823, 80
  %v1826 = vpop.permute.xlu0 %1825
  %v1827 = vsel %vm261, %v1826, 0
  %1829 = vmatprep.subr.mxu0 0.0
  %1830 = vmatpush1.msra.mxu0 0.0
  %1831 = vmatprep.subr.mxu0 0.0
  %1832 = vmatpush1.msra.mxu0 0.0
  %1833 = vmatprep.subr.mxu0 0.0
  %1834 = vmatpush1.msra.mxu0 0.0
  %1835 = vmatprep.subr.mxu0 0.0
  %1836 = vmatpush1.msra.mxu0 0.0
  %1837 = vmatprep.subr.mxu0 0.0
  %1838 = vmatpush1.msra.mxu0 0.0
  %1839 = vmatprep.subr.mxu0 0.0
  %1840 = vmatpush1.msra.mxu0 0.0
  %1841 = vmatprep.subr.mxu0 0.0
  %1842 = vmatpush1.msra.mxu0 0.0
  %1843 = vmatprep.subr.mxu0 0.0
  %1844 = vmatpush1.msra.mxu0 0.0
  %1845 = vmatprep.subr.mxu0 0.0
  %1846 = vmatpush1.msra.mxu0 0.0
  %1847 = vmatprep.subr.mxu0 0.0
  %1848 = vmatpush1.msra.mxu0 0.0
  %1849 = vmatprep.subr.mxu0 0.0
  %1850 = vmatpush1.msra.mxu0 0.0
  %1851 = vmatprep.subr.mxu0 0.0
  %1852 = vmatpush1.msra.mxu0 0.0
  %1853 = vmatprep.subr.mxu0 0.0
  %1854 = vmatpush1.msra.mxu0 0.0
  %1855 = vmatprep.subr.mxu0 0.0
  %1856 = vmatpush1.msra.mxu0 0.0
  %1857 = vmatprep.subr.mxu0 0.0
  %1858 = vmatpush1.msra.mxu0 %v406
  %1859 = vmatprep.subr.mxu0 0.0
  %1860 = vmatpush1.msra.mxu0 %v405
  %1861 = vmatprep.subr.mxu0 0.0
  %1862 = vmatpush2.msra.mxu0 0.0
  %1863 = vmatprep.subr.mxu0 0.0
  %1864 = vmatpush2.msra.mxu0 0.0
  %1865 = vmatprep.subr.mxu0 0.0
  %1866 = vmatpush2.msra.mxu0 0.0
  %1867 = vmatprep.subr.mxu0 0.0
  %1868 = vmatpush2.msra.mxu0 0.0
  %1869 = vmatprep.subr.mxu0 0.0
  %1870 = vmatpush2.msra.mxu0 0.0
  %1871 = vmatprep.subr.mxu0 0.0
  %1872 = vmatpush2.msra.mxu0 0.0
  %1873 = vmatprep.subr.mxu0 0.0
  %1874 = vmatpush2.msra.mxu0 0.0
  %1875 = vmatprep.subr.mxu0 0.0
  %1876 = vmatpush2.msra.mxu0 0.0
  %1877 = vmatprep.subr.mxu0 0.0
  %1878 = vmatpush2.msra.mxu0 0.0
  %1879 = vmatprep.subr.mxu0 0.0
  %1880 = vmatpush2.msra.mxu0 0.0
  %1881 = vmatprep.subr.mxu0 0.0
  %1882 = vmatpush2.msra.mxu0 0.0
  %1883 = vmatprep.subr.mxu0 0.0
  %1884 = vmatpush2.msra.mxu0 0.0
  %1885 = vmatprep.subr.mxu0 0.0
  %1886 = vmatpush2.msra.mxu0 0.0
  %1887 = vmatprep.subr.mxu0 0.0
  %1888 = vmatpush2.msra.mxu0 0.0
  %1889 = vmatprep.subr.mxu0 0.0
  %1890 = vmatpush2.msra.mxu0 0.0
  %1891 = vmatprep.subr.mxu0 0.0
  %1892 = vmatpush2.msra.mxu0 0.0
  %1893 = vmatprep.mubr.f32.mxu0 0.0
  %1894 = vmatmul.mubr.f32.gmra.mxu0 %v1827
  %v1895 = vpop.f32.mrf.mxu0
  %v1896 = vadd.f32 %v458, %v1895
  %v1897 = vpop.f32.mrf.mxu0
  %1898 = vdwg.mxu0
  %v1899 = vmax.f32 %v1896, 0.0
  %v1901 = vsel %vm261, %v1899, 0
  %1903 = vmatprep.subr.mxu0 0.0
  %1904 = vmatpush1.msra.mxu0 0.0
  %1905 = vmatprep.subr.mxu0 0.0
  %1906 = vmatpush1.msra.mxu0 0.0
  %1907 = vmatprep.subr.mxu0 0.0
  %1908 = vmatpush1.msra.mxu0 0.0
  %1909 = vmatprep.subr.mxu0 0.0
  %1910 = vmatpush1.msra.mxu0 0.0
  %1911 = vmatprep.subr.mxu0 0.0
  %1912 = vmatpush1.msra.mxu0 0.0
  %1913 = vmatprep.subr.mxu0 0.0
  %1914 = vmatpush1.msra.mxu0 0.0
  %1915 = vmatprep.subr.mxu0 0.0
  %1916 = vmatpush1.msra.mxu0 0.0
  %1917 = vmatprep.subr.mxu0 0.0
  %1918 = vmatpush1.msra.mxu0 0.0
  %1919 = vmatprep.subr.mxu0 0.0
  %1920 = vmatpush1.msra.mxu0 0.0
  %1921 = vmatprep.subr.mxu0 0.0
  %1922 = vmatpush1.msra.mxu0 0.0
  %1923 = vmatprep.subr.mxu0 0.0
  %1924 = vmatpush1.msra.mxu0 0.0
  %1925 = vmatprep.subr.mxu0 0.0
  %1926 = vmatpush1.msra.mxu0 0.0
  %1927 = vmatprep.subr.mxu0 0.0
  %1928 = vmatpush1.msra.mxu0 0.0
  %1929 = vmatprep.subr.mxu0 0.0
  %1930 = vmatpush1.msra.mxu0 0.0
  %1931 = vmatprep.subr.mxu0 0.0
  %1932 = vmatpush1.msra.mxu0 %v411
  %1933 = vmatprep.subr.mxu0 0.0
  %1934 = vmatpush1.msra.mxu0 %v410
  %1935 = vmatprep.subr.mxu0 0.0
  %1936 = vmatpush2.msra.mxu0 0.0
  %1937 = vmatprep.subr.mxu0 0.0
  %1938 = vmatpush2.msra.mxu0 0.0
  %1939 = vmatprep.subr.mxu0 0.0
  %1940 = vmatpush2.msra.mxu0 0.0
  %1941 = vmatprep.subr.mxu0 0.0
  %1942 = vmatpush2.msra.mxu0 0.0
  %1943 = vmatprep.subr.mxu0 0.0
  %1944 = vmatpush2.msra.mxu0 0.0
  %1945 = vmatprep.subr.mxu0 0.0
  %1946 = vmatpush2.msra.mxu0 0.0
  %1947 = vmatprep.subr.mxu0 0.0
  %1948 = vmatpush2.msra.mxu0 0.0
  %1949 = vmatprep.subr.mxu0 0.0
  %1950 = vmatpush2.msra.mxu0 0.0
  %1951 = vmatprep.subr.mxu0 0.0
  %1952 = vmatpush2.msra.mxu0 0.0
  %1953 = vmatprep.subr.mxu0 0.0
  %1954 = vmatpush2.msra.mxu0 0.0
  %1955 = vmatprep.subr.mxu0 0.0
  %1956 = vmatpush2.msra.mxu0 0.0
  %1957 = vmatprep.subr.mxu0 0.0
  %1958 = vmatpush2.msra.mxu0 0.0
  %1959 = vmatprep.subr.mxu0 0.0
  %1960 = vmatpush2.msra.mxu0 0.0
  %1961 = vmatprep.subr.mxu0 0.0
  %1962 = vmatpush2.msra.mxu0 0.0
  %1963 = vmatprep.subr.mxu0 0.0
  %1964 = vmatpush2.msra.mxu0 0.0
  %1965 = vmatprep.subr.mxu0 0.0
  %1966 = vmatpush2.msra.mxu0 0.0
  %1967 = vmatprep.mubr.f32.mxu0 0.0
  %1968 = vmatmul.mubr.f32.gmra.mxu0 %v1901
  %v1969 = vpop.f32.mrf.mxu0
  %v1970 = vadd.f32 %v417, %v1969
  %v1971 = vpop.f32.mrf.mxu0
  %1972 = vdwg.mxu0
  %1973 = vmatprep.subr.mxu0 0.0
  %1974 = vmatpush1.msra.mxu0 0.0
  %1975 = vmatprep.subr.mxu0 0.0
  %1976 = vmatpush1.msra.mxu0 0.0
  %1977 = vmatprep.subr.mxu0 0.0
  %1978 = vmatpush1.msra.mxu0 0.0
  %1979 = vmatprep.subr.mxu0 0.0
  %1980 = vmatpush1.msra.mxu0 0.0
  %1981 = vmatprep.subr.mxu0 0.0
  %1982 = vmatpush1.msra.mxu0 0.0
  %1983 = vmatprep.subr.mxu0 0.0
  %1984 = vmatpush1.msra.mxu0 0.0
  %1985 = vmatprep.subr.mxu0 0.0
  %1986 = vmatpush1.msra.mxu0 0.0
  %1987 = vmatprep.subr.mxu0 0.0
  %1988 = vmatpush1.msra.mxu0 0.0
  %1989 = vmatprep.subr.mxu0 0.0
  %1990 = vmatpush1.msra.mxu0 0.0
  %1991 = vmatprep.subr.mxu0 0.0
  %1992 = vmatpush1.msra.mxu0 0.0
  %1993 = vmatprep.subr.mxu0 0.0
  %1994 = vmatpush1.msra.mxu0 0.0
  %1995 = vmatprep.subr.mxu0 0.0
  %1996 = vmatpush1.msra.mxu0 0.0
  %1997 = vmatprep.subr.mxu0 0.0
  %1998 = vmatpush1.msra.mxu0 0.0
  %1999 = vmatprep.subr.mxu0 0.0
  %2000 = vmatpush1.msra.mxu0 0.0
  %2001 = vmatprep.subr.mxu0 0.0
  %2002 = vmatpush1.msra.mxu0 %v420
  %2003 = vmatprep.subr.mxu0 0.0
  %2004 = vmatpush1.msra.mxu0 %v419
  %2005 = vmatprep.subr.mxu0 0.0
  %2006 = vmatpush2.msra.mxu0 0.0
  %2007 = vmatprep.subr.mxu0 0.0
  %2008 = vmatpush2.msra.mxu0 0.0
  %2009 = vmatprep.subr.mxu0 0.0
  %2010 = vmatpush2.msra.mxu0 0.0
  %2011 = vmatprep.subr.mxu0 0.0
  %2012 = vmatpush2.msra.mxu0 0.0
  %2013 = vmatprep.subr.mxu0 0.0
  %2014 = vmatpush2.msra.mxu0 0.0
  %2015 = vmatprep.subr.mxu0 0.0
  %2016 = vmatpush2.msra.mxu0 0.0
  %2017 = vmatprep.subr.mxu0 0.0
  %2018 = vmatpush2.msra.mxu0 0.0
  %2019 = vmatprep.subr.mxu0 0.0
  %2020 = vmatpush2.msra.mxu0 0.0
  %2021 = vmatprep.subr.mxu0 0.0
  %2022 = vmatpush2.msra.mxu0 0.0
  %2023 = vmatprep.subr.mxu0 0.0
  %2024 = vmatpush2.msra.mxu0 0.0
  %2025 = vmatprep.subr.mxu0 0.0
  %2026 = vmatpush2.msra.mxu0 0.0
  %2027 = vmatprep.subr.mxu0 0.0
  %2028 = vmatpush2.msra.mxu0 0.0
  %2029 = vmatprep.subr.mxu0 0.0
  %2030 = vmatpush2.msra.mxu0 0.0
  %2031 = vmatprep.subr.mxu0 0.0
  %2032 = vmatpush2.msra.mxu0 0.0
  %2033 = vmatprep.subr.mxu0 0.0
  %2034 = vmatpush2.msra.mxu0 0.0
  %2035 = vmatprep.subr.mxu0 0.0
  %2036 = vmatpush2.msra.mxu0 0.0
  %2037 = vmatprep.mubr.f32.mxu0 0.0
  %2038 = vmatmul.mubr.f32.gmra.mxu0 %v1901
  %v2039 = vpop.f32.mrf.mxu0
  %v2040 = vadd.f32 0.0, %v2039
  %v2041 = vpop.f32.mrf.mxu0
  %2042 = vdwg.mxu0
  %v2043 = vadd.f32 %v1279, %v2040
  %v2044 = vadd.f32 %v2043, %v426
  %v2045 = vsel %vm261, %v1818, 0
  %2047 = vmatprep.subr.mxu0 0.0
  %2048 = vmatpush1.msra.mxu0 0.0
  %2049 = vmatprep.subr.mxu0 0.0
  %2050 = vmatpush1.msra.mxu0 0.0
  %2051 = vmatprep.subr.mxu0 0.0
  %2052 = vmatpush1.msra.mxu0 0.0
  %2053 = vmatprep.subr.mxu0 0.0
  %2054 = vmatpush1.msra.mxu0 0.0
  %2055 = vmatprep.subr.mxu0 0.0
  %2056 = vmatpush1.msra.mxu0 0.0
  %2057 = vmatprep.subr.mxu0 0.0
  %2058 = vmatpush1.msra.mxu0 0.0
  %2059 = vmatprep.subr.mxu0 0.0
  %2060 = vmatpush1.msra.mxu0 0.0
  %2061 = vmatprep.subr.mxu0 0.0
  %2062 = vmatpush1.msra.mxu0 0.0
  %2063 = vmatprep.subr.mxu0 0.0
  %2064 = vmatpush1.msra.mxu0 0.0
  %2065 = vmatprep.subr.mxu0 0.0
  %2066 = vmatpush1.msra.mxu0 0.0
  %2067 = vmatprep.subr.mxu0 0.0
  %2068 = vmatpush1.msra.mxu0 0.0
  %2069 = vmatprep.subr.mxu0 0.0
  %2070 = vmatpush1.msra.mxu0 0.0
  %2071 = vmatprep.subr.mxu0 0.0
  %2072 = vmatpush1.msra.mxu0 0.0
  %2073 = vmatprep.subr.mxu0 0.0
  %2074 = vmatpush1.msra.mxu0 0.0
  %2075 = vmatprep.subr.mxu0 0.0
  %2076 = vmatpush1.msra.mxu0 %v366
  %2077 = vmatprep.subr.mxu0 0.0
  %2078 = vmatpush1.msra.mxu0 %v365
  %2079 = vmatprep.subr.mxu0 0.0
  %2080 = vmatpush2.msra.mxu0 0.0
  %2081 = vmatprep.subr.mxu0 0.0
  %2082 = vmatpush2.msra.mxu0 0.0
  %2083 = vmatprep.subr.mxu0 0.0
  %2084 = vmatpush2.msra.mxu0 0.0
  %2085 = vmatprep.subr.mxu0 0.0
  %2086 = vmatpush2.msra.mxu0 0.0
  %2087 = vmatprep.subr.mxu0 0.0
  %2088 = vmatpush2.msra.mxu0 0.0
  %2089 = vmatprep.subr.mxu0 0.0
  %2090 = vmatpush2.msra.mxu0 0.0
  %2091 = vmatprep.subr.mxu0 0.0
  %2092 = vmatpush2.msra.mxu0 0.0
  %2093 = vmatprep.subr.mxu0 0.0
  %2094 = vmatpush2.msra.mxu0 0.0
  %2095 = vmatprep.subr.mxu0 0.0
  %2096 = vmatpush2.msra.mxu0 0.0
  %2097 = vmatprep.subr.mxu0 0.0
  %2098 = vmatpush2.msra.mxu0 0.0
  %2099 = vmatprep.subr.mxu0 0.0
  %2100 = vmatpush2.msra.mxu0 0.0
  %2101 = vmatprep.subr.mxu0 0.0
  %2102 = vmatpush2.msra.mxu0 0.0
  %2103 = vmatprep.subr.mxu0 0.0
  %2104 = vmatpush2.msra.mxu0 0.0
  %2105 = vmatprep.subr.mxu0 0.0
  %2106 = vmatpush2.msra.mxu0 0.0
  %2107 = vmatprep.subr.mxu0 0.0
  %2108 = vmatpush2.msra.mxu0 0.0
  %2109 = vmatprep.subr.mxu0 0.0
  %2110 = vmatpush2.msra.mxu0 0.0
  %2111 = vmatprep.mubr.f32.mxu0 0.0
  %2112 = vmatmul.mubr.f32.gmra.mxu0 %v2045
  %v2113 = vpop.f32.mrf.mxu0
  %v2114 = vadd.f32 %v1970, %v2113
  %v2115 = vpop.f32.mrf.mxu0
  %2116 = vdwg.mxu0
  %v2117 = vadd.f32 %v2114, %v373
  %v2118 = vmax.f32 %v2117, 0.0
  %2119 = vmatprep.subr.mxu0 0.0
  %2120 = vmatpush1.msra.mxu0 0.0
  %2121 = vmatprep.subr.mxu0 0.0
  %2122 = vmatpush1.msra.mxu0 0.0
  %2123 = vmatprep.subr.mxu0 0.0
  %2124 = vmatpush1.msra.mxu0 0.0
  %2125 = vmatprep.subr.mxu0 0.0
  %2126 = vmatpush1.msra.mxu0 0.0
  %2127 = vmatprep.subr.mxu0 0.0
  %2128 = vmatpush1.msra.mxu0 0.0
  %2129 = vmatprep.subr.mxu0 0.0
  %2130 = vmatpush1.msra.mxu0 0.0
  %2131 = vmatprep.subr.mxu0 0.0
  %2132 = vmatpush1.msra.mxu0 0.0
  %2133 = vmatprep.subr.mxu0 0.0
  %2134 = vmatpush1.msra.mxu0 0.0
  %2135 = vmatprep.subr.mxu0 0.0
  %2136 = vmatpush1.msra.mxu0 0.0
  %2137 = vmatprep.subr.mxu0 0.0
  %2138 = vmatpush1.msra.mxu0 0.0
  %2139 = vmatprep.subr.mxu0 0.0
  %2140 = vmatpush1.msra.mxu0 0.0
  %2141 = vmatprep.subr.mxu0 0.0
  %2142 = vmatpush1.msra.mxu0 0.0
  %2143 = vmatprep.subr.mxu0 0.0
  %2144 = vmatpush1.msra.mxu0 0.0
  %2145 = vmatprep.subr.mxu0 0.0
  %2146 = vmatpush1.msra.mxu0 0.0
  %2147 = vmatprep.subr.mxu0 0.0
  %2148 = vmatpush1.msra.mxu0 %v378
  %2149 = vmatprep.subr.mxu0 0.0
  %2150 = vmatpush1.msra.mxu0 %v377
  %2151 = vmatprep.subr.mxu0 0.0
  %2152 = vmatpush2.msra.mxu0 0.0
  %2153 = vmatprep.subr.mxu0 0.0
  %2154 = vmatpush2.msra.mxu0 0.0
  %2155 = vmatprep.subr.mxu0 0.0
  %2156 = vmatpush2.msra.mxu0 0.0
  %2157 = vmatprep.subr.mxu0 0.0
  %2158 = vmatpush2.msra.mxu0 0.0
  %2159 = vmatprep.subr.mxu0 0.0
  %2160 = vmatpush2.msra.mxu0 0.0
  %2161 = vmatprep.subr.mxu0 0.0
  %2162 = vmatpush2.msra.mxu0 0.0
  %2163 = vmatprep.subr.mxu0 0.0
  %2164 = vmatpush2.msra.mxu0 0.0
  %2165 = vmatprep.subr.mxu0 0.0
  %2166 = vmatpush2.msra.mxu0 0.0
  %2167 = vmatprep.subr.mxu0 0.0
  %2168 = vmatpush2.msra.mxu0 0.0
  %2169 = vmatprep.subr.mxu0 0.0
  %2170 = vmatpush2.msra.mxu0 0.0
  %2171 = vmatprep.subr.mxu0 0.0
  %2172 = vmatpush2.msra.mxu0 0.0
  %2173 = vmatprep.subr.mxu0 0.0
  %2174 = vmatpush2.msra.mxu0 0.0
  %2175 = vmatprep.subr.mxu0 0.0
  %2176 = vmatpush2.msra.mxu0 0.0
  %2177 = vmatprep.subr.mxu0 0.0
  %2178 = vmatpush2.msra.mxu0 0.0
  %2179 = vmatprep.subr.mxu0 0.0
  %2180 = vmatpush2.msra.mxu0 0.0
  %2181 = vmatprep.subr.mxu0 0.0
  %2182 = vmatpush2.msra.mxu0 0.0
  %2183 = vmatprep.mubr.f32.mxu0 0.0
  %2184 = vmatmul.mubr.f32.gmra.mxu0 %v1672
  %v2185 = vpop.f32.mrf.mxu0
  %v2186 = vadd.f32 0.0, %v2185
  %v2187 = vpop.f32.mrf.mxu0
  %2188 = vdwg.mxu0
  %v2190 = vsel %vm261, %v2118, 0
  %2192 = vmatprep.subr.mxu0 0.0
  %2193 = vmatpush1.msra.mxu0 0.0
  %2194 = vmatprep.subr.mxu0 0.0
  %2195 = vmatpush1.msra.mxu0 0.0
  %2196 = vmatprep.subr.mxu0 0.0
  %2197 = vmatpush1.msra.mxu0 0.0
  %2198 = vmatprep.subr.mxu0 0.0
  %2199 = vmatpush1.msra.mxu0 0.0
  %2200 = vmatprep.subr.mxu0 0.0
  %2201 = vmatpush1.msra.mxu0 0.0
  %2202 = vmatprep.subr.mxu0 0.0
  %2203 = vmatpush1.msra.mxu0 0.0
  %2204 = vmatprep.subr.mxu0 0.0
  %2205 = vmatpush1.msra.mxu0 0.0
  %2206 = vmatprep.subr.mxu0 0.0
  %2207 = vmatpush1.msra.mxu0 0.0
  %2208 = vmatprep.subr.mxu0 0.0
  %2209 = vmatpush1.msra.mxu0 0.0
  %2210 = vmatprep.subr.mxu0 0.0
  %2211 = vmatpush1.msra.mxu0 0.0
  %2212 = vmatprep.subr.mxu0 0.0
  %2213 = vmatpush1.msra.mxu0 0.0
  %2214 = vmatprep.subr.mxu0 0.0
  %2215 = vmatpush1.msra.mxu0 0.0
  %2216 = vmatprep.subr.mxu0 0.0
  %2217 = vmatpush1.msra.mxu0 0.0
  %2218 = vmatprep.subr.mxu0 0.0
  %2219 = vmatpush1.msra.mxu0 0.0
  %2220 = vmatprep.subr.mxu0 0.0
  %2221 = vmatpush1.msra.mxu0 %v376
  %2222 = vmatprep.subr.mxu0 0.0
  %2223 = vmatpush1.msra.mxu0 %v375
  %2224 = vmatprep.subr.mxu0 0.0
  %2225 = vmatpush2.msra.mxu0 0.0
  %2226 = vmatprep.subr.mxu0 0.0
  %2227 = vmatpush2.msra.mxu0 0.0
  %2228 = vmatprep.subr.mxu0 0.0
  %2229 = vmatpush2.msra.mxu0 0.0
  %2230 = vmatprep.subr.mxu0 0.0
  %2231 = vmatpush2.msra.mxu0 0.0
  %2232 = vmatprep.subr.mxu0 0.0
  %2233 = vmatpush2.msra.mxu0 0.0
  %2234 = vmatprep.subr.mxu0 0.0
  %2235 = vmatpush2.msra.mxu0 0.0
  %2236 = vmatprep.subr.mxu0 0.0
  %2237 = vmatpush2.msra.mxu0 0.0
  %2238 = vmatprep.subr.mxu0 0.0
  %2239 = vmatpush2.msra.mxu0 0.0
  %2240 = vmatprep.subr.mxu0 0.0
  %2241 = vmatpush2.msra.mxu0 0.0
  %2242 = vmatprep.subr.mxu0 0.0
  %2243 = vmatpush2.msra.mxu0 0.0
  %2244 = vmatprep.subr.mxu0 0.0
  %2245 = vmatpush2.msra.mxu0 0.0
  %2246 = vmatprep.subr.mxu0 0.0
  %2247 = vmatpush2.msra.mxu0 0.0
  %2248 = vmatprep.subr.mxu0 0.0
  %2249 = vmatpush2.msra.mxu0 0.0
  %2250 = vmatprep.subr.mxu0 0.0
  %2251 = vmatpush2.msra.mxu0 0.0
  %2252 = vmatprep.subr.mxu0 0.0
  %2253 = vmatpush2.msra.mxu0 0.0
  %2254 = vmatprep.subr.mxu0 0.0
  %2255 = vmatpush2.msra.mxu0 0.0
  %2256 = vmatprep.mubr.f32.mxu0 0.0
  %2257 = vmatmul.mubr.f32.gmra.mxu0 %v2190
  %v2258 = vpop.f32.mrf.mxu0
  %v2259 = vadd.f32 %v2186, %v2258
  %v2260 = vpop.f32.mrf.mxu0
  %2261 = vdwg.mxu0
  %v2262 = vadd.f32 %v2259, %v384
  %v2263 = vxor.u32 %v2262, 2147483648
  %v2264 = vmul.f32 %v2263, 1.442695
  %v2265 = vpow.pop %v2264
  %v2266 = vadd.f32 %v2265, 1.0
  %v2267 = vrcp.pop %v2266
  %v2268 = vmul.f32 1.0, %v2267
  %v2269 = vtanh.pop %v2262
  %v2270 = vmul.f32 %v2268, %v1515
  %2272 = vrot.lane.b32.xlu0 %v2269, 96
  %v2273 = vpop.permute.xlu0 %2272
  %v2275 = vmul.f32 %v2268, %v2273
  %2277 = vrot.lane.b32.xlu0 %v2275, 16
  %v2278 = vpop.permute.xlu0 %2277
  %v2280 = vadd.f32 %v2270, %v2278
  %v2281 = vtanh.pop %v2280
  %2283 = vrot.lane.b32.xlu0 %v2281, 32
  %v2284 = vpop.permute.xlu0 %2283
  %v2286 = vmul.f32 %v2268, %v2284
  %2287 = vmatprep.subr.mxu0 0.0
  %2288 = vmatpush1.msra.mxu0 0.0
  %2289 = vmatprep.subr.mxu0 0.0
  %2290 = vmatpush1.msra.mxu0 0.0
  %2291 = vmatprep.subr.mxu0 0.0
  %2292 = vmatpush1.msra.mxu0 0.0
  %2293 = vmatprep.subr.mxu0 0.0
  %2294 = vmatpush1.msra.mxu0 0.0
  %2295 = vmatprep.subr.mxu0 0.0
  %2296 = vmatpush1.msra.mxu0 0.0
  %2297 = vmatprep.subr.mxu0 0.0
  %2298 = vmatpush1.msra.mxu0 0.0
  %2299 = vmatprep.subr.mxu0 0.0
  %2300 = vmatpush1.msra.mxu0 0.0
  %2301 = vmatprep.subr.mxu0 0.0
  %2302 = vmatpush1.msra.mxu0 0.0
  %2303 = vmatprep.subr.mxu0 0.0
  %2304 = vmatpush1.msra.mxu0 0.0
  %2305 = vmatprep.subr.mxu0 0.0
  %2306 = vmatpush1.msra.mxu0 0.0
  %2307 = vmatprep.subr.mxu0 0.0
  %2308 = vmatpush1.msra.mxu0 0.0
  %2309 = vmatprep.subr.mxu0 0.0
  %2310 = vmatpush1.msra.mxu0 0.0
  %2311 = vmatprep.subr.mxu0 0.0
  %2312 = vmatpush1.msra.mxu0 0.0
  %2313 = vmatprep.subr.mxu0 0.0
  %2314 = vmatpush1.msra.mxu0 0.0
  %2315 = vmatprep.subr.mxu0 0.0
  %2316 = vmatpush1.msra.mxu0 0.0
  %2317 = vmatprep.subr.mxu0 0.0
  %2318 = vmatpush1.msra.mxu0 %v2044
  %2319 = vmatprep.subr.mxu0 0.0
  %2320 = vmatpush2.msra.mxu0 0.0
  %2321 = vmatprep.subr.mxu0 0.0
  %2322 = vmatpush2.msra.mxu0 0.0
  %2323 = vmatprep.subr.mxu0 0.0
  %2324 = vmatpush2.msra.mxu0 0.0
  %2325 = vmatprep.subr.mxu0 0.0
  %2326 = vmatpush2.msra.mxu0 0.0
  %2327 = vmatprep.subr.mxu0 0.0
  %2328 = vmatpush2.msra.mxu0 0.0
  %2329 = vmatprep.subr.mxu0 0.0
  %2330 = vmatpush2.msra.mxu0 0.0
  %2331 = vmatprep.subr.mxu0 0.0
  %2332 = vmatpush2.msra.mxu0 0.0
  %2333 = vmatprep.subr.mxu0 0.0
  %2334 = vmatpush2.msra.mxu0 0.0
  %2335 = vmatprep.subr.mxu0 0.0
  %2336 = vmatpush2.msra.mxu0 0.0
  %2337 = vmatprep.subr.mxu0 0.0
  %2338 = vmatpush2.msra.mxu0 0.0
  %2339 = vmatprep.subr.mxu0 0.0
  %2340 = vmatpush2.msra.mxu0 0.0
  %2341 = vmatprep.subr.mxu0 0.0
  %2342 = vmatpush2.msra.mxu0 0.0
  %2343 = vmatprep.subr.mxu0 0.0
  %2344 = vmatpush2.msra.mxu0 0.0
  %2345 = vmatprep.subr.mxu0 0.0
  %2346 = vmatpush2.msra.mxu0 0.0
  %2347 = vmatprep.subr.mxu0 0.0
  %2348 = vmatpush2.msra.mxu0 0.0
  %2349 = vmatprep.subr.mxu0 0.0
  %2350 = vmatpush2.msra.mxu0 0.0
  %2351 = vmatprep.mubr.f32.mxu0 0.0
  %2352 = vmatmul.mubr.f32.gmra.mxu0 %v749
  %v2353 = vpop.f32.mrf.mxu0
  %v2354 = vadd.f32 %v392, %v2353
  %v2355 = vpop.f32.mrf.mxu0
  %2356 = vmatprep.mubr.f32.mxu0 0.0
  %2357 = vmatmul.mubr.f32.gmra.mxu0 %v752
  %v2358 = vpop.f32.mrf.mxu0
  %v2359 = vadd.f32 %v392, %v2358
  %v2360 = vpop.f32.mrf.mxu0
  %2361 = vdwg.mxu0
  %v2362 = vmax.f32 %v2354, 0.0
  %v2363 = vmax.f32 %v2359, 0.0
  %2364 = vmatprep.subr.mxu0 0.0
  %2365 = vmatpush1.msra.mxu0 0.0
  %2366 = vmatprep.subr.mxu0 0.0
  %2367 = vmatpush1.msra.mxu0 0.0
  %2368 = vmatprep.subr.mxu0 0.0
  %2369 = vmatpush1.msra.mxu0 0.0
  %2370 = vmatprep.subr.mxu0 0.0
  %2371 = vmatpush1.msra.mxu0 0.0
  %2372 = vmatprep.subr.mxu0 0.0
  %2373 = vmatpush1.msra.mxu0 0.0
  %2374 = vmatprep.subr.mxu0 0.0
  %2375 = vmatpush1.msra.mxu0 0.0
  %2376 = vmatprep.subr.mxu0 0.0
  %2377 = vmatpush1.msra.mxu0 0.0
  %2378 = vmatprep.subr.mxu0 0.0
  %2379 = vmatpush1.msra.mxu0 0.0
  %2380 = vmatprep.subr.mxu0 0.0
  %2381 = vmatpush1.msra.mxu0 0.0
  %2382 = vmatprep.subr.mxu0 0.0
  %2383 = vmatpush1.msra.mxu0 0.0
  %2384 = vmatprep.subr.mxu0 0.0
  %2385 = vmatpush1.msra.mxu0 0.0
  %2386 = vmatprep.subr.mxu0 0.0
  %2387 = vmatpush1.msra.mxu0 0.0
  %2388 = vmatprep.subr.mxu0 0.0
  %2389 = vmatpush1.msra.mxu0 0.0
  %2390 = vmatprep.subr.mxu0 0.0
  %2391 = vmatpush1.msra.mxu0 0.0
  %2392 = vmatprep.subr.mxu0 0.0
  %2393 = vmatpush1.msra.mxu0 %v2363
  %2394 = vmatprep.subr.mxu0 0.0
  %2395 = vmatpush1.msra.mxu0 %v2362
  %2396 = vmatprep.subr.mxu0 0.0
  %2397 = vmatpush2.msra.mxu0 0.0
  %2398 = vmatprep.subr.mxu0 0.0
  %2399 = vmatpush2.msra.mxu0 0.0
  %2400 = vmatprep.subr.mxu0 0.0
  %2401 = vmatpush2.msra.mxu0 0.0
  %2402 = vmatprep.subr.mxu0 0.0
  %2403 = vmatpush2.msra.mxu0 0.0
  %2404 = vmatprep.subr.mxu0 0.0
  %2405 = vmatpush2.msra.mxu0 0.0
  %2406 = vmatprep.subr.mxu0 0.0
  %2407 = vmatpush2.msra.mxu0 0.0
  %2408 = vmatprep.subr.mxu0 0.0
  %2409 = vmatpush2.msra.mxu0 0.0
  %2410 = vmatprep.subr.mxu0 0.0
  %2411 = vmatpush2.msra.mxu0 0.0
  %2412 = vmatprep.subr.mxu0 0.0
  %2413 = vmatpush2.msra.mxu0 0.0
  %2414 = vmatprep.subr.mxu0 0.0
  %2415 = vmatpush2.msra.mxu0 0.0
  %2416 = vmatprep.subr.mxu0 0.0
  %2417 = vmatpush2.msra.mxu0 0.0
  %2418 = vmatprep.subr.mxu0 0.0
  %2419 = vmatpush2.msra.mxu0 0.0
  %2420 = vmatprep.subr.mxu0 0.0
  %2421 = vmatpush2.msra.mxu0 0.0
  %2422 = vmatprep.subr.mxu0 0.0
  %2423 = vmatpush2.msra.mxu0 0.0
  %2424 = vmatprep.subr.mxu0 0.0
  %2425 = vmatpush2.msra.mxu0 0.0
  %2426 = vmatprep.subr.mxu0 0.0
  %2427 = vmatpush2.msra.mxu0 0.0
  %2428 = vmatprep.mubr.f32.mxu0 0.0
  %2429 = vmatmul.mubr.f32.gmra.mxu0 %v832
  %v2430 = vpop.f32.mrf.mxu0
  %v2431 = vadd.f32 0.0, %v2430
  %v2432 = vpop.f32.mrf.mxu0
  %2433 = vdwg.mxu0
  %2435 = vrot.lane.b32.xlu0 %v2286, 80
  %v2436 = vpop.permute.xlu0 %2435
  %v2437 = vsel %vm261, %v2436, 0
  %2439 = vmatprep.subr.mxu0 0.0
  %2440 = vmatpush1.msra.mxu0 0.0
  %2441 = vmatprep.subr.mxu0 0.0
  %2442 = vmatpush1.msra.mxu0 0.0
  %2443 = vmatprep.subr.mxu0 0.0
  %2444 = vmatpush1.msra.mxu0 0.0
  %2445 = vmatprep.subr.mxu0 0.0
  %2446 = vmatpush1.msra.mxu0 0.0
  %2447 = vmatprep.subr.mxu0 0.0
  %2448 = vmatpush1.msra.mxu0 0.0
  %2449 = vmatprep.subr.mxu0 0.0
  %2450 = vmatpush1.msra.mxu0 0.0
  %2451 = vmatprep.subr.mxu0 0.0
  %2452 = vmatpush1.msra.mxu0 0.0
  %2453 = vmatprep.subr.mxu0 0.0
  %2454 = vmatpush1.msra.mxu0 0.0
  %2455 = vmatprep.subr.mxu0 0.0
  %2456 = vmatpush1.msra.mxu0 0.0
  %2457 = vmatprep.subr.mxu0 0.0
  %2458 = vmatpush1.msra.mxu0 0.0
  %2459 = vmatprep.subr.mxu0 0.0
  %2460 = vmatpush1.msra.mxu0 0.0
  %2461 = vmatprep.subr.mxu0 0.0
  %2462 = vmatpush1.msra.mxu0 0.0
  %2463 = vmatprep.subr.mxu0 0.0
  %2464 = vmatpush1.msra.mxu0 0.0
  %2465 = vmatprep.subr.mxu0 0.0
  %2466 = vmatpush1.msra.mxu0 0.0
  %2467 = vmatprep.subr.mxu0 0.0
  %2468 = vmatpush1.msra.mxu0 %v397
  %2469 = vmatprep.subr.mxu0 0.0
  %2470 = vmatpush1.msra.mxu0 %v396
  %2471 = vmatprep.subr.mxu0 0.0
  %2472 = vmatpush2.msra.mxu0 0.0
  %2473 = vmatprep.subr.mxu0 0.0
  %2474 = vmatpush2.msra.mxu0 0.0
  %2475 = vmatprep.subr.mxu0 0.0
  %2476 = vmatpush2.msra.mxu0 0.0
  %2477 = vmatprep.subr.mxu0 0.0
  %2478 = vmatpush2.msra.mxu0 0.0
  %2479 = vmatprep.subr.mxu0 0.0
  %2480 = vmatpush2.msra.mxu0 0.0
  %2481 = vmatprep.subr.mxu0 0.0
  %2482 = vmatpush2.msra.mxu0 0.0
  %2483 = vmatprep.subr.mxu0 0.0
  %2484 = vmatpush2.msra.mxu0 0.0
  %2485 = vmatprep.subr.mxu0 0.0
  %2486 = vmatpush2.msra.mxu0 0.0
  %2487 = vmatprep.subr.mxu0 0.0
  %2488 = vmatpush2.msra.mxu0 0.0
  %2489 = vmatprep.subr.mxu0 0.0
  %2490 = vmatpush2.msra.mxu0 0.0
  %2491 = vmatprep.subr.mxu0 0.0
  %2492 = vmatpush2.msra.mxu0 0.0
  %2493 = vmatprep.subr.mxu0 0.0
  %2494 = vmatpush2.msra.mxu0 0.0
  %2495 = vmatprep.subr.mxu0 0.0
  %2496 = vmatpush2.msra.mxu0 0.0
  %2497 = vmatprep.subr.mxu0 0.0
  %2498 = vmatpush2.msra.mxu0 0.0
  %2499 = vmatprep.subr.mxu0 0.0
  %2500 = vmatpush2.msra.mxu0 0.0
  %2501 = vmatprep.subr.mxu0 0.0
  %2502 = vmatpush2.msra.mxu0 0.0
  %2503 = vmatprep.mubr.f32.mxu0 0.0
  %2504 = vmatmul.mubr.f32.gmra.mxu0 %v2437
  %v2505 = vpop.f32.mrf.mxu0
  %v2506 = vadd.f32 0.0, %v2505
  %v2507 = vpop.f32.mrf.mxu0
  %2508 = vdwg.mxu0
  %v2510 = vsel %vm261, %v2431, 0
  %2512 = vmatprep.subr.mxu0 0.0
  %2513 = vmatpush1.msra.mxu0 0.0
  %2514 = vmatprep.subr.mxu0 0.0
  %2515 = vmatpush1.msra.mxu0 0.0
  %2516 = vmatprep.subr.mxu0 0.0
  %2517 = vmatpush1.msra.mxu0 0.0
  %2518 = vmatprep.subr.mxu0 0.0
  %2519 = vmatpush1.msra.mxu0 0.0
  %2520 = vmatprep.subr.mxu0 0.0
  %2521 = vmatpush1.msra.mxu0 0.0
  %2522 = vmatprep.subr.mxu0 0.0
  %2523 = vmatpush1.msra.mxu0 0.0
  %2524 = vmatprep.subr.mxu0 0.0
  %2525 = vmatpush1.msra.mxu0 0.0
  %2526 = vmatprep.subr.mxu0 0.0
  %2527 = vmatpush1.msra.mxu0 0.0
  %2528 = vmatprep.subr.mxu0 0.0
  %2529 = vmatpush1.msra.mxu0 0.0
  %2530 = vmatprep.subr.mxu0 0.0
  %2531 = vmatpush1.msra.mxu0 0.0
  %2532 = vmatprep.subr.mxu0 0.0
  %2533 = vmatpush1.msra.mxu0 0.0
  %2534 = vmatprep.subr.mxu0 0.0
  %2535 = vmatpush1.msra.mxu0 0.0
  %2536 = vmatprep.subr.mxu0 0.0
  %2537 = vmatpush1.msra.mxu0 0.0
  %2538 = vmatprep.subr.mxu0 0.0
  %2539 = vmatpush1.msra.mxu0 0.0
  %2540 = vmatprep.subr.mxu0 0.0
  %2541 = vmatpush1.msra.mxu0 %v395
  %2542 = vmatprep.subr.mxu0 0.0
  %2543 = vmatpush1.msra.mxu0 %v394
  %2544 = vmatprep.subr.mxu0 0.0
  %2545 = vmatpush2.msra.mxu0 0.0
  %2546 = vmatprep.subr.mxu0 0.0
  %2547 = vmatpush2.msra.mxu0 0.0
  %2548 = vmatprep.subr.mxu0 0.0
  %2549 = vmatpush2.msra.mxu0 0.0
  %2550 = vmatprep.subr.mxu0 0.0
  %2551 = vmatpush2.msra.mxu0 0.0
  %2552 = vmatprep.subr.mxu0 0.0
  %2553 = vmatpush2.msra.mxu0 0.0
  %2554 = vmatprep.subr.mxu0 0.0
  %2555 = vmatpush2.msra.mxu0 0.0
  %2556 = vmatprep.subr.mxu0 0.0
  %2557 = vmatpush2.msra.mxu0 0.0
  %2558 = vmatprep.subr.mxu0 0.0
  %2559 = vmatpush2.msra.mxu0 0.0
  %2560 = vmatprep.subr.mxu0 0.0
  %2561 = vmatpush2.msra.mxu0 0.0
  %2562 = vmatprep.subr.mxu0 0.0
  %2563 = vmatpush2.msra.mxu0 0.0
  %2564 = vmatprep.subr.mxu0 0.0
  %2565 = vmatpush2.msra.mxu0 0.0
  %2566 = vmatprep.subr.mxu0 0.0
  %2567 = vmatpush2.msra.mxu0 0.0
  %2568 = vmatprep.subr.mxu0 0.0
  %2569 = vmatpush2.msra.mxu0 0.0
  %2570 = vmatprep.subr.mxu0 0.0
  %2571 = vmatpush2.msra.mxu0 0.0
  %2572 = vmatprep.subr.mxu0 0.0
  %2573 = vmatpush2.msra.mxu0 0.0
  %2574 = vmatprep.subr.mxu0 0.0
  %2575 = vmatpush2.msra.mxu0 0.0
  %2576 = vmatprep.mubr.f32.mxu0 0.0
  %2577 = vmatmul.mubr.f32.gmra.mxu0 %v2510
  %v2578 = vpop.f32.mrf.mxu0
  %v2579 = vadd.f32 %v2506, %v2578
  %v2580 = vpop.f32.mrf.mxu0
  %2581 = vdwg.mxu0
  %v2582 = vadd.f32 %v2579, %v403
  %v2583 = vmax.f32 %v2582, 0.0
  %2585 = vrot.lane.b32.xlu0 %v2583, 48
  %v2586 = vpop.permute.xlu0 %2585
  %v2588 = vadd.f32 %v2286, %v2586
  %2590 = vrot.lane.b32.xlu0 %v2588, 80
  %v2591 = vpop.permute.xlu0 %2590
  %v2592 = vsel %vm261, %v2591, 0
  %2594 = vmatprep.subr.mxu0 0.0
  %2595 = vmatpush1.msra.mxu0 0.0
  %2596 = vmatprep.subr.mxu0 0.0
  %2597 = vmatpush1.msra.mxu0 0.0
  %2598 = vmatprep.subr.mxu0 0.0
  %2599 = vmatpush1.msra.mxu0 0.0
  %2600 = vmatprep.subr.mxu0 0.0
  %2601 = vmatpush1.msra.mxu0 0.0
  %2602 = vmatprep.subr.mxu0 0.0
  %2603 = vmatpush1.msra.mxu0 0.0
  %2604 = vmatprep.subr.mxu0 0.0
  %2605 = vmatpush1.msra.mxu0 0.0
  %2606 = vmatprep.subr.mxu0 0.0
  %2607 = vmatpush1.msra.mxu0 0.0
  %2608 = vmatprep.subr.mxu0 0.0
  %2609 = vmatpush1.msra.mxu0 0.0
  %2610 = vmatprep.subr.mxu0 0.0
  %2611 = vmatpush1.msra.mxu0 0.0
  %2612 = vmatprep.subr.mxu0 0.0
  %2613 = vmatpush1.msra.mxu0 0.0
  %2614 = vmatprep.subr.mxu0 0.0
  %2615 = vmatpush1.msra.mxu0 0.0
  %2616 = vmatprep.subr.mxu0 0.0
  %2617 = vmatpush1.msra.mxu0 0.0
  %2618 = vmatprep.subr.mxu0 0.0
  %2619 = vmatpush1.msra.mxu0 0.0
  %2620 = vmatprep.subr.mxu0 0.0
  %2621 = vmatpush1.msra.mxu0 0.0
  %2622 = vmatprep.subr.mxu0 0.0
  %2623 = vmatpush1.msra.mxu0 %v406
  %2624 = vmatprep.subr.mxu0 0.0
  %2625 = vmatpush1.msra.mxu0 %v405
  %2626 = vmatprep.subr.mxu0 0.0
  %2627 = vmatpush2.msra.mxu0 0.0
  %2628 = vmatprep.subr.mxu0 0.0
  %2629 = vmatpush2.msra.mxu0 0.0
  %2630 = vmatprep.subr.mxu0 0.0
  %2631 = vmatpush2.msra.mxu0 0.0
  %2632 = vmatprep.subr.mxu0 0.0
  %2633 = vmatpush2.msra.mxu0 0.0
  %2634 = vmatprep.subr.mxu0 0.0
  %2635 = vmatpush2.msra.mxu0 0.0
  %2636 = vmatprep.subr.mxu0 0.0
  %2637 = vmatpush2.msra.mxu0 0.0
  %2638 = vmatprep.subr.mxu0 0.0
  %2639 = vmatpush2.msra.mxu0 0.0
  %2640 = vmatprep.subr.mxu0 0.0
  %2641 = vmatpush2.msra.mxu0 0.0
  %2642 = vmatprep.subr.mxu0 0.0
  %2643 = vmatpush2.msra.mxu0 0.0
  %2644 = vmatprep.subr.mxu0 0.0
  %2645 = vmatpush2.msra.mxu0 0.0
  %2646 = vmatprep.subr.mxu0 0.0
  %2647 = vmatpush2.msra.mxu0 0.0
  %2648 = vmatprep.subr.mxu0 0.0
  %2649 = vmatpush2.msra.mxu0 0.0
  %2650 = vmatprep.subr.mxu0 0.0
  %2651 = vmatpush2.msra.mxu0 0.0
  %2652 = vmatprep.subr.mxu0 0.0
  %2653 = vmatpush2.msra.mxu0 0.0
  %2654 = vmatprep.subr.mxu0 0.0
  %2655 = vmatpush2.msra.mxu0 0.0
  %2656 = vmatprep.subr.mxu0 0.0
  %2657 = vmatpush2.msra.mxu0 0.0
  %2658 = vmatprep.mubr.f32.mxu0 0.0
  %2659 = vmatmul.mubr.f32.gmra.mxu0 %v2592
  %v2660 = vpop.f32.mrf.mxu0
  %v2661 = vadd.f32 %v458, %v2660
  %v2662 = vpop.f32.mrf.mxu0
  %2663 = vdwg.mxu0
  %v2664 = vmax.f32 %v2661, 0.0
  %v2666 = vsel %vm261, %v2664, 0
  %2668 = vmatprep.subr.mxu0 0.0
  %2669 = vmatpush1.msra.mxu0 0.0
  %2670 = vmatprep.subr.mxu0 0.0
  %2671 = vmatpush1.msra.mxu0 0.0
  %2672 = vmatprep.subr.mxu0 0.0
  %2673 = vmatpush1.msra.mxu0 0.0
  %2674 = vmatprep.subr.mxu0 0.0
  %2675 = vmatpush1.msra.mxu0 0.0
  %2676 = vmatprep.subr.mxu0 0.0
  %2677 = vmatpush1.msra.mxu0 0.0
  %2678 = vmatprep.subr.mxu0 0.0
  %2679 = vmatpush1.msra.mxu0 0.0
  %2680 = vmatprep.subr.mxu0 0.0
  %2681 = vmatpush1.msra.mxu0 0.0
  %2682 = vmatprep.subr.mxu0 0.0
  %2683 = vmatpush1.msra.mxu0 0.0
  %2684 = vmatprep.subr.mxu0 0.0
  %2685 = vmatpush1.msra.mxu0 0.0
  %2686 = vmatprep.subr.mxu0 0.0
  %2687 = vmatpush1.msra.mxu0 0.0
  %2688 = vmatprep.subr.mxu0 0.0
  %2689 = vmatpush1.msra.mxu0 0.0
  %2690 = vmatprep.subr.mxu0 0.0
  %2691 = vmatpush1.msra.mxu0 0.0
  %2692 = vmatprep.subr.mxu0 0.0
  %2693 = vmatpush1.msra.mxu0 0.0
  %2694 = vmatprep.subr.mxu0 0.0
  %2695 = vmatpush1.msra.mxu0 0.0
  %2696 = vmatprep.subr.mxu0 0.0
  %2697 = vmatpush1.msra.mxu0 %v411
  %2698 = vmatprep.subr.mxu0 0.0
  %2699 = vmatpush1.msra.mxu0 %v410
  %2700 = vmatprep.subr.mxu0 0.0
  %2701 = vmatpush2.msra.mxu0 0.0
  %2702 = vmatprep.subr.mxu0 0.0
  %2703 = vmatpush2.msra.mxu0 0.0
  %2704 = vmatprep.subr.mxu0 0.0
  %2705 = vmatpush2.msra.mxu0 0.0
  %2706 = vmatprep.subr.mxu0 0.0
  %2707 = vmatpush2.msra.mxu0 0.0
  %2708 = vmatprep.subr.mxu0 0.0
  %2709 = vmatpush2.msra.mxu0 0.0
  %2710 = vmatprep.subr.mxu0 0.0
  %2711 = vmatpush2.msra.mxu0 0.0
  %2712 = vmatprep.subr.mxu0 0.0
  %2713 = vmatpush2.msra.mxu0 0.0
  %2714 = vmatprep.subr.mxu0 0.0
  %2715 = vmatpush2.msra.mxu0 0.0
  %2716 = vmatprep.subr.mxu0 0.0
  %2717 = vmatpush2.msra.mxu0 0.0
  %2718 = vmatprep.subr.mxu0 0.0
  %2719 = vmatpush2.msra.mxu0 0.0
  %2720 = vmatprep.subr.mxu0 0.0
  %2721 = vmatpush2.msra.mxu0 0.0
  %2722 = vmatprep.subr.mxu0 0.0
  %2723 = vmatpush2.msra.mxu0 0.0
  %2724 = vmatprep.subr.mxu0 0.0
  %2725 = vmatpush2.msra.mxu0 0.0
  %2726 = vmatprep.subr.mxu0 0.0
  %2727 = vmatpush2.msra.mxu0 0.0
  %2728 = vmatprep.subr.mxu0 0.0
  %2729 = vmatpush2.msra.mxu0 0.0
  %2730 = vmatprep.subr.mxu0 0.0
  %2731 = vmatpush2.msra.mxu0 0.0
  %2732 = vmatprep.mubr.f32.mxu0 0.0
  %2733 = vmatmul.mubr.f32.gmra.mxu0 %v2666
  %v2734 = vpop.f32.mrf.mxu0
  %v2735 = vadd.f32 %v417, %v2734
  %v2736 = vpop.f32.mrf.mxu0
  %2737 = vdwg.mxu0
  %2738 = vmatprep.subr.mxu0 0.0
  %2739 = vmatpush1.msra.mxu0 0.0
  %2740 = vmatprep.subr.mxu0 0.0
  %2741 = vmatpush1.msra.mxu0 0.0
  %2742 = vmatprep.subr.mxu0 0.0
  %2743 = vmatpush1.msra.mxu0 0.0
  %2744 = vmatprep.subr.mxu0 0.0
  %2745 = vmatpush1.msra.mxu0 0.0
  %2746 = vmatprep.subr.mxu0 0.0
  %2747 = vmatpush1.msra.mxu0 0.0
  %2748 = vmatprep.subr.mxu0 0.0
  %2749 = vmatpush1.msra.mxu0 0.0
  %2750 = vmatprep.subr.mxu0 0.0
  %2751 = vmatpush1.msra.mxu0 0.0
  %2752 = vmatprep.subr.mxu0 0.0
  %2753 = vmatpush1.msra.mxu0 0.0
  %2754 = vmatprep.subr.mxu0 0.0
  %2755 = vmatpush1.msra.mxu0 0.0
  %2756 = vmatprep.subr.mxu0 0.0
  %2757 = vmatpush1.msra.mxu0 0.0
  %2758 = vmatprep.subr.mxu0 0.0
  %2759 = vmatpush1.msra.mxu0 0.0
  %2760 = vmatprep.subr.mxu0 0.0
  %2761 = vmatpush1.msra.mxu0 0.0
  %2762 = vmatprep.subr.mxu0 0.0
  %2763 = vmatpush1.msra.mxu0 0.0
  %2764 = vmatprep.subr.mxu0 0.0
  %2765 = vmatpush1.msra.mxu0 0.0
  %2766 = vmatprep.subr.mxu0 0.0
  %2767 = vmatpush1.msra.mxu0 %v420
  %2768 = vmatprep.subr.mxu0 0.0
  %2769 = vmatpush1.msra.mxu0 %v419
  %2770 = vmatprep.subr.mxu0 0.0
  %2771 = vmatpush2.msra.mxu0 0.0
  %2772 = vmatprep.subr.mxu0 0.0
  %2773 = vmatpush2.msra.mxu0 0.0
  %2774 = vmatprep.subr.mxu0 0.0
  %2775 = vmatpush2.msra.mxu0 0.0
  %2776 = vmatprep.subr.mxu0 0.0
  %2777 = vmatpush2.msra.mxu0 0.0
  %2778 = vmatprep.subr.mxu0 0.0
  %2779 = vmatpush2.msra.mxu0 0.0
  %2780 = vmatprep.subr.mxu0 0.0
  %2781 = vmatpush2.msra.mxu0 0.0
  %2782 = vmatprep.subr.mxu0 0.0
  %2783 = vmatpush2.msra.mxu0 0.0
  %2784 = vmatprep.subr.mxu0 0.0
  %2785 = vmatpush2.msra.mxu0 0.0
  %2786 = vmatprep.subr.mxu0 0.0
  %2787 = vmatpush2.msra.mxu0 0.0
  %2788 = vmatprep.subr.mxu0 0.0
  %2789 = vmatpush2.msra.mxu0 0.0
  %2790 = vmatprep.subr.mxu0 0.0
  %2791 = vmatpush2.msra.mxu0 0.0
  %2792 = vmatprep.subr.mxu0 0.0
  %2793 = vmatpush2.msra.mxu0 0.0
  %2794 = vmatprep.subr.mxu0 0.0
  %2795 = vmatpush2.msra.mxu0 0.0
  %2796 = vmatprep.subr.mxu0 0.0
  %2797 = vmatpush2.msra.mxu0 0.0
  %2798 = vmatprep.subr.mxu0 0.0
  %2799 = vmatpush2.msra.mxu0 0.0
  %2800 = vmatprep.subr.mxu0 0.0
  %2801 = vmatpush2.msra.mxu0 0.0
  %2802 = vmatprep.mubr.f32.mxu0 0.0
  %2803 = vmatmul.mubr.f32.gmra.mxu0 %v2666
  %v2804 = vpop.f32.mrf.mxu0
  %v2805 = vadd.f32 0.0, %v2804
  %v2806 = vpop.f32.mrf.mxu0
  %2807 = vdwg.mxu0
  %v2808 = vadd.f32 %v2044, %v2805
  %v2809 = vadd.f32 %v2808, %v426
  %v2810 = vsel %vm261, %v2583, 0
  %2812 = vmatprep.subr.mxu0 0.0
  %2813 = vmatpush1.msra.mxu0 0.0
  %2814 = vmatprep.subr.mxu0 0.0
  %2815 = vmatpush1.msra.mxu0 0.0
  %2816 = vmatprep.subr.mxu0 0.0
  %2817 = vmatpush1.msra.mxu0 0.0
  %2818 = vmatprep.subr.mxu0 0.0
  %2819 = vmatpush1.msra.mxu0 0.0
  %2820 = vmatprep.subr.mxu0 0.0
  %2821 = vmatpush1.msra.mxu0 0.0
  %2822 = vmatprep.subr.mxu0 0.0
  %2823 = vmatpush1.msra.mxu0 0.0
  %2824 = vmatprep.subr.mxu0 0.0
  %2825 = vmatpush1.msra.mxu0 0.0
  %2826 = vmatprep.subr.mxu0 0.0
  %2827 = vmatpush1.msra.mxu0 0.0
  %2828 = vmatprep.subr.mxu0 0.0
  %2829 = vmatpush1.msra.mxu0 0.0
  %2830 = vmatprep.subr.mxu0 0.0
  %2831 = vmatpush1.msra.mxu0 0.0
  %2832 = vmatprep.subr.mxu0 0.0
  %2833 = vmatpush1.msra.mxu0 0.0
  %2834 = vmatprep.subr.mxu0 0.0
  %2835 = vmatpush1.msra.mxu0 0.0
  %2836 = vmatprep.subr.mxu0 0.0
  %2837 = vmatpush1.msra.mxu0 0.0
  %2838 = vmatprep.subr.mxu0 0.0
  %2839 = vmatpush1.msra.mxu0 0.0
  %2840 = vmatprep.subr.mxu0 0.0
  %2841 = vmatpush1.msra.mxu0 %v366
  %2842 = vmatprep.subr.mxu0 0.0
  %2843 = vmatpush1.msra.mxu0 %v365
  %2844 = vmatprep.subr.mxu0 0.0
  %2845 = vmatpush2.msra.mxu0 0.0
  %2846 = vmatprep.subr.mxu0 0.0
  %2847 = vmatpush2.msra.mxu0 0.0
  %2848 = vmatprep.subr.mxu0 0.0
  %2849 = vmatpush2.msra.mxu0 0.0
  %2850 = vmatprep.subr.mxu0 0.0
  %2851 = vmatpush2.msra.mxu0 0.0
  %2852 = vmatprep.subr.mxu0 0.0
  %2853 = vmatpush2.msra.mxu0 0.0
  %2854 = vmatprep.subr.mxu0 0.0
  %2855 = vmatpush2.msra.mxu0 0.0
  %2856 = vmatprep.subr.mxu0 0.0
  %2857 = vmatpush2.msra.mxu0 0.0
  %2858 = vmatprep.subr.mxu0 0.0
  %2859 = vmatpush2.msra.mxu0 0.0
  %2860 = vmatprep.subr.mxu0 0.0
  %2861 = vmatpush2.msra.mxu0 0.0
  %2862 = vmatprep.subr.mxu0 0.0
  %2863 = vmatpush2.msra.mxu0 0.0
  %2864 = vmatprep.subr.mxu0 0.0
  %2865 = vmatpush2.msra.mxu0 0.0
  %2866 = vmatprep.subr.mxu0 0.0
  %2867 = vmatpush2.msra.mxu0 0.0
  %2868 = vmatprep.subr.mxu0 0.0
  %2869 = vmatpush2.msra.mxu0 0.0
  %2870 = vmatprep.subr.mxu0 0.0
  %2871 = vmatpush2.msra.mxu0 0.0
  %2872 = vmatprep.subr.mxu0 0.0
  %2873 = vmatpush2.msra.mxu0 0.0
  %2874 = vmatprep.subr.mxu0 0.0
  %2875 = vmatpush2.msra.mxu0 0.0
  %2876 = vmatprep.mubr.f32.mxu0 0.0
  %2877 = vmatmul.mubr.f32.gmra.mxu0 %v2810
  %v2878 = vpop.f32.mrf.mxu0
  %v2879 = vadd.f32 %v2735, %v2878
  %v2880 = vpop.f32.mrf.mxu0
  %2881 = vdwg.mxu0
  %v2882 = vadd.f32 %v2879, %v373
  %v2883 = vmax.f32 %v2882, 0.0
  %2884 = vmatprep.subr.mxu0 0.0
  %2885 = vmatpush1.msra.mxu0 0.0
  %2886 = vmatprep.subr.mxu0 0.0
  %2887 = vmatpush1.msra.mxu0 0.0
  %2888 = vmatprep.subr.mxu0 0.0
  %2889 = vmatpush1.msra.mxu0 0.0
  %2890 = vmatprep.subr.mxu0 0.0
  %2891 = vmatpush1.msra.mxu0 0.0
  %2892 = vmatprep.subr.mxu0 0.0
  %2893 = vmatpush1.msra.mxu0 0.0
  %2894 = vmatprep.subr.mxu0 0.0
  %2895 = vmatpush1.msra.mxu0 0.0
  %2896 = vmatprep.subr.mxu0 0.0
  %2897 = vmatpush1.msra.mxu0 0.0
  %2898 = vmatprep.subr.mxu0 0.0
  %2899 = vmatpush1.msra.mxu0 0.0
  %2900 = vmatprep.subr.mxu0 0.0
  %2901 = vmatpush1.msra.mxu0 0.0
  %2902 = vmatprep.subr.mxu0 0.0
  %2903 = vmatpush1.msra.mxu0 0.0
  %2904 = vmatprep.subr.mxu0 0.0
  %2905 = vmatpush1.msra.mxu0 0.0
  %2906 = vmatprep.subr.mxu0 0.0
  %2907 = vmatpush1.msra.mxu0 0.0
  %2908 = vmatprep.subr.mxu0 0.0
  %2909 = vmatpush1.msra.mxu0 0.0
  %2910 = vmatprep.subr.mxu0 0.0
  %2911 = vmatpush1.msra.mxu0 0.0
  %2912 = vmatprep.subr.mxu0 0.0
  %2913 = vmatpush1.msra.mxu0 %v378
  %2914 = vmatprep.subr.mxu0 0.0
  %2915 = vmatpush1.msra.mxu0 %v377
  %2916 = vmatprep.subr.mxu0 0.0
  %2917 = vmatpush2.msra.mxu0 0.0
  %2918 = vmatprep.subr.mxu0 0.0
  %2919 = vmatpush2.msra.mxu0 0.0
  %2920 = vmatprep.subr.mxu0 0.0
  %2921 = vmatpush2.msra.mxu0 0.0
  %2922 = vmatprep.subr.mxu0 0.0
  %2923 = vmatpush2.msra.mxu0 0.0
  %2924 = vmatprep.subr.mxu0 0.0
  %2925 = vmatpush2.msra.mxu0 0.0
  %2926 = vmatprep.subr.mxu0 0.0
  %2927 = vmatpush2.msra.mxu0 0.0
  %2928 = vmatprep.subr.mxu0 0.0
  %2929 = vmatpush2.msra.mxu0 0.0
  %2930 = vmatprep.subr.mxu0 0.0
  %2931 = vmatpush2.msra.mxu0 0.0
  %2932 = vmatprep.subr.mxu0 0.0
  %2933 = vmatpush2.msra.mxu0 0.0
  %2934 = vmatprep.subr.mxu0 0.0
  %2935 = vmatpush2.msra.mxu0 0.0
  %2936 = vmatprep.subr.mxu0 0.0
  %2937 = vmatpush2.msra.mxu0 0.0
  %2938 = vmatprep.subr.mxu0 0.0
  %2939 = vmatpush2.msra.mxu0 0.0
  %2940 = vmatprep.subr.mxu0 0.0
  %2941 = vmatpush2.msra.mxu0 0.0
  %2942 = vmatprep.subr.mxu0 0.0
  %2943 = vmatpush2.msra.mxu0 0.0
  %2944 = vmatprep.subr.mxu0 0.0
  %2945 = vmatpush2.msra.mxu0 0.0
  %2946 = vmatprep.subr.mxu0 0.0
  %2947 = vmatpush2.msra.mxu0 0.0
  %2948 = vmatprep.mubr.f32.mxu0 0.0
  %2949 = vmatmul.mubr.f32.gmra.mxu0 %v2437
  %v2950 = vpop.f32.mrf.mxu0
  %v2951 = vadd.f32 0.0, %v2950
  %v2952 = vpop.f32.mrf.mxu0
  %2953 = vdwg.mxu0
  %v2955 = vsel %vm261, %v2883, 0
  %2957 = vmatprep.subr.mxu0 0.0
  %2958 = vmatpush1.msra.mxu0 0.0
  %2959 = vmatprep.subr.mxu0 0.0
  %2960 = vmatpush1.msra.mxu0 0.0
  %2961 = vmatprep.subr.mxu0 0.0
  %2962 = vmatpush1.msra.mxu0 0.0
  %2963 = vmatprep.subr.mxu0 0.0
  %2964 = vmatpush1.msra.mxu0 0.0
  %2965 = vmatprep.subr.mxu0 0.0
  %2966 = vmatpush1.msra.mxu0 0.0
  %2967 = vmatprep.subr.mxu0 0.0
  %2968 = vmatpush1.msra.mxu0 0.0
  %2969 = vmatprep.subr.mxu0 0.0
  %2970 = vmatpush1.msra.mxu0 0.0
  %2971 = vmatprep.subr.mxu0 0.0
  %2972 = vmatpush1.msra.mxu0 0.0
  %2973 = vmatprep.subr.mxu0 0.0
  %2974 = vmatpush1.msra.mxu0 0.0
  %2975 = vmatprep.subr.mxu0 0.0
  %2976 = vmatpush1.msra.mxu0 0.0
  %2977 = vmatprep.subr.mxu0 0.0
  %2978 = vmatpush1.msra.mxu0 0.0
  %2979 = vmatprep.subr.mxu0 0.0
  %2980 = vmatpush1.msra.mxu0 0.0
  %2981 = vmatprep.subr.mxu0 0.0
  %2982 = vmatpush1.msra.mxu0 0.0
  %2983 = vmatprep.subr.mxu0 0.0
  %2984 = vmatpush1.msra.mxu0 0.0
  %2985 = vmatprep.subr.mxu0 0.0
  %2986 = vmatpush1.msra.mxu0 %v376
  %2987 = vmatprep.subr.mxu0 0.0
  %2988 = vmatpush1.msra.mxu0 %v375
  %2989 = vmatprep.subr.mxu0 0.0
  %2990 = vmatpush2.msra.mxu0 0.0
  %2991 = vmatprep.subr.mxu0 0.0
  %2992 = vmatpush2.msra.mxu0 0.0
  %2993 = vmatprep.subr.mxu0 0.0
  %2994 = vmatpush2.msra.mxu0 0.0
  %2995 = vmatprep.subr.mxu0 0.0
  %2996 = vmatpush2.msra.mxu0 0.0
  %2997 = vmatprep.subr.mxu0 0.0
  %2998 = vmatpush2.msra.mxu0 0.0
  %2999 = vmatprep.subr.mxu0 0.0
  %3000 = vmatpush2.msra.mxu0 0.0
  %3001 = vmatprep.subr.mxu0 0.0
  %3002 = vmatpush2.msra.mxu0 0.0
  %3003 = vmatprep.subr.mxu0 0.0
  %3004 = vmatpush2.msra.mxu0 0.0
  %3005 = vmatprep.subr.mxu0 0.0
  %3006 = vmatpush2.msra.mxu0 0.0
  %3007 = vmatprep.subr.mxu0 0.0
  %3008 = vmatpush2.msra.mxu0 0.0
  %3009 = vmatprep.subr.mxu0 0.0
  %3010 = vmatpush2.msra.mxu0 0.0
  %3011 = vmatprep.subr.mxu0 0.0
  %3012 = vmatpush2.msra.mxu0 0.0
  %3013 = vmatprep.subr.mxu0 0.0
  %3014 = vmatpush2.msra.mxu0 0.0
  %3015 = vmatprep.subr.mxu0 0.0
  %3016 = vmatpush2.msra.mxu0 0.0
  %3017 = vmatprep.subr.mxu0 0.0
  %3018 = vmatpush2.msra.mxu0 0.0
  %3019 = vmatprep.subr.mxu0 0.0
  %3020 = vmatpush2.msra.mxu0 0.0
  %3021 = vmatprep.mubr.f32.mxu0 0.0
  %3022 = vmatmul.mubr.f32.gmra.mxu0 %v2955
  %v3023 = vpop.f32.mrf.mxu0
  %v3024 = vadd.f32 %v2951, %v3023
  %v3025 = vpop.f32.mrf.mxu0
  %3026 = vdwg.mxu0
  %v3027 = vadd.f32 %v3024, %v384
  %v3028 = vxor.u32 %v3027, 2147483648
  %v3029 = vmul.f32 %v3028, 1.442695
  %v3030 = vpow.pop %v3029
  %v3031 = vadd.f32 %v3030, 1.0
  %v3032 = vrcp.pop %v3031
  %v3033 = vmul.f32 1.0, %v3032
  %v3034 = vtanh.pop %v3027
  %v3035 = vmul.f32 %v3033, %v2280
  %3037 = vrot.lane.b32.xlu0 %v3034, 96
  %v3038 = vpop.permute.xlu0 %3037
  %v3040 = vmul.f32 %v3033, %v3038
  %3042 = vrot.lane.b32.xlu0 %v3040, 16
  %v3043 = vpop.permute.xlu0 %3042
  %v3045 = vadd.f32 %v3035, %v3043
  %v3046 = vtanh.pop %v3045
  %3048 = vrot.lane.b32.xlu0 %v3046, 32
  %v3049 = vpop.permute.xlu0 %3048
  %v3051 = vmul.f32 %v3033, %v3049
  %3052 = vmatprep.subr.mxu0 0.0
  %3053 = vmatpush1.msra.mxu0 0.0
  %3054 = vmatprep.subr.mxu0 0.0
  %3055 = vmatpush1.msra.mxu0 0.0
  %3056 = vmatprep.subr.mxu0 0.0
  %3057 = vmatpush1.msra.mxu0 0.0
  %3058 = vmatprep.subr.mxu0 0.0
  %3059 = vmatpush1.msra.mxu0 0.0
  %3060 = vmatprep.subr.mxu0 0.0
  %3061 = vmatpush1.msra.mxu0 0.0
  %3062 = vmatprep.subr.mxu0 0.0
  %3063 = vmatpush1.msra.mxu0 0.0
  %3064 = vmatprep.subr.mxu0 0.0
  %3065 = vmatpush1.msra.mxu0 0.0
  %3066 = vmatprep.subr.mxu0 0.0
  %3067 = vmatpush1.msra.mxu0 0.0
  %3068 = vmatprep.subr.mxu0 0.0
  %3069 = vmatpush1.msra.mxu0 0.0
  %3070 = vmatprep.subr.mxu0 0.0
  %3071 = vmatpush1.msra.mxu0 0.0
  %3072 = vmatprep.subr.mxu0 0.0
  %3073 = vmatpush1.msra.mxu0 0.0
  %3074 = vmatprep.subr.mxu0 0.0
  %3075 = vmatpush1.msra.mxu0 0.0
  %3076 = vmatprep.subr.mxu0 0.0
  %3077 = vmatpush1.msra.mxu0 0.0
  %3078 = vmatprep.subr.mxu0 0.0
  %3079 = vmatpush1.msra.mxu0 0.0
  %3080 = vmatprep.subr.mxu0 0.0
  %3081 = vmatpush1.msra.mxu0 0.0
  %3082 = vmatprep.subr.mxu0 0.0
  %3083 = vmatpush1.msra.mxu0 %v2809
  %3084 = vmatprep.subr.mxu0 0.0
  %3085 = vmatpush2.msra.mxu0 0.0
  %3086 = vmatprep.subr.mxu0 0.0
  %3087 = vmatpush2.msra.mxu0 0.0
  %3088 = vmatprep.subr.mxu0 0.0
  %3089 = vmatpush2.msra.mxu0 0.0
  %3090 = vmatprep.subr.mxu0 0.0
  %3091 = vmatpush2.msra.mxu0 0.0
  %3092 = vmatprep.subr.mxu0 0.0
  %3093 = vmatpush2.msra.mxu0 0.0
  %3094 = vmatprep.subr.mxu0 0.0
  %3095 = vmatpush2.msra.mxu0 0.0
  %3096 = vmatprep.subr.mxu0 0.0
  %3097 = vmatpush2.msra.mxu0 0.0
  %3098 = vmatprep.subr.mxu0 0.0
  %3099 = vmatpush2.msra.mxu0 0.0
  %3100 = vmatprep.subr.mxu0 0.0
  %3101 = vmatpush2.msra.mxu0 0.0
  %3102 = vmatprep.subr.mxu0 0.0
  %3103 = vmatpush2.msra.mxu0 0.0
  %3104 = vmatprep.subr.mxu0 0.0
  %3105 = vmatpush2.msra.mxu0 0.0
  %3106 = vmatprep.subr.mxu0 0.0
  %3107 = vmatpush2.msra.mxu0 0.0
  %3108 = vmatprep.subr.mxu0 0.0
  %3109 = vmatpush2.msra.mxu0 0.0
  %3110 = vmatprep.subr.mxu0 0.0
  %3111 = vmatpush2.msra.mxu0 0.0
  %3112 = vmatprep.subr.mxu0 0.0
  %3113 = vmatpush2.msra.mxu0 0.0
  %3114 = vmatprep.subr.mxu0 0.0
  %3115 = vmatpush2.msra.mxu0 0.0
  %3116 = vmatprep.mubr.f32.mxu0 0.0
  %3117 = vmatmul.mubr.f32.gmra.mxu0 %v749
  %v3118 = vpop.f32.mrf.mxu0
  %v3119 = vadd.f32 %v392, %v3118
  %v3120 = vpop.f32.mrf.mxu0
  %3121 = vmatprep.mubr.f32.mxu0 0.0
  %3122 = vmatmul.mubr.f32.gmra.mxu0 %v752
  %v3123 = vpop.f32.mrf.mxu0
  %v3124 = vadd.f32 %v392, %v3123
  %v3125 = vpop.f32.mrf.mxu0
  %3126 = vdwg.mxu0
  %v3127 = vmax.f32 %v3119, 0.0
  %v3128 = vmax.f32 %v3124, 0.0
  %3129 = vmatprep.subr.mxu0 0.0
  %3130 = vmatpush1.msra.mxu0 0.0
  %3131 = vmatprep.subr.mxu0 0.0
  %3132 = vmatpush1.msra.mxu0 0.0
  %3133 = vmatprep.subr.mxu0 0.0
  %3134 = vmatpush1.msra.mxu0 0.0
  %3135 = vmatprep.subr.mxu0 0.0
  %3136 = vmatpush1.msra.mxu0 0.0
  %3137 = vmatprep.subr.mxu0 0.0
  %3138 = vmatpush1.msra.mxu0 0.0
  %3139 = vmatprep.subr.mxu0 0.0
  %3140 = vmatpush1.msra.mxu0 0.0
  %3141 = vmatprep.subr.mxu0 0.0
  %3142 = vmatpush1.msra.mxu0 0.0
  %3143 = vmatprep.subr.mxu0 0.0
  %3144 = vmatpush1.msra.mxu0 0.0
  %3145 = vmatprep.subr.mxu0 0.0
  %3146 = vmatpush1.msra.mxu0 0.0
  %3147 = vmatprep.subr.mxu0 0.0
  %3148 = vmatpush1.msra.mxu0 0.0
  %3149 = vmatprep.subr.mxu0 0.0
  %3150 = vmatpush1.msra.mxu0 0.0
  %3151 = vmatprep.subr.mxu0 0.0
  %3152 = vmatpush1.msra.mxu0 0.0
  %3153 = vmatprep.subr.mxu0 0.0
  %3154 = vmatpush1.msra.mxu0 0.0
  %3155 = vmatprep.subr.mxu0 0.0
  %3156 = vmatpush1.msra.mxu0 0.0
  %3157 = vmatprep.subr.mxu0 0.0
  %3158 = vmatpush1.msra.mxu0 %v3128
  %3159 = vmatprep.subr.mxu0 0.0
  %3160 = vmatpush1.msra.mxu0 %v3127
  %3161 = vmatprep.subr.mxu0 0.0
  %3162 = vmatpush2.msra.mxu0 0.0
  %3163 = vmatprep.subr.mxu0 0.0
  %3164 = vmatpush2.msra.mxu0 0.0
  %3165 = vmatprep.subr.mxu0 0.0
  %3166 = vmatpush2.msra.mxu0 0.0
  %3167 = vmatprep.subr.mxu0 0.0
  %3168 = vmatpush2.msra.mxu0 0.0
  %3169 = vmatprep.subr.mxu0 0.0
  %3170 = vmatpush2.msra.mxu0 0.0
  %3171 = vmatprep.subr.mxu0 0.0
  %3172 = vmatpush2.msra.mxu0 0.0
  %3173 = vmatprep.subr.mxu0 0.0
  %3174 = vmatpush2.msra.mxu0 0.0
  %3175 = vmatprep.subr.mxu0 0.0
  %3176 = vmatpush2.msra.mxu0 0.0
  %3177 = vmatprep.subr.mxu0 0.0
  %3178 = vmatpush2.msra.mxu0 0.0
  %3179 = vmatprep.subr.mxu0 0.0
  %3180 = vmatpush2.msra.mxu0 0.0
  %3181 = vmatprep.subr.mxu0 0.0
  %3182 = vmatpush2.msra.mxu0 0.0
  %3183 = vmatprep.subr.mxu0 0.0
  %3184 = vmatpush2.msra.mxu0 0.0
  %3185 = vmatprep.subr.mxu0 0.0
  %3186 = vmatpush2.msra.mxu0 0.0
  %3187 = vmatprep.subr.mxu0 0.0
  %3188 = vmatpush2.msra.mxu0 0.0
  %3189 = vmatprep.subr.mxu0 0.0
  %3190 = vmatpush2.msra.mxu0 0.0
  %3191 = vmatprep.subr.mxu0 0.0
  %3192 = vmatpush2.msra.mxu0 0.0
  %3193 = vmatprep.mubr.f32.mxu0 0.0
  %3194 = vmatmul.mubr.f32.gmra.mxu0 %v832
  %v3195 = vpop.f32.mrf.mxu0
  %v3196 = vadd.f32 0.0, %v3195
  %v3197 = vpop.f32.mrf.mxu0
  %3198 = vdwg.mxu0
  %3200 = vrot.lane.b32.xlu0 %v3051, 80
  %v3201 = vpop.permute.xlu0 %3200
  %v3202 = vsel %vm261, %v3201, 0
  %3204 = vmatprep.subr.mxu0 0.0
  %3205 = vmatpush1.msra.mxu0 0.0
  %3206 = vmatprep.subr.mxu0 0.0
  %3207 = vmatpush1.msra.mxu0 0.0
  %3208 = vmatprep.subr.mxu0 0.0
  %3209 = vmatpush1.msra.mxu0 0.0
  %3210 = vmatprep.subr.mxu0 0.0
  %3211 = vmatpush1.msra.mxu0 0.0
  %3212 = vmatprep.subr.mxu0 0.0
  %3213 = vmatpush1.msra.mxu0 0.0
  %3214 = vmatprep.subr.mxu0 0.0
  %3215 = vmatpush1.msra.mxu0 0.0
  %3216 = vmatprep.subr.mxu0 0.0
  %3217 = vmatpush1.msra.mxu0 0.0
  %3218 = vmatprep.subr.mxu0 0.0
  %3219 = vmatpush1.msra.mxu0 0.0
  %3220 = vmatprep.subr.mxu0 0.0
  %3221 = vmatpush1.msra.mxu0 0.0
  %3222 = vmatprep.subr.mxu0 0.0
  %3223 = vmatpush1.msra.mxu0 0.0
  %3224 = vmatprep.subr.mxu0 0.0
  %3225 = vmatpush1.msra.mxu0 0.0
  %3226 = vmatprep.subr.mxu0 0.0
  %3227 = vmatpush1.msra.mxu0 0.0
  %3228 = vmatprep.subr.mxu0 0.0
  %3229 = vmatpush1.msra.mxu0 0.0
  %3230 = vmatprep.subr.mxu0 0.0
  %3231 = vmatpush1.msra.mxu0 0.0
  %3232 = vmatprep.subr.mxu0 0.0
  %3233 = vmatpush1.msra.mxu0 %v397
  %3234 = vmatprep.subr.mxu0 0.0
  %3235 = vmatpush1.msra.mxu0 %v396
  %3236 = vmatprep.subr.mxu0 0.0
  %3237 = vmatpush2.msra.mxu0 0.0
  %3238 = vmatprep.subr.mxu0 0.0
  %3239 = vmatpush2.msra.mxu0 0.0
  %3240 = vmatprep.subr.mxu0 0.0
  %3241 = vmatpush2.msra.mxu0 0.0
  %3242 = vmatprep.subr.mxu0 0.0
  %3243 = vmatpush2.msra.mxu0 0.0
  %3244 = vmatprep.subr.mxu0 0.0
  %3245 = vmatpush2.msra.mxu0 0.0
  %3246 = vmatprep.subr.mxu0 0.0
  %3247 = vmatpush2.msra.mxu0 0.0
  %3248 = vmatprep.subr.mxu0 0.0
  %3249 = vmatpush2.msra.mxu0 0.0
  %3250 = vmatprep.subr.mxu0 0.0
  %3251 = vmatpush2.msra.mxu0 0.0
  %3252 = vmatprep.subr.mxu0 0.0
  %3253 = vmatpush2.msra.mxu0 0.0
  %3254 = vmatprep.subr.mxu0 0.0
  %3255 = vmatpush2.msra.mxu0 0.0
  %3256 = vmatprep.subr.mxu0 0.0
  %3257 = vmatpush2.msra.mxu0 0.0
  %3258 = vmatprep.subr.mxu0 0.0
  %3259 = vmatpush2.msra.mxu0 0.0
  %3260 = vmatprep.subr.mxu0 0.0
  %3261 = vmatpush2.msra.mxu0 0.0
  %3262 = vmatprep.subr.mxu0 0.0
  %3263 = vmatpush2.msra.mxu0 0.0
  %3264 = vmatprep.subr.mxu0 0.0
  %3265 = vmatpush2.msra.mxu0 0.0
  %3266 = vmatprep.subr.mxu0 0.0
  %3267 = vmatpush2.msra.mxu0 0.0
  %3268 = vmatprep.mubr.f32.mxu0 0.0
  %3269 = vmatmul.mubr.f32.gmra.mxu0 %v3202
  %v3270 = vpop.f32.mrf.mxu0
  %v3271 = vadd.f32 0.0, %v3270
  %v3272 = vpop.f32.mrf.mxu0
  %3273 = vdwg.mxu0
  %v3275 = vsel %vm261, %v3196, 0
  %3277 = vmatprep.subr.mxu0 0.0
  %3278 = vmatpush1.msra.mxu0 0.0
  %3279 = vmatprep.subr.mxu0 0.0
  %3280 = vmatpush1.msra.mxu0 0.0
  %3281 = vmatprep.subr.mxu0 0.0
  %3282 = vmatpush1.msra.mxu0 0.0
  %3283 = vmatprep.subr.mxu0 0.0
  %3284 = vmatpush1.msra.mxu0 0.0
  %3285 = vmatprep.subr.mxu0 0.0
  %3286 = vmatpush1.msra.mxu0 0.0
  %3287 = vmatprep.subr.mxu0 0.0
  %3288 = vmatpush1.msra.mxu0 0.0
  %3289 = vmatprep.subr.mxu0 0.0
  %3290 = vmatpush1.msra.mxu0 0.0
  %3291 = vmatprep.subr.mxu0 0.0
  %3292 = vmatpush1.msra.mxu0 0.0
  %3293 = vmatprep.subr.mxu0 0.0
  %3294 = vmatpush1.msra.mxu0 0.0
  %3295 = vmatprep.subr.mxu0 0.0
  %3296 = vmatpush1.msra.mxu0 0.0
  %3297 = vmatprep.subr.mxu0 0.0
  %3298 = vmatpush1.msra.mxu0 0.0
  %3299 = vmatprep.subr.mxu0 0.0
  %3300 = vmatpush1.msra.mxu0 0.0
  %3301 = vmatprep.subr.mxu0 0.0
  %3302 = vmatpush1.msra.mxu0 0.0
  %3303 = vmatprep.subr.mxu0 0.0
  %3304 = vmatpush1.msra.mxu0 0.0
  %3305 = vmatprep.subr.mxu0 0.0
  %3306 = vmatpush1.msra.mxu0 %v395
  %3307 = vmatprep.subr.mxu0 0.0
  %3308 = vmatpush1.msra.mxu0 %v394
  %3309 = vmatprep.subr.mxu0 0.0
  %3310 = vmatpush2.msra.mxu0 0.0
  %3311 = vmatprep.subr.mxu0 0.0
  %3312 = vmatpush2.msra.mxu0 0.0
  %3313 = vmatprep.subr.mxu0 0.0
  %3314 = vmatpush2.msra.mxu0 0.0
  %3315 = vmatprep.subr.mxu0 0.0
  %3316 = vmatpush2.msra.mxu0 0.0
  %3317 = vmatprep.subr.mxu0 0.0
  %3318 = vmatpush2.msra.mxu0 0.0
  %3319 = vmatprep.subr.mxu0 0.0
  %3320 = vmatpush2.msra.mxu0 0.0
  %3321 = vmatprep.subr.mxu0 0.0
  %3322 = vmatpush2.msra.mxu0 0.0
  %3323 = vmatprep.subr.mxu0 0.0
  %3324 = vmatpush2.msra.mxu0 0.0
  %3325 = vmatprep.subr.mxu0 0.0
  %3326 = vmatpush2.msra.mxu0 0.0
  %3327 = vmatprep.subr.mxu0 0.0
  %3328 = vmatpush2.msra.mxu0 0.0
  %3329 = vmatprep.subr.mxu0 0.0
  %3330 = vmatpush2.msra.mxu0 0.0
  %3331 = vmatprep.subr.mxu0 0.0
  %3332 = vmatpush2.msra.mxu0 0.0
  %3333 = vmatprep.subr.mxu0 0.0
  %3334 = vmatpush2.msra.mxu0 0.0
  %3335 = vmatprep.subr.mxu0 0.0
  %3336 = vmatpush2.msra.mxu0 0.0
  %3337 = vmatprep.subr.mxu0 0.0
  %3338 = vmatpush2.msra.mxu0 0.0
  %3339 = vmatprep.subr.mxu0 0.0
  %3340 = vmatpush2.msra.mxu0 0.0
  %3341 = vmatprep.mubr.f32.mxu0 0.0
  %3342 = vmatmul.mubr.f32.gmra.mxu0 %v3275
  %v3343 = vpop.f32.mrf.mxu0
  %v3344 = vadd.f32 %v3271, %v3343
  %v3345 = vpop.f32.mrf.mxu0
  %3346 = vdwg.mxu0
  %v3347 = vadd.f32 %v3344, %v403
  %v3348 = vmax.f32 %v3347, 0.0
  %3350 = vrot.lane.b32.xlu0 %v3348, 48
  %v3351 = vpop.permute.xlu0 %3350
  %v3353 = vadd.f32 %v3051, %v3351
  %3355 = vrot.lane.b32.xlu0 %v3353, 80
  %v3356 = vpop.permute.xlu0 %3355
  %v3357 = vsel %vm261, %v3356, 0
  %3359 = vmatprep.subr.mxu0 0.0
  %3360 = vmatpush1.msra.mxu0 0.0
  %3361 = vmatprep.subr.mxu0 0.0
  %3362 = vmatpush1.msra.mxu0 0.0
  %3363 = vmatprep.subr.mxu0 0.0
  %3364 = vmatpush1.msra.mxu0 0.0
  %3365 = vmatprep.subr.mxu0 0.0
  %3366 = vmatpush1.msra.mxu0 0.0
  %3367 = vmatprep.subr.mxu0 0.0
  %3368 = vmatpush1.msra.mxu0 0.0
  %3369 = vmatprep.subr.mxu0 0.0
  %3370 = vmatpush1.msra.mxu0 0.0
  %3371 = vmatprep.subr.mxu0 0.0
  %3372 = vmatpush1.msra.mxu0 0.0
  %3373 = vmatprep.subr.mxu0 0.0
  %3374 = vmatpush1.msra.mxu0 0.0
  %3375 = vmatprep.subr.mxu0 0.0
  %3376 = vmatpush1.msra.mxu0 0.0
  %3377 = vmatprep.subr.mxu0 0.0
  %3378 = vmatpush1.msra.mxu0 0.0
  %3379 = vmatprep.subr.mxu0 0.0
  %3380 = vmatpush1.msra.mxu0 0.0
  %3381 = vmatprep.subr.mxu0 0.0
  %3382 = vmatpush1.msra.mxu0 0.0
  %3383 = vmatprep.subr.mxu0 0.0
  %3384 = vmatpush1.msra.mxu0 0.0
  %3385 = vmatprep.subr.mxu0 0.0
  %3386 = vmatpush1.msra.mxu0 0.0
  %3387 = vmatprep.subr.mxu0 0.0
  %3388 = vmatpush1.msra.mxu0 %v406
  %3389 = vmatprep.subr.mxu0 0.0
  %3390 = vmatpush1.msra.mxu0 %v405
  %3391 = vmatprep.subr.mxu0 0.0
  %3392 = vmatpush2.msra.mxu0 0.0
  %3393 = vmatprep.subr.mxu0 0.0
  %3394 = vmatpush2.msra.mxu0 0.0
  %3395 = vmatprep.subr.mxu0 0.0
  %3396 = vmatpush2.msra.mxu0 0.0
  %3397 = vmatprep.subr.mxu0 0.0
  %3398 = vmatpush2.msra.mxu0 0.0
  %3399 = vmatprep.subr.mxu0 0.0
  %3400 = vmatpush2.msra.mxu0 0.0
  %3401 = vmatprep.subr.mxu0 0.0
  %3402 = vmatpush2.msra.mxu0 0.0
  %3403 = vmatprep.subr.mxu0 0.0
  %3404 = vmatpush2.msra.mxu0 0.0
  %3405 = vmatprep.subr.mxu0 0.0
  %3406 = vmatpush2.msra.mxu0 0.0
  %3407 = vmatprep.subr.mxu0 0.0
  %3408 = vmatpush2.msra.mxu0 0.0
  %3409 = vmatprep.subr.mxu0 0.0
  %3410 = vmatpush2.msra.mxu0 0.0
  %3411 = vmatprep.subr.mxu0 0.0
  %3412 = vmatpush2.msra.mxu0 0.0
  %3413 = vmatprep.subr.mxu0 0.0
  %3414 = vmatpush2.msra.mxu0 0.0
  %3415 = vmatprep.subr.mxu0 0.0
  %3416 = vmatpush2.msra.mxu0 0.0
  %3417 = vmatprep.subr.mxu0 0.0
  %3418 = vmatpush2.msra.mxu0 0.0
  %3419 = vmatprep.subr.mxu0 0.0
  %3420 = vmatpush2.msra.mxu0 0.0
  %3421 = vmatprep.subr.mxu0 0.0
  %3422 = vmatpush2.msra.mxu0 0.0
  %3423 = vmatprep.mubr.f32.mxu0 0.0
  %3424 = vmatmul.mubr.f32.gmra.mxu0 %v3357
  %v3425 = vpop.f32.mrf.mxu0
  %v3426 = vadd.f32 %v458, %v3425
  %v3427 = vpop.f32.mrf.mxu0
  %3428 = vdwg.mxu0
  %v3429 = vmax.f32 %v3426, 0.0
  %v3431 = vsel %vm261, %v3429, 0
  %3433 = vmatprep.subr.mxu0 0.0
  %3434 = vmatpush1.msra.mxu0 0.0
  %3435 = vmatprep.subr.mxu0 0.0
  %3436 = vmatpush1.msra.mxu0 0.0
  %3437 = vmatprep.subr.mxu0 0.0
  %3438 = vmatpush1.msra.mxu0 0.0
  %3439 = vmatprep.subr.mxu0 0.0
  %3440 = vmatpush1.msra.mxu0 0.0
  %3441 = vmatprep.subr.mxu0 0.0
  %3442 = vmatpush1.msra.mxu0 0.0
  %3443 = vmatprep.subr.mxu0 0.0
  %3444 = vmatpush1.msra.mxu0 0.0
  %3445 = vmatprep.subr.mxu0 0.0
  %3446 = vmatpush1.msra.mxu0 0.0
  %3447 = vmatprep.subr.mxu0 0.0
  %3448 = vmatpush1.msra.mxu0 0.0
  %3449 = vmatprep.subr.mxu0 0.0
  %3450 = vmatpush1.msra.mxu0 0.0
  %3451 = vmatprep.subr.mxu0 0.0
  %3452 = vmatpush1.msra.mxu0 0.0
  %3453 = vmatprep.subr.mxu0 0.0
  %3454 = vmatpush1.msra.mxu0 0.0
  %3455 = vmatprep.subr.mxu0 0.0
  %3456 = vmatpush1.msra.mxu0 0.0
  %3457 = vmatprep.subr.mxu0 0.0
  %3458 = vmatpush1.msra.mxu0 0.0
  %3459 = vmatprep.subr.mxu0 0.0
  %3460 = vmatpush1.msra.mxu0 0.0
  %3461 = vmatprep.subr.mxu0 0.0
  %3462 = vmatpush1.msra.mxu0 %v411
  %3463 = vmatprep.subr.mxu0 0.0
  %3464 = vmatpush1.msra.mxu0 %v410
  %3465 = vmatprep.subr.mxu0 0.0
  %3466 = vmatpush2.msra.mxu0 0.0
  %3467 = vmatprep.subr.mxu0 0.0
  %3468 = vmatpush2.msra.mxu0 0.0
  %3469 = vmatprep.subr.mxu0 0.0
  %3470 = vmatpush2.msra.mxu0 0.0
  %3471 = vmatprep.subr.mxu0 0.0
  %3472 = vmatpush2.msra.mxu0 0.0
  %3473 = vmatprep.subr.mxu0 0.0
  %3474 = vmatpush2.msra.mxu0 0.0
  %3475 = vmatprep.subr.mxu0 0.0
  %3476 = vmatpush2.msra.mxu0 0.0
  %3477 = vmatprep.subr.mxu0 0.0
  %3478 = vmatpush2.msra.mxu0 0.0
  %3479 = vmatprep.subr.mxu0 0.0
  %3480 = vmatpush2.msra.mxu0 0.0
  %3481 = vmatprep.subr.mxu0 0.0
  %3482 = vmatpush2.msra.mxu0 0.0
  %3483 = vmatprep.subr.mxu0 0.0
  %3484 = vmatpush2.msra.mxu0 0.0
  %3485 = vmatprep.subr.mxu0 0.0
  %3486 = vmatpush2.msra.mxu0 0.0
  %3487 = vmatprep.subr.mxu0 0.0
  %3488 = vmatpush2.msra.mxu0 0.0
  %3489 = vmatprep.subr.mxu0 0.0
  %3490 = vmatpush2.msra.mxu0 0.0
  %3491 = vmatprep.subr.mxu0 0.0
  %3492 = vmatpush2.msra.mxu0 0.0
  %3493 = vmatprep.subr.mxu0 0.0
  %3494 = vmatpush2.msra.mxu0 0.0
  %3495 = vmatprep.subr.mxu0 0.0
  %3496 = vmatpush2.msra.mxu0 0.0
  %3497 = vmatprep.mubr.f32.mxu0 0.0
  %3498 = vmatmul.mubr.f32.gmra.mxu0 %v3431
  %v3499 = vpop.f32.mrf.mxu0
  %v3500 = vadd.f32 %v417, %v3499
  %v3501 = vpop.f32.mrf.mxu0
  %3502 = vdwg.mxu0
  %3503 = vmatprep.subr.mxu0 0.0
  %3504 = vmatpush1.msra.mxu0 0.0
  %3505 = vmatprep.subr.mxu0 0.0
  %3506 = vmatpush1.msra.mxu0 0.0
  %3507 = vmatprep.subr.mxu0 0.0
  %3508 = vmatpush1.msra.mxu0 0.0
  %3509 = vmatprep.subr.mxu0 0.0
  %3510 = vmatpush1.msra.mxu0 0.0
  %3511 = vmatprep.subr.mxu0 0.0
  %3512 = vmatpush1.msra.mxu0 0.0
  %3513 = vmatprep.subr.mxu0 0.0
  %3514 = vmatpush1.msra.mxu0 0.0
  %3515 = vmatprep.subr.mxu0 0.0
  %3516 = vmatpush1.msra.mxu0 0.0
  %3517 = vmatprep.subr.mxu0 0.0
  %3518 = vmatpush1.msra.mxu0 0.0
  %3519 = vmatprep.subr.mxu0 0.0
  %3520 = vmatpush1.msra.mxu0 0.0
  %3521 = vmatprep.subr.mxu0 0.0
  %3522 = vmatpush1.msra.mxu0 0.0
  %3523 = vmatprep.subr.mxu0 0.0
  %3524 = vmatpush1.msra.mxu0 0.0
  %3525 = vmatprep.subr.mxu0 0.0
  %3526 = vmatpush1.msra.mxu0 0.0
  %3527 = vmatprep.subr.mxu0 0.0
  %3528 = vmatpush1.msra.mxu0 0.0
  %3529 = vmatprep.subr.mxu0 0.0
  %3530 = vmatpush1.msra.mxu0 0.0
  %3531 = vmatprep.subr.mxu0 0.0
  %3532 = vmatpush1.msra.mxu0 %v420
  %3533 = vmatprep.subr.mxu0 0.0
  %3534 = vmatpush1.msra.mxu0 %v419
  %3535 = vmatprep.subr.mxu0 0.0
  %3536 = vmatpush2.msra.mxu0 0.0
  %3537 = vmatprep.subr.mxu0 0.0
  %3538 = vmatpush2.msra.mxu0 0.0
  %3539 = vmatprep.subr.mxu0 0.0
  %3540 = vmatpush2.msra.mxu0 0.0
  %3541 = vmatprep.subr.mxu0 0.0
  %3542 = vmatpush2.msra.mxu0 0.0
  %3543 = vmatprep.subr.mxu0 0.0
  %3544 = vmatpush2.msra.mxu0 0.0
  %3545 = vmatprep.subr.mxu0 0.0
  %3546 = vmatpush2.msra.mxu0 0.0
  %3547 = vmatprep.subr.mxu0 0.0
  %3548 = vmatpush2.msra.mxu0 0.0
  %3549 = vmatprep.subr.mxu0 0.0
  %3550 = vmatpush2.msra.mxu0 0.0
  %3551 = vmatprep.subr.mxu0 0.0
  %3552 = vmatpush2.msra.mxu0 0.0
  %3553 = vmatprep.subr.mxu0 0.0
  %3554 = vmatpush2.msra.mxu0 0.0
  %3555 = vmatprep.subr.mxu0 0.0
  %3556 = vmatpush2.msra.mxu0 0.0
  %3557 = vmatprep.subr.mxu0 0.0
  %3558 = vmatpush2.msra.mxu0 0.0
  %3559 = vmatprep.subr.mxu0 0.0
  %3560 = vmatpush2.msra.mxu0 0.0
  %3561 = vmatprep.subr.mxu0 0.0
  %3562 = vmatpush2.msra.mxu0 0.0
  %3563 = vmatprep.subr.mxu0 0.0
  %3564 = vmatpush2.msra.mxu0 0.0
  %3565 = vmatprep.subr.mxu0 0.0
  %3566 = vmatpush2.msra.mxu0 0.0
  %3567 = vmatprep.mubr.f32.mxu0 0.0
  %3568 = vmatmul.mubr.f32.gmra.mxu0 %v3431
  %v3569 = vpop.f32.mrf.mxu0
  %v3570 = vadd.f32 0.0, %v3569
  %v3571 = vpop.f32.mrf.mxu0
  %3572 = vdwg.mxu0
  %v3573 = vadd.f32 %v2809, %v3570
  %v3574 = vadd.f32 %v3573, %v426
  %v3575 = vsel %vm261, %v3348, 0
  %3577 = vmatprep.subr.mxu0 0.0
  %3578 = vmatpush1.msra.mxu0 0.0
  %3579 = vmatprep.subr.mxu0 0.0
  %3580 = vmatpush1.msra.mxu0 0.0
  %3581 = vmatprep.subr.mxu0 0.0
  %3582 = vmatpush1.msra.mxu0 0.0
  %3583 = vmatprep.subr.mxu0 0.0
  %3584 = vmatpush1.msra.mxu0 0.0
  %3585 = vmatprep.subr.mxu0 0.0
  %3586 = vmatpush1.msra.mxu0 0.0
  %3587 = vmatprep.subr.mxu0 0.0
  %3588 = vmatpush1.msra.mxu0 0.0
  %3589 = vmatprep.subr.mxu0 0.0
  %3590 = vmatpush1.msra.mxu0 0.0
  %3591 = vmatprep.subr.mxu0 0.0
  %3592 = vmatpush1.msra.mxu0 0.0
  %3593 = vmatprep.subr.mxu0 0.0
  %3594 = vmatpush1.msra.mxu0 0.0
  %3595 = vmatprep.subr.mxu0 0.0
  %3596 = vmatpush1.msra.mxu0 0.0
  %3597 = vmatprep.subr.mxu0 0.0
  %3598 = vmatpush1.msra.mxu0 0.0
  %3599 = vmatprep.subr.mxu0 0.0
  %3600 = vmatpush1.msra.mxu0 0.0
  %3601 = vmatprep.subr.mxu0 0.0
  %3602 = vmatpush1.msra.mxu0 0.0
  %3603 = vmatprep.subr.mxu0 0.0
  %3604 = vmatpush1.msra.mxu0 0.0
  %3605 = vmatprep.subr.mxu0 0.0
  %3606 = vmatpush1.msra.mxu0 %v366
  %3607 = vmatprep.subr.mxu0 0.0
  %3608 = vmatpush1.msra.mxu0 %v365
  %3609 = vmatprep.subr.mxu0 0.0
  %3610 = vmatpush2.msra.mxu0 0.0
  %3611 = vmatprep.subr.mxu0 0.0
  %3612 = vmatpush2.msra.mxu0 0.0
  %3613 = vmatprep.subr.mxu0 0.0
  %3614 = vmatpush2.msra.mxu0 0.0
  %3615 = vmatprep.subr.mxu0 0.0
  %3616 = vmatpush2.msra.mxu0 0.0
  %3617 = vmatprep.subr.mxu0 0.0
  %3618 = vmatpush2.msra.mxu0 0.0
  %3619 = vmatprep.subr.mxu0 0.0
  %3620 = vmatpush2.msra.mxu0 0.0
  %3621 = vmatprep.subr.mxu0 0.0
  %3622 = vmatpush2.msra.mxu0 0.0
  %3623 = vmatprep.subr.mxu0 0.0
  %3624 = vmatpush2.msra.mxu0 0.0
  %3625 = vmatprep.subr.mxu0 0.0
  %3626 = vmatpush2.msra.mxu0 0.0
  %3627 = vmatprep.subr.mxu0 0.0
  %3628 = vmatpush2.msra.mxu0 0.0
  %3629 = vmatprep.subr.mxu0 0.0
  %3630 = vmatpush2.msra.mxu0 0.0
  %3631 = vmatprep.subr.mxu0 0.0
  %3632 = vmatpush2.msra.mxu0 0.0
  %3633 = vmatprep.subr.mxu0 0.0
  %3634 = vmatpush2.msra.mxu0 0.0
  %3635 = vmatprep.subr.mxu0 0.0
  %3636 = vmatpush2.msra.mxu0 0.0
  %3637 = vmatprep.subr.mxu0 0.0
  %3638 = vmatpush2.msra.mxu0 0.0
  %3639 = vmatprep.subr.mxu0 0.0
  %3640 = vmatpush2.msra.mxu0 0.0
  %3641 = vmatprep.mubr.f32.mxu0 0.0
  %3642 = vmatmul.mubr.f32.gmra.mxu0 %v3575
  %v3643 = vpop.f32.mrf.mxu0
  %v3644 = vadd.f32 %v3500, %v3643
  %v3645 = vpop.f32.mrf.mxu0
  %3646 = vdwg.mxu0
  %v3647 = vadd.f32 %v3644, %v373
  %v3648 = vmax.f32 %v3647, 0.0
  %3649 = vmatprep.subr.mxu0 0.0
  %3650 = vmatpush1.msra.mxu0 0.0
  %3651 = vmatprep.subr.mxu0 0.0
  %3652 = vmatpush1.msra.mxu0 0.0
  %3653 = vmatprep.subr.mxu0 0.0
  %3654 = vmatpush1.msra.mxu0 0.0
  %3655 = vmatprep.subr.mxu0 0.0
  %3656 = vmatpush1.msra.mxu0 0.0
  %3657 = vmatprep.subr.mxu0 0.0
  %3658 = vmatpush1.msra.mxu0 0.0
  %3659 = vmatprep.subr.mxu0 0.0
  %3660 = vmatpush1.msra.mxu0 0.0
  %3661 = vmatprep.subr.mxu0 0.0
  %3662 = vmatpush1.msra.mxu0 0.0
  %3663 = vmatprep.subr.mxu0 0.0
  %3664 = vmatpush1.msra.mxu0 0.0
  %3665 = vmatprep.subr.mxu0 0.0
  %3666 = vmatpush1.msra.mxu0 0.0
  %3667 = vmatprep.subr.mxu0 0.0
  %3668 = vmatpush1.msra.mxu0 0.0
  %3669 = vmatprep.subr.mxu0 0.0
  %3670 = vmatpush1.msra.mxu0 0.0
  %3671 = vmatprep.subr.mxu0 0.0
  %3672 = vmatpush1.msra.mxu0 0.0
  %3673 = vmatprep.subr.mxu0 0.0
  %3674 = vmatpush1.msra.mxu0 0.0
  %3675 = vmatprep.subr.mxu0 0.0
  %3676 = vmatpush1.msra.mxu0 0.0
  %3677 = vmatprep.subr.mxu0 0.0
  %3678 = vmatpush1.msra.mxu0 %v378
  %3679 = vmatprep.subr.mxu0 0.0
  %3680 = vmatpush1.msra.mxu0 %v377
  %3681 = vmatprep.subr.mxu0 0.0
  %3682 = vmatpush2.msra.mxu0 0.0
  %3683 = vmatprep.subr.mxu0 0.0
  %3684 = vmatpush2.msra.mxu0 0.0
  %3685 = vmatprep.subr.mxu0 0.0
  %3686 = vmatpush2.msra.mxu0 0.0
  %3687 = vmatprep.subr.mxu0 0.0
  %3688 = vmatpush2.msra.mxu0 0.0
  %3689 = vmatprep.subr.mxu0 0.0
  %3690 = vmatpush2.msra.mxu0 0.0
  %3691 = vmatprep.subr.mxu0 0.0
  %3692 = vmatpush2.msra.mxu0 0.0
  %3693 = vmatprep.subr.mxu0 0.0
  %3694 = vmatpush2.msra.mxu0 0.0
  %3695 = vmatprep.subr.mxu0 0.0
  %3696 = vmatpush2.msra.mxu0 0.0
  %3697 = vmatprep.subr.mxu0 0.0
  %3698 = vmatpush2.msra.mxu0 0.0
  %3699 = vmatprep.subr.mxu0 0.0
  %3700 = vmatpush2.msra.mxu0 0.0
  %3701 = vmatprep.subr.mxu0 0.0
  %3702 = vmatpush2.msra.mxu0 0.0
  %3703 = vmatprep.subr.mxu0 0.0
  %3704 = vmatpush2.msra.mxu0 0.0
  %3705 = vmatprep.subr.mxu0 0.0
  %3706 = vmatpush2.msra.mxu0 0.0
  %3707 = vmatprep.subr.mxu0 0.0
  %3708 = vmatpush2.msra.mxu0 0.0
  %3709 = vmatprep.subr.mxu0 0.0
  %3710 = vmatpush2.msra.mxu0 0.0
  %3711 = vmatprep.subr.mxu0 0.0
  %3712 = vmatpush2.msra.mxu0 0.0
  %3713 = vmatprep.mubr.f32.mxu0 0.0
  %3714 = vmatmul.mubr.f32.gmra.mxu0 %v3202
  %v3715 = vpop.f32.mrf.mxu0
  %v3716 = vadd.f32 0.0, %v3715
  %v3717 = vpop.f32.mrf.mxu0
  %3718 = vdwg.mxu0
  %v3720 = vsel %vm261, %v3648, 0
  %3722 = vmatprep.subr.mxu0 0.0
  %3723 = vmatpush1.msra.mxu0 0.0
  %3724 = vmatprep.subr.mxu0 0.0
  %3725 = vmatpush1.msra.mxu0 0.0
  %3726 = vmatprep.subr.mxu0 0.0
  %3727 = vmatpush1.msra.mxu0 0.0
  %3728 = vmatprep.subr.mxu0 0.0
  %3729 = vmatpush1.msra.mxu0 0.0
  %3730 = vmatprep.subr.mxu0 0.0
  %3731 = vmatpush1.msra.mxu0 0.0
  %3732 = vmatprep.subr.mxu0 0.0
  %3733 = vmatpush1.msra.mxu0 0.0
  %3734 = vmatprep.subr.mxu0 0.0
  %3735 = vmatpush1.msra.mxu0 0.0
  %3736 = vmatprep.subr.mxu0 0.0
  %3737 = vmatpush1.msra.mxu0 0.0
  %3738 = vmatprep.subr.mxu0 0.0
  %3739 = vmatpush1.msra.mxu0 0.0
  %3740 = vmatprep.subr.mxu0 0.0
  %3741 = vmatpush1.msra.mxu0 0.0
  %3742 = vmatprep.subr.mxu0 0.0
  %3743 = vmatpush1.msra.mxu0 0.0
  %3744 = vmatprep.subr.mxu0 0.0
  %3745 = vmatpush1.msra.mxu0 0.0
  %3746 = vmatprep.subr.mxu0 0.0
  %3747 = vmatpush1.msra.mxu0 0.0
  %3748 = vmatprep.subr.mxu0 0.0
  %3749 = vmatpush1.msra.mxu0 0.0
  %3750 = vmatprep.subr.mxu0 0.0
  %3751 = vmatpush1.msra.mxu0 %v376
  %3752 = vmatprep.subr.mxu0 0.0
  %3753 = vmatpush1.msra.mxu0 %v375
  %3754 = vmatprep.subr.mxu0 0.0
  %3755 = vmatpush2.msra.mxu0 0.0
  %3756 = vmatprep.subr.mxu0 0.0
  %3757 = vmatpush2.msra.mxu0 0.0
  %3758 = vmatprep.subr.mxu0 0.0
  %3759 = vmatpush2.msra.mxu0 0.0
  %3760 = vmatprep.subr.mxu0 0.0
  %3761 = vmatpush2.msra.mxu0 0.0
  %3762 = vmatprep.subr.mxu0 0.0
  %3763 = vmatpush2.msra.mxu0 0.0
  %3764 = vmatprep.subr.mxu0 0.0
  %3765 = vmatpush2.msra.mxu0 0.0
  %3766 = vmatprep.subr.mxu0 0.0
  %3767 = vmatpush2.msra.mxu0 0.0
  %3768 = vmatprep.subr.mxu0 0.0
  %3769 = vmatpush2.msra.mxu0 0.0
  %3770 = vmatprep.subr.mxu0 0.0
  %3771 = vmatpush2.msra.mxu0 0.0
  %3772 = vmatprep.subr.mxu0 0.0
  %3773 = vmatpush2.msra.mxu0 0.0
  %3774 = vmatprep.subr.mxu0 0.0
  %3775 = vmatpush2.msra.mxu0 0.0
  %3776 = vmatprep.subr.mxu0 0.0
  %3777 = vmatpush2.msra.mxu0 0.0
  %3778 = vmatprep.subr.mxu0 0.0
  %3779 = vmatpush2.msra.mxu0 0.0
  %3780 = vmatprep.subr.mxu0 0.0
  %3781 = vmatpush2.msra.mxu0 0.0
  %3782 = vmatprep.subr.mxu0 0.0
  %3783 = vmatpush2.msra.mxu0 0.0
  %3784 = vmatprep.subr.mxu0 0.0
  %3785 = vmatpush2.msra.mxu0 0.0
  %3786 = vmatprep.mubr.f32.mxu0 0.0
  %3787 = vmatmul.mubr.f32.gmra.mxu0 %v3720
  %v3788 = vpop.f32.mrf.mxu0
  %v3789 = vadd.f32 %v3716, %v3788
  %v3790 = vpop.f32.mrf.mxu0
  %3791 = vdwg.mxu0
  %v3792 = vadd.f32 %v3789, %v384
  %v3793 = vxor.u32 %v3792, 2147483648
  %v3794 = vmul.f32 %v3793, 1.442695
  %v3795 = vpow.pop %v3794
  %v3796 = vadd.f32 %v3795, 1.0
  %v3797 = vrcp.pop %v3796
  %v3798 = vmul.f32 1.0, %v3797
  %v3799 = vtanh.pop %v3792
  %v3800 = vmul.f32 %v3798, %v3045
  %3802 = vrot.lane.b32.xlu0 %v3799, 96
  %v3803 = vpop.permute.xlu0 %3802
  %v3805 = vmul.f32 %v3798, %v3803
  %3807 = vrot.lane.b32.xlu0 %v3805, 16
  %v3808 = vpop.permute.xlu0 %3807
  %v3810 = vadd.f32 %v3800, %v3808
  %v3811 = vtanh.pop %v3810
  %3813 = vrot.lane.b32.xlu0 %v3811, 32
  %v3814 = vpop.permute.xlu0 %3813
  %v3816 = vmul.f32 %v3798, %v3814
  %3817 = vmatprep.subr.mxu0 0.0
  %3818 = vmatpush1.msra.mxu0 0.0
  %3819 = vmatprep.subr.mxu0 0.0
  %3820 = vmatpush1.msra.mxu0 0.0
  %3821 = vmatprep.subr.mxu0 0.0
  %3822 = vmatpush1.msra.mxu0 0.0
  %3823 = vmatprep.subr.mxu0 0.0
  %3824 = vmatpush1.msra.mxu0 0.0
  %3825 = vmatprep.subr.mxu0 0.0
  %3826 = vmatpush1.msra.mxu0 0.0
  %3827 = vmatprep.subr.mxu0 0.0
  %3828 = vmatpush1.msra.mxu0 0.0
  %3829 = vmatprep.subr.mxu0 0.0
  %3830 = vmatpush1.msra.mxu0 0.0
  %3831 = vmatprep.subr.mxu0 0.0
  %3832 = vmatpush1.msra.mxu0 0.0
  %3833 = vmatprep.subr.mxu0 0.0
  %3834 = vmatpush1.msra.mxu0 0.0
  %3835 = vmatprep.subr.mxu0 0.0
  %3836 = vmatpush1.msra.mxu0 0.0
  %3837 = vmatprep.subr.mxu0 0.0
  %3838 = vmatpush1.msra.mxu0 0.0
  %3839 = vmatprep.subr.mxu0 0.0
  %3840 = vmatpush1.msra.mxu0 0.0
  %3841 = vmatprep.subr.mxu0 0.0
  %3842 = vmatpush1.msra.mxu0 0.0
  %3843 = vmatprep.subr.mxu0 0.0
  %3844 = vmatpush1.msra.mxu0 0.0
  %3845 = vmatprep.subr.mxu0 0.0
  %3846 = vmatpush1.msra.mxu0 0.0
  %3847 = vmatprep.subr.mxu0 0.0
  %3848 = vmatpush1.msra.mxu0 %v3574
  %3849 = vmatprep.subr.mxu0 0.0
  %3850 = vmatpush2.msra.mxu0 0.0
  %3851 = vmatprep.subr.mxu0 0.0
  %3852 = vmatpush2.msra.mxu0 0.0
  %3853 = vmatprep.subr.mxu0 0.0
  %3854 = vmatpush2.msra.mxu0 0.0
  %3855 = vmatprep.subr.mxu0 0.0
  %3856 = vmatpush2.msra.mxu0 0.0
  %3857 = vmatprep.subr.mxu0 0.0
  %3858 = vmatpush2.msra.mxu0 0.0
  %3859 = vmatprep.subr.mxu0 0.0
  %3860 = vmatpush2.msra.mxu0 0.0
  %3861 = vmatprep.subr.mxu0 0.0
  %3862 = vmatpush2.msra.mxu0 0.0
  %3863 = vmatprep.subr.mxu0 0.0
  %3864 = vmatpush2.msra.mxu0 0.0
  %3865 = vmatprep.subr.mxu0 0.0
  %3866 = vmatpush2.msra.mxu0 0.0
  %3867 = vmatprep.subr.mxu0 0.0
  %3868 = vmatpush2.msra.mxu0 0.0
  %3869 = vmatprep.subr.mxu0 0.0
  %3870 = vmatpush2.msra.mxu0 0.0
  %3871 = vmatprep.subr.mxu0 0.0
  %3872 = vmatpush2.msra.mxu0 0.0
  %3873 = vmatprep.subr.mxu0 0.0
  %3874 = vmatpush2.msra.mxu0 0.0
  %3875 = vmatprep.subr.mxu0 0.0
  %3876 = vmatpush2.msra.mxu0 0.0
  %3877 = vmatprep.subr.mxu0 0.0
  %3878 = vmatpush2.msra.mxu0 0.0
  %3879 = vmatprep.subr.mxu0 0.0
  %3880 = vmatpush2.msra.mxu0 0.0
  %3881 = vmatprep.mubr.f32.mxu0 0.0
  %3882 = vmatmul.mubr.f32.gmra.mxu0 %v749
  %v3883 = vpop.f32.mrf.mxu0
  %v3884 = vadd.f32 %v392, %v3883
  %v3885 = vpop.f32.mrf.mxu0
  %3886 = vmatprep.mubr.f32.mxu0 0.0
  %3887 = vmatmul.mubr.f32.gmra.mxu0 %v752
  %v3888 = vpop.f32.mrf.mxu0
  %v3889 = vadd.f32 %v392, %v3888
  %v3890 = vpop.f32.mrf.mxu0
  %3891 = vdwg.mxu0
  %v3892 = vmax.f32 %v3884, 0.0
  %v3893 = vmax.f32 %v3889, 0.0
  %3894 = vmatprep.subr.mxu0 0.0
  %3895 = vmatpush1.msra.mxu0 0.0
  %3896 = vmatprep.subr.mxu0 0.0
  %3897 = vmatpush1.msra.mxu0 0.0
  %3898 = vmatprep.subr.mxu0 0.0
  %3899 = vmatpush1.msra.mxu0 0.0
  %3900 = vmatprep.subr.mxu0 0.0
  %3901 = vmatpush1.msra.mxu0 0.0
  %3902 = vmatprep.subr.mxu0 0.0
  %3903 = vmatpush1.msra.mxu0 0.0
  %3904 = vmatprep.subr.mxu0 0.0
  %3905 = vmatpush1.msra.mxu0 0.0
  %3906 = vmatprep.subr.mxu0 0.0
  %3907 = vmatpush1.msra.mxu0 0.0
  %3908 = vmatprep.subr.mxu0 0.0
  %3909 = vmatpush1.msra.mxu0 0.0
  %3910 = vmatprep.subr.mxu0 0.0
  %3911 = vmatpush1.msra.mxu0 0.0
  %3912 = vmatprep.subr.mxu0 0.0
  %3913 = vmatpush1.msra.mxu0 0.0
  %3914 = vmatprep.subr.mxu0 0.0
  %3915 = vmatpush1.msra.mxu0 0.0
  %3916 = vmatprep.subr.mxu0 0.0
  %3917 = vmatpush1.msra.mxu0 0.0
  %3918 = vmatprep.subr.mxu0 0.0
  %3919 = vmatpush1.msra.mxu0 0.0
  %3920 = vmatprep.subr.mxu0 0.0
  %3921 = vmatpush1.msra.mxu0 0.0
  %3922 = vmatprep.subr.mxu0 0.0
  %3923 = vmatpush1.msra.mxu0 %v3893
  %3924 = vmatprep.subr.mxu0 0.0
  %3925 = vmatpush1.msra.mxu0 %v3892
  %3926 = vmatprep.subr.mxu0 0.0
  %3927 = vmatpush2.msra.mxu0 0.0
  %3928 = vmatprep.subr.mxu0 0.0
  %3929 = vmatpush2.msra.mxu0 0.0
  %3930 = vmatprep.subr.mxu0 0.0
  %3931 = vmatpush2.msra.mxu0 0.0
  %3932 = vmatprep.subr.mxu0 0.0
  %3933 = vmatpush2.msra.mxu0 0.0
  %3934 = vmatprep.subr.mxu0 0.0
  %3935 = vmatpush2.msra.mxu0 0.0
  %3936 = vmatprep.subr.mxu0 0.0
  %3937 = vmatpush2.msra.mxu0 0.0
  %3938 = vmatprep.subr.mxu0 0.0
  %3939 = vmatpush2.msra.mxu0 0.0
  %3940 = vmatprep.subr.mxu0 0.0
  %3941 = vmatpush2.msra.mxu0 0.0
  %3942 = vmatprep.subr.mxu0 0.0
  %3943 = vmatpush2.msra.mxu0 0.0
  %3944 = vmatprep.subr.mxu0 0.0
  %3945 = vmatpush2.msra.mxu0 0.0
  %3946 = vmatprep.subr.mxu0 0.0
  %3947 = vmatpush2.msra.mxu0 0.0
  %3948 = vmatprep.subr.mxu0 0.0
  %3949 = vmatpush2.msra.mxu0 0.0
  %3950 = vmatprep.subr.mxu0 0.0
  %3951 = vmatpush2.msra.mxu0 0.0
  %3952 = vmatprep.subr.mxu0 0.0
  %3953 = vmatpush2.msra.mxu0 0.0
  %3954 = vmatprep.subr.mxu0 0.0
  %3955 = vmatpush2.msra.mxu0 0.0
  %3956 = vmatprep.subr.mxu0 0.0
  %3957 = vmatpush2.msra.mxu0 0.0
  %3958 = vmatprep.mubr.f32.mxu0 0.0
  %3959 = vmatmul.mubr.f32.gmra.mxu0 %v832
  %v3960 = vpop.f32.mrf.mxu0
  %v3961 = vadd.f32 0.0, %v3960
  %v3962 = vpop.f32.mrf.mxu0
  %3963 = vdwg.mxu0
  %3965 = vrot.lane.b32.xlu0 %v3816, 80
  %v3966 = vpop.permute.xlu0 %3965
  %v3967 = vsel %vm261, %v3966, 0
  %3969 = vmatprep.subr.mxu0 0.0
  %3970 = vmatpush1.msra.mxu0 0.0
  %3971 = vmatprep.subr.mxu0 0.0
  %3972 = vmatpush1.msra.mxu0 0.0
  %3973 = vmatprep.subr.mxu0 0.0
  %3974 = vmatpush1.msra.mxu0 0.0
  %3975 = vmatprep.subr.mxu0 0.0
  %3976 = vmatpush1.msra.mxu0 0.0
  %3977 = vmatprep.subr.mxu0 0.0
  %3978 = vmatpush1.msra.mxu0 0.0
  %3979 = vmatprep.subr.mxu0 0.0
  %3980 = vmatpush1.msra.mxu0 0.0
  %3981 = vmatprep.subr.mxu0 0.0
  %3982 = vmatpush1.msra.mxu0 0.0
  %3983 = vmatprep.subr.mxu0 0.0
  %3984 = vmatpush1.msra.mxu0 0.0
  %3985 = vmatprep.subr.mxu0 0.0
  %3986 = vmatpush1.msra.mxu0 0.0
  %3987 = vmatprep.subr.mxu0 0.0
  %3988 = vmatpush1.msra.mxu0 0.0
  %3989 = vmatprep.subr.mxu0 0.0
  %3990 = vmatpush1.msra.mxu0 0.0
  %3991 = vmatprep.subr.mxu0 0.0
  %3992 = vmatpush1.msra.mxu0 0.0
  %3993 = vmatprep.subr.mxu0 0.0
  %3994 = vmatpush1.msra.mxu0 0.0
  %3995 = vmatprep.subr.mxu0 0.0
  %3996 = vmatpush1.msra.mxu0 0.0
  %3997 = vmatprep.subr.mxu0 0.0
  %3998 = vmatpush1.msra.mxu0 %v397
  %3999 = vmatprep.subr.mxu0 0.0
  %4000 = vmatpush1.msra.mxu0 %v396
  %4001 = vmatprep.subr.mxu0 0.0
  %4002 = vmatpush2.msra.mxu0 0.0
  %4003 = vmatprep.subr.mxu0 0.0
  %4004 = vmatpush2.msra.mxu0 0.0
  %4005 = vmatprep.subr.mxu0 0.0
  %4006 = vmatpush2.msra.mxu0 0.0
  %4007 = vmatprep.subr.mxu0 0.0
  %4008 = vmatpush2.msra.mxu0 0.0
  %4009 = vmatprep.subr.mxu0 0.0
  %4010 = vmatpush2.msra.mxu0 0.0
  %4011 = vmatprep.subr.mxu0 0.0
  %4012 = vmatpush2.msra.mxu0 0.0
  %4013 = vmatprep.subr.mxu0 0.0
  %4014 = vmatpush2.msra.mxu0 0.0
  %4015 = vmatprep.subr.mxu0 0.0
  %4016 = vmatpush2.msra.mxu0 0.0
  %4017 = vmatprep.subr.mxu0 0.0
  %4018 = vmatpush2.msra.mxu0 0.0
  %4019 = vmatprep.subr.mxu0 0.0
  %4020 = vmatpush2.msra.mxu0 0.0
  %4021 = vmatprep.subr.mxu0 0.0
  %4022 = vmatpush2.msra.mxu0 0.0
  %4023 = vmatprep.subr.mxu0 0.0
  %4024 = vmatpush2.msra.mxu0 0.0
  %4025 = vmatprep.subr.mxu0 0.0
  %4026 = vmatpush2.msra.mxu0 0.0
  %4027 = vmatprep.subr.mxu0 0.0
  %4028 = vmatpush2.msra.mxu0 0.0
  %4029 = vmatprep.subr.mxu0 0.0
  %4030 = vmatpush2.msra.mxu0 0.0
  %4031 = vmatprep.subr.mxu0 0.0
  %4032 = vmatpush2.msra.mxu0 0.0
  %4033 = vmatprep.mubr.f32.mxu0 0.0
  %4034 = vmatmul.mubr.f32.gmra.mxu0 %v3967
  %v4035 = vpop.f32.mrf.mxu0
  %v4036 = vadd.f32 0.0, %v4035
  %v4037 = vpop.f32.mrf.mxu0
  %4038 = vdwg.mxu0
  %v4040 = vsel %vm261, %v3961, 0
  %4042 = vmatprep.subr.mxu0 0.0
  %4043 = vmatpush1.msra.mxu0 0.0
  %4044 = vmatprep.subr.mxu0 0.0
  %4045 = vmatpush1.msra.mxu0 0.0
  %4046 = vmatprep.subr.mxu0 0.0
  %4047 = vmatpush1.msra.mxu0 0.0
  %4048 = vmatprep.subr.mxu0 0.0
  %4049 = vmatpush1.msra.mxu0 0.0
  %4050 = vmatprep.subr.mxu0 0.0
  %4051 = vmatpush1.msra.mxu0 0.0
  %4052 = vmatprep.subr.mxu0 0.0
  %4053 = vmatpush1.msra.mxu0 0.0
  %4054 = vmatprep.subr.mxu0 0.0
  %4055 = vmatpush1.msra.mxu0 0.0
  %4056 = vmatprep.subr.mxu0 0.0
  %4057 = vmatpush1.msra.mxu0 0.0
  %4058 = vmatprep.subr.mxu0 0.0
  %4059 = vmatpush1.msra.mxu0 0.0
  %4060 = vmatprep.subr.mxu0 0.0
  %4061 = vmatpush1.msra.mxu0 0.0
  %4062 = vmatprep.subr.mxu0 0.0
  %4063 = vmatpush1.msra.mxu0 0.0
  %4064 = vmatprep.subr.mxu0 0.0
  %4065 = vmatpush1.msra.mxu0 0.0
  %4066 = vmatprep.subr.mxu0 0.0
  %4067 = vmatpush1.msra.mxu0 0.0
  %4068 = vmatprep.subr.mxu0 0.0
  %4069 = vmatpush1.msra.mxu0 0.0
  %4070 = vmatprep.subr.mxu0 0.0
  %4071 = vmatpush1.msra.mxu0 %v395
  %4072 = vmatprep.subr.mxu0 0.0
  %4073 = vmatpush1.msra.mxu0 %v394
  %4074 = vmatprep.subr.mxu0 0.0
  %4075 = vmatpush2.msra.mxu0 0.0
  %4076 = vmatprep.subr.mxu0 0.0
  %4077 = vmatpush2.msra.mxu0 0.0
  %4078 = vmatprep.subr.mxu0 0.0
  %4079 = vmatpush2.msra.mxu0 0.0
  %4080 = vmatprep.subr.mxu0 0.0
  %4081 = vmatpush2.msra.mxu0 0.0
  %4082 = vmatprep.subr.mxu0 0.0
  %4083 = vmatpush2.msra.mxu0 0.0
  %4084 = vmatprep.subr.mxu0 0.0
  %4085 = vmatpush2.msra.mxu0 0.0
  %4086 = vmatprep.subr.mxu0 0.0
  %4087 = vmatpush2.msra.mxu0 0.0
  %4088 = vmatprep.subr.mxu0 0.0
  %4089 = vmatpush2.msra.mxu0 0.0
  %4090 = vmatprep.subr.mxu0 0.0
  %4091 = vmatpush2.msra.mxu0 0.0
  %4092 = vmatprep.subr.mxu0 0.0
  %4093 = vmatpush2.msra.mxu0 0.0
  %4094 = vmatprep.subr.mxu0 0.0
  %4095 = vmatpush2.msra.mxu0 0.0
  %4096 = vmatprep.subr.mxu0 0.0
  %4097 = vmatpush2.msra.mxu0 0.0
  %4098 = vmatprep.subr.mxu0 0.0
  %4099 = vmatpush2.msra.mxu0 0.0
  %4100 = vmatprep.subr.mxu0 0.0
  %4101 = vmatpush2.msra.mxu0 0.0
  %4102 = vmatprep.subr.mxu0 0.0
  %4103 = vmatpush2.msra.mxu0 0.0
  %4104 = vmatprep.subr.mxu0 0.0
  %4105 = vmatpush2.msra.mxu0 0.0
  %4106 = vmatprep.mubr.f32.mxu0 0.0
  %4107 = vmatmul.mubr.f32.gmra.mxu0 %v4040
  %v4108 = vpop.f32.mrf.mxu0
  %v4109 = vadd.f32 %v4036, %v4108
  %v4110 = vpop.f32.mrf.mxu0
  %4111 = vdwg.mxu0
  %v4112 = vadd.f32 %v4109, %v403
  %v4113 = vmax.f32 %v4112, 0.0
  %4115 = vrot.lane.b32.xlu0 %v4113, 48
  %v4116 = vpop.permute.xlu0 %4115
  %v4118 = vadd.f32 %v3816, %v4116
  %4120 = vrot.lane.b32.xlu0 %v4118, 80
  %v4121 = vpop.permute.xlu0 %4120
  %v4122 = vsel %vm261, %v4121, 0
  %4124 = vmatprep.subr.mxu0 0.0
  %4125 = vmatpush1.msra.mxu0 0.0
  %4126 = vmatprep.subr.mxu0 0.0
  %4127 = vmatpush1.msra.mxu0 0.0
  %4128 = vmatprep.subr.mxu0 0.0
  %4129 = vmatpush1.msra.mxu0 0.0
  %4130 = vmatprep.subr.mxu0 0.0
  %4131 = vmatpush1.msra.mxu0 0.0
  %4132 = vmatprep.subr.mxu0 0.0
  %4133 = vmatpush1.msra.mxu0 0.0
  %4134 = vmatprep.subr.mxu0 0.0
  %4135 = vmatpush1.msra.mxu0 0.0
  %4136 = vmatprep.subr.mxu0 0.0
  %4137 = vmatpush1.msra.mxu0 0.0
  %4138 = vmatprep.subr.mxu0 0.0
  %4139 = vmatpush1.msra.mxu0 0.0
  %4140 = vmatprep.subr.mxu0 0.0
  %4141 = vmatpush1.msra.mxu0 0.0
  %4142 = vmatprep.subr.mxu0 0.0
  %4143 = vmatpush1.msra.mxu0 0.0
  %4144 = vmatprep.subr.mxu0 0.0
  %4145 = vmatpush1.msra.mxu0 0.0
  %4146 = vmatprep.subr.mxu0 0.0
  %4147 = vmatpush1.msra.mxu0 0.0
  %4148 = vmatprep.subr.mxu0 0.0
  %4149 = vmatpush1.msra.mxu0 0.0
  %4150 = vmatprep.subr.mxu0 0.0
  %4151 = vmatpush1.msra.mxu0 0.0
  %4152 = vmatprep.subr.mxu0 0.0
  %4153 = vmatpush1.msra.mxu0 %v406
  %4154 = vmatprep.subr.mxu0 0.0
  %4155 = vmatpush1.msra.mxu0 %v405
  %4156 = vmatprep.subr.mxu0 0.0
  %4157 = vmatpush2.msra.mxu0 0.0
  %4158 = vmatprep.subr.mxu0 0.0
  %4159 = vmatpush2.msra.mxu0 0.0
  %4160 = vmatprep.subr.mxu0 0.0
  %4161 = vmatpush2.msra.mxu0 0.0
  %4162 = vmatprep.subr.mxu0 0.0
  %4163 = vmatpush2.msra.mxu0 0.0
  %4164 = vmatprep.subr.mxu0 0.0
  %4165 = vmatpush2.msra.mxu0 0.0
  %4166 = vmatprep.subr.mxu0 0.0
  %4167 = vmatpush2.msra.mxu0 0.0
  %4168 = vmatprep.subr.mxu0 0.0
  %4169 = vmatpush2.msra.mxu0 0.0
  %4170 = vmatprep.subr.mxu0 0.0
  %4171 = vmatpush2.msra.mxu0 0.0
  %4172 = vmatprep.subr.mxu0 0.0
  %4173 = vmatpush2.msra.mxu0 0.0
  %4174 = vmatprep.subr.mxu0 0.0
  %4175 = vmatpush2.msra.mxu0 0.0
  %4176 = vmatprep.subr.mxu0 0.0
  %4177 = vmatpush2.msra.mxu0 0.0
  %4178 = vmatprep.subr.mxu0 0.0
  %4179 = vmatpush2.msra.mxu0 0.0
  %4180 = vmatprep.subr.mxu0 0.0
  %4181 = vmatpush2.msra.mxu0 0.0
  %4182 = vmatprep.subr.mxu0 0.0
  %4183 = vmatpush2.msra.mxu0 0.0
  %4184 = vmatprep.subr.mxu0 0.0
  %4185 = vmatpush2.msra.mxu0 0.0
  %4186 = vmatprep.subr.mxu0 0.0
  %4187 = vmatpush2.msra.mxu0 0.0
  %4188 = vmatprep.mubr.f32.mxu0 0.0
  %4189 = vmatmul.mubr.f32.gmra.mxu0 %v4122
  %v4190 = vpop.f32.mrf.mxu0
  %v4191 = vadd.f32 %v458, %v4190
  %v4192 = vpop.f32.mrf.mxu0
  %4193 = vdwg.mxu0
  %v4194 = vmax.f32 %v4191, 0.0
  %v4196 = vsel %vm261, %v4194, 0
  %4198 = vmatprep.subr.mxu0 0.0
  %4199 = vmatpush1.msra.mxu0 0.0
  %4200 = vmatprep.subr.mxu0 0.0
  %4201 = vmatpush1.msra.mxu0 0.0
  %4202 = vmatprep.subr.mxu0 0.0
  %4203 = vmatpush1.msra.mxu0 0.0
  %4204 = vmatprep.subr.mxu0 0.0
  %4205 = vmatpush1.msra.mxu0 0.0
  %4206 = vmatprep.subr.mxu0 0.0
  %4207 = vmatpush1.msra.mxu0 0.0
  %4208 = vmatprep.subr.mxu0 0.0
  %4209 = vmatpush1.msra.mxu0 0.0
  %4210 = vmatprep.subr.mxu0 0.0
  %4211 = vmatpush1.msra.mxu0 0.0
  %4212 = vmatprep.subr.mxu0 0.0
  %4213 = vmatpush1.msra.mxu0 0.0
  %4214 = vmatprep.subr.mxu0 0.0
  %4215 = vmatpush1.msra.mxu0 0.0
  %4216 = vmatprep.subr.mxu0 0.0
  %4217 = vmatpush1.msra.mxu0 0.0
  %4218 = vmatprep.subr.mxu0 0.0
  %4219 = vmatpush1.msra.mxu0 0.0
  %4220 = vmatprep.subr.mxu0 0.0
  %4221 = vmatpush1.msra.mxu0 0.0
  %4222 = vmatprep.subr.mxu0 0.0
  %4223 = vmatpush1.msra.mxu0 0.0
  %4224 = vmatprep.subr.mxu0 0.0
  %4225 = vmatpush1.msra.mxu0 0.0
  %4226 = vmatprep.subr.mxu0 0.0
  %4227 = vmatpush1.msra.mxu0 %v411
  %4228 = vmatprep.subr.mxu0 0.0
  %4229 = vmatpush1.msra.mxu0 %v410
  %4230 = vmatprep.subr.mxu0 0.0
  %4231 = vmatpush2.msra.mxu0 0.0
  %4232 = vmatprep.subr.mxu0 0.0
  %4233 = vmatpush2.msra.mxu0 0.0
  %4234 = vmatprep.subr.mxu0 0.0
  %4235 = vmatpush2.msra.mxu0 0.0
  %4236 = vmatprep.subr.mxu0 0.0
  %4237 = vmatpush2.msra.mxu0 0.0
  %4238 = vmatprep.subr.mxu0 0.0
  %4239 = vmatpush2.msra.mxu0 0.0
  %4240 = vmatprep.subr.mxu0 0.0
  %4241 = vmatpush2.msra.mxu0 0.0
  %4242 = vmatprep.subr.mxu0 0.0
  %4243 = vmatpush2.msra.mxu0 0.0
  %4244 = vmatprep.subr.mxu0 0.0
  %4245 = vmatpush2.msra.mxu0 0.0
  %4246 = vmatprep.subr.mxu0 0.0
  %4247 = vmatpush2.msra.mxu0 0.0
  %4248 = vmatprep.subr.mxu0 0.0
  %4249 = vmatpush2.msra.mxu0 0.0
  %4250 = vmatprep.subr.mxu0 0.0
  %4251 = vmatpush2.msra.mxu0 0.0
  %4252 = vmatprep.subr.mxu0 0.0
  %4253 = vmatpush2.msra.mxu0 0.0
  %4254 = vmatprep.subr.mxu0 0.0
  %4255 = vmatpush2.msra.mxu0 0.0
  %4256 = vmatprep.subr.mxu0 0.0
  %4257 = vmatpush2.msra.mxu0 0.0
  %4258 = vmatprep.subr.mxu0 0.0
  %4259 = vmatpush2.msra.mxu0 0.0
  %4260 = vmatprep.subr.mxu0 0.0
  %4261 = vmatpush2.msra.mxu0 0.0
  %4262 = vmatprep.mubr.f32.mxu0 0.0
  %4263 = vmatmul.mubr.f32.gmra.mxu0 %v4196
  %v4264 = vpop.f32.mrf.mxu0
  %v4265 = vadd.f32 %v417, %v4264
  %v4266 = vpop.f32.mrf.mxu0
  %4267 = vdwg.mxu0
  %4268 = vmatprep.subr.mxu0 0.0
  %4269 = vmatpush1.msra.mxu0 0.0
  %4270 = vmatprep.subr.mxu0 0.0
  %4271 = vmatpush1.msra.mxu0 0.0
  %4272 = vmatprep.subr.mxu0 0.0
  %4273 = vmatpush1.msra.mxu0 0.0
  %4274 = vmatprep.subr.mxu0 0.0
  %4275 = vmatpush1.msra.mxu0 0.0
  %4276 = vmatprep.subr.mxu0 0.0
  %4277 = vmatpush1.msra.mxu0 0.0
  %4278 = vmatprep.subr.mxu0 0.0
  %4279 = vmatpush1.msra.mxu0 0.0
  %4280 = vmatprep.subr.mxu0 0.0
  %4281 = vmatpush1.msra.mxu0 0.0
  %4282 = vmatprep.subr.mxu0 0.0
  %4283 = vmatpush1.msra.mxu0 0.0
  %4284 = vmatprep.subr.mxu0 0.0
  %4285 = vmatpush1.msra.mxu0 0.0
  %4286 = vmatprep.subr.mxu0 0.0
  %4287 = vmatpush1.msra.mxu0 0.0
  %4288 = vmatprep.subr.mxu0 0.0
  %4289 = vmatpush1.msra.mxu0 0.0
  %4290 = vmatprep.subr.mxu0 0.0
  %4291 = vmatpush1.msra.mxu0 0.0
  %4292 = vmatprep.subr.mxu0 0.0
  %4293 = vmatpush1.msra.mxu0 0.0
  %4294 = vmatprep.subr.mxu0 0.0
  %4295 = vmatpush1.msra.mxu0 0.0
  %4296 = vmatprep.subr.mxu0 0.0
  %4297 = vmatpush1.msra.mxu0 %v420
  %4298 = vmatprep.subr.mxu0 0.0
  %4299 = vmatpush1.msra.mxu0 %v419
  %4300 = vmatprep.subr.mxu0 0.0
  %4301 = vmatpush2.msra.mxu0 0.0
  %4302 = vmatprep.subr.mxu0 0.0
  %4303 = vmatpush2.msra.mxu0 0.0
  %4304 = vmatprep.subr.mxu0 0.0
  %4305 = vmatpush2.msra.mxu0 0.0
  %4306 = vmatprep.subr.mxu0 0.0
  %4307 = vmatpush2.msra.mxu0 0.0
  %4308 = vmatprep.subr.mxu0 0.0
  %4309 = vmatpush2.msra.mxu0 0.0
  %4310 = vmatprep.subr.mxu0 0.0
  %4311 = vmatpush2.msra.mxu0 0.0
  %4312 = vmatprep.subr.mxu0 0.0
  %4313 = vmatpush2.msra.mxu0 0.0
  %4314 = vmatprep.subr.mxu0 0.0
  %4315 = vmatpush2.msra.mxu0 0.0
  %4316 = vmatprep.subr.mxu0 0.0
  %4317 = vmatpush2.msra.mxu0 0.0
  %4318 = vmatprep.subr.mxu0 0.0
  %4319 = vmatpush2.msra.mxu0 0.0
  %4320 = vmatprep.subr.mxu0 0.0
  %4321 = vmatpush2.msra.mxu0 0.0
  %4322 = vmatprep.subr.mxu0 0.0
  %4323 = vmatpush2.msra.mxu0 0.0
  %4324 = vmatprep.subr.mxu0 0.0
  %4325 = vmatpush2.msra.mxu0 0.0
  %4326 = vmatprep.subr.mxu0 0.0
  %4327 = vmatpush2.msra.mxu0 0.0
  %4328 = vmatprep.subr.mxu0 0.0
  %4329 = vmatpush2.msra.mxu0 0.0
  %4330 = vmatprep.subr.mxu0 0.0
  %4331 = vmatpush2.msra.mxu0 0.0
  %4332 = vmatprep.mubr.f32.mxu0 0.0
  %4333 = vmatmul.mubr.f32.gmra.mxu0 %v4196
  %v4334 = vpop.f32.mrf.mxu0
  %v4335 = vadd.f32 0.0, %v4334
  %v4336 = vpop.f32.mrf.mxu0
  %4337 = vdwg.mxu0
  %v4338 = vadd.f32 %v3574, %v4335
  %v4339 = vadd.f32 %v4338, %v426
  %v4340 = vsel %vm261, %v4113, 0
  %4342 = vmatprep.subr.mxu0 0.0
  %4343 = vmatpush1.msra.mxu0 0.0
  %4344 = vmatprep.subr.mxu0 0.0
  %4345 = vmatpush1.msra.mxu0 0.0
  %4346 = vmatprep.subr.mxu0 0.0
  %4347 = vmatpush1.msra.mxu0 0.0
  %4348 = vmatprep.subr.mxu0 0.0
  %4349 = vmatpush1.msra.mxu0 0.0
  %4350 = vmatprep.subr.mxu0 0.0
  %4351 = vmatpush1.msra.mxu0 0.0
  %4352 = vmatprep.subr.mxu0 0.0
  %4353 = vmatpush1.msra.mxu0 0.0
  %4354 = vmatprep.subr.mxu0 0.0
  %4355 = vmatpush1.msra.mxu0 0.0
  %4356 = vmatprep.subr.mxu0 0.0
  %4357 = vmatpush1.msra.mxu0 0.0
  %4358 = vmatprep.subr.mxu0 0.0
  %4359 = vmatpush1.msra.mxu0 0.0
  %4360 = vmatprep.subr.mxu0 0.0
  %4361 = vmatpush1.msra.mxu0 0.0
  %4362 = vmatprep.subr.mxu0 0.0
  %4363 = vmatpush1.msra.mxu0 0.0
  %4364 = vmatprep.subr.mxu0 0.0
  %4365 = vmatpush1.msra.mxu0 0.0
  %4366 = vmatprep.subr.mxu0 0.0
  %4367 = vmatpush1.msra.mxu0 0.0
  %4368 = vmatprep.subr.mxu0 0.0
  %4369 = vmatpush1.msra.mxu0 0.0
  %4370 = vmatprep.subr.mxu0 0.0
  %4371 = vmatpush1.msra.mxu0 %v366
  %4372 = vmatprep.subr.mxu0 0.0
  %4373 = vmatpush1.msra.mxu0 %v365
  %4374 = vmatprep.subr.mxu0 0.0
  %4375 = vmatpush2.msra.mxu0 0.0
  %4376 = vmatprep.subr.mxu0 0.0
  %4377 = vmatpush2.msra.mxu0 0.0
  %4378 = vmatprep.subr.mxu0 0.0
  %4379 = vmatpush2.msra.mxu0 0.0
  %4380 = vmatprep.subr.mxu0 0.0
  %4381 = vmatpush2.msra.mxu0 0.0
  %4382 = vmatprep.subr.mxu0 0.0
  %4383 = vmatpush2.msra.mxu0 0.0
  %4384 = vmatprep.subr.mxu0 0.0
  %4385 = vmatpush2.msra.mxu0 0.0
  %4386 = vmatprep.subr.mxu0 0.0
  %4387 = vmatpush2.msra.mxu0 0.0
  %4388 = vmatprep.subr.mxu0 0.0
  %4389 = vmatpush2.msra.mxu0 0.0
  %4390 = vmatprep.subr.mxu0 0.0
  %4391 = vmatpush2.msra.mxu0 0.0
  %4392 = vmatprep.subr.mxu0 0.0
  %4393 = vmatpush2.msra.mxu0 0.0
  %4394 = vmatprep.subr.mxu0 0.0
  %4395 = vmatpush2.msra.mxu0 0.0
  %4396 = vmatprep.subr.mxu0 0.0
  %4397 = vmatpush2.msra.mxu0 0.0
  %4398 = vmatprep.subr.mxu0 0.0
  %4399 = vmatpush2.msra.mxu0 0.0
  %4400 = vmatprep.subr.mxu0 0.0
  %4401 = vmatpush2.msra.mxu0 0.0
  %4402 = vmatprep.subr.mxu0 0.0
  %4403 = vmatpush2.msra.mxu0 0.0
  %4404 = vmatprep.subr.mxu0 0.0
  %4405 = vmatpush2.msra.mxu0 0.0
  %4406 = vmatprep.mubr.f32.mxu0 0.0
  %4407 = vmatmul.mubr.f32.gmra.mxu0 %v4340
  %v4408 = vpop.f32.mrf.mxu0
  %v4409 = vadd.f32 %v4265, %v4408
  %v4410 = vpop.f32.mrf.mxu0
  %4411 = vdwg.mxu0
  %v4412 = vadd.f32 %v4409, %v373
  %v4413 = vmax.f32 %v4412, 0.0
  %4414 = vmatprep.subr.mxu0 0.0
  %4415 = vmatpush1.msra.mxu0 0.0
  %4416 = vmatprep.subr.mxu0 0.0
  %4417 = vmatpush1.msra.mxu0 0.0
  %4418 = vmatprep.subr.mxu0 0.0
  %4419 = vmatpush1.msra.mxu0 0.0
  %4420 = vmatprep.subr.mxu0 0.0
  %4421 = vmatpush1.msra.mxu0 0.0
  %4422 = vmatprep.subr.mxu0 0.0
  %4423 = vmatpush1.msra.mxu0 0.0
  %4424 = vmatprep.subr.mxu0 0.0
  %4425 = vmatpush1.msra.mxu0 0.0
  %4426 = vmatprep.subr.mxu0 0.0
  %4427 = vmatpush1.msra.mxu0 0.0
  %4428 = vmatprep.subr.mxu0 0.0
  %4429 = vmatpush1.msra.mxu0 0.0
  %4430 = vmatprep.subr.mxu0 0.0
  %4431 = vmatpush1.msra.mxu0 0.0
  %4432 = vmatprep.subr.mxu0 0.0
  %4433 = vmatpush1.msra.mxu0 0.0
  %4434 = vmatprep.subr.mxu0 0.0
  %4435 = vmatpush1.msra.mxu0 0.0
  %4436 = vmatprep.subr.mxu0 0.0
  %4437 = vmatpush1.msra.mxu0 0.0
  %4438 = vmatprep.subr.mxu0 0.0
  %4439 = vmatpush1.msra.mxu0 0.0
  %4440 = vmatprep.subr.mxu0 0.0
  %4441 = vmatpush1.msra.mxu0 0.0
  %4442 = vmatprep.subr.mxu0 0.0
  %4443 = vmatpush1.msra.mxu0 %v378
  %4444 = vmatprep.subr.mxu0 0.0
  %4445 = vmatpush1.msra.mxu0 %v377
  %4446 = vmatprep.subr.mxu0 0.0
  %4447 = vmatpush2.msra.mxu0 0.0
  %4448 = vmatprep.subr.mxu0 0.0
  %4449 = vmatpush2.msra.mxu0 0.0
  %4450 = vmatprep.subr.mxu0 0.0
  %4451 = vmatpush2.msra.mxu0 0.0
  %4452 = vmatprep.subr.mxu0 0.0
  %4453 = vmatpush2.msra.mxu0 0.0
  %4454 = vmatprep.subr.mxu0 0.0
  %4455 = vmatpush2.msra.mxu0 0.0
  %4456 = vmatprep.subr.mxu0 0.0
  %4457 = vmatpush2.msra.mxu0 0.0
  %4458 = vmatprep.subr.mxu0 0.0
  %4459 = vmatpush2.msra.mxu0 0.0
  %4460 = vmatprep.subr.mxu0 0.0
  %4461 = vmatpush2.msra.mxu0 0.0
  %4462 = vmatprep.subr.mxu0 0.0
  %4463 = vmatpush2.msra.mxu0 0.0
  %4464 = vmatprep.subr.mxu0 0.0
  %4465 = vmatpush2.msra.mxu0 0.0
  %4466 = vmatprep.subr.mxu0 0.0
  %4467 = vmatpush2.msra.mxu0 0.0
  %4468 = vmatprep.subr.mxu0 0.0
  %4469 = vmatpush2.msra.mxu0 0.0
  %4470 = vmatprep.subr.mxu0 0.0
  %4471 = vmatpush2.msra.mxu0 0.0
  %4472 = vmatprep.subr.mxu0 0.0
  %4473 = vmatpush2.msra.mxu0 0.0
  %4474 = vmatprep.subr.mxu0 0.0
  %4475 = vmatpush2.msra.mxu0 0.0
  %4476 = vmatprep.subr.mxu0 0.0
  %4477 = vmatpush2.msra.mxu0 0.0
  %4478 = vmatprep.mubr.f32.mxu0 0.0
  %4479 = vmatmul.mubr.f32.gmra.mxu0 %v3967
  %v4480 = vpop.f32.mrf.mxu0
  %v4481 = vadd.f32 0.0, %v4480
  %v4482 = vpop.f32.mrf.mxu0
  %4483 = vdwg.mxu0
  %v4485 = vsel %vm261, %v4413, 0
  %4487 = vmatprep.subr.mxu0 0.0
  %4488 = vmatpush1.msra.mxu0 0.0
  %4489 = vmatprep.subr.mxu0 0.0
  %4490 = vmatpush1.msra.mxu0 0.0
  %4491 = vmatprep.subr.mxu0 0.0
  %4492 = vmatpush1.msra.mxu0 0.0
  %4493 = vmatprep.subr.mxu0 0.0
  %4494 = vmatpush1.msra.mxu0 0.0
  %4495 = vmatprep.subr.mxu0 0.0
  %4496 = vmatpush1.msra.mxu0 0.0
  %4497 = vmatprep.subr.mxu0 0.0
  %4498 = vmatpush1.msra.mxu0 0.0
  %4499 = vmatprep.subr.mxu0 0.0
  %4500 = vmatpush1.msra.mxu0 0.0
  %4501 = vmatprep.subr.mxu0 0.0
  %4502 = vmatpush1.msra.mxu0 0.0
  %4503 = vmatprep.subr.mxu0 0.0
  %4504 = vmatpush1.msra.mxu0 0.0
  %4505 = vmatprep.subr.mxu0 0.0
  %4506 = vmatpush1.msra.mxu0 0.0
  %4507 = vmatprep.subr.mxu0 0.0
  %4508 = vmatpush1.msra.mxu0 0.0
  %4509 = vmatprep.subr.mxu0 0.0
  %4510 = vmatpush1.msra.mxu0 0.0
  %4511 = vmatprep.subr.mxu0 0.0
  %4512 = vmatpush1.msra.mxu0 0.0
  %4513 = vmatprep.subr.mxu0 0.0
  %4514 = vmatpush1.msra.mxu0 0.0
  %4515 = vmatprep.subr.mxu0 0.0
  %4516 = vmatpush1.msra.mxu0 %v376
  %4517 = vmatprep.subr.mxu0 0.0
  %4518 = vmatpush1.msra.mxu0 %v375
  %4519 = vmatprep.subr.mxu0 0.0
  %4520 = vmatpush2.msra.mxu0 0.0
  %4521 = vmatprep.subr.mxu0 0.0
  %4522 = vmatpush2.msra.mxu0 0.0
  %4523 = vmatprep.subr.mxu0 0.0
  %4524 = vmatpush2.msra.mxu0 0.0
  %4525 = vmatprep.subr.mxu0 0.0
  %4526 = vmatpush2.msra.mxu0 0.0
  %4527 = vmatprep.subr.mxu0 0.0
  %4528 = vmatpush2.msra.mxu0 0.0
  %4529 = vmatprep.subr.mxu0 0.0
  %4530 = vmatpush2.msra.mxu0 0.0
  %4531 = vmatprep.subr.mxu0 0.0
  %4532 = vmatpush2.msra.mxu0 0.0
  %4533 = vmatprep.subr.mxu0 0.0
  %4534 = vmatpush2.msra.mxu0 0.0
  %4535 = vmatprep.subr.mxu0 0.0
  %4536 = vmatpush2.msra.mxu0 0.0
  %4537 = vmatprep.subr.mxu0 0.0
  %4538 = vmatpush2.msra.mxu0 0.0
  %4539 = vmatprep.subr.mxu0 0.0
  %4540 = vmatpush2.msra.mxu0 0.0
  %4541 = vmatprep.subr.mxu0 0.0
  %4542 = vmatpush2.msra.mxu0 0.0
  %4543 = vmatprep.subr.mxu0 0.0
  %4544 = vmatpush2.msra.mxu0 0.0
  %4545 = vmatprep.subr.mxu0 0.0
  %4546 = vmatpush2.msra.mxu0 0.0
  %4547 = vmatprep.subr.mxu0 0.0
  %4548 = vmatpush2.msra.mxu0 0.0
  %4549 = vmatprep.subr.mxu0 0.0
  %4550 = vmatpush2.msra.mxu0 0.0
  %4551 = vmatprep.mubr.f32.mxu0 0.0
  %4552 = vmatmul.mubr.f32.gmra.mxu0 %v4485
  %v4553 = vpop.f32.mrf.mxu0
  %v4554 = vadd.f32 %v4481, %v4553
  %v4555 = vpop.f32.mrf.mxu0
  %4556 = vdwg.mxu0
  %v4557 = vadd.f32 %v4554, %v384
  %v4558 = vxor.u32 %v4557, 2147483648
  %v4559 = vmul.f32 %v4558, 1.442695
  %v4560 = vpow.pop %v4559
  %v4561 = vadd.f32 %v4560, 1.0
  %v4562 = vrcp.pop %v4561
  %v4563 = vmul.f32 1.0, %v4562
  %v4564 = vtanh.pop %v4557
  %v4565 = vmul.f32 %v4563, %v3810
  %4567 = vrot.lane.b32.xlu0 %v4564, 96
  %v4568 = vpop.permute.xlu0 %4567
  %v4570 = vmul.f32 %v4563, %v4568
  %4572 = vrot.lane.b32.xlu0 %v4570, 16
  %v4573 = vpop.permute.xlu0 %4572
  %v4575 = vadd.f32 %v4565, %v4573
  %v4576 = vtanh.pop %v4575
  %4578 = vrot.lane.b32.xlu0 %v4576, 32
  %v4579 = vpop.permute.xlu0 %4578
  %v4581 = vmul.f32 %v4563, %v4579
  %4582 = vmatprep.subr.mxu0 0.0
  %4583 = vmatpush1.msra.mxu0 0.0
  %4584 = vmatprep.subr.mxu0 0.0
  %4585 = vmatpush1.msra.mxu0 0.0
  %4586 = vmatprep.subr.mxu0 0.0
  %4587 = vmatpush1.msra.mxu0 0.0
  %4588 = vmatprep.subr.mxu0 0.0
  %4589 = vmatpush1.msra.mxu0 0.0
  %4590 = vmatprep.subr.mxu0 0.0
  %4591 = vmatpush1.msra.mxu0 0.0
  %4592 = vmatprep.subr.mxu0 0.0
  %4593 = vmatpush1.msra.mxu0 0.0
  %4594 = vmatprep.subr.mxu0 0.0
  %4595 = vmatpush1.msra.mxu0 0.0
  %4596 = vmatprep.subr.mxu0 0.0
  %4597 = vmatpush1.msra.mxu0 0.0
  %4598 = vmatprep.subr.mxu0 0.0
  %4599 = vmatpush1.msra.mxu0 0.0
  %4600 = vmatprep.subr.mxu0 0.0
  %4601 = vmatpush1.msra.mxu0 0.0
  %4602 = vmatprep.subr.mxu0 0.0
  %4603 = vmatpush1.msra.mxu0 0.0
  %4604 = vmatprep.subr.mxu0 0.0
  %4605 = vmatpush1.msra.mxu0 0.0
  %4606 = vmatprep.subr.mxu0 0.0
  %4607 = vmatpush1.msra.mxu0 0.0
  %4608 = vmatprep.subr.mxu0 0.0
  %4609 = vmatpush1.msra.mxu0 0.0
  %4610 = vmatprep.subr.mxu0 0.0
  %4611 = vmatpush1.msra.mxu0 0.0
  %4612 = vmatprep.subr.mxu0 0.0
  %4613 = vmatpush1.msra.mxu0 %v4339
  %4614 = vmatprep.subr.mxu0 0.0
  %4615 = vmatpush2.msra.mxu0 0.0
  %4616 = vmatprep.subr.mxu0 0.0
  %4617 = vmatpush2.msra.mxu0 0.0
  %4618 = vmatprep.subr.mxu0 0.0
  %4619 = vmatpush2.msra.mxu0 0.0
  %4620 = vmatprep.subr.mxu0 0.0
  %4621 = vmatpush2.msra.mxu0 0.0
  %4622 = vmatprep.subr.mxu0 0.0
  %4623 = vmatpush2.msra.mxu0 0.0
  %4624 = vmatprep.subr.mxu0 0.0
  %4625 = vmatpush2.msra.mxu0 0.0
  %4626 = vmatprep.subr.mxu0 0.0
  %4627 = vmatpush2.msra.mxu0 0.0
  %4628 = vmatprep.subr.mxu0 0.0
  %4629 = vmatpush2.msra.mxu0 0.0
  %4630 = vmatprep.subr.mxu0 0.0
  %4631 = vmatpush2.msra.mxu0 0.0
  %4632 = vmatprep.subr.mxu0 0.0
  %4633 = vmatpush2.msra.mxu0 0.0
  %4634 = vmatprep.subr.mxu0 0.0
  %4635 = vmatpush2.msra.mxu0 0.0
  %4636 = vmatprep.subr.mxu0 0.0
  %4637 = vmatpush2.msra.mxu0 0.0
  %4638 = vmatprep.subr.mxu0 0.0
  %4639 = vmatpush2.msra.mxu0 0.0
  %4640 = vmatprep.subr.mxu0 0.0
  %4641 = vmatpush2.msra.mxu0 0.0
  %4642 = vmatprep.subr.mxu0 0.0
  %4643 = vmatpush2.msra.mxu0 0.0
  %4644 = vmatprep.subr.mxu0 0.0
  %4645 = vmatpush2.msra.mxu0 0.0
  %4646 = vmatprep.mubr.f32.mxu0 0.0
  %4647 = vmatmul.mubr.f32.gmra.mxu0 %v749
  %v4648 = vpop.f32.mrf.mxu0
  %v4649 = vadd.f32 %v392, %v4648
  %v4650 = vpop.f32.mrf.mxu0
  %4651 = vmatprep.mubr.f32.mxu0 0.0
  %4652 = vmatmul.mubr.f32.gmra.mxu0 %v752
  %v4653 = vpop.f32.mrf.mxu0
  %v4654 = vadd.f32 %v392, %v4653
  %v4655 = vpop.f32.mrf.mxu0
  %4656 = vdwg.mxu0
  %v4657 = vmax.f32 %v4649, 0.0
  %v4658 = vmax.f32 %v4654, 0.0
  %4659 = vmatprep.subr.mxu0 0.0
  %4660 = vmatpush1.msra.mxu0 0.0
  %4661 = vmatprep.subr.mxu0 0.0
  %4662 = vmatpush1.msra.mxu0 0.0
  %4663 = vmatprep.subr.mxu0 0.0
  %4664 = vmatpush1.msra.mxu0 0.0
  %4665 = vmatprep.subr.mxu0 0.0
  %4666 = vmatpush1.msra.mxu0 0.0
  %4667 = vmatprep.subr.mxu0 0.0
  %4668 = vmatpush1.msra.mxu0 0.0
  %4669 = vmatprep.subr.mxu0 0.0
  %4670 = vmatpush1.msra.mxu0 0.0
  %4671 = vmatprep.subr.mxu0 0.0
  %4672 = vmatpush1.msra.mxu0 0.0
  %4673 = vmatprep.subr.mxu0 0.0
  %4674 = vmatpush1.msra.mxu0 0.0
  %4675 = vmatprep.subr.mxu0 0.0
  %4676 = vmatpush1.msra.mxu0 0.0
  %4677 = vmatprep.subr.mxu0 0.0
  %4678 = vmatpush1.msra.mxu0 0.0
  %4679 = vmatprep.subr.mxu0 0.0
  %4680 = vmatpush1.msra.mxu0 0.0
  %4681 = vmatprep.subr.mxu0 0.0
  %4682 = vmatpush1.msra.mxu0 0.0
  %4683 = vmatprep.subr.mxu0 0.0
  %4684 = vmatpush1.msra.mxu0 0.0
  %4685 = vmatprep.subr.mxu0 0.0
  %4686 = vmatpush1.msra.mxu0 0.0
  %4687 = vmatprep.subr.mxu0 0.0
  %4688 = vmatpush1.msra.mxu0 %v4658
  %4689 = vmatprep.subr.mxu0 0.0
  %4690 = vmatpush1.msra.mxu0 %v4657
  %4691 = vmatprep.subr.mxu0 0.0
  %4692 = vmatpush2.msra.mxu0 0.0
  %4693 = vmatprep.subr.mxu0 0.0
  %4694 = vmatpush2.msra.mxu0 0.0
  %4695 = vmatprep.subr.mxu0 0.0
  %4696 = vmatpush2.msra.mxu0 0.0
  %4697 = vmatprep.subr.mxu0 0.0
  %4698 = vmatpush2.msra.mxu0 0.0
  %4699 = vmatprep.subr.mxu0 0.0
  %4700 = vmatpush2.msra.mxu0 0.0
  %4701 = vmatprep.subr.mxu0 0.0
  %4702 = vmatpush2.msra.mxu0 0.0
  %4703 = vmatprep.subr.mxu0 0.0
  %4704 = vmatpush2.msra.mxu0 0.0
  %4705 = vmatprep.subr.mxu0 0.0
  %4706 = vmatpush2.msra.mxu0 0.0
  %4707 = vmatprep.subr.mxu0 0.0
  %4708 = vmatpush2.msra.mxu0 0.0
  %4709 = vmatprep.subr.mxu0 0.0
  %4710 = vmatpush2.msra.mxu0 0.0
  %4711 = vmatprep.subr.mxu0 0.0
  %4712 = vmatpush2.msra.mxu0 0.0
  %4713 = vmatprep.subr.mxu0 0.0
  %4714 = vmatpush2.msra.mxu0 0.0
  %4715 = vmatprep.subr.mxu0 0.0
  %4716 = vmatpush2.msra.mxu0 0.0
  %4717 = vmatprep.subr.mxu0 0.0
  %4718 = vmatpush2.msra.mxu0 0.0
  %4719 = vmatprep.subr.mxu0 0.0
  %4720 = vmatpush2.msra.mxu0 0.0
  %4721 = vmatprep.subr.mxu0 0.0
  %4722 = vmatpush2.msra.mxu0 0.0
  %4723 = vmatprep.mubr.f32.mxu0 0.0
  %4724 = vmatmul.mubr.f32.gmra.mxu0 %v832
  %v4725 = vpop.f32.mrf.mxu0
  %v4726 = vadd.f32 0.0, %v4725
  %v4727 = vpop.f32.mrf.mxu0
  %4728 = vdwg.mxu0
  %4730 = vrot.lane.b32.xlu0 %v4581, 80
  %v4731 = vpop.permute.xlu0 %4730
  %v4732 = vsel %vm261, %v4731, 0
  %4734 = vmatprep.subr.mxu0 0.0
  %4735 = vmatpush1.msra.mxu0 0.0
  %4736 = vmatprep.subr.mxu0 0.0
  %4737 = vmatpush1.msra.mxu0 0.0
  %4738 = vmatprep.subr.mxu0 0.0
  %4739 = vmatpush1.msra.mxu0 0.0
  %4740 = vmatprep.subr.mxu0 0.0
  %4741 = vmatpush1.msra.mxu0 0.0
  %4742 = vmatprep.subr.mxu0 0.0
  %4743 = vmatpush1.msra.mxu0 0.0
  %4744 = vmatprep.subr.mxu0 0.0
  %4745 = vmatpush1.msra.mxu0 0.0
  %4746 = vmatprep.subr.mxu0 0.0
  %4747 = vmatpush1.msra.mxu0 0.0
  %4748 = vmatprep.subr.mxu0 0.0
  %4749 = vmatpush1.msra.mxu0 0.0
  %4750 = vmatprep.subr.mxu0 0.0
  %4751 = vmatpush1.msra.mxu0 0.0
  %4752 = vmatprep.subr.mxu0 0.0
  %4753 = vmatpush1.msra.mxu0 0.0
  %4754 = vmatprep.subr.mxu0 0.0
  %4755 = vmatpush1.msra.mxu0 0.0
  %4756 = vmatprep.subr.mxu0 0.0
  %4757 = vmatpush1.msra.mxu0 0.0
  %4758 = vmatprep.subr.mxu0 0.0
  %4759 = vmatpush1.msra.mxu0 0.0
  %4760 = vmatprep.subr.mxu0 0.0
  %4761 = vmatpush1.msra.mxu0 0.0
  %4762 = vmatprep.subr.mxu0 0.0
  %4763 = vmatpush1.msra.mxu0 %v397
  %4764 = vmatprep.subr.mxu0 0.0
  %4765 = vmatpush1.msra.mxu0 %v396
  %4766 = vmatprep.subr.mxu0 0.0
  %4767 = vmatpush2.msra.mxu0 0.0
  %4768 = vmatprep.subr.mxu0 0.0
  %4769 = vmatpush2.msra.mxu0 0.0
  %4770 = vmatprep.subr.mxu0 0.0
  %4771 = vmatpush2.msra.mxu0 0.0
  %4772 = vmatprep.subr.mxu0 0.0
  %4773 = vmatpush2.msra.mxu0 0.0
  %4774 = vmatprep.subr.mxu0 0.0
  %4775 = vmatpush2.msra.mxu0 0.0
  %4776 = vmatprep.subr.mxu0 0.0
  %4777 = vmatpush2.msra.mxu0 0.0
  %4778 = vmatprep.subr.mxu0 0.0
  %4779 = vmatpush2.msra.mxu0 0.0
  %4780 = vmatprep.subr.mxu0 0.0
  %4781 = vmatpush2.msra.mxu0 0.0
  %4782 = vmatprep.subr.mxu0 0.0
  %4783 = vmatpush2.msra.mxu0 0.0
  %4784 = vmatprep.subr.mxu0 0.0
  %4785 = vmatpush2.msra.mxu0 0.0
  %4786 = vmatprep.subr.mxu0 0.0
  %4787 = vmatpush2.msra.mxu0 0.0
  %4788 = vmatprep.subr.mxu0 0.0
  %4789 = vmatpush2.msra.mxu0 0.0
  %4790 = vmatprep.subr.mxu0 0.0
  %4791 = vmatpush2.msra.mxu0 0.0
  %4792 = vmatprep.subr.mxu0 0.0
  %4793 = vmatpush2.msra.mxu0 0.0
  %4794 = vmatprep.subr.mxu0 0.0
  %4795 = vmatpush2.msra.mxu0 0.0
  %4796 = vmatprep.subr.mxu0 0.0
  %4797 = vmatpush2.msra.mxu0 0.0
  %4798 = vmatprep.mubr.f32.mxu0 0.0
  %4799 = vmatmul.mubr.f32.gmra.mxu0 %v4732
  %v4800 = vpop.f32.mrf.mxu0
  %v4801 = vadd.f32 0.0, %v4800
  %v4802 = vpop.f32.mrf.mxu0
  %4803 = vdwg.mxu0
  %v4805 = vsel %vm261, %v4726, 0
  %4807 = vmatprep.subr.mxu0 0.0
  %4808 = vmatpush1.msra.mxu0 0.0
  %4809 = vmatprep.subr.mxu0 0.0
  %4810 = vmatpush1.msra.mxu0 0.0
  %4811 = vmatprep.subr.mxu0 0.0
  %4812 = vmatpush1.msra.mxu0 0.0
  %4813 = vmatprep.subr.mxu0 0.0
  %4814 = vmatpush1.msra.mxu0 0.0
  %4815 = vmatprep.subr.mxu0 0.0
  %4816 = vmatpush1.msra.mxu0 0.0
  %4817 = vmatprep.subr.mxu0 0.0
  %4818 = vmatpush1.msra.mxu0 0.0
  %4819 = vmatprep.subr.mxu0 0.0
  %4820 = vmatpush1.msra.mxu0 0.0
  %4821 = vmatprep.subr.mxu0 0.0
  %4822 = vmatpush1.msra.mxu0 0.0
  %4823 = vmatprep.subr.mxu0 0.0
  %4824 = vmatpush1.msra.mxu0 0.0
  %4825 = vmatprep.subr.mxu0 0.0
  %4826 = vmatpush1.msra.mxu0 0.0
  %4827 = vmatprep.subr.mxu0 0.0
  %4828 = vmatpush1.msra.mxu0 0.0
  %4829 = vmatprep.subr.mxu0 0.0
  %4830 = vmatpush1.msra.mxu0 0.0
  %4831 = vmatprep.subr.mxu0 0.0
  %4832 = vmatpush1.msra.mxu0 0.0
  %4833 = vmatprep.subr.mxu0 0.0
  %4834 = vmatpush1.msra.mxu0 0.0
  %4835 = vmatprep.subr.mxu0 0.0
  %4836 = vmatpush1.msra.mxu0 %v395
  %4837 = vmatprep.subr.mxu0 0.0
  %4838 = vmatpush1.msra.mxu0 %v394
  %4839 = vmatprep.subr.mxu0 0.0
  %4840 = vmatpush2.msra.mxu0 0.0
  %4841 = vmatprep.subr.mxu0 0.0
  %4842 = vmatpush2.msra.mxu0 0.0
  %4843 = vmatprep.subr.mxu0 0.0
  %4844 = vmatpush2.msra.mxu0 0.0
  %4845 = vmatprep.subr.mxu0 0.0
  %4846 = vmatpush2.msra.mxu0 0.0
  %4847 = vmatprep.subr.mxu0 0.0
  %4848 = vmatpush2.msra.mxu0 0.0
  %4849 = vmatprep.subr.mxu0 0.0
  %4850 = vmatpush2.msra.mxu0 0.0
  %4851 = vmatprep.subr.mxu0 0.0
  %4852 = vmatpush2.msra.mxu0 0.0
  %4853 = vmatprep.subr.mxu0 0.0
  %4854 = vmatpush2.msra.mxu0 0.0
  %4855 = vmatprep.subr.mxu0 0.0
  %4856 = vmatpush2.msra.mxu0 0.0
  %4857 = vmatprep.subr.mxu0 0.0
  %4858 = vmatpush2.msra.mxu0 0.0
  %4859 = vmatprep.subr.mxu0 0.0
  %4860 = vmatpush2.msra.mxu0 0.0
  %4861 = vmatprep.subr.mxu0 0.0
  %4862 = vmatpush2.msra.mxu0 0.0
  %4863 = vmatprep.subr.mxu0 0.0
  %4864 = vmatpush2.msra.mxu0 0.0
  %4865 = vmatprep.subr.mxu0 0.0
  %4866 = vmatpush2.msra.mxu0 0.0
  %4867 = vmatprep.subr.mxu0 0.0
  %4868 = vmatpush2.msra.mxu0 0.0
  %4869 = vmatprep.subr.mxu0 0.0
  %4870 = vmatpush2.msra.mxu0 0.0
  %4871 = vmatprep.mubr.f32.mxu0 0.0
  %4872 = vmatmul.mubr.f32.gmra.mxu0 %v4805
  %v4873 = vpop.f32.mrf.mxu0
  %v4874 = vadd.f32 %v4801, %v4873
  %v4875 = vpop.f32.mrf.mxu0
  %4876 = vdwg.mxu0
  %v4877 = vadd.f32 %v4874, %v403
  %v4878 = vmax.f32 %v4877, 0.0
  %4880 = vrot.lane.b32.xlu0 %v4878, 48
  %v4881 = vpop.permute.xlu0 %4880
  %v4883 = vadd.f32 %v4581, %v4881
  %4885 = vrot.lane.b32.xlu0 %v4883, 80
  %v4886 = vpop.permute.xlu0 %4885
  %v4887 = vsel %vm261, %v4886, 0
  %4889 = vmatprep.subr.mxu0 0.0
  %4890 = vmatpush1.msra.mxu0 0.0
  %4891 = vmatprep.subr.mxu0 0.0
  %4892 = vmatpush1.msra.mxu0 0.0
  %4893 = vmatprep.subr.mxu0 0.0
  %4894 = vmatpush1.msra.mxu0 0.0
  %4895 = vmatprep.subr.mxu0 0.0
  %4896 = vmatpush1.msra.mxu0 0.0
  %4897 = vmatprep.subr.mxu0 0.0
  %4898 = vmatpush1.msra.mxu0 0.0
  %4899 = vmatprep.subr.mxu0 0.0
  %4900 = vmatpush1.msra.mxu0 0.0
  %4901 = vmatprep.subr.mxu0 0.0
  %4902 = vmatpush1.msra.mxu0 0.0
  %4903 = vmatprep.subr.mxu0 0.0
  %4904 = vmatpush1.msra.mxu0 0.0
  %4905 = vmatprep.subr.mxu0 0.0
  %4906 = vmatpush1.msra.mxu0 0.0
  %4907 = vmatprep.subr.mxu0 0.0
  %4908 = vmatpush1.msra.mxu0 0.0
  %4909 = vmatprep.subr.mxu0 0.0
  %4910 = vmatpush1.msra.mxu0 0.0
  %4911 = vmatprep.subr.mxu0 0.0
  %4912 = vmatpush1.msra.mxu0 0.0
  %4913 = vmatprep.subr.mxu0 0.0
  %4914 = vmatpush1.msra.mxu0 0.0
  %4915 = vmatprep.subr.mxu0 0.0
  %4916 = vmatpush1.msra.mxu0 0.0
  %4917 = vmatprep.subr.mxu0 0.0
  %4918 = vmatpush1.msra.mxu0 %v406
  %4919 = vmatprep.subr.mxu0 0.0
  %4920 = vmatpush1.msra.mxu0 %v405
  %4921 = vmatprep.subr.mxu0 0.0
  %4922 = vmatpush2.msra.mxu0 0.0
  %4923 = vmatprep.subr.mxu0 0.0
  %4924 = vmatpush2.msra.mxu0 0.0
  %4925 = vmatprep.subr.mxu0 0.0
  %4926 = vmatpush2.msra.mxu0 0.0
  %4927 = vmatprep.subr.mxu0 0.0
  %4928 = vmatpush2.msra.mxu0 0.0
  %4929 = vmatprep.subr.mxu0 0.0
  %4930 = vmatpush2.msra.mxu0 0.0
  %4931 = vmatprep.subr.mxu0 0.0
  %4932 = vmatpush2.msra.mxu0 0.0
  %4933 = vmatprep.subr.mxu0 0.0
  %4934 = vmatpush2.msra.mxu0 0.0
  %4935 = vmatprep.subr.mxu0 0.0
  %4936 = vmatpush2.msra.mxu0 0.0
  %4937 = vmatprep.subr.mxu0 0.0
  %4938 = vmatpush2.msra.mxu0 0.0
  %4939 = vmatprep.subr.mxu0 0.0
  %4940 = vmatpush2.msra.mxu0 0.0
  %4941 = vmatprep.subr.mxu0 0.0
  %4942 = vmatpush2.msra.mxu0 0.0
  %4943 = vmatprep.subr.mxu0 0.0
  %4944 = vmatpush2.msra.mxu0 0.0
  %4945 = vmatprep.subr.mxu0 0.0
  %4946 = vmatpush2.msra.mxu0 0.0
  %4947 = vmatprep.subr.mxu0 0.0
  %4948 = vmatpush2.msra.mxu0 0.0
  %4949 = vmatprep.subr.mxu0 0.0
  %4950 = vmatpush2.msra.mxu0 0.0
  %4951 = vmatprep.subr.mxu0 0.0
  %4952 = vmatpush2.msra.mxu0 0.0
  %4953 = vmatprep.mubr.f32.mxu0 0.0
  %4954 = vmatmul.mubr.f32.gmra.mxu0 %v4887
  %v4955 = vpop.f32.mrf.mxu0
  %v4956 = vadd.f32 %v458, %v4955
  %v4957 = vpop.f32.mrf.mxu0
  %4958 = vdwg.mxu0
  %v4959 = vmax.f32 %v4956, 0.0
  %v4961 = vsel %vm261, %v4959, 0
  %4963 = vmatprep.subr.mxu0 0.0
  %4964 = vmatpush1.msra.mxu0 0.0
  %4965 = vmatprep.subr.mxu0 0.0
  %4966 = vmatpush1.msra.mxu0 0.0
  %4967 = vmatprep.subr.mxu0 0.0
  %4968 = vmatpush1.msra.mxu0 0.0
  %4969 = vmatprep.subr.mxu0 0.0
  %4970 = vmatpush1.msra.mxu0 0.0
  %4971 = vmatprep.subr.mxu0 0.0
  %4972 = vmatpush1.msra.mxu0 0.0
  %4973 = vmatprep.subr.mxu0 0.0
  %4974 = vmatpush1.msra.mxu0 0.0
  %4975 = vmatprep.subr.mxu0 0.0
  %4976 = vmatpush1.msra.mxu0 0.0
  %4977 = vmatprep.subr.mxu0 0.0
  %4978 = vmatpush1.msra.mxu0 0.0
  %4979 = vmatprep.subr.mxu0 0.0
  %4980 = vmatpush1.msra.mxu0 0.0
  %4981 = vmatprep.subr.mxu0 0.0
  %4982 = vmatpush1.msra.mxu0 0.0
  %4983 = vmatprep.subr.mxu0 0.0
  %4984 = vmatpush1.msra.mxu0 0.0
  %4985 = vmatprep.subr.mxu0 0.0
  %4986 = vmatpush1.msra.mxu0 0.0
  %4987 = vmatprep.subr.mxu0 0.0
  %4988 = vmatpush1.msra.mxu0 0.0
  %4989 = vmatprep.subr.mxu0 0.0
  %4990 = vmatpush1.msra.mxu0 0.0
  %4991 = vmatprep.subr.mxu0 0.0
  %4992 = vmatpush1.msra.mxu0 %v411
  %4993 = vmatprep.subr.mxu0 0.0
  %4994 = vmatpush1.msra.mxu0 %v410
  %4995 = vmatprep.subr.mxu0 0.0
  %4996 = vmatpush2.msra.mxu0 0.0
  %4997 = vmatprep.subr.mxu0 0.0
  %4998 = vmatpush2.msra.mxu0 0.0
  %4999 = vmatprep.subr.mxu0 0.0
  %5000 = vmatpush2.msra.mxu0 0.0
  %5001 = vmatprep.subr.mxu0 0.0
  %5002 = vmatpush2.msra.mxu0 0.0
  %5003 = vmatprep.subr.mxu0 0.0
  %5004 = vmatpush2.msra.mxu0 0.0
  %5005 = vmatprep.subr.mxu0 0.0
  %5006 = vmatpush2.msra.mxu0 0.0
  %5007 = vmatprep.subr.mxu0 0.0
  %5008 = vmatpush2.msra.mxu0 0.0
  %5009 = vmatprep.subr.mxu0 0.0
  %5010 = vmatpush2.msra.mxu0 0.0
  %5011 = vmatprep.subr.mxu0 0.0
  %5012 = vmatpush2.msra.mxu0 0.0
  %5013 = vmatprep.subr.mxu0 0.0
  %5014 = vmatpush2.msra.mxu0 0.0
  %5015 = vmatprep.subr.mxu0 0.0
  %5016 = vmatpush2.msra.mxu0 0.0
  %5017 = vmatprep.subr.mxu0 0.0
  %5018 = vmatpush2.msra.mxu0 0.0
  %5019 = vmatprep.subr.mxu0 0.0
  %5020 = vmatpush2.msra.mxu0 0.0
  %5021 = vmatprep.subr.mxu0 0.0
  %5022 = vmatpush2.msra.mxu0 0.0
  %5023 = vmatprep.subr.mxu0 0.0
  %5024 = vmatpush2.msra.mxu0 0.0
  %5025 = vmatprep.subr.mxu0 0.0
  %5026 = vmatpush2.msra.mxu0 0.0
  %5027 = vmatprep.mubr.f32.mxu0 0.0
  %5028 = vmatmul.mubr.f32.gmra.mxu0 %v4961
  %v5029 = vpop.f32.mrf.mxu0
  %v5030 = vadd.f32 %v417, %v5029
  %v5031 = vpop.f32.mrf.mxu0
  %5032 = vdwg.mxu0
  %5033 = vmatprep.subr.mxu0 0.0
  %5034 = vmatpush1.msra.mxu0 0.0
  %5035 = vmatprep.subr.mxu0 0.0
  %5036 = vmatpush1.msra.mxu0 0.0
  %5037 = vmatprep.subr.mxu0 0.0
  %5038 = vmatpush1.msra.mxu0 0.0
  %5039 = vmatprep.subr.mxu0 0.0
  %5040 = vmatpush1.msra.mxu0 0.0
  %5041 = vmatprep.subr.mxu0 0.0
  %5042 = vmatpush1.msra.mxu0 0.0
  %5043 = vmatprep.subr.mxu0 0.0
  %5044 = vmatpush1.msra.mxu0 0.0
  %5045 = vmatprep.subr.mxu0 0.0
  %5046 = vmatpush1.msra.mxu0 0.0
  %5047 = vmatprep.subr.mxu0 0.0
  %5048 = vmatpush1.msra.mxu0 0.0
  %5049 = vmatprep.subr.mxu0 0.0
  %5050 = vmatpush1.msra.mxu0 0.0
  %5051 = vmatprep.subr.mxu0 0.0
  %5052 = vmatpush1.msra.mxu0 0.0
  %5053 = vmatprep.subr.mxu0 0.0
  %5054 = vmatpush1.msra.mxu0 0.0
  %5055 = vmatprep.subr.mxu0 0.0
  %5056 = vmatpush1.msra.mxu0 0.0
  %5057 = vmatprep.subr.mxu0 0.0
  %5058 = vmatpush1.msra.mxu0 0.0
  %5059 = vmatprep.subr.mxu0 0.0
  %5060 = vmatpush1.msra.mxu0 0.0
  %5061 = vmatprep.subr.mxu0 0.0
  %5062 = vmatpush1.msra.mxu0 %v420
  %5063 = vmatprep.subr.mxu0 0.0
  %5064 = vmatpush1.msra.mxu0 %v419
  %5065 = vmatprep.subr.mxu0 0.0
  %5066 = vmatpush2.msra.mxu0 0.0
  %5067 = vmatprep.subr.mxu0 0.0
  %5068 = vmatpush2.msra.mxu0 0.0
  %5069 = vmatprep.subr.mxu0 0.0
  %5070 = vmatpush2.msra.mxu0 0.0
  %5071 = vmatprep.subr.mxu0 0.0
  %5072 = vmatpush2.msra.mxu0 0.0
  %5073 = vmatprep.subr.mxu0 0.0
  %5074 = vmatpush2.msra.mxu0 0.0
  %5075 = vmatprep.subr.mxu0 0.0
  %5076 = vmatpush2.msra.mxu0 0.0
  %5077 = vmatprep.subr.mxu0 0.0
  %5078 = vmatpush2.msra.mxu0 0.0
  %5079 = vmatprep.subr.mxu0 0.0
  %5080 = vmatpush2.msra.mxu0 0.0
  %5081 = vmatprep.subr.mxu0 0.0
  %5082 = vmatpush2.msra.mxu0 0.0
  %5083 = vmatprep.subr.mxu0 0.0
  %5084 = vmatpush2.msra.mxu0 0.0
  %5085 = vmatprep.subr.mxu0 0.0
  %5086 = vmatpush2.msra.mxu0 0.0
  %5087 = vmatprep.subr.mxu0 0.0
  %5088 = vmatpush2.msra.mxu0 0.0
  %5089 = vmatprep.subr.mxu0 0.0
  %5090 = vmatpush2.msra.mxu0 0.0
  %5091 = vmatprep.subr.mxu0 0.0
  %5092 = vmatpush2.msra.mxu0 0.0
  %5093 = vmatprep.subr.mxu0 0.0
  %5094 = vmatpush2.msra.mxu0 0.0
  %5095 = vmatprep.subr.mxu0 0.0
  %5096 = vmatpush2.msra.mxu0 0.0
  %5097 = vmatprep.mubr.f32.mxu0 0.0
  %5098 = vmatmul.mubr.f32.gmra.mxu0 %v4961
  %v5099 = vpop.f32.mrf.mxu0
  %v5100 = vadd.f32 0.0, %v5099
  %v5101 = vpop.f32.mrf.mxu0
  %5102 = vdwg.mxu0
  %v5103 = vadd.f32 %v4339, %v5100
  %v5104 = vadd.f32 %v5103, %v426
  %v5105 = vsel %vm261, %v4878, 0
  %5107 = vmatprep.subr.mxu0 0.0
  %5108 = vmatpush1.msra.mxu0 0.0
  %5109 = vmatprep.subr.mxu0 0.0
  %5110 = vmatpush1.msra.mxu0 0.0
  %5111 = vmatprep.subr.mxu0 0.0
  %5112 = vmatpush1.msra.mxu0 0.0
  %5113 = vmatprep.subr.mxu0 0.0
  %5114 = vmatpush1.msra.mxu0 0.0
  %5115 = vmatprep.subr.mxu0 0.0
  %5116 = vmatpush1.msra.mxu0 0.0
  %5117 = vmatprep.subr.mxu0 0.0
  %5118 = vmatpush1.msra.mxu0 0.0
  %5119 = vmatprep.subr.mxu0 0.0
  %5120 = vmatpush1.msra.mxu0 0.0
  %5121 = vmatprep.subr.mxu0 0.0
  %5122 = vmatpush1.msra.mxu0 0.0
  %5123 = vmatprep.subr.mxu0 0.0
  %5124 = vmatpush1.msra.mxu0 0.0
  %5125 = vmatprep.subr.mxu0 0.0
  %5126 = vmatpush1.msra.mxu0 0.0
  %5127 = vmatprep.subr.mxu0 0.0
  %5128 = vmatpush1.msra.mxu0 0.0
  %5129 = vmatprep.subr.mxu0 0.0
  %5130 = vmatpush1.msra.mxu0 0.0
  %5131 = vmatprep.subr.mxu0 0.0
  %5132 = vmatpush1.msra.mxu0 0.0
  %5133 = vmatprep.subr.mxu0 0.0
  %5134 = vmatpush1.msra.mxu0 0.0
  %5135 = vmatprep.subr.mxu0 0.0
  %5136 = vmatpush1.msra.mxu0 %v366
  %5137 = vmatprep.subr.mxu0 0.0
  %5138 = vmatpush1.msra.mxu0 %v365
  %5139 = vmatprep.subr.mxu0 0.0
  %5140 = vmatpush2.msra.mxu0 0.0
  %5141 = vmatprep.subr.mxu0 0.0
  %5142 = vmatpush2.msra.mxu0 0.0
  %5143 = vmatprep.subr.mxu0 0.0
  %5144 = vmatpush2.msra.mxu0 0.0
  %5145 = vmatprep.subr.mxu0 0.0
  %5146 = vmatpush2.msra.mxu0 0.0
  %5147 = vmatprep.subr.mxu0 0.0
  %5148 = vmatpush2.msra.mxu0 0.0
  %5149 = vmatprep.subr.mxu0 0.0
  %5150 = vmatpush2.msra.mxu0 0.0
  %5151 = vmatprep.subr.mxu0 0.0
  %5152 = vmatpush2.msra.mxu0 0.0
  %5153 = vmatprep.subr.mxu0 0.0
  %5154 = vmatpush2.msra.mxu0 0.0
  %5155 = vmatprep.subr.mxu0 0.0
  %5156 = vmatpush2.msra.mxu0 0.0
  %5157 = vmatprep.subr.mxu0 0.0
  %5158 = vmatpush2.msra.mxu0 0.0
  %5159 = vmatprep.subr.mxu0 0.0
  %5160 = vmatpush2.msra.mxu0 0.0
  %5161 = vmatprep.subr.mxu0 0.0
  %5162 = vmatpush2.msra.mxu0 0.0
  %5163 = vmatprep.subr.mxu0 0.0
  %5164 = vmatpush2.msra.mxu0 0.0
  %5165 = vmatprep.subr.mxu0 0.0
  %5166 = vmatpush2.msra.mxu0 0.0
  %5167 = vmatprep.subr.mxu0 0.0
  %5168 = vmatpush2.msra.mxu0 0.0
  %5169 = vmatprep.subr.mxu0 0.0
  %5170 = vmatpush2.msra.mxu0 0.0
  %5171 = vmatprep.mubr.f32.mxu0 0.0
  %5172 = vmatmul.mubr.f32.gmra.mxu0 %v5105
  %v5173 = vpop.f32.mrf.mxu0
  %v5174 = vadd.f32 %v5030, %v5173
  %v5175 = vpop.f32.mrf.mxu0
  %5176 = vdwg.mxu0
  %v5177 = vadd.f32 %v5174, %v373
  %v5178 = vmax.f32 %v5177, 0.0
  %5179 = vmatprep.subr.mxu0 0.0
  %5180 = vmatpush1.msra.mxu0 0.0
  %5181 = vmatprep.subr.mxu0 0.0
  %5182 = vmatpush1.msra.mxu0 0.0
  %5183 = vmatprep.subr.mxu0 0.0
  %5184 = vmatpush1.msra.mxu0 0.0
  %5185 = vmatprep.subr.mxu0 0.0
  %5186 = vmatpush1.msra.mxu0 0.0
  %5187 = vmatprep.subr.mxu0 0.0
  %5188 = vmatpush1.msra.mxu0 0.0
  %5189 = vmatprep.subr.mxu0 0.0
  %5190 = vmatpush1.msra.mxu0 0.0
  %5191 = vmatprep.subr.mxu0 0.0
  %5192 = vmatpush1.msra.mxu0 0.0
  %5193 = vmatprep.subr.mxu0 0.0
  %5194 = vmatpush1.msra.mxu0 0.0
  %5195 = vmatprep.subr.mxu0 0.0
  %5196 = vmatpush1.msra.mxu0 0.0
  %5197 = vmatprep.subr.mxu0 0.0
  %5198 = vmatpush1.msra.mxu0 0.0
  %5199 = vmatprep.subr.mxu0 0.0
  %5200 = vmatpush1.msra.mxu0 0.0
  %5201 = vmatprep.subr.mxu0 0.0
  %5202 = vmatpush1.msra.mxu0 0.0
  %5203 = vmatprep.subr.mxu0 0.0
  %5204 = vmatpush1.msra.mxu0 0.0
  %5205 = vmatprep.subr.mxu0 0.0
  %5206 = vmatpush1.msra.mxu0 0.0
  %5207 = vmatprep.subr.mxu0 0.0
  %5208 = vmatpush1.msra.mxu0 %v378
  %5209 = vmatprep.subr.mxu0 0.0
  %5210 = vmatpush1.msra.mxu0 %v377
  %5211 = vmatprep.subr.mxu0 0.0
  %5212 = vmatpush2.msra.mxu0 0.0
  %5213 = vmatprep.subr.mxu0 0.0
  %5214 = vmatpush2.msra.mxu0 0.0
  %5215 = vmatprep.subr.mxu0 0.0
  %5216 = vmatpush2.msra.mxu0 0.0
  %5217 = vmatprep.subr.mxu0 0.0
  %5218 = vmatpush2.msra.mxu0 0.0
  %5219 = vmatprep.subr.mxu0 0.0
  %5220 = vmatpush2.msra.mxu0 0.0
  %5221 = vmatprep.subr.mxu0 0.0
  %5222 = vmatpush2.msra.mxu0 0.0
  %5223 = vmatprep.subr.mxu0 0.0
  %5224 = vmatpush2.msra.mxu0 0.0
  %5225 = vmatprep.subr.mxu0 0.0
  %5226 = vmatpush2.msra.mxu0 0.0
  %5227 = vmatprep.subr.mxu0 0.0
  %5228 = vmatpush2.msra.mxu0 0.0
  %5229 = vmatprep.subr.mxu0 0.0
  %5230 = vmatpush2.msra.mxu0 0.0
  %5231 = vmatprep.subr.mxu0 0.0
  %5232 = vmatpush2.msra.mxu0 0.0
  %5233 = vmatprep.subr.mxu0 0.0
  %5234 = vmatpush2.msra.mxu0 0.0
  %5235 = vmatprep.subr.mxu0 0.0
  %5236 = vmatpush2.msra.mxu0 0.0
  %5237 = vmatprep.subr.mxu0 0.0
  %5238 = vmatpush2.msra.mxu0 0.0
  %5239 = vmatprep.subr.mxu0 0.0
  %5240 = vmatpush2.msra.mxu0 0.0
  %5241 = vmatprep.subr.mxu0 0.0
  %5242 = vmatpush2.msra.mxu0 0.0
  %5243 = vmatprep.mubr.f32.mxu0 0.0
  %5244 = vmatmul.mubr.f32.gmra.mxu0 %v4732
  %v5245 = vpop.f32.mrf.mxu0
  %v5246 = vadd.f32 0.0, %v5245
  %v5247 = vpop.f32.mrf.mxu0
  %5248 = vdwg.mxu0
  %v5250 = vsel %vm261, %v5178, 0
  %5252 = vmatprep.subr.mxu0 0.0
  %5253 = vmatpush1.msra.mxu0 0.0
  %5254 = vmatprep.subr.mxu0 0.0
  %5255 = vmatpush1.msra.mxu0 0.0
  %5256 = vmatprep.subr.mxu0 0.0
  %5257 = vmatpush1.msra.mxu0 0.0
  %5258 = vmatprep.subr.mxu0 0.0
  %5259 = vmatpush1.msra.mxu0 0.0
  %5260 = vmatprep.subr.mxu0 0.0
  %5261 = vmatpush1.msra.mxu0 0.0
  %5262 = vmatprep.subr.mxu0 0.0
  %5263 = vmatpush1.msra.mxu0 0.0
  %5264 = vmatprep.subr.mxu0 0.0
  %5265 = vmatpush1.msra.mxu0 0.0
  %5266 = vmatprep.subr.mxu0 0.0
  %5267 = vmatpush1.msra.mxu0 0.0
  %5268 = vmatprep.subr.mxu0 0.0
  %5269 = vmatpush1.msra.mxu0 0.0
  %5270 = vmatprep.subr.mxu0 0.0
  %5271 = vmatpush1.msra.mxu0 0.0
  %5272 = vmatprep.subr.mxu0 0.0
  %5273 = vmatpush1.msra.mxu0 0.0
  %5274 = vmatprep.subr.mxu0 0.0
  %5275 = vmatpush1.msra.mxu0 0.0
  %5276 = vmatprep.subr.mxu0 0.0
  %5277 = vmatpush1.msra.mxu0 0.0
  %5278 = vmatprep.subr.mxu0 0.0
  %5279 = vmatpush1.msra.mxu0 0.0
  %5280 = vmatprep.subr.mxu0 0.0
  %5281 = vmatpush1.msra.mxu0 %v376
  %5282 = vmatprep.subr.mxu0 0.0
  %5283 = vmatpush1.msra.mxu0 %v375
  %5284 = vmatprep.subr.mxu0 0.0
  %5285 = vmatpush2.msra.mxu0 0.0
  %5286 = vmatprep.subr.mxu0 0.0
  %5287 = vmatpush2.msra.mxu0 0.0
  %5288 = vmatprep.subr.mxu0 0.0
  %5289 = vmatpush2.msra.mxu0 0.0
  %5290 = vmatprep.subr.mxu0 0.0
  %5291 = vmatpush2.msra.mxu0 0.0
  %5292 = vmatprep.subr.mxu0 0.0
  %5293 = vmatpush2.msra.mxu0 0.0
  %5294 = vmatprep.subr.mxu0 0.0
  %5295 = vmatpush2.msra.mxu0 0.0
  %5296 = vmatprep.subr.mxu0 0.0
  %5297 = vmatpush2.msra.mxu0 0.0
  %5298 = vmatprep.subr.mxu0 0.0
  %5299 = vmatpush2.msra.mxu0 0.0
  %5300 = vmatprep.subr.mxu0 0.0
  %5301 = vmatpush2.msra.mxu0 0.0
  %5302 = vmatprep.subr.mxu0 0.0
  %5303 = vmatpush2.msra.mxu0 0.0
  %5304 = vmatprep.subr.mxu0 0.0
  %5305 = vmatpush2.msra.mxu0 0.0
  %5306 = vmatprep.subr.mxu0 0.0
  %5307 = vmatpush2.msra.mxu0 0.0
  %5308 = vmatprep.subr.mxu0 0.0
  %5309 = vmatpush2.msra.mxu0 0.0
  %5310 = vmatprep.subr.mxu0 0.0
  %5311 = vmatpush2.msra.mxu0 0.0
  %5312 = vmatprep.subr.mxu0 0.0
  %5313 = vmatpush2.msra.mxu0 0.0
  %5314 = vmatprep.subr.mxu0 0.0
  %5315 = vmatpush2.msra.mxu0 0.0
  %5316 = vmatprep.mubr.f32.mxu0 0.0
  %5317 = vmatmul.mubr.f32.gmra.mxu0 %v5250
  %v5318 = vpop.f32.mrf.mxu0
  %v5319 = vadd.f32 %v5246, %v5318
  %v5320 = vpop.f32.mrf.mxu0
  %5321 = vdwg.mxu0
  %v5322 = vadd.f32 %v5319, %v384
  %v5323 = vxor.u32 %v5322, 2147483648
  %v5324 = vmul.f32 %v5323, 1.442695
  %v5325 = vpow.pop %v5324
  %v5326 = vadd.f32 %v5325, 1.0
  %v5327 = vrcp.pop %v5326
  %v5328 = vmul.f32 1.0, %v5327
  %v5329 = vtanh.pop %v5322
  %v5330 = vmul.f32 %v5328, %v4575
  %5332 = vrot.lane.b32.xlu0 %v5329, 96
  %v5333 = vpop.permute.xlu0 %5332
  %v5335 = vmul.f32 %v5328, %v5333
  %5337 = vrot.lane.b32.xlu0 %v5335, 16
  %v5338 = vpop.permute.xlu0 %5337
  %v5340 = vadd.f32 %v5330, %v5338
  %v5341 = vtanh.pop %v5340
  %5343 = vrot.lane.b32.xlu0 %v5341, 32
  %v5344 = vpop.permute.xlu0 %5343
  %v5346 = vmul.f32 %v5328, %v5344
  %5347 = vmatprep.subr.mxu0 0.0
  %5348 = vmatpush1.msra.mxu0 0.0
  %5349 = vmatprep.subr.mxu0 0.0
  %5350 = vmatpush1.msra.mxu0 0.0
  %5351 = vmatprep.subr.mxu0 0.0
  %5352 = vmatpush1.msra.mxu0 0.0
  %5353 = vmatprep.subr.mxu0 0.0
  %5354 = vmatpush1.msra.mxu0 0.0
  %5355 = vmatprep.subr.mxu0 0.0
  %5356 = vmatpush1.msra.mxu0 0.0
  %5357 = vmatprep.subr.mxu0 0.0
  %5358 = vmatpush1.msra.mxu0 0.0
  %5359 = vmatprep.subr.mxu0 0.0
  %5360 = vmatpush1.msra.mxu0 0.0
  %5361 = vmatprep.subr.mxu0 0.0
  %5362 = vmatpush1.msra.mxu0 0.0
  %5363 = vmatprep.subr.mxu0 0.0
  %5364 = vmatpush1.msra.mxu0 0.0
  %5365 = vmatprep.subr.mxu0 0.0
  %5366 = vmatpush1.msra.mxu0 0.0
  %5367 = vmatprep.subr.mxu0 0.0
  %5368 = vmatpush1.msra.mxu0 0.0
  %5369 = vmatprep.subr.mxu0 0.0
  %5370 = vmatpush1.msra.mxu0 0.0
  %5371 = vmatprep.subr.mxu0 0.0
  %5372 = vmatpush1.msra.mxu0 0.0
  %5373 = vmatprep.subr.mxu0 0.0
  %5374 = vmatpush1.msra.mxu0 0.0
  %5375 = vmatprep.subr.mxu0 0.0
  %5376 = vmatpush1.msra.mxu0 0.0
  %5377 = vmatprep.subr.mxu0 0.0
  %5378 = vmatpush1.msra.mxu0 %v5104
  %5379 = vmatprep.subr.mxu0 0.0
  %5380 = vmatpush2.msra.mxu0 0.0
  %5381 = vmatprep.subr.mxu0 0.0
  %5382 = vmatpush2.msra.mxu0 0.0
  %5383 = vmatprep.subr.mxu0 0.0
  %5384 = vmatpush2.msra.mxu0 0.0
  %5385 = vmatprep.subr.mxu0 0.0
  %5386 = vmatpush2.msra.mxu0 0.0
  %5387 = vmatprep.subr.mxu0 0.0
  %5388 = vmatpush2.msra.mxu0 0.0
  %5389 = vmatprep.subr.mxu0 0.0
  %5390 = vmatpush2.msra.mxu0 0.0
  %5391 = vmatprep.subr.mxu0 0.0
  %5392 = vmatpush2.msra.mxu0 0.0
  %5393 = vmatprep.subr.mxu0 0.0
  %5394 = vmatpush2.msra.mxu0 0.0
  %5395 = vmatprep.subr.mxu0 0.0
  %5396 = vmatpush2.msra.mxu0 0.0
  %5397 = vmatprep.subr.mxu0 0.0
  %5398 = vmatpush2.msra.mxu0 0.0
  %5399 = vmatprep.subr.mxu0 0.0
  %5400 = vmatpush2.msra.mxu0 0.0
  %5401 = vmatprep.subr.mxu0 0.0
  %5402 = vmatpush2.msra.mxu0 0.0
  %5403 = vmatprep.subr.mxu0 0.0
  %5404 = vmatpush2.msra.mxu0 0.0
  %5405 = vmatprep.subr.mxu0 0.0
  %5406 = vmatpush2.msra.mxu0 0.0
  %5407 = vmatprep.subr.mxu0 0.0
  %5408 = vmatpush2.msra.mxu0 0.0
  %5409 = vmatprep.subr.mxu0 0.0
  %5410 = vmatpush2.msra.mxu0 0.0
  %5411 = vmatprep.mubr.f32.mxu0 0.0
  %5412 = vmatmul.mubr.f32.gmra.mxu0 %v749
  %v5413 = vpop.f32.mrf.mxu0
  %v5414 = vadd.f32 %v392, %v5413
  %v5415 = vpop.f32.mrf.mxu0
  %5416 = vmatprep.mubr.f32.mxu0 0.0
  %5417 = vmatmul.mubr.f32.gmra.mxu0 %v752
  %v5418 = vpop.f32.mrf.mxu0
  %v5419 = vadd.f32 %v392, %v5418
  %v5420 = vpop.f32.mrf.mxu0
  %5421 = vdwg.mxu0
  %v5422 = vmax.f32 %v5414, 0.0
  %v5423 = vmax.f32 %v5419, 0.0
  %5424 = vmatprep.subr.mxu0 0.0
  %5425 = vmatpush1.msra.mxu0 0.0
  %5426 = vmatprep.subr.mxu0 0.0
  %5427 = vmatpush1.msra.mxu0 0.0
  %5428 = vmatprep.subr.mxu0 0.0
  %5429 = vmatpush1.msra.mxu0 0.0
  %5430 = vmatprep.subr.mxu0 0.0
  %5431 = vmatpush1.msra.mxu0 0.0
  %5432 = vmatprep.subr.mxu0 0.0
  %5433 = vmatpush1.msra.mxu0 0.0
  %5434 = vmatprep.subr.mxu0 0.0
  %5435 = vmatpush1.msra.mxu0 0.0
  %5436 = vmatprep.subr.mxu0 0.0
  %5437 = vmatpush1.msra.mxu0 0.0
  %5438 = vmatprep.subr.mxu0 0.0
  %5439 = vmatpush1.msra.mxu0 0.0
  %5440 = vmatprep.subr.mxu0 0.0
  %5441 = vmatpush1.msra.mxu0 0.0
  %5442 = vmatprep.subr.mxu0 0.0
  %5443 = vmatpush1.msra.mxu0 0.0
  %5444 = vmatprep.subr.mxu0 0.0
  %5445 = vmatpush1.msra.mxu0 0.0
  %5446 = vmatprep.subr.mxu0 0.0
  %5447 = vmatpush1.msra.mxu0 0.0
  %5448 = vmatprep.subr.mxu0 0.0
  %5449 = vmatpush1.msra.mxu0 0.0
  %5450 = vmatprep.subr.mxu0 0.0
  %5451 = vmatpush1.msra.mxu0 0.0
  %5452 = vmatprep.subr.mxu0 0.0
  %5453 = vmatpush1.msra.mxu0 %v5423
  %5454 = vmatprep.subr.mxu0 0.0
  %5455 = vmatpush1.msra.mxu0 %v5422
  %5456 = vmatprep.subr.mxu0 0.0
  %5457 = vmatpush2.msra.mxu0 0.0
  %5458 = vmatprep.subr.mxu0 0.0
  %5459 = vmatpush2.msra.mxu0 0.0
  %5460 = vmatprep.subr.mxu0 0.0
  %5461 = vmatpush2.msra.mxu0 0.0
  %5462 = vmatprep.subr.mxu0 0.0
  %5463 = vmatpush2.msra.mxu0 0.0
  %5464 = vmatprep.subr.mxu0 0.0
  %5465 = vmatpush2.msra.mxu0 0.0
  %5466 = vmatprep.subr.mxu0 0.0
  %5467 = vmatpush2.msra.mxu0 0.0
  %5468 = vmatprep.subr.mxu0 0.0
  %5469 = vmatpush2.msra.mxu0 0.0
  %5470 = vmatprep.subr.mxu0 0.0
  %5471 = vmatpush2.msra.mxu0 0.0
  %5472 = vmatprep.subr.mxu0 0.0
  %5473 = vmatpush2.msra.mxu0 0.0
  %5474 = vmatprep.subr.mxu0 0.0
  %5475 = vmatpush2.msra.mxu0 0.0
  %5476 = vmatprep.subr.mxu0 0.0
  %5477 = vmatpush2.msra.mxu0 0.0
  %5478 = vmatprep.subr.mxu0 0.0
  %5479 = vmatpush2.msra.mxu0 0.0
  %5480 = vmatprep.subr.mxu0 0.0
  %5481 = vmatpush2.msra.mxu0 0.0
  %5482 = vmatprep.subr.mxu0 0.0
  %5483 = vmatpush2.msra.mxu0 0.0
  %5484 = vmatprep.subr.mxu0 0.0
  %5485 = vmatpush2.msra.mxu0 0.0
  %5486 = vmatprep.subr.mxu0 0.0
  %5487 = vmatpush2.msra.mxu0 0.0
  %5488 = vmatprep.mubr.f32.mxu0 0.0
  %5489 = vmatmul.mubr.f32.gmra.mxu0 %v832
  %v5490 = vpop.f32.mrf.mxu0
  %v5491 = vadd.f32 0.0, %v5490
  %v5492 = vpop.f32.mrf.mxu0
  %5493 = vdwg.mxu0
  %5495 = vrot.lane.b32.xlu0 %v5346, 80
  %v5496 = vpop.permute.xlu0 %5495
  %v5497 = vsel %vm261, %v5496, 0
  %5499 = vmatprep.subr.mxu0 0.0
  %5500 = vmatpush1.msra.mxu0 0.0
  %5501 = vmatprep.subr.mxu0 0.0
  %5502 = vmatpush1.msra.mxu0 0.0
  %5503 = vmatprep.subr.mxu0 0.0
  %5504 = vmatpush1.msra.mxu0 0.0
  %5505 = vmatprep.subr.mxu0 0.0
  %5506 = vmatpush1.msra.mxu0 0.0
  %5507 = vmatprep.subr.mxu0 0.0
  %5508 = vmatpush1.msra.mxu0 0.0
  %5509 = vmatprep.subr.mxu0 0.0
  %5510 = vmatpush1.msra.mxu0 0.0
  %5511 = vmatprep.subr.mxu0 0.0
  %5512 = vmatpush1.msra.mxu0 0.0
  %5513 = vmatprep.subr.mxu0 0.0
  %5514 = vmatpush1.msra.mxu0 0.0
  %5515 = vmatprep.subr.mxu0 0.0
  %5516 = vmatpush1.msra.mxu0 0.0
  %5517 = vmatprep.subr.mxu0 0.0
  %5518 = vmatpush1.msra.mxu0 0.0
  %5519 = vmatprep.subr.mxu0 0.0
  %5520 = vmatpush1.msra.mxu0 0.0
  %5521 = vmatprep.subr.mxu0 0.0
  %5522 = vmatpush1.msra.mxu0 0.0
  %5523 = vmatprep.subr.mxu0 0.0
  %5524 = vmatpush1.msra.mxu0 0.0
  %5525 = vmatprep.subr.mxu0 0.0
  %5526 = vmatpush1.msra.mxu0 0.0
  %5527 = vmatprep.subr.mxu0 0.0
  %5528 = vmatpush1.msra.mxu0 %v397
  %5529 = vmatprep.subr.mxu0 0.0
  %5530 = vmatpush1.msra.mxu0 %v396
  %5531 = vmatprep.subr.mxu0 0.0
  %5532 = vmatpush2.msra.mxu0 0.0
  %5533 = vmatprep.subr.mxu0 0.0
  %5534 = vmatpush2.msra.mxu0 0.0
  %5535 = vmatprep.subr.mxu0 0.0
  %5536 = vmatpush2.msra.mxu0 0.0
  %5537 = vmatprep.subr.mxu0 0.0
  %5538 = vmatpush2.msra.mxu0 0.0
  %5539 = vmatprep.subr.mxu0 0.0
  %5540 = vmatpush2.msra.mxu0 0.0
  %5541 = vmatprep.subr.mxu0 0.0
  %5542 = vmatpush2.msra.mxu0 0.0
  %5543 = vmatprep.subr.mxu0 0.0
  %5544 = vmatpush2.msra.mxu0 0.0
  %5545 = vmatprep.subr.mxu0 0.0
  %5546 = vmatpush2.msra.mxu0 0.0
  %5547 = vmatprep.subr.mxu0 0.0
  %5548 = vmatpush2.msra.mxu0 0.0
  %5549 = vmatprep.subr.mxu0 0.0
  %5550 = vmatpush2.msra.mxu0 0.0
  %5551 = vmatprep.subr.mxu0 0.0
  %5552 = vmatpush2.msra.mxu0 0.0
  %5553 = vmatprep.subr.mxu0 0.0
  %5554 = vmatpush2.msra.mxu0 0.0
  %5555 = vmatprep.subr.mxu0 0.0
  %5556 = vmatpush2.msra.mxu0 0.0
  %5557 = vmatprep.subr.mxu0 0.0
  %5558 = vmatpush2.msra.mxu0 0.0
  %5559 = vmatprep.subr.mxu0 0.0
  %5560 = vmatpush2.msra.mxu0 0.0
  %5561 = vmatprep.subr.mxu0 0.0
  %5562 = vmatpush2.msra.mxu0 0.0
  %5563 = vmatprep.mubr.f32.mxu0 0.0
  %5564 = vmatmul.mubr.f32.gmra.mxu0 %v5497
  %v5565 = vpop.f32.mrf.mxu0
  %v5566 = vadd.f32 0.0, %v5565
  %v5567 = vpop.f32.mrf.mxu0
  %5568 = vdwg.mxu0
  %v5570 = vsel %vm261, %v5491, 0
  %5572 = vmatprep.subr.mxu0 0.0
  %5573 = vmatpush1.msra.mxu0 0.0
  %5574 = vmatprep.subr.mxu0 0.0
  %5575 = vmatpush1.msra.mxu0 0.0
  %5576 = vmatprep.subr.mxu0 0.0
  %5577 = vmatpush1.msra.mxu0 0.0
  %5578 = vmatprep.subr.mxu0 0.0
  %5579 = vmatpush1.msra.mxu0 0.0
  %5580 = vmatprep.subr.mxu0 0.0
  %5581 = vmatpush1.msra.mxu0 0.0
  %5582 = vmatprep.subr.mxu0 0.0
  %5583 = vmatpush1.msra.mxu0 0.0
  %5584 = vmatprep.subr.mxu0 0.0
  %5585 = vmatpush1.msra.mxu0 0.0
  %5586 = vmatprep.subr.mxu0 0.0
  %5587 = vmatpush1.msra.mxu0 0.0
  %5588 = vmatprep.subr.mxu0 0.0
  %5589 = vmatpush1.msra.mxu0 0.0
  %5590 = vmatprep.subr.mxu0 0.0
  %5591 = vmatpush1.msra.mxu0 0.0
  %5592 = vmatprep.subr.mxu0 0.0
  %5593 = vmatpush1.msra.mxu0 0.0
  %5594 = vmatprep.subr.mxu0 0.0
  %5595 = vmatpush1.msra.mxu0 0.0
  %5596 = vmatprep.subr.mxu0 0.0
  %5597 = vmatpush1.msra.mxu0 0.0
  %5598 = vmatprep.subr.mxu0 0.0
  %5599 = vmatpush1.msra.mxu0 0.0
  %5600 = vmatprep.subr.mxu0 0.0
  %5601 = vmatpush1.msra.mxu0 %v395
  %5602 = vmatprep.subr.mxu0 0.0
  %5603 = vmatpush1.msra.mxu0 %v394
  %5604 = vmatprep.subr.mxu0 0.0
  %5605 = vmatpush2.msra.mxu0 0.0
  %5606 = vmatprep.subr.mxu0 0.0
  %5607 = vmatpush2.msra.mxu0 0.0
  %5608 = vmatprep.subr.mxu0 0.0
  %5609 = vmatpush2.msra.mxu0 0.0
  %5610 = vmatprep.subr.mxu0 0.0
  %5611 = vmatpush2.msra.mxu0 0.0
  %5612 = vmatprep.subr.mxu0 0.0
  %5613 = vmatpush2.msra.mxu0 0.0
  %5614 = vmatprep.subr.mxu0 0.0
  %5615 = vmatpush2.msra.mxu0 0.0
  %5616 = vmatprep.subr.mxu0 0.0
  %5617 = vmatpush2.msra.mxu0 0.0
  %5618 = vmatprep.subr.mxu0 0.0
  %5619 = vmatpush2.msra.mxu0 0.0
  %5620 = vmatprep.subr.mxu0 0.0
  %5621 = vmatpush2.msra.mxu0 0.0
  %5622 = vmatprep.subr.mxu0 0.0
  %5623 = vmatpush2.msra.mxu0 0.0
  %5624 = vmatprep.subr.mxu0 0.0
  %5625 = vmatpush2.msra.mxu0 0.0
  %5626 = vmatprep.subr.mxu0 0.0
  %5627 = vmatpush2.msra.mxu0 0.0
  %5628 = vmatprep.subr.mxu0 0.0
  %5629 = vmatpush2.msra.mxu0 0.0
  %5630 = vmatprep.subr.mxu0 0.0
  %5631 = vmatpush2.msra.mxu0 0.0
  %5632 = vmatprep.subr.mxu0 0.0
  %5633 = vmatpush2.msra.mxu0 0.0
  %5634 = vmatprep.subr.mxu0 0.0
  %5635 = vmatpush2.msra.mxu0 0.0
  %5636 = vmatprep.mubr.f32.mxu0 0.0
  %5637 = vmatmul.mubr.f32.gmra.mxu0 %v5570
  %v5638 = vpop.f32.mrf.mxu0
  %v5639 = vadd.f32 %v5566, %v5638
  %v5640 = vpop.f32.mrf.mxu0
  %5641 = vdwg.mxu0
  %v5642 = vadd.f32 %v5639, %v403
  %v5643 = vmax.f32 %v5642, 0.0
  %5645 = vrot.lane.b32.xlu0 %v5643, 48
  %v5646 = vpop.permute.xlu0 %5645
  %v5648 = vadd.f32 %v5346, %v5646
  %5650 = vrot.lane.b32.xlu0 %v5648, 80
  %v5651 = vpop.permute.xlu0 %5650
  %v5652 = vsel %vm261, %v5651, 0
  %5654 = vmatprep.subr.mxu0 0.0
  %5655 = vmatpush1.msra.mxu0 0.0
  %5656 = vmatprep.subr.mxu0 0.0
  %5657 = vmatpush1.msra.mxu0 0.0
  %5658 = vmatprep.subr.mxu0 0.0
  %5659 = vmatpush1.msra.mxu0 0.0
  %5660 = vmatprep.subr.mxu0 0.0
  %5661 = vmatpush1.msra.mxu0 0.0
  %5662 = vmatprep.subr.mxu0 0.0
  %5663 = vmatpush1.msra.mxu0 0.0
  %5664 = vmatprep.subr.mxu0 0.0
  %5665 = vmatpush1.msra.mxu0 0.0
  %5666 = vmatprep.subr.mxu0 0.0
  %5667 = vmatpush1.msra.mxu0 0.0
  %5668 = vmatprep.subr.mxu0 0.0
  %5669 = vmatpush1.msra.mxu0 0.0
  %5670 = vmatprep.subr.mxu0 0.0
  %5671 = vmatpush1.msra.mxu0 0.0
  %5672 = vmatprep.subr.mxu0 0.0
  %5673 = vmatpush1.msra.mxu0 0.0
  %5674 = vmatprep.subr.mxu0 0.0
  %5675 = vmatpush1.msra.mxu0 0.0
  %5676 = vmatprep.subr.mxu0 0.0
  %5677 = vmatpush1.msra.mxu0 0.0
  %5678 = vmatprep.subr.mxu0 0.0
  %5679 = vmatpush1.msra.mxu0 0.0
  %5680 = vmatprep.subr.mxu0 0.0
  %5681 = vmatpush1.msra.mxu0 0.0
  %5682 = vmatprep.subr.mxu0 0.0
  %5683 = vmatpush1.msra.mxu0 %v406
  %5684 = vmatprep.subr.mxu0 0.0
  %5685 = vmatpush1.msra.mxu0 %v405
  %5686 = vmatprep.subr.mxu0 0.0
  %5687 = vmatpush2.msra.mxu0 0.0
  %5688 = vmatprep.subr.mxu0 0.0
  %5689 = vmatpush2.msra.mxu0 0.0
  %5690 = vmatprep.subr.mxu0 0.0
  %5691 = vmatpush2.msra.mxu0 0.0
  %5692 = vmatprep.subr.mxu0 0.0
  %5693 = vmatpush2.msra.mxu0 0.0
  %5694 = vmatprep.subr.mxu0 0.0
  %5695 = vmatpush2.msra.mxu0 0.0
  %5696 = vmatprep.subr.mxu0 0.0
  %5697 = vmatpush2.msra.mxu0 0.0
  %5698 = vmatprep.subr.mxu0 0.0
  %5699 = vmatpush2.msra.mxu0 0.0
  %5700 = vmatprep.subr.mxu0 0.0
  %5701 = vmatpush2.msra.mxu0 0.0
  %5702 = vmatprep.subr.mxu0 0.0
  %5703 = vmatpush2.msra.mxu0 0.0
  %5704 = vmatprep.subr.mxu0 0.0
  %5705 = vmatpush2.msra.mxu0 0.0
  %5706 = vmatprep.subr.mxu0 0.0
  %5707 = vmatpush2.msra.mxu0 0.0
  %5708 = vmatprep.subr.mxu0 0.0
  %5709 = vmatpush2.msra.mxu0 0.0
  %5710 = vmatprep.subr.mxu0 0.0
  %5711 = vmatpush2.msra.mxu0 0.0
  %5712 = vmatprep.subr.mxu0 0.0
  %5713 = vmatpush2.msra.mxu0 0.0
  %5714 = vmatprep.subr.mxu0 0.0
  %5715 = vmatpush2.msra.mxu0 0.0
  %5716 = vmatprep.subr.mxu0 0.0
  %5717 = vmatpush2.msra.mxu0 0.0
  %5718 = vmatprep.mubr.f32.mxu0 0.0
  %5719 = vmatmul.mubr.f32.gmra.mxu0 %v5652
  %v5720 = vpop.f32.mrf.mxu0
  %v5721 = vadd.f32 %v458, %v5720
  %v5722 = vpop.f32.mrf.mxu0
  %5723 = vdwg.mxu0
  %v5724 = vmax.f32 %v5721, 0.0
  %v5726 = vsel %vm261, %v5724, 0
  %5728 = vmatprep.subr.mxu0 0.0
  %5729 = vmatpush1.msra.mxu0 0.0
  %5730 = vmatprep.subr.mxu0 0.0
  %5731 = vmatpush1.msra.mxu0 0.0
  %5732 = vmatprep.subr.mxu0 0.0
  %5733 = vmatpush1.msra.mxu0 0.0
  %5734 = vmatprep.subr.mxu0 0.0
  %5735 = vmatpush1.msra.mxu0 0.0
  %5736 = vmatprep.subr.mxu0 0.0
  %5737 = vmatpush1.msra.mxu0 0.0
  %5738 = vmatprep.subr.mxu0 0.0
  %5739 = vmatpush1.msra.mxu0 0.0
  %5740 = vmatprep.subr.mxu0 0.0
  %5741 = vmatpush1.msra.mxu0 0.0
  %5742 = vmatprep.subr.mxu0 0.0
  %5743 = vmatpush1.msra.mxu0 0.0
  %5744 = vmatprep.subr.mxu0 0.0
  %5745 = vmatpush1.msra.mxu0 0.0
  %5746 = vmatprep.subr.mxu0 0.0
  %5747 = vmatpush1.msra.mxu0 0.0
  %5748 = vmatprep.subr.mxu0 0.0
  %5749 = vmatpush1.msra.mxu0 0.0
  %5750 = vmatprep.subr.mxu0 0.0
  %5751 = vmatpush1.msra.mxu0 0.0
  %5752 = vmatprep.subr.mxu0 0.0
  %5753 = vmatpush1.msra.mxu0 0.0
  %5754 = vmatprep.subr.mxu0 0.0
  %5755 = vmatpush1.msra.mxu0 0.0
  %5756 = vmatprep.subr.mxu0 0.0
  %5757 = vmatpush1.msra.mxu0 %v411
  %5758 = vmatprep.subr.mxu0 0.0
  %5759 = vmatpush1.msra.mxu0 %v410
  %5760 = vmatprep.subr.mxu0 0.0
  %5761 = vmatpush2.msra.mxu0 0.0
  %5762 = vmatprep.subr.mxu0 0.0
  %5763 = vmatpush2.msra.mxu0 0.0
  %5764 = vmatprep.subr.mxu0 0.0
  %5765 = vmatpush2.msra.mxu0 0.0
  %5766 = vmatprep.subr.mxu0 0.0
  %5767 = vmatpush2.msra.mxu0 0.0
  %5768 = vmatprep.subr.mxu0 0.0
  %5769 = vmatpush2.msra.mxu0 0.0
  %5770 = vmatprep.subr.mxu0 0.0
  %5771 = vmatpush2.msra.mxu0 0.0
  %5772 = vmatprep.subr.mxu0 0.0
  %5773 = vmatpush2.msra.mxu0 0.0
  %5774 = vmatprep.subr.mxu0 0.0
  %5775 = vmatpush2.msra.mxu0 0.0
  %5776 = vmatprep.subr.mxu0 0.0
  %5777 = vmatpush2.msra.mxu0 0.0
  %5778 = vmatprep.subr.mxu0 0.0
  %5779 = vmatpush2.msra.mxu0 0.0
  %5780 = vmatprep.subr.mxu0 0.0
  %5781 = vmatpush2.msra.mxu0 0.0
  %5782 = vmatprep.subr.mxu0 0.0
  %5783 = vmatpush2.msra.mxu0 0.0
  %5784 = vmatprep.subr.mxu0 0.0
  %5785 = vmatpush2.msra.mxu0 0.0
  %5786 = vmatprep.subr.mxu0 0.0
  %5787 = vmatpush2.msra.mxu0 0.0
  %5788 = vmatprep.subr.mxu0 0.0
  %5789 = vmatpush2.msra.mxu0 0.0
  %5790 = vmatprep.subr.mxu0 0.0
  %5791 = vmatpush2.msra.mxu0 0.0
  %5792 = vmatprep.mubr.f32.mxu0 0.0
  %5793 = vmatmul.mubr.f32.gmra.mxu0 %v5726
  %v5794 = vpop.f32.mrf.mxu0
  %v5795 = vadd.f32 %v417, %v5794
  %v5796 = vpop.f32.mrf.mxu0
  %5797 = vdwg.mxu0
  %5798 = vmatprep.subr.mxu0 0.0
  %5799 = vmatpush1.msra.mxu0 0.0
  %5800 = vmatprep.subr.mxu0 0.0
  %5801 = vmatpush1.msra.mxu0 0.0
  %5802 = vmatprep.subr.mxu0 0.0
  %5803 = vmatpush1.msra.mxu0 0.0
  %5804 = vmatprep.subr.mxu0 0.0
  %5805 = vmatpush1.msra.mxu0 0.0
  %5806 = vmatprep.subr.mxu0 0.0
  %5807 = vmatpush1.msra.mxu0 0.0
  %5808 = vmatprep.subr.mxu0 0.0
  %5809 = vmatpush1.msra.mxu0 0.0
  %5810 = vmatprep.subr.mxu0 0.0
  %5811 = vmatpush1.msra.mxu0 0.0
  %5812 = vmatprep.subr.mxu0 0.0
  %5813 = vmatpush1.msra.mxu0 0.0
  %5814 = vmatprep.subr.mxu0 0.0
  %5815 = vmatpush1.msra.mxu0 0.0
  %5816 = vmatprep.subr.mxu0 0.0
  %5817 = vmatpush1.msra.mxu0 0.0
  %5818 = vmatprep.subr.mxu0 0.0
  %5819 = vmatpush1.msra.mxu0 0.0
  %5820 = vmatprep.subr.mxu0 0.0
  %5821 = vmatpush1.msra.mxu0 0.0
  %5822 = vmatprep.subr.mxu0 0.0
  %5823 = vmatpush1.msra.mxu0 0.0
  %5824 = vmatprep.subr.mxu0 0.0
  %5825 = vmatpush1.msra.mxu0 0.0
  %5826 = vmatprep.subr.mxu0 0.0
  %5827 = vmatpush1.msra.mxu0 %v420
  %5828 = vmatprep.subr.mxu0 0.0
  %5829 = vmatpush1.msra.mxu0 %v419
  %5830 = vmatprep.subr.mxu0 0.0
  %5831 = vmatpush2.msra.mxu0 0.0
  %5832 = vmatprep.subr.mxu0 0.0
  %5833 = vmatpush2.msra.mxu0 0.0
  %5834 = vmatprep.subr.mxu0 0.0
  %5835 = vmatpush2.msra.mxu0 0.0
  %5836 = vmatprep.subr.mxu0 0.0
  %5837 = vmatpush2.msra.mxu0 0.0
  %5838 = vmatprep.subr.mxu0 0.0
  %5839 = vmatpush2.msra.mxu0 0.0
  %5840 = vmatprep.subr.mxu0 0.0
  %5841 = vmatpush2.msra.mxu0 0.0
  %5842 = vmatprep.subr.mxu0 0.0
  %5843 = vmatpush2.msra.mxu0 0.0
  %5844 = vmatprep.subr.mxu0 0.0
  %5845 = vmatpush2.msra.mxu0 0.0
  %5846 = vmatprep.subr.mxu0 0.0
  %5847 = vmatpush2.msra.mxu0 0.0
  %5848 = vmatprep.subr.mxu0 0.0
  %5849 = vmatpush2.msra.mxu0 0.0
  %5850 = vmatprep.subr.mxu0 0.0
  %5851 = vmatpush2.msra.mxu0 0.0
  %5852 = vmatprep.subr.mxu0 0.0
  %5853 = vmatpush2.msra.mxu0 0.0
  %5854 = vmatprep.subr.mxu0 0.0
  %5855 = vmatpush2.msra.mxu0 0.0
  %5856 = vmatprep.subr.mxu0 0.0
  %5857 = vmatpush2.msra.mxu0 0.0
  %5858 = vmatprep.subr.mxu0 0.0
  %5859 = vmatpush2.msra.mxu0 0.0
  %5860 = vmatprep.subr.mxu0 0.0
  %5861 = vmatpush2.msra.mxu0 0.0
  %5862 = vmatprep.mubr.f32.mxu0 0.0
  %5863 = vmatmul.mubr.f32.gmra.mxu0 %v5726
  %v5864 = vpop.f32.mrf.mxu0
  %v5865 = vadd.f32 0.0, %v5864
  %v5866 = vpop.f32.mrf.mxu0
  %5867 = vdwg.mxu0
  %v5868 = vadd.f32 %v5104, %v5865
  %v5869 = vadd.f32 %v5868, %v426
  %v5870 = vsel %vm261, %v5643, 0
  %5872 = vmatprep.subr.mxu0 0.0
  %5873 = vmatpush1.msra.mxu0 0.0
  %5874 = vmatprep.subr.mxu0 0.0
  %5875 = vmatpush1.msra.mxu0 0.0
  %5876 = vmatprep.subr.mxu0 0.0
  %5877 = vmatpush1.msra.mxu0 0.0
  %5878 = vmatprep.subr.mxu0 0.0
  %5879 = vmatpush1.msra.mxu0 0.0
  %5880 = vmatprep.subr.mxu0 0.0
  %5881 = vmatpush1.msra.mxu0 0.0
  %5882 = vmatprep.subr.mxu0 0.0
  %5883 = vmatpush1.msra.mxu0 0.0
  %5884 = vmatprep.subr.mxu0 0.0
  %5885 = vmatpush1.msra.mxu0 0.0
  %5886 = vmatprep.subr.mxu0 0.0
  %5887 = vmatpush1.msra.mxu0 0.0
  %5888 = vmatprep.subr.mxu0 0.0
  %5889 = vmatpush1.msra.mxu0 0.0
  %5890 = vmatprep.subr.mxu0 0.0
  %5891 = vmatpush1.msra.mxu0 0.0
  %5892 = vmatprep.subr.mxu0 0.0
  %5893 = vmatpush1.msra.mxu0 0.0
  %5894 = vmatprep.subr.mxu0 0.0
  %5895 = vmatpush1.msra.mxu0 0.0
  %5896 = vmatprep.subr.mxu0 0.0
  %5897 = vmatpush1.msra.mxu0 0.0
  %5898 = vmatprep.subr.mxu0 0.0
  %5899 = vmatpush1.msra.mxu0 0.0
  %5900 = vmatprep.subr.mxu0 0.0
  %5901 = vmatpush1.msra.mxu0 %v366
  %5902 = vmatprep.subr.mxu0 0.0
  %5903 = vmatpush1.msra.mxu0 %v365
  %5904 = vmatprep.subr.mxu0 0.0
  %5905 = vmatpush2.msra.mxu0 0.0
  %5906 = vmatprep.subr.mxu0 0.0
  %5907 = vmatpush2.msra.mxu0 0.0
  %5908 = vmatprep.subr.mxu0 0.0
  %5909 = vmatpush2.msra.mxu0 0.0
  %5910 = vmatprep.subr.mxu0 0.0
  %5911 = vmatpush2.msra.mxu0 0.0
  %5912 = vmatprep.subr.mxu0 0.0
  %5913 = vmatpush2.msra.mxu0 0.0
  %5914 = vmatprep.subr.mxu0 0.0
  %5915 = vmatpush2.msra.mxu0 0.0
  %5916 = vmatprep.subr.mxu0 0.0
  %5917 = vmatpush2.msra.mxu0 0.0
  %5918 = vmatprep.subr.mxu0 0.0
  %5919 = vmatpush2.msra.mxu0 0.0
  %5920 = vmatprep.subr.mxu0 0.0
  %5921 = vmatpush2.msra.mxu0 0.0
  %5922 = vmatprep.subr.mxu0 0.0
  %5923 = vmatpush2.msra.mxu0 0.0
  %5924 = vmatprep.subr.mxu0 0.0
  %5925 = vmatpush2.msra.mxu0 0.0
  %5926 = vmatprep.subr.mxu0 0.0
  %5927 = vmatpush2.msra.mxu0 0.0
  %5928 = vmatprep.subr.mxu0 0.0
  %5929 = vmatpush2.msra.mxu0 0.0
  %5930 = vmatprep.subr.mxu0 0.0
  %5931 = vmatpush2.msra.mxu0 0.0
  %5932 = vmatprep.subr.mxu0 0.0
  %5933 = vmatpush2.msra.mxu0 0.0
  %5934 = vmatprep.subr.mxu0 0.0
  %5935 = vmatpush2.msra.mxu0 0.0
  %5936 = vmatprep.mubr.f32.mxu0 0.0
  %5937 = vmatmul.mubr.f32.gmra.mxu0 %v5870
  %v5938 = vpop.f32.mrf.mxu0
  %v5939 = vadd.f32 %v5795, %v5938
  %v5940 = vpop.f32.mrf.mxu0
  %5941 = vdwg.mxu0
  %v5942 = vadd.f32 %v5939, %v373
  %v5943 = vmax.f32 %v5942, 0.0
  %5944 = vmatprep.subr.mxu0 0.0
  %5945 = vmatpush1.msra.mxu0 0.0
  %5946 = vmatprep.subr.mxu0 0.0
  %5947 = vmatpush1.msra.mxu0 0.0
  %5948 = vmatprep.subr.mxu0 0.0
  %5949 = vmatpush1.msra.mxu0 0.0
  %5950 = vmatprep.subr.mxu0 0.0
  %5951 = vmatpush1.msra.mxu0 0.0
  %5952 = vmatprep.subr.mxu0 0.0
  %5953 = vmatpush1.msra.mxu0 0.0
  %5954 = vmatprep.subr.mxu0 0.0
  %5955 = vmatpush1.msra.mxu0 0.0
  %5956 = vmatprep.subr.mxu0 0.0
  %5957 = vmatpush1.msra.mxu0 0.0
  %5958 = vmatprep.subr.mxu0 0.0
  %5959 = vmatpush1.msra.mxu0 0.0
  %5960 = vmatprep.subr.mxu0 0.0
  %5961 = vmatpush1.msra.mxu0 0.0
  %5962 = vmatprep.subr.mxu0 0.0
  %5963 = vmatpush1.msra.mxu0 0.0
  %5964 = vmatprep.subr.mxu0 0.0
  %5965 = vmatpush1.msra.mxu0 0.0
  %5966 = vmatprep.subr.mxu0 0.0
  %5967 = vmatpush1.msra.mxu0 0.0
  %5968 = vmatprep.subr.mxu0 0.0
  %5969 = vmatpush1.msra.mxu0 0.0
  %5970 = vmatprep.subr.mxu0 0.0
  %5971 = vmatpush1.msra.mxu0 0.0
  %5972 = vmatprep.subr.mxu0 0.0
  %5973 = vmatpush1.msra.mxu0 %v378
  %5974 = vmatprep.subr.mxu0 0.0
  %5975 = vmatpush1.msra.mxu0 %v377
  %5976 = vmatprep.subr.mxu0 0.0
  %5977 = vmatpush2.msra.mxu0 0.0
  %5978 = vmatprep.subr.mxu0 0.0
  %5979 = vmatpush2.msra.mxu0 0.0
  %5980 = vmatprep.subr.mxu0 0.0
  %5981 = vmatpush2.msra.mxu0 0.0
  %5982 = vmatprep.subr.mxu0 0.0
  %5983 = vmatpush2.msra.mxu0 0.0
  %5984 = vmatprep.subr.mxu0 0.0
  %5985 = vmatpush2.msra.mxu0 0.0
  %5986 = vmatprep.subr.mxu0 0.0
  %5987 = vmatpush2.msra.mxu0 0.0
  %5988 = vmatprep.subr.mxu0 0.0
  %5989 = vmatpush2.msra.mxu0 0.0
  %5990 = vmatprep.subr.mxu0 0.0
  %5991 = vmatpush2.msra.mxu0 0.0
  %5992 = vmatprep.subr.mxu0 0.0
  %5993 = vmatpush2.msra.mxu0 0.0
  %5994 = vmatprep.subr.mxu0 0.0
  %5995 = vmatpush2.msra.mxu0 0.0
  %5996 = vmatprep.subr.mxu0 0.0
  %5997 = vmatpush2.msra.mxu0 0.0
  %5998 = vmatprep.subr.mxu0 0.0
  %5999 = vmatpush2.msra.mxu0 0.0
  %6000 = vmatprep.subr.mxu0 0.0
  %6001 = vmatpush2.msra.mxu0 0.0
  %6002 = vmatprep.subr.mxu0 0.0
  %6003 = vmatpush2.msra.mxu0 0.0
  %6004 = vmatprep.subr.mxu0 0.0
  %6005 = vmatpush2.msra.mxu0 0.0
  %6006 = vmatprep.subr.mxu0 0.0
  %6007 = vmatpush2.msra.mxu0 0.0
  %6008 = vmatprep.mubr.f32.mxu0 0.0
  %6009 = vmatmul.mubr.f32.gmra.mxu0 %v5497
  %v6010 = vpop.f32.mrf.mxu0
  %v6011 = vadd.f32 0.0, %v6010
  %v6012 = vpop.f32.mrf.mxu0
  %6013 = vdwg.mxu0
  %v6015 = vsel %vm261, %v5943, 0
  %6017 = vmatprep.subr.mxu0 0.0
  %6018 = vmatpush1.msra.mxu0 0.0
  %6019 = vmatprep.subr.mxu0 0.0
  %6020 = vmatpush1.msra.mxu0 0.0
  %6021 = vmatprep.subr.mxu0 0.0
  %6022 = vmatpush1.msra.mxu0 0.0
  %6023 = vmatprep.subr.mxu0 0.0
  %6024 = vmatpush1.msra.mxu0 0.0
  %6025 = vmatprep.subr.mxu0 0.0
  %6026 = vmatpush1.msra.mxu0 0.0
  %6027 = vmatprep.subr.mxu0 0.0
  %6028 = vmatpush1.msra.mxu0 0.0
  %6029 = vmatprep.subr.mxu0 0.0
  %6030 = vmatpush1.msra.mxu0 0.0
  %6031 = vmatprep.subr.mxu0 0.0
  %6032 = vmatpush1.msra.mxu0 0.0
  %6033 = vmatprep.subr.mxu0 0.0
  %6034 = vmatpush1.msra.mxu0 0.0
  %6035 = vmatprep.subr.mxu0 0.0
  %6036 = vmatpush1.msra.mxu0 0.0
  %6037 = vmatprep.subr.mxu0 0.0
  %6038 = vmatpush1.msra.mxu0 0.0
  %6039 = vmatprep.subr.mxu0 0.0
  %6040 = vmatpush1.msra.mxu0 0.0
  %6041 = vmatprep.subr.mxu0 0.0
  %6042 = vmatpush1.msra.mxu0 0.0
  %6043 = vmatprep.subr.mxu0 0.0
  %6044 = vmatpush1.msra.mxu0 0.0
  %6045 = vmatprep.subr.mxu0 0.0
  %6046 = vmatpush1.msra.mxu0 %v376
  %6047 = vmatprep.subr.mxu0 0.0
  %6048 = vmatpush1.msra.mxu0 %v375
  %6049 = vmatprep.subr.mxu0 0.0
  %6050 = vmatpush2.msra.mxu0 0.0
  %6051 = vmatprep.subr.mxu0 0.0
  %6052 = vmatpush2.msra.mxu0 0.0
  %6053 = vmatprep.subr.mxu0 0.0
  %6054 = vmatpush2.msra.mxu0 0.0
  %6055 = vmatprep.subr.mxu0 0.0
  %6056 = vmatpush2.msra.mxu0 0.0
  %6057 = vmatprep.subr.mxu0 0.0
  %6058 = vmatpush2.msra.mxu0 0.0
  %6059 = vmatprep.subr.mxu0 0.0
  %6060 = vmatpush2.msra.mxu0 0.0
  %6061 = vmatprep.subr.mxu0 0.0
  %6062 = vmatpush2.msra.mxu0 0.0
  %6063 = vmatprep.subr.mxu0 0.0
  %6064 = vmatpush2.msra.mxu0 0.0
  %6065 = vmatprep.subr.mxu0 0.0
  %6066 = vmatpush2.msra.mxu0 0.0
  %6067 = vmatprep.subr.mxu0 0.0
  %6068 = vmatpush2.msra.mxu0 0.0
  %6069 = vmatprep.subr.mxu0 0.0
  %6070 = vmatpush2.msra.mxu0 0.0
  %6071 = vmatprep.subr.mxu0 0.0
  %6072 = vmatpush2.msra.mxu0 0.0
  %6073 = vmatprep.subr.mxu0 0.0
  %6074 = vmatpush2.msra.mxu0 0.0
  %6075 = vmatprep.subr.mxu0 0.0
  %6076 = vmatpush2.msra.mxu0 0.0
  %6077 = vmatprep.subr.mxu0 0.0
  %6078 = vmatpush2.msra.mxu0 0.0
  %6079 = vmatprep.subr.mxu0 0.0
  %6080 = vmatpush2.msra.mxu0 0.0
  %6081 = vmatprep.mubr.f32.mxu0 0.0
  %6082 = vmatmul.mubr.f32.gmra.mxu0 %v6015
  %v6083 = vpop.f32.mrf.mxu0
  %v6084 = vadd.f32 %v6011, %v6083
  %v6085 = vpop.f32.mrf.mxu0
  %6086 = vdwg.mxu0
  %v6087 = vadd.f32 %v6084, %v384
  %v6088 = vxor.u32 %v6087, 2147483648
  %v6089 = vmul.f32 %v6088, 1.442695
  %v6090 = vpow.pop %v6089
  %v6091 = vadd.f32 %v6090, 1.0
  %v6092 = vrcp.pop %v6091
  %v6093 = vmul.f32 1.0, %v6092
  %v6094 = vtanh.pop %v6087
  %v6095 = vmul.f32 %v6093, %v5340
  %6097 = vrot.lane.b32.xlu0 %v6094, 96
  %v6098 = vpop.permute.xlu0 %6097
  %v6100 = vmul.f32 %v6093, %v6098
  %6102 = vrot.lane.b32.xlu0 %v6100, 16
  %v6103 = vpop.permute.xlu0 %6102
  %v6105 = vadd.f32 %v6095, %v6103
  %v6106 = vtanh.pop %v6105
  %6108 = vrot.lane.b32.xlu0 %v6106, 32
  %v6109 = vpop.permute.xlu0 %6108
  %v6111 = vmul.f32 %v6093, %v6109
  %6112 = vmatprep.subr.mxu0 0.0
  %6113 = vmatpush1.msra.mxu0 0.0
  %6114 = vmatprep.subr.mxu0 0.0
  %6115 = vmatpush1.msra.mxu0 0.0
  %6116 = vmatprep.subr.mxu0 0.0
  %6117 = vmatpush1.msra.mxu0 0.0
  %6118 = vmatprep.subr.mxu0 0.0
  %6119 = vmatpush1.msra.mxu0 0.0
  %6120 = vmatprep.subr.mxu0 0.0
  %6121 = vmatpush1.msra.mxu0 0.0
  %6122 = vmatprep.subr.mxu0 0.0
  %6123 = vmatpush1.msra.mxu0 0.0
  %6124 = vmatprep.subr.mxu0 0.0
  %6125 = vmatpush1.msra.mxu0 0.0
  %6126 = vmatprep.subr.mxu0 0.0
  %6127 = vmatpush1.msra.mxu0 0.0
  %6128 = vmatprep.subr.mxu0 0.0
  %6129 = vmatpush1.msra.mxu0 0.0
  %6130 = vmatprep.subr.mxu0 0.0
  %6131 = vmatpush1.msra.mxu0 0.0
  %6132 = vmatprep.subr.mxu0 0.0
  %6133 = vmatpush1.msra.mxu0 0.0
  %6134 = vmatprep.subr.mxu0 0.0
  %6135 = vmatpush1.msra.mxu0 0.0
  %6136 = vmatprep.subr.mxu0 0.0
  %6137 = vmatpush1.msra.mxu0 0.0
  %6138 = vmatprep.subr.mxu0 0.0
  %6139 = vmatpush1.msra.mxu0 0.0
  %6140 = vmatprep.subr.mxu0 0.0
  %6141 = vmatpush1.msra.mxu0 0.0
  %6142 = vmatprep.subr.mxu0 0.0
  %6143 = vmatpush1.msra.mxu0 %v5869
  %6144 = vmatprep.subr.mxu0 0.0
  %6145 = vmatpush2.msra.mxu0 0.0
  %6146 = vmatprep.subr.mxu0 0.0
  %6147 = vmatpush2.msra.mxu0 0.0
  %6148 = vmatprep.subr.mxu0 0.0
  %6149 = vmatpush2.msra.mxu0 0.0
  %6150 = vmatprep.subr.mxu0 0.0
  %6151 = vmatpush2.msra.mxu0 0.0
  %6152 = vmatprep.subr.mxu0 0.0
  %6153 = vmatpush2.msra.mxu0 0.0
  %6154 = vmatprep.subr.mxu0 0.0
  %6155 = vmatpush2.msra.mxu0 0.0
  %6156 = vmatprep.subr.mxu0 0.0
  %6157 = vmatpush2.msra.mxu0 0.0
  %6158 = vmatprep.subr.mxu0 0.0
  %6159 = vmatpush2.msra.mxu0 0.0
  %6160 = vmatprep.subr.mxu0 0.0
  %6161 = vmatpush2.msra.mxu0 0.0
  %6162 = vmatprep.subr.mxu0 0.0
  %6163 = vmatpush2.msra.mxu0 0.0
  %6164 = vmatprep.subr.mxu0 0.0
  %6165 = vmatpush2.msra.mxu0 0.0
  %6166 = vmatprep.subr.mxu0 0.0
  %6167 = vmatpush2.msra.mxu0 0.0
  %6168 = vmatprep.subr.mxu0 0.0
  %6169 = vmatpush2.msra.mxu0 0.0
  %6170 = vmatprep.subr.mxu0 0.0
  %6171 = vmatpush2.msra.mxu0 0.0
  %6172 = vmatprep.subr.mxu0 0.0
  %6173 = vmatpush2.msra.mxu0 0.0
  %6174 = vmatprep.subr.mxu0 0.0
  %6175 = vmatpush2.msra.mxu0 0.0
  %6176 = vmatprep.mubr.f32.mxu0 0.0
  %6177 = vmatmul.mubr.f32.gmra.mxu0 %v749
  %v6178 = vpop.f32.mrf.mxu0
  %v6179 = vadd.f32 %v392, %v6178
  %v6180 = vpop.f32.mrf.mxu0
  %6181 = vmatprep.mubr.f32.mxu0 0.0
  %6182 = vmatmul.mubr.f32.gmra.mxu0 %v752
  %v6183 = vpop.f32.mrf.mxu0
  %v6184 = vadd.f32 %v392, %v6183
  %v6185 = vpop.f32.mrf.mxu0
  %6186 = vdwg.mxu0
  %v6187 = vmax.f32 %v6179, 0.0
  %v6188 = vmax.f32 %v6184, 0.0
  %6189 = vmatprep.subr.mxu0 0.0
  %6190 = vmatpush1.msra.mxu0 0.0
  %6191 = vmatprep.subr.mxu0 0.0
  %6192 = vmatpush1.msra.mxu0 0.0
  %6193 = vmatprep.subr.mxu0 0.0
  %6194 = vmatpush1.msra.mxu0 0.0
  %6195 = vmatprep.subr.mxu0 0.0
  %6196 = vmatpush1.msra.mxu0 0.0
  %6197 = vmatprep.subr.mxu0 0.0
  %6198 = vmatpush1.msra.mxu0 0.0
  %6199 = vmatprep.subr.mxu0 0.0
  %6200 = vmatpush1.msra.mxu0 0.0
  %6201 = vmatprep.subr.mxu0 0.0
  %6202 = vmatpush1.msra.mxu0 0.0
  %6203 = vmatprep.subr.mxu0 0.0
  %6204 = vmatpush1.msra.mxu0 0.0
  %6205 = vmatprep.subr.mxu0 0.0
  %6206 = vmatpush1.msra.mxu0 0.0
  %6207 = vmatprep.subr.mxu0 0.0
  %6208 = vmatpush1.msra.mxu0 0.0
  %6209 = vmatprep.subr.mxu0 0.0
  %6210 = vmatpush1.msra.mxu0 0.0
  %6211 = vmatprep.subr.mxu0 0.0
  %6212 = vmatpush1.msra.mxu0 0.0
  %6213 = vmatprep.subr.mxu0 0.0
  %6214 = vmatpush1.msra.mxu0 0.0
  %6215 = vmatprep.subr.mxu0 0.0
  %6216 = vmatpush1.msra.mxu0 0.0
  %6217 = vmatprep.subr.mxu0 0.0
  %6218 = vmatpush1.msra.mxu0 %v6188
  %6219 = vmatprep.subr.mxu0 0.0
  %6220 = vmatpush1.msra.mxu0 %v6187
  %6221 = vmatprep.subr.mxu0 0.0
  %6222 = vmatpush2.msra.mxu0 0.0
  %6223 = vmatprep.subr.mxu0 0.0
  %6224 = vmatpush2.msra.mxu0 0.0
  %6225 = vmatprep.subr.mxu0 0.0
  %6226 = vmatpush2.msra.mxu0 0.0
  %6227 = vmatprep.subr.mxu0 0.0
  %6228 = vmatpush2.msra.mxu0 0.0
  %6229 = vmatprep.subr.mxu0 0.0
  %6230 = vmatpush2.msra.mxu0 0.0
  %6231 = vmatprep.subr.mxu0 0.0
  %6232 = vmatpush2.msra.mxu0 0.0
  %6233 = vmatprep.subr.mxu0 0.0
  %6234 = vmatpush2.msra.mxu0 0.0
  %6235 = vmatprep.subr.mxu0 0.0
  %6236 = vmatpush2.msra.mxu0 0.0
  %6237 = vmatprep.subr.mxu0 0.0
  %6238 = vmatpush2.msra.mxu0 0.0
  %6239 = vmatprep.subr.mxu0 0.0
  %6240 = vmatpush2.msra.mxu0 0.0
  %6241 = vmatprep.subr.mxu0 0.0
  %6242 = vmatpush2.msra.mxu0 0.0
  %6243 = vmatprep.subr.mxu0 0.0
  %6244 = vmatpush2.msra.mxu0 0.0
  %6245 = vmatprep.subr.mxu0 0.0
  %6246 = vmatpush2.msra.mxu0 0.0
  %6247 = vmatprep.subr.mxu0 0.0
  %6248 = vmatpush2.msra.mxu0 0.0
  %6249 = vmatprep.subr.mxu0 0.0
  %6250 = vmatpush2.msra.mxu0 0.0
  %6251 = vmatprep.subr.mxu0 0.0
  %6252 = vmatpush2.msra.mxu0 0.0
  %6253 = vmatprep.mubr.f32.mxu0 0.0
  %6254 = vmatmul.mubr.f32.gmra.mxu0 %v832
  %v6255 = vpop.f32.mrf.mxu0
  %v6256 = vadd.f32 0.0, %v6255
  %v6257 = vpop.f32.mrf.mxu0
  %6258 = vdwg.mxu0
  %6260 = vrot.lane.b32.xlu0 %v6111, 80
  %v6261 = vpop.permute.xlu0 %6260
  %v6262 = vsel %vm261, %v6261, 0
  %6264 = vmatprep.subr.mxu0 0.0
  %6265 = vmatpush1.msra.mxu0 0.0
  %6266 = vmatprep.subr.mxu0 0.0
  %6267 = vmatpush1.msra.mxu0 0.0
  %6268 = vmatprep.subr.mxu0 0.0
  %6269 = vmatpush1.msra.mxu0 0.0
  %6270 = vmatprep.subr.mxu0 0.0
  %6271 = vmatpush1.msra.mxu0 0.0
  %6272 = vmatprep.subr.mxu0 0.0
  %6273 = vmatpush1.msra.mxu0 0.0
  %6274 = vmatprep.subr.mxu0 0.0
  %6275 = vmatpush1.msra.mxu0 0.0
  %6276 = vmatprep.subr.mxu0 0.0
  %6277 = vmatpush1.msra.mxu0 0.0
  %6278 = vmatprep.subr.mxu0 0.0
  %6279 = vmatpush1.msra.mxu0 0.0
  %6280 = vmatprep.subr.mxu0 0.0
  %6281 = vmatpush1.msra.mxu0 0.0
  %6282 = vmatprep.subr.mxu0 0.0
  %6283 = vmatpush1.msra.mxu0 0.0
  %6284 = vmatprep.subr.mxu0 0.0
  %6285 = vmatpush1.msra.mxu0 0.0
  %6286 = vmatprep.subr.mxu0 0.0
  %6287 = vmatpush1.msra.mxu0 0.0
  %6288 = vmatprep.subr.mxu0 0.0
  %6289 = vmatpush1.msra.mxu0 0.0
  %6290 = vmatprep.subr.mxu0 0.0
  %6291 = vmatpush1.msra.mxu0 0.0
  %6292 = vmatprep.subr.mxu0 0.0
  %6293 = vmatpush1.msra.mxu0 %v397
  %6294 = vmatprep.subr.mxu0 0.0
  %6295 = vmatpush1.msra.mxu0 %v396
  %6296 = vmatprep.subr.mxu0 0.0
  %6297 = vmatpush2.msra.mxu0 0.0
  %6298 = vmatprep.subr.mxu0 0.0
  %6299 = vmatpush2.msra.mxu0 0.0
  %6300 = vmatprep.subr.mxu0 0.0
  %6301 = vmatpush2.msra.mxu0 0.0
  %6302 = vmatprep.subr.mxu0 0.0
  %6303 = vmatpush2.msra.mxu0 0.0
  %6304 = vmatprep.subr.mxu0 0.0
  %6305 = vmatpush2.msra.mxu0 0.0
  %6306 = vmatprep.subr.mxu0 0.0
  %6307 = vmatpush2.msra.mxu0 0.0
  %6308 = vmatprep.subr.mxu0 0.0
  %6309 = vmatpush2.msra.mxu0 0.0
  %6310 = vmatprep.subr.mxu0 0.0
  %6311 = vmatpush2.msra.mxu0 0.0
  %6312 = vmatprep.subr.mxu0 0.0
  %6313 = vmatpush2.msra.mxu0 0.0
  %6314 = vmatprep.subr.mxu0 0.0
  %6315 = vmatpush2.msra.mxu0 0.0
  %6316 = vmatprep.subr.mxu0 0.0
  %6317 = vmatpush2.msra.mxu0 0.0
  %6318 = vmatprep.subr.mxu0 0.0
  %6319 = vmatpush2.msra.mxu0 0.0
  %6320 = vmatprep.subr.mxu0 0.0
  %6321 = vmatpush2.msra.mxu0 0.0
  %6322 = vmatprep.subr.mxu0 0.0
  %6323 = vmatpush2.msra.mxu0 0.0
  %6324 = vmatprep.subr.mxu0 0.0
  %6325 = vmatpush2.msra.mxu0 0.0
  %6326 = vmatprep.subr.mxu0 0.0
  %6327 = vmatpush2.msra.mxu0 0.0
  %6328 = vmatprep.mubr.f32.mxu0 0.0
  %6329 = vmatmul.mubr.f32.gmra.mxu0 %v6262
  %v6330 = vpop.f32.mrf.mxu0
  %v6331 = vadd.f32 0.0, %v6330
  %v6332 = vpop.f32.mrf.mxu0
  %6333 = vdwg.mxu0
  %v6335 = vsel %vm261, %v6256, 0
  %6337 = vmatprep.subr.mxu0 0.0
  %6338 = vmatpush1.msra.mxu0 0.0
  %6339 = vmatprep.subr.mxu0 0.0
  %6340 = vmatpush1.msra.mxu0 0.0
  %6341 = vmatprep.subr.mxu0 0.0
  %6342 = vmatpush1.msra.mxu0 0.0
  %6343 = vmatprep.subr.mxu0 0.0
  %6344 = vmatpush1.msra.mxu0 0.0
  %6345 = vmatprep.subr.mxu0 0.0
  %6346 = vmatpush1.msra.mxu0 0.0
  %6347 = vmatprep.subr.mxu0 0.0
  %6348 = vmatpush1.msra.mxu0 0.0
  %6349 = vmatprep.subr.mxu0 0.0
  %6350 = vmatpush1.msra.mxu0 0.0
  %6351 = vmatprep.subr.mxu0 0.0
  %6352 = vmatpush1.msra.mxu0 0.0
  %6353 = vmatprep.subr.mxu0 0.0
  %6354 = vmatpush1.msra.mxu0 0.0
  %6355 = vmatprep.subr.mxu0 0.0
  %6356 = vmatpush1.msra.mxu0 0.0
  %6357 = vmatprep.subr.mxu0 0.0
  %6358 = vmatpush1.msra.mxu0 0.0
  %6359 = vmatprep.subr.mxu0 0.0
  %6360 = vmatpush1.msra.mxu0 0.0
  %6361 = vmatprep.subr.mxu0 0.0
  %6362 = vmatpush1.msra.mxu0 0.0
  %6363 = vmatprep.subr.mxu0 0.0
  %6364 = vmatpush1.msra.mxu0 0.0
  %6365 = vmatprep.subr.mxu0 0.0
  %6366 = vmatpush1.msra.mxu0 %v395
  %6367 = vmatprep.subr.mxu0 0.0
  %6368 = vmatpush1.msra.mxu0 %v394
  %6369 = vmatprep.subr.mxu0 0.0
  %6370 = vmatpush2.msra.mxu0 0.0
  %6371 = vmatprep.subr.mxu0 0.0
  %6372 = vmatpush2.msra.mxu0 0.0
  %6373 = vmatprep.subr.mxu0 0.0
  %6374 = vmatpush2.msra.mxu0 0.0
  %6375 = vmatprep.subr.mxu0 0.0
  %6376 = vmatpush2.msra.mxu0 0.0
  %6377 = vmatprep.subr.mxu0 0.0
  %6378 = vmatpush2.msra.mxu0 0.0
  %6379 = vmatprep.subr.mxu0 0.0
  %6380 = vmatpush2.msra.mxu0 0.0
  %6381 = vmatprep.subr.mxu0 0.0
  %6382 = vmatpush2.msra.mxu0 0.0
  %6383 = vmatprep.subr.mxu0 0.0
  %6384 = vmatpush2.msra.mxu0 0.0
  %6385 = vmatprep.subr.mxu0 0.0
  %6386 = vmatpush2.msra.mxu0 0.0
  %6387 = vmatprep.subr.mxu0 0.0
  %6388 = vmatpush2.msra.mxu0 0.0
  %6389 = vmatprep.subr.mxu0 0.0
  %6390 = vmatpush2.msra.mxu0 0.0
  %6391 = vmatprep.subr.mxu0 0.0
  %6392 = vmatpush2.msra.mxu0 0.0
  %6393 = vmatprep.subr.mxu0 0.0
  %6394 = vmatpush2.msra.mxu0 0.0
  %6395 = vmatprep.subr.mxu0 0.0
  %6396 = vmatpush2.msra.mxu0 0.0
  %6397 = vmatprep.subr.mxu0 0.0
  %6398 = vmatpush2.msra.mxu0 0.0
  %6399 = vmatprep.subr.mxu0 0.0
  %6400 = vmatpush2.msra.mxu0 0.0
  %6401 = vmatprep.mubr.f32.mxu0 0.0
  %6402 = vmatmul.mubr.f32.gmra.mxu0 %v6335
  %v6403 = vpop.f32.mrf.mxu0
  %v6404 = vadd.f32 %v6331, %v6403
  %v6405 = vpop.f32.mrf.mxu0
  %6406 = vdwg.mxu0
  %v6407 = vadd.f32 %v6404, %v403
  %v6408 = vmax.f32 %v6407, 0.0
  %6410 = vrot.lane.b32.xlu0 %v6408, 48
  %v6411 = vpop.permute.xlu0 %6410
  %v6413 = vadd.f32 %v6111, %v6411
  %6415 = vrot.lane.b32.xlu0 %v6413, 80
  %v6416 = vpop.permute.xlu0 %6415
  %v6417 = vsel %vm261, %v6416, 0
  %6419 = vmatprep.subr.mxu0 0.0
  %6420 = vmatpush1.msra.mxu0 0.0
  %6421 = vmatprep.subr.mxu0 0.0
  %6422 = vmatpush1.msra.mxu0 0.0
  %6423 = vmatprep.subr.mxu0 0.0
  %6424 = vmatpush1.msra.mxu0 0.0
  %6425 = vmatprep.subr.mxu0 0.0
  %6426 = vmatpush1.msra.mxu0 0.0
  %6427 = vmatprep.subr.mxu0 0.0
  %6428 = vmatpush1.msra.mxu0 0.0
  %6429 = vmatprep.subr.mxu0 0.0
  %6430 = vmatpush1.msra.mxu0 0.0
  %6431 = vmatprep.subr.mxu0 0.0
  %6432 = vmatpush1.msra.mxu0 0.0
  %6433 = vmatprep.subr.mxu0 0.0
  %6434 = vmatpush1.msra.mxu0 0.0
  %6435 = vmatprep.subr.mxu0 0.0
  %6436 = vmatpush1.msra.mxu0 0.0
  %6437 = vmatprep.subr.mxu0 0.0
  %6438 = vmatpush1.msra.mxu0 0.0
  %6439 = vmatprep.subr.mxu0 0.0
  %6440 = vmatpush1.msra.mxu0 0.0
  %6441 = vmatprep.subr.mxu0 0.0
  %6442 = vmatpush1.msra.mxu0 0.0
  %6443 = vmatprep.subr.mxu0 0.0
  %6444 = vmatpush1.msra.mxu0 0.0
  %6445 = vmatprep.subr.mxu0 0.0
  %6446 = vmatpush1.msra.mxu0 0.0
  %6447 = vmatprep.subr.mxu0 0.0
  %6448 = vmatpush1.msra.mxu0 %v406
  %6449 = vmatprep.subr.mxu0 0.0
  %6450 = vmatpush1.msra.mxu0 %v405
  %6451 = vmatprep.subr.mxu0 0.0
  %6452 = vmatpush2.msra.mxu0 0.0
  %6453 = vmatprep.subr.mxu0 0.0
  %6454 = vmatpush2.msra.mxu0 0.0
  %6455 = vmatprep.subr.mxu0 0.0
  %6456 = vmatpush2.msra.mxu0 0.0
  %6457 = vmatprep.subr.mxu0 0.0
  %6458 = vmatpush2.msra.mxu0 0.0
  %6459 = vmatprep.subr.mxu0 0.0
  %6460 = vmatpush2.msra.mxu0 0.0
  %6461 = vmatprep.subr.mxu0 0.0
  %6462 = vmatpush2.msra.mxu0 0.0
  %6463 = vmatprep.subr.mxu0 0.0
  %6464 = vmatpush2.msra.mxu0 0.0
  %6465 = vmatprep.subr.mxu0 0.0
  %6466 = vmatpush2.msra.mxu0 0.0
  %6467 = vmatprep.subr.mxu0 0.0
  %6468 = vmatpush2.msra.mxu0 0.0
  %6469 = vmatprep.subr.mxu0 0.0
  %6470 = vmatpush2.msra.mxu0 0.0
  %6471 = vmatprep.subr.mxu0 0.0
  %6472 = vmatpush2.msra.mxu0 0.0
  %6473 = vmatprep.subr.mxu0 0.0
  %6474 = vmatpush2.msra.mxu0 0.0
  %6475 = vmatprep.subr.mxu0 0.0
  %6476 = vmatpush2.msra.mxu0 0.0
  %6477 = vmatprep.subr.mxu0 0.0
  %6478 = vmatpush2.msra.mxu0 0.0
  %6479 = vmatprep.subr.mxu0 0.0
  %6480 = vmatpush2.msra.mxu0 0.0
  %6481 = vmatprep.subr.mxu0 0.0
  %6482 = vmatpush2.msra.mxu0 0.0
  %6483 = vmatprep.mubr.f32.mxu0 0.0
  %6484 = vmatmul.mubr.f32.gmra.mxu0 %v6417
  %v6485 = vpop.f32.mrf.mxu0
  %v6486 = vadd.f32 %v458, %v6485
  %v6487 = vpop.f32.mrf.mxu0
  %6488 = vdwg.mxu0
  %v6489 = vmax.f32 %v6486, 0.0
  %v6491 = vsel %vm261, %v6489, 0
  %6493 = vmatprep.subr.mxu0 0.0
  %6494 = vmatpush1.msra.mxu0 0.0
  %6495 = vmatprep.subr.mxu0 0.0
  %6496 = vmatpush1.msra.mxu0 0.0
  %6497 = vmatprep.subr.mxu0 0.0
  %6498 = vmatpush1.msra.mxu0 0.0
  %6499 = vmatprep.subr.mxu0 0.0
  %6500 = vmatpush1.msra.mxu0 0.0
  %6501 = vmatprep.subr.mxu0 0.0
  %6502 = vmatpush1.msra.mxu0 0.0
  %6503 = vmatprep.subr.mxu0 0.0
  %6504 = vmatpush1.msra.mxu0 0.0
  %6505 = vmatprep.subr.mxu0 0.0
  %6506 = vmatpush1.msra.mxu0 0.0
  %6507 = vmatprep.subr.mxu0 0.0
  %6508 = vmatpush1.msra.mxu0 0.0
  %6509 = vmatprep.subr.mxu0 0.0
  %6510 = vmatpush1.msra.mxu0 0.0
  %6511 = vmatprep.subr.mxu0 0.0
  %6512 = vmatpush1.msra.mxu0 0.0
  %6513 = vmatprep.subr.mxu0 0.0
  %6514 = vmatpush1.msra.mxu0 0.0
  %6515 = vmatprep.subr.mxu0 0.0
  %6516 = vmatpush1.msra.mxu0 0.0
  %6517 = vmatprep.subr.mxu0 0.0
  %6518 = vmatpush1.msra.mxu0 0.0
  %6519 = vmatprep.subr.mxu0 0.0
  %6520 = vmatpush1.msra.mxu0 0.0
  %6521 = vmatprep.subr.mxu0 0.0
  %6522 = vmatpush1.msra.mxu0 %v411
  %6523 = vmatprep.subr.mxu0 0.0
  %6524 = vmatpush1.msra.mxu0 %v410
  %6525 = vmatprep.subr.mxu0 0.0
  %6526 = vmatpush2.msra.mxu0 0.0
  %6527 = vmatprep.subr.mxu0 0.0
  %6528 = vmatpush2.msra.mxu0 0.0
  %6529 = vmatprep.subr.mxu0 0.0
  %6530 = vmatpush2.msra.mxu0 0.0
  %6531 = vmatprep.subr.mxu0 0.0
  %6532 = vmatpush2.msra.mxu0 0.0
  %6533 = vmatprep.subr.mxu0 0.0
  %6534 = vmatpush2.msra.mxu0 0.0
  %6535 = vmatprep.subr.mxu0 0.0
  %6536 = vmatpush2.msra.mxu0 0.0
  %6537 = vmatprep.subr.mxu0 0.0
  %6538 = vmatpush2.msra.mxu0 0.0
  %6539 = vmatprep.subr.mxu0 0.0
  %6540 = vmatpush2.msra.mxu0 0.0
  %6541 = vmatprep.subr.mxu0 0.0
  %6542 = vmatpush2.msra.mxu0 0.0
  %6543 = vmatprep.subr.mxu0 0.0
  %6544 = vmatpush2.msra.mxu0 0.0
  %6545 = vmatprep.subr.mxu0 0.0
  %6546 = vmatpush2.msra.mxu0 0.0
  %6547 = vmatprep.subr.mxu0 0.0
  %6548 = vmatpush2.msra.mxu0 0.0
  %6549 = vmatprep.subr.mxu0 0.0
  %6550 = vmatpush2.msra.mxu0 0.0
  %6551 = vmatprep.subr.mxu0 0.0
  %6552 = vmatpush2.msra.mxu0 0.0
  %6553 = vmatprep.subr.mxu0 0.0
  %6554 = vmatpush2.msra.mxu0 0.0
  %6555 = vmatprep.subr.mxu0 0.0
  %6556 = vmatpush2.msra.mxu0 0.0
  %6557 = vmatprep.mubr.f32.mxu0 0.0
  %6558 = vmatmul.mubr.f32.gmra.mxu0 %v6491
  %v6559 = vpop.f32.mrf.mxu0
  %v6560 = vadd.f32 %v417, %v6559
  %v6561 = vpop.f32.mrf.mxu0
  %6562 = vdwg.mxu0
  %6563 = vmatprep.subr.mxu0 0.0
  %6564 = vmatpush1.msra.mxu0 0.0
  %6565 = vmatprep.subr.mxu0 0.0
  %6566 = vmatpush1.msra.mxu0 0.0
  %6567 = vmatprep.subr.mxu0 0.0
  %6568 = vmatpush1.msra.mxu0 0.0
  %6569 = vmatprep.subr.mxu0 0.0
  %6570 = vmatpush1.msra.mxu0 0.0
  %6571 = vmatprep.subr.mxu0 0.0
  %6572 = vmatpush1.msra.mxu0 0.0
  %6573 = vmatprep.subr.mxu0 0.0
  %6574 = vmatpush1.msra.mxu0 0.0
  %6575 = vmatprep.subr.mxu0 0.0
  %6576 = vmatpush1.msra.mxu0 0.0
  %6577 = vmatprep.subr.mxu0 0.0
  %6578 = vmatpush1.msra.mxu0 0.0
  %6579 = vmatprep.subr.mxu0 0.0
  %6580 = vmatpush1.msra.mxu0 0.0
  %6581 = vmatprep.subr.mxu0 0.0
  %6582 = vmatpush1.msra.mxu0 0.0
  %6583 = vmatprep.subr.mxu0 0.0
  %6584 = vmatpush1.msra.mxu0 0.0
  %6585 = vmatprep.subr.mxu0 0.0
  %6586 = vmatpush1.msra.mxu0 0.0
  %6587 = vmatprep.subr.mxu0 0.0
  %6588 = vmatpush1.msra.mxu0 0.0
  %6589 = vmatprep.subr.mxu0 0.0
  %6590 = vmatpush1.msra.mxu0 0.0
  %6591 = vmatprep.subr.mxu0 0.0
  %6592 = vmatpush1.msra.mxu0 %v420
  %6593 = vmatprep.subr.mxu0 0.0
  %6594 = vmatpush1.msra.mxu0 %v419
  %6595 = vmatprep.subr.mxu0 0.0
  %6596 = vmatpush2.msra.mxu0 0.0
  %6597 = vmatprep.subr.mxu0 0.0
  %6598 = vmatpush2.msra.mxu0 0.0
  %6599 = vmatprep.subr.mxu0 0.0
  %6600 = vmatpush2.msra.mxu0 0.0
  %6601 = vmatprep.subr.mxu0 0.0
  %6602 = vmatpush2.msra.mxu0 0.0
  %6603 = vmatprep.subr.mxu0 0.0
  %6604 = vmatpush2.msra.mxu0 0.0
  %6605 = vmatprep.subr.mxu0 0.0
  %6606 = vmatpush2.msra.mxu0 0.0
  %6607 = vmatprep.subr.mxu0 0.0
  %6608 = vmatpush2.msra.mxu0 0.0
  %6609 = vmatprep.subr.mxu0 0.0
  %6610 = vmatpush2.msra.mxu0 0.0
  %6611 = vmatprep.subr.mxu0 0.0
  %6612 = vmatpush2.msra.mxu0 0.0
  %6613 = vmatprep.subr.mxu0 0.0
  %6614 = vmatpush2.msra.mxu0 0.0
  %6615 = vmatprep.subr.mxu0 0.0
  %6616 = vmatpush2.msra.mxu0 0.0
  %6617 = vmatprep.subr.mxu0 0.0
  %6618 = vmatpush2.msra.mxu0 0.0
  %6619 = vmatprep.subr.mxu0 0.0
  %6620 = vmatpush2.msra.mxu0 0.0
  %6621 = vmatprep.subr.mxu0 0.0
  %6622 = vmatpush2.msra.mxu0 0.0
  %6623 = vmatprep.subr.mxu0 0.0
  %6624 = vmatpush2.msra.mxu0 0.0
  %6625 = vmatprep.subr.mxu0 0.0
  %6626 = vmatpush2.msra.mxu0 0.0
  %6627 = vmatprep.mubr.f32.mxu0 0.0
  %6628 = vmatmul.mubr.f32.gmra.mxu0 %v6491
  %v6629 = vpop.f32.mrf.mxu0
  %v6630 = vadd.f32 0.0, %v6629
  %v6631 = vpop.f32.mrf.mxu0
  %6632 = vdwg.mxu0
  %v6633 = vadd.f32 %v5869, %v6630
  %v6634 = vadd.f32 %v6633, %v426
  %v6635 = vsel %vm261, %v6408, 0
  %6637 = vmatprep.subr.mxu0 0.0
  %6638 = vmatpush1.msra.mxu0 0.0
  %6639 = vmatprep.subr.mxu0 0.0
  %6640 = vmatpush1.msra.mxu0 0.0
  %6641 = vmatprep.subr.mxu0 0.0
  %6642 = vmatpush1.msra.mxu0 0.0
  %6643 = vmatprep.subr.mxu0 0.0
  %6644 = vmatpush1.msra.mxu0 0.0
  %6645 = vmatprep.subr.mxu0 0.0
  %6646 = vmatpush1.msra.mxu0 0.0
  %6647 = vmatprep.subr.mxu0 0.0
  %6648 = vmatpush1.msra.mxu0 0.0
  %6649 = vmatprep.subr.mxu0 0.0
  %6650 = vmatpush1.msra.mxu0 0.0
  %6651 = vmatprep.subr.mxu0 0.0
  %6652 = vmatpush1.msra.mxu0 0.0
  %6653 = vmatprep.subr.mxu0 0.0
  %6654 = vmatpush1.msra.mxu0 0.0
  %6655 = vmatprep.subr.mxu0 0.0
  %6656 = vmatpush1.msra.mxu0 0.0
  %6657 = vmatprep.subr.mxu0 0.0
  %6658 = vmatpush1.msra.mxu0 0.0
  %6659 = vmatprep.subr.mxu0 0.0
  %6660 = vmatpush1.msra.mxu0 0.0
  %6661 = vmatprep.subr.mxu0 0.0
  %6662 = vmatpush1.msra.mxu0 0.0
  %6663 = vmatprep.subr.mxu0 0.0
  %6664 = vmatpush1.msra.mxu0 0.0
  %6665 = vmatprep.subr.mxu0 0.0
  %6666 = vmatpush1.msra.mxu0 %v366
  %6667 = vmatprep.subr.mxu0 0.0
  %6668 = vmatpush1.msra.mxu0 %v365
  %6669 = vmatprep.subr.mxu0 0.0
  %6670 = vmatpush2.msra.mxu0 0.0
  %6671 = vmatprep.subr.mxu0 0.0
  %6672 = vmatpush2.msra.mxu0 0.0
  %6673 = vmatprep.subr.mxu0 0.0
  %6674 = vmatpush2.msra.mxu0 0.0
  %6675 = vmatprep.subr.mxu0 0.0
  %6676 = vmatpush2.msra.mxu0 0.0
  %6677 = vmatprep.subr.mxu0 0.0
  %6678 = vmatpush2.msra.mxu0 0.0
  %6679 = vmatprep.subr.mxu0 0.0
  %6680 = vmatpush2.msra.mxu0 0.0
  %6681 = vmatprep.subr.mxu0 0.0
  %6682 = vmatpush2.msra.mxu0 0.0
  %6683 = vmatprep.subr.mxu0 0.0
  %6684 = vmatpush2.msra.mxu0 0.0
  %6685 = vmatprep.subr.mxu0 0.0
  %6686 = vmatpush2.msra.mxu0 0.0
  %6687 = vmatprep.subr.mxu0 0.0
  %6688 = vmatpush2.msra.mxu0 0.0
  %6689 = vmatprep.subr.mxu0 0.0
  %6690 = vmatpush2.msra.mxu0 0.0
  %6691 = vmatprep.subr.mxu0 0.0
  %6692 = vmatpush2.msra.mxu0 0.0
  %6693 = vmatprep.subr.mxu0 0.0
  %6694 = vmatpush2.msra.mxu0 0.0
  %6695 = vmatprep.subr.mxu0 0.0
  %6696 = vmatpush2.msra.mxu0 0.0
  %6697 = vmatprep.subr.mxu0 0.0
  %6698 = vmatpush2.msra.mxu0 0.0
  %6699 = vmatprep.subr.mxu0 0.0
  %6700 = vmatpush2.msra.mxu0 0.0
  %6701 = vmatprep.mubr.f32.mxu0 0.0
  %6702 = vmatmul.mubr.f32.gmra.mxu0 %v6635
  %v6703 = vpop.f32.mrf.mxu0
  %v6704 = vadd.f32 %v6560, %v6703
  %v6705 = vpop.f32.mrf.mxu0
  %6706 = vdwg.mxu0
  %v6707 = vadd.f32 %v6704, %v373
  %v6708 = vmax.f32 %v6707, 0.0
  %6709 = vmatprep.subr.mxu0 0.0
  %6710 = vmatpush1.msra.mxu0 0.0
  %6711 = vmatprep.subr.mxu0 0.0
  %6712 = vmatpush1.msra.mxu0 0.0
  %6713 = vmatprep.subr.mxu0 0.0
  %6714 = vmatpush1.msra.mxu0 0.0
  %6715 = vmatprep.subr.mxu0 0.0
  %6716 = vmatpush1.msra.mxu0 0.0
  %6717 = vmatprep.subr.mxu0 0.0
  %6718 = vmatpush1.msra.mxu0 0.0
  %6719 = vmatprep.subr.mxu0 0.0
  %6720 = vmatpush1.msra.mxu0 0.0
  %6721 = vmatprep.subr.mxu0 0.0
  %6722 = vmatpush1.msra.mxu0 0.0
  %6723 = vmatprep.subr.mxu0 0.0
  %6724 = vmatpush1.msra.mxu0 0.0
  %6725 = vmatprep.subr.mxu0 0.0
  %6726 = vmatpush1.msra.mxu0 0.0
  %6727 = vmatprep.subr.mxu0 0.0
  %6728 = vmatpush1.msra.mxu0 0.0
  %6729 = vmatprep.subr.mxu0 0.0
  %6730 = vmatpush1.msra.mxu0 0.0
  %6731 = vmatprep.subr.mxu0 0.0
  %6732 = vmatpush1.msra.mxu0 0.0
  %6733 = vmatprep.subr.mxu0 0.0
  %6734 = vmatpush1.msra.mxu0 0.0
  %6735 = vmatprep.subr.mxu0 0.0
  %6736 = vmatpush1.msra.mxu0 0.0
  %6737 = vmatprep.subr.mxu0 0.0
  %6738 = vmatpush1.msra.mxu0 %v378
  %6739 = vmatprep.subr.mxu0 0.0
  %6740 = vmatpush1.msra.mxu0 %v377
  %6741 = vmatprep.subr.mxu0 0.0
  %6742 = vmatpush2.msra.mxu0 0.0
  %6743 = vmatprep.subr.mxu0 0.0
  %6744 = vmatpush2.msra.mxu0 0.0
  %6745 = vmatprep.subr.mxu0 0.0
  %6746 = vmatpush2.msra.mxu0 0.0
  %6747 = vmatprep.subr.mxu0 0.0
  %6748 = vmatpush2.msra.mxu0 0.0
  %6749 = vmatprep.subr.mxu0 0.0
  %6750 = vmatpush2.msra.mxu0 0.0
  %6751 = vmatprep.subr.mxu0 0.0
  %6752 = vmatpush2.msra.mxu0 0.0
  %6753 = vmatprep.subr.mxu0 0.0
  %6754 = vmatpush2.msra.mxu0 0.0
  %6755 = vmatprep.subr.mxu0 0.0
  %6756 = vmatpush2.msra.mxu0 0.0
  %6757 = vmatprep.subr.mxu0 0.0
  %6758 = vmatpush2.msra.mxu0 0.0
  %6759 = vmatprep.subr.mxu0 0.0
  %6760 = vmatpush2.msra.mxu0 0.0
  %6761 = vmatprep.subr.mxu0 0.0
  %6762 = vmatpush2.msra.mxu0 0.0
  %6763 = vmatprep.subr.mxu0 0.0
  %6764 = vmatpush2.msra.mxu0 0.0
  %6765 = vmatprep.subr.mxu0 0.0
  %6766 = vmatpush2.msra.mxu0 0.0
  %6767 = vmatprep.subr.mxu0 0.0
  %6768 = vmatpush2.msra.mxu0 0.0
  %6769 = vmatprep.subr.mxu0 0.0
  %6770 = vmatpush2.msra.mxu0 0.0
  %6771 = vmatprep.subr.mxu0 0.0
  %6772 = vmatpush2.msra.mxu0 0.0
  %6773 = vmatprep.mubr.f32.mxu0 0.0
  %6774 = vmatmul.mubr.f32.gmra.mxu0 %v6262
  %v6775 = vpop.f32.mrf.mxu0
  %v6776 = vadd.f32 0.0, %v6775
  %v6777 = vpop.f32.mrf.mxu0
  %6778 = vdwg.mxu0
  %v6780 = vsel %vm261, %v6708, 0
  %6782 = vmatprep.subr.mxu0 0.0
  %6783 = vmatpush1.msra.mxu0 0.0
  %6784 = vmatprep.subr.mxu0 0.0
  %6785 = vmatpush1.msra.mxu0 0.0
  %6786 = vmatprep.subr.mxu0 0.0
  %6787 = vmatpush1.msra.mxu0 0.0
  %6788 = vmatprep.subr.mxu0 0.0
  %6789 = vmatpush1.msra.mxu0 0.0
  %6790 = vmatprep.subr.mxu0 0.0
  %6791 = vmatpush1.msra.mxu0 0.0
  %6792 = vmatprep.subr.mxu0 0.0
  %6793 = vmatpush1.msra.mxu0 0.0
  %6794 = vmatprep.subr.mxu0 0.0
  %6795 = vmatpush1.msra.mxu0 0.0
  %6796 = vmatprep.subr.mxu0 0.0
  %6797 = vmatpush1.msra.mxu0 0.0
  %6798 = vmatprep.subr.mxu0 0.0
  %6799 = vmatpush1.msra.mxu0 0.0
  %6800 = vmatprep.subr.mxu0 0.0
  %6801 = vmatpush1.msra.mxu0 0.0
  %6802 = vmatprep.subr.mxu0 0.0
  %6803 = vmatpush1.msra.mxu0 0.0
  %6804 = vmatprep.subr.mxu0 0.0
  %6805 = vmatpush1.msra.mxu0 0.0
  %6806 = vmatprep.subr.mxu0 0.0
  %6807 = vmatpush1.msra.mxu0 0.0
  %6808 = vmatprep.subr.mxu0 0.0
  %6809 = vmatpush1.msra.mxu0 0.0
  %6810 = vmatprep.subr.mxu0 0.0
  %6811 = vmatpush1.msra.mxu0 %v376
  %6812 = vmatprep.subr.mxu0 0.0
  %6813 = vmatpush1.msra.mxu0 %v375
  %6814 = vmatprep.subr.mxu0 0.0
  %6815 = vmatpush2.msra.mxu0 0.0
  %6816 = vmatprep.subr.mxu0 0.0
  %6817 = vmatpush2.msra.mxu0 0.0
  %6818 = vmatprep.subr.mxu0 0.0
  %6819 = vmatpush2.msra.mxu0 0.0
  %6820 = vmatprep.subr.mxu0 0.0
  %6821 = vmatpush2.msra.mxu0 0.0
  %6822 = vmatprep.subr.mxu0 0.0
  %6823 = vmatpush2.msra.mxu0 0.0
  %6824 = vmatprep.subr.mxu0 0.0
  %6825 = vmatpush2.msra.mxu0 0.0
  %6826 = vmatprep.subr.mxu0 0.0
  %6827 = vmatpush2.msra.mxu0 0.0
  %6828 = vmatprep.subr.mxu0 0.0
  %6829 = vmatpush2.msra.mxu0 0.0
  %6830 = vmatprep.subr.mxu0 0.0
  %6831 = vmatpush2.msra.mxu0 0.0
  %6832 = vmatprep.subr.mxu0 0.0
  %6833 = vmatpush2.msra.mxu0 0.0
  %6834 = vmatprep.subr.mxu0 0.0
  %6835 = vmatpush2.msra.mxu0 0.0
  %6836 = vmatprep.subr.mxu0 0.0
  %6837 = vmatpush2.msra.mxu0 0.0
  %6838 = vmatprep.subr.mxu0 0.0
  %6839 = vmatpush2.msra.mxu0 0.0
  %6840 = vmatprep.subr.mxu0 0.0
  %6841 = vmatpush2.msra.mxu0 0.0
  %6842 = vmatprep.subr.mxu0 0.0
  %6843 = vmatpush2.msra.mxu0 0.0
  %6844 = vmatprep.subr.mxu0 0.0
  %6845 = vmatpush2.msra.mxu0 0.0
  %6846 = vmatprep.mubr.f32.mxu0 0.0
  %6847 = vmatmul.mubr.f32.gmra.mxu0 %v6780
  %v6848 = vpop.f32.mrf.mxu0
  %v6849 = vadd.f32 %v6776, %v6848
  %v6850 = vpop.f32.mrf.mxu0
  %6851 = vdwg.mxu0
  %v6852 = vadd.f32 %v6849, %v384
  %v6853 = vxor.u32 %v6852, 2147483648
  %v6854 = vmul.f32 %v6853, 1.442695
  %v6855 = vpow.pop %v6854
  %v6856 = vadd.f32 %v6855, 1.0
  %v6857 = vrcp.pop %v6856
  %v6858 = vmul.f32 1.0, %v6857
  %v6859 = vtanh.pop %v6852
  %v6860 = vmul.f32 %v6858, %v6105
  %6862 = vrot.lane.b32.xlu0 %v6859, 96
  %v6863 = vpop.permute.xlu0 %6862
  %v6865 = vmul.f32 %v6858, %v6863
  %6867 = vrot.lane.b32.xlu0 %v6865, 16
  %v6868 = vpop.permute.xlu0 %6867
  %v6870 = vadd.f32 %v6860, %v6868
  %v6871 = vtanh.pop %v6870
  %6873 = vrot.lane.b32.xlu0 %v6871, 32
  %v6874 = vpop.permute.xlu0 %6873
  %v6876 = vmul.f32 %v6858, %v6874
  %6877 = vmatprep.subr.mxu0 0.0
  %6878 = vmatpush1.msra.mxu0 0.0
  %6879 = vmatprep.subr.mxu0 0.0
  %6880 = vmatpush1.msra.mxu0 0.0
  %6881 = vmatprep.subr.mxu0 0.0
  %6882 = vmatpush1.msra.mxu0 0.0
  %6883 = vmatprep.subr.mxu0 0.0
  %6884 = vmatpush1.msra.mxu0 0.0
  %6885 = vmatprep.subr.mxu0 0.0
  %6886 = vmatpush1.msra.mxu0 0.0
  %6887 = vmatprep.subr.mxu0 0.0
  %6888 = vmatpush1.msra.mxu0 0.0
  %6889 = vmatprep.subr.mxu0 0.0
  %6890 = vmatpush1.msra.mxu0 0.0
  %6891 = vmatprep.subr.mxu0 0.0
  %6892 = vmatpush1.msra.mxu0 0.0
  %6893 = vmatprep.subr.mxu0 0.0
  %6894 = vmatpush1.msra.mxu0 0.0
  %6895 = vmatprep.subr.mxu0 0.0
  %6896 = vmatpush1.msra.mxu0 0.0
  %6897 = vmatprep.subr.mxu0 0.0
  %6898 = vmatpush1.msra.mxu0 0.0
  %6899 = vmatprep.subr.mxu0 0.0
  %6900 = vmatpush1.msra.mxu0 0.0
  %6901 = vmatprep.subr.mxu0 0.0
  %6902 = vmatpush1.msra.mxu0 0.0
  %6903 = vmatprep.subr.mxu0 0.0
  %6904 = vmatpush1.msra.mxu0 0.0
  %6905 = vmatprep.subr.mxu0 0.0
  %6906 = vmatpush1.msra.mxu0 0.0
  %6907 = vmatprep.subr.mxu0 0.0
  %6908 = vmatpush1.msra.mxu0 %v6634
  %6909 = vmatprep.subr.mxu0 0.0
  %6910 = vmatpush2.msra.mxu0 0.0
  %6911 = vmatprep.subr.mxu0 0.0
  %6912 = vmatpush2.msra.mxu0 0.0
  %6913 = vmatprep.subr.mxu0 0.0
  %6914 = vmatpush2.msra.mxu0 0.0
  %6915 = vmatprep.subr.mxu0 0.0
  %6916 = vmatpush2.msra.mxu0 0.0
  %6917 = vmatprep.subr.mxu0 0.0
  %6918 = vmatpush2.msra.mxu0 0.0
  %6919 = vmatprep.subr.mxu0 0.0
  %6920 = vmatpush2.msra.mxu0 0.0
  %6921 = vmatprep.subr.mxu0 0.0
  %6922 = vmatpush2.msra.mxu0 0.0
  %6923 = vmatprep.subr.mxu0 0.0
  %6924 = vmatpush2.msra.mxu0 0.0
  %6925 = vmatprep.subr.mxu0 0.0
  %6926 = vmatpush2.msra.mxu0 0.0
  %6927 = vmatprep.subr.mxu0 0.0
  %6928 = vmatpush2.msra.mxu0 0.0
  %6929 = vmatprep.subr.mxu0 0.0
  %6930 = vmatpush2.msra.mxu0 0.0
  %6931 = vmatprep.subr.mxu0 0.0
  %6932 = vmatpush2.msra.mxu0 0.0
  %6933 = vmatprep.subr.mxu0 0.0
  %6934 = vmatpush2.msra.mxu0 0.0
  %6935 = vmatprep.subr.mxu0 0.0
  %6936 = vmatpush2.msra.mxu0 0.0
  %6937 = vmatprep.subr.mxu0 0.0
  %6938 = vmatpush2.msra.mxu0 0.0
  %6939 = vmatprep.subr.mxu0 0.0
  %6940 = vmatpush2.msra.mxu0 0.0
  %6941 = vmatprep.mubr.f32.mxu0 0.0
  %6942 = vmatmul.mubr.f32.gmra.mxu0 %v749
  %v6943 = vpop.f32.mrf.mxu0
  %v6944 = vadd.f32 %v392, %v6943
  %v6945 = vpop.f32.mrf.mxu0
  %6946 = vmatprep.mubr.f32.mxu0 0.0
  %6947 = vmatmul.mubr.f32.gmra.mxu0 %v752
  %v6948 = vpop.f32.mrf.mxu0
  %v6949 = vadd.f32 %v392, %v6948
  %v6950 = vpop.f32.mrf.mxu0
  %6951 = vdwg.mxu0
  %v6952 = vmax.f32 %v6944, 0.0
  %v6953 = vmax.f32 %v6949, 0.0
  %6954 = vmatprep.subr.mxu0 0.0
  %6955 = vmatpush1.msra.mxu0 0.0
  %6956 = vmatprep.subr.mxu0 0.0
  %6957 = vmatpush1.msra.mxu0 0.0
  %6958 = vmatprep.subr.mxu0 0.0
  %6959 = vmatpush1.msra.mxu0 0.0
  %6960 = vmatprep.subr.mxu0 0.0
  %6961 = vmatpush1.msra.mxu0 0.0
  %6962 = vmatprep.subr.mxu0 0.0
  %6963 = vmatpush1.msra.mxu0 0.0
  %6964 = vmatprep.subr.mxu0 0.0
  %6965 = vmatpush1.msra.mxu0 0.0
  %6966 = vmatprep.subr.mxu0 0.0
  %6967 = vmatpush1.msra.mxu0 0.0
  %6968 = vmatprep.subr.mxu0 0.0
  %6969 = vmatpush1.msra.mxu0 0.0
  %6970 = vmatprep.subr.mxu0 0.0
  %6971 = vmatpush1.msra.mxu0 0.0
  %6972 = vmatprep.subr.mxu0 0.0
  %6973 = vmatpush1.msra.mxu0 0.0
  %6974 = vmatprep.subr.mxu0 0.0
  %6975 = vmatpush1.msra.mxu0 0.0
  %6976 = vmatprep.subr.mxu0 0.0
  %6977 = vmatpush1.msra.mxu0 0.0
  %6978 = vmatprep.subr.mxu0 0.0
  %6979 = vmatpush1.msra.mxu0 0.0
  %6980 = vmatprep.subr.mxu0 0.0
  %6981 = vmatpush1.msra.mxu0 0.0
  %6982 = vmatprep.subr.mxu0 0.0
  %6983 = vmatpush1.msra.mxu0 %v6953
  %6984 = vmatprep.subr.mxu0 0.0
  %6985 = vmatpush1.msra.mxu0 %v6952
  %6986 = vmatprep.subr.mxu0 0.0
  %6987 = vmatpush2.msra.mxu0 0.0
  %6988 = vmatprep.subr.mxu0 0.0
  %6989 = vmatpush2.msra.mxu0 0.0
  %6990 = vmatprep.subr.mxu0 0.0
  %6991 = vmatpush2.msra.mxu0 0.0
  %6992 = vmatprep.subr.mxu0 0.0
  %6993 = vmatpush2.msra.mxu0 0.0
  %6994 = vmatprep.subr.mxu0 0.0
  %6995 = vmatpush2.msra.mxu0 0.0
  %6996 = vmatprep.subr.mxu0 0.0
  %6997 = vmatpush2.msra.mxu0 0.0
  %6998 = vmatprep.subr.mxu0 0.0
  %6999 = vmatpush2.msra.mxu0 0.0
  %7000 = vmatprep.subr.mxu0 0.0
  %7001 = vmatpush2.msra.mxu0 0.0
  %7002 = vmatprep.subr.mxu0 0.0
  %7003 = vmatpush2.msra.mxu0 0.0
  %7004 = vmatprep.subr.mxu0 0.0
  %7005 = vmatpush2.msra.mxu0 0.0
  %7006 = vmatprep.subr.mxu0 0.0
  %7007 = vmatpush2.msra.mxu0 0.0
  %7008 = vmatprep.subr.mxu0 0.0
  %7009 = vmatpush2.msra.mxu0 0.0
  %7010 = vmatprep.subr.mxu0 0.0
  %7011 = vmatpush2.msra.mxu0 0.0
  %7012 = vmatprep.subr.mxu0 0.0
  %7013 = vmatpush2.msra.mxu0 0.0
  %7014 = vmatprep.subr.mxu0 0.0
  %7015 = vmatpush2.msra.mxu0 0.0
  %7016 = vmatprep.subr.mxu0 0.0
  %7017 = vmatpush2.msra.mxu0 0.0
  %7018 = vmatprep.mubr.f32.mxu0 0.0
  %7019 = vmatmul.mubr.f32.gmra.mxu0 %v832
  %v7020 = vpop.f32.mrf.mxu0
  %v7021 = vadd.f32 0.0, %v7020
  %v7022 = vpop.f32.mrf.mxu0
  %7023 = vdwg.mxu0
  %7025 = vrot.lane.b32.xlu0 %v6876, 80
  %v7026 = vpop.permute.xlu0 %7025
  %v7027 = vsel %vm261, %v7026, 0
  %7029 = vmatprep.subr.mxu0 0.0
  %7030 = vmatpush1.msra.mxu0 0.0
  %7031 = vmatprep.subr.mxu0 0.0
  %7032 = vmatpush1.msra.mxu0 0.0
  %7033 = vmatprep.subr.mxu0 0.0
  %7034 = vmatpush1.msra.mxu0 0.0
  %7035 = vmatprep.subr.mxu0 0.0
  %7036 = vmatpush1.msra.mxu0 0.0
  %7037 = vmatprep.subr.mxu0 0.0
  %7038 = vmatpush1.msra.mxu0 0.0
  %7039 = vmatprep.subr.mxu0 0.0
  %7040 = vmatpush1.msra.mxu0 0.0
  %7041 = vmatprep.subr.mxu0 0.0
  %7042 = vmatpush1.msra.mxu0 0.0
  %7043 = vmatprep.subr.mxu0 0.0
  %7044 = vmatpush1.msra.mxu0 0.0
  %7045 = vmatprep.subr.mxu0 0.0
  %7046 = vmatpush1.msra.mxu0 0.0
  %7047 = vmatprep.subr.mxu0 0.0
  %7048 = vmatpush1.msra.mxu0 0.0
  %7049 = vmatprep.subr.mxu0 0.0
  %7050 = vmatpush1.msra.mxu0 0.0
  %7051 = vmatprep.subr.mxu0 0.0
  %7052 = vmatpush1.msra.mxu0 0.0
  %7053 = vmatprep.subr.mxu0 0.0
  %7054 = vmatpush1.msra.mxu0 0.0
  %7055 = vmatprep.subr.mxu0 0.0
  %7056 = vmatpush1.msra.mxu0 0.0
  %7057 = vmatprep.subr.mxu0 0.0
  %7058 = vmatpush1.msra.mxu0 %v397
  %7059 = vmatprep.subr.mxu0 0.0
  %7060 = vmatpush1.msra.mxu0 %v396
  %7061 = vmatprep.subr.mxu0 0.0
  %7062 = vmatpush2.msra.mxu0 0.0
  %7063 = vmatprep.subr.mxu0 0.0
  %7064 = vmatpush2.msra.mxu0 0.0
  %7065 = vmatprep.subr.mxu0 0.0
  %7066 = vmatpush2.msra.mxu0 0.0
  %7067 = vmatprep.subr.mxu0 0.0
  %7068 = vmatpush2.msra.mxu0 0.0
  %7069 = vmatprep.subr.mxu0 0.0
  %7070 = vmatpush2.msra.mxu0 0.0
  %7071 = vmatprep.subr.mxu0 0.0
  %7072 = vmatpush2.msra.mxu0 0.0
  %7073 = vmatprep.subr.mxu0 0.0
  %7074 = vmatpush2.msra.mxu0 0.0
  %7075 = vmatprep.subr.mxu0 0.0
  %7076 = vmatpush2.msra.mxu0 0.0
  %7077 = vmatprep.subr.mxu0 0.0
  %7078 = vmatpush2.msra.mxu0 0.0
  %7079 = vmatprep.subr.mxu0 0.0
  %7080 = vmatpush2.msra.mxu0 0.0
  %7081 = vmatprep.subr.mxu0 0.0
  %7082 = vmatpush2.msra.mxu0 0.0
  %7083 = vmatprep.subr.mxu0 0.0
  %7084 = vmatpush2.msra.mxu0 0.0
  %7085 = vmatprep.subr.mxu0 0.0
  %7086 = vmatpush2.msra.mxu0 0.0
  %7087 = vmatprep.subr.mxu0 0.0
  %7088 = vmatpush2.msra.mxu0 0.0
  %7089 = vmatprep.subr.mxu0 0.0
  %7090 = vmatpush2.msra.mxu0 0.0
  %7091 = vmatprep.subr.mxu0 0.0
  %7092 = vmatpush2.msra.mxu0 0.0
  %7093 = vmatprep.mubr.f32.mxu0 0.0
  %7094 = vmatmul.mubr.f32.gmra.mxu0 %v7027
  %v7095 = vpop.f32.mrf.mxu0
  %v7096 = vadd.f32 0.0, %v7095
  %v7097 = vpop.f32.mrf.mxu0
  %7098 = vdwg.mxu0
  %v7100 = vsel %vm261, %v7021, 0
  %7102 = vmatprep.subr.mxu0 0.0
  %7103 = vmatpush1.msra.mxu0 0.0
  %7104 = vmatprep.subr.mxu0 0.0
  %7105 = vmatpush1.msra.mxu0 0.0
  %7106 = vmatprep.subr.mxu0 0.0
  %7107 = vmatpush1.msra.mxu0 0.0
  %7108 = vmatprep.subr.mxu0 0.0
  %7109 = vmatpush1.msra.mxu0 0.0
  %7110 = vmatprep.subr.mxu0 0.0
  %7111 = vmatpush1.msra.mxu0 0.0
  %7112 = vmatprep.subr.mxu0 0.0
  %7113 = vmatpush1.msra.mxu0 0.0
  %7114 = vmatprep.subr.mxu0 0.0
  %7115 = vmatpush1.msra.mxu0 0.0
  %7116 = vmatprep.subr.mxu0 0.0
  %7117 = vmatpush1.msra.mxu0 0.0
  %7118 = vmatprep.subr.mxu0 0.0
  %7119 = vmatpush1.msra.mxu0 0.0
  %7120 = vmatprep.subr.mxu0 0.0
  %7121 = vmatpush1.msra.mxu0 0.0
  %7122 = vmatprep.subr.mxu0 0.0
  %7123 = vmatpush1.msra.mxu0 0.0
  %7124 = vmatprep.subr.mxu0 0.0
  %7125 = vmatpush1.msra.mxu0 0.0
  %7126 = vmatprep.subr.mxu0 0.0
  %7127 = vmatpush1.msra.mxu0 0.0
  %7128 = vmatprep.subr.mxu0 0.0
  %7129 = vmatpush1.msra.mxu0 0.0
  %7130 = vmatprep.subr.mxu0 0.0
  %7131 = vmatpush1.msra.mxu0 %v395
  %7132 = vmatprep.subr.mxu0 0.0
  %7133 = vmatpush1.msra.mxu0 %v394
  %7134 = vmatprep.subr.mxu0 0.0
  %7135 = vmatpush2.msra.mxu0 0.0
  %7136 = vmatprep.subr.mxu0 0.0
  %7137 = vmatpush2.msra.mxu0 0.0
  %7138 = vmatprep.subr.mxu0 0.0
  %7139 = vmatpush2.msra.mxu0 0.0
  %7140 = vmatprep.subr.mxu0 0.0
  %7141 = vmatpush2.msra.mxu0 0.0
  %7142 = vmatprep.subr.mxu0 0.0
  %7143 = vmatpush2.msra.mxu0 0.0
  %7144 = vmatprep.subr.mxu0 0.0
  %7145 = vmatpush2.msra.mxu0 0.0
  %7146 = vmatprep.subr.mxu0 0.0
  %7147 = vmatpush2.msra.mxu0 0.0
  %7148 = vmatprep.subr.mxu0 0.0
  %7149 = vmatpush2.msra.mxu0 0.0
  %7150 = vmatprep.subr.mxu0 0.0
  %7151 = vmatpush2.msra.mxu0 0.0
  %7152 = vmatprep.subr.mxu0 0.0
  %7153 = vmatpush2.msra.mxu0 0.0
  %7154 = vmatprep.subr.mxu0 0.0
  %7155 = vmatpush2.msra.mxu0 0.0
  %7156 = vmatprep.subr.mxu0 0.0
  %7157 = vmatpush2.msra.mxu0 0.0
  %7158 = vmatprep.subr.mxu0 0.0
  %7159 = vmatpush2.msra.mxu0 0.0
  %7160 = vmatprep.subr.mxu0 0.0
  %7161 = vmatpush2.msra.mxu0 0.0
  %7162 = vmatprep.subr.mxu0 0.0
  %7163 = vmatpush2.msra.mxu0 0.0
  %7164 = vmatprep.subr.mxu0 0.0
  %7165 = vmatpush2.msra.mxu0 0.0
  %7166 = vmatprep.mubr.f32.mxu0 0.0
  %7167 = vmatmul.mubr.f32.gmra.mxu0 %v7100
  %v7168 = vpop.f32.mrf.mxu0
  %v7169 = vadd.f32 %v7096, %v7168
  %v7170 = vpop.f32.mrf.mxu0
  %7171 = vdwg.mxu0
  %v7172 = vadd.f32 %v7169, %v403
  %v7173 = vmax.f32 %v7172, 0.0
  %7175 = vrot.lane.b32.xlu0 %v7173, 48
  %v7176 = vpop.permute.xlu0 %7175
  %v7178 = vadd.f32 %v6876, %v7176
  %7180 = vrot.lane.b32.xlu0 %v7178, 80
  %v7181 = vpop.permute.xlu0 %7180
  %v7182 = vsel %vm261, %v7181, 0
  %7184 = vmatprep.subr.mxu0 0.0
  %7185 = vmatpush1.msra.mxu0 0.0
  %7186 = vmatprep.subr.mxu0 0.0
  %7187 = vmatpush1.msra.mxu0 0.0
  %7188 = vmatprep.subr.mxu0 0.0
  %7189 = vmatpush1.msra.mxu0 0.0
  %7190 = vmatprep.subr.mxu0 0.0
  %7191 = vmatpush1.msra.mxu0 0.0
  %7192 = vmatprep.subr.mxu0 0.0
  %7193 = vmatpush1.msra.mxu0 0.0
  %7194 = vmatprep.subr.mxu0 0.0
  %7195 = vmatpush1.msra.mxu0 0.0
  %7196 = vmatprep.subr.mxu0 0.0
  %7197 = vmatpush1.msra.mxu0 0.0
  %7198 = vmatprep.subr.mxu0 0.0
  %7199 = vmatpush1.msra.mxu0 0.0
  %7200 = vmatprep.subr.mxu0 0.0
  %7201 = vmatpush1.msra.mxu0 0.0
  %7202 = vmatprep.subr.mxu0 0.0
  %7203 = vmatpush1.msra.mxu0 0.0
  %7204 = vmatprep.subr.mxu0 0.0
  %7205 = vmatpush1.msra.mxu0 0.0
  %7206 = vmatprep.subr.mxu0 0.0
  %7207 = vmatpush1.msra.mxu0 0.0
  %7208 = vmatprep.subr.mxu0 0.0
  %7209 = vmatpush1.msra.mxu0 0.0
  %7210 = vmatprep.subr.mxu0 0.0
  %7211 = vmatpush1.msra.mxu0 0.0
  %7212 = vmatprep.subr.mxu0 0.0
  %7213 = vmatpush1.msra.mxu0 %v406
  %7214 = vmatprep.subr.mxu0 0.0
  %7215 = vmatpush1.msra.mxu0 %v405
  %7216 = vmatprep.subr.mxu0 0.0
  %7217 = vmatpush2.msra.mxu0 0.0
  %7218 = vmatprep.subr.mxu0 0.0
  %7219 = vmatpush2.msra.mxu0 0.0
  %7220 = vmatprep.subr.mxu0 0.0
  %7221 = vmatpush2.msra.mxu0 0.0
  %7222 = vmatprep.subr.mxu0 0.0
  %7223 = vmatpush2.msra.mxu0 0.0
  %7224 = vmatprep.subr.mxu0 0.0
  %7225 = vmatpush2.msra.mxu0 0.0
  %7226 = vmatprep.subr.mxu0 0.0
  %7227 = vmatpush2.msra.mxu0 0.0
  %7228 = vmatprep.subr.mxu0 0.0
  %7229 = vmatpush2.msra.mxu0 0.0
  %7230 = vmatprep.subr.mxu0 0.0
  %7231 = vmatpush2.msra.mxu0 0.0
  %7232 = vmatprep.subr.mxu0 0.0
  %7233 = vmatpush2.msra.mxu0 0.0
  %7234 = vmatprep.subr.mxu0 0.0
  %7235 = vmatpush2.msra.mxu0 0.0
  %7236 = vmatprep.subr.mxu0 0.0
  %7237 = vmatpush2.msra.mxu0 0.0
  %7238 = vmatprep.subr.mxu0 0.0
  %7239 = vmatpush2.msra.mxu0 0.0
  %7240 = vmatprep.subr.mxu0 0.0
  %7241 = vmatpush2.msra.mxu0 0.0
  %7242 = vmatprep.subr.mxu0 0.0
  %7243 = vmatpush2.msra.mxu0 0.0
  %7244 = vmatprep.subr.mxu0 0.0
  %7245 = vmatpush2.msra.mxu0 0.0
  %7246 = vmatprep.subr.mxu0 0.0
  %7247 = vmatpush2.msra.mxu0 0.0
  %7248 = vmatprep.mubr.f32.mxu0 0.0
  %7249 = vmatmul.mubr.f32.gmra.mxu0 %v7182
  %v7250 = vpop.f32.mrf.mxu0
  %v7251 = vadd.f32 %v458, %v7250
  %v7252 = vpop.f32.mrf.mxu0
  %7253 = vdwg.mxu0
  %v7254 = vmax.f32 %v7251, 0.0
  %v7256 = vsel %vm261, %v7254, 0
  %7258 = vmatprep.subr.mxu0 0.0
  %7259 = vmatpush1.msra.mxu0 0.0
  %7260 = vmatprep.subr.mxu0 0.0
  %7261 = vmatpush1.msra.mxu0 0.0
  %7262 = vmatprep.subr.mxu0 0.0
  %7263 = vmatpush1.msra.mxu0 0.0
  %7264 = vmatprep.subr.mxu0 0.0
  %7265 = vmatpush1.msra.mxu0 0.0
  %7266 = vmatprep.subr.mxu0 0.0
  %7267 = vmatpush1.msra.mxu0 0.0
  %7268 = vmatprep.subr.mxu0 0.0
  %7269 = vmatpush1.msra.mxu0 0.0
  %7270 = vmatprep.subr.mxu0 0.0
  %7271 = vmatpush1.msra.mxu0 0.0
  %7272 = vmatprep.subr.mxu0 0.0
  %7273 = vmatpush1.msra.mxu0 0.0
  %7274 = vmatprep.subr.mxu0 0.0
  %7275 = vmatpush1.msra.mxu0 0.0
  %7276 = vmatprep.subr.mxu0 0.0
  %7277 = vmatpush1.msra.mxu0 0.0
  %7278 = vmatprep.subr.mxu0 0.0
  %7279 = vmatpush1.msra.mxu0 0.0
  %7280 = vmatprep.subr.mxu0 0.0
  %7281 = vmatpush1.msra.mxu0 0.0
  %7282 = vmatprep.subr.mxu0 0.0
  %7283 = vmatpush1.msra.mxu0 0.0
  %7284 = vmatprep.subr.mxu0 0.0
  %7285 = vmatpush1.msra.mxu0 0.0
  %7286 = vmatprep.subr.mxu0 0.0
  %7287 = vmatpush1.msra.mxu0 %v411
  %7288 = vmatprep.subr.mxu0 0.0
  %7289 = vmatpush1.msra.mxu0 %v410
  %7290 = vmatprep.subr.mxu0 0.0
  %7291 = vmatpush2.msra.mxu0 0.0
  %7292 = vmatprep.subr.mxu0 0.0
  %7293 = vmatpush2.msra.mxu0 0.0
  %7294 = vmatprep.subr.mxu0 0.0
  %7295 = vmatpush2.msra.mxu0 0.0
  %7296 = vmatprep.subr.mxu0 0.0
  %7297 = vmatpush2.msra.mxu0 0.0
  %7298 = vmatprep.subr.mxu0 0.0
  %7299 = vmatpush2.msra.mxu0 0.0
  %7300 = vmatprep.subr.mxu0 0.0
  %7301 = vmatpush2.msra.mxu0 0.0
  %7302 = vmatprep.subr.mxu0 0.0
  %7303 = vmatpush2.msra.mxu0 0.0
  %7304 = vmatprep.subr.mxu0 0.0
  %7305 = vmatpush2.msra.mxu0 0.0
  %7306 = vmatprep.subr.mxu0 0.0
  %7307 = vmatpush2.msra.mxu0 0.0
  %7308 = vmatprep.subr.mxu0 0.0
  %7309 = vmatpush2.msra.mxu0 0.0
  %7310 = vmatprep.subr.mxu0 0.0
  %7311 = vmatpush2.msra.mxu0 0.0
  %7312 = vmatprep.subr.mxu0 0.0
  %7313 = vmatpush2.msra.mxu0 0.0
  %7314 = vmatprep.subr.mxu0 0.0
  %7315 = vmatpush2.msra.mxu0 0.0
  %7316 = vmatprep.subr.mxu0 0.0
  %7317 = vmatpush2.msra.mxu0 0.0
  %7318 = vmatprep.subr.mxu0 0.0
  %7319 = vmatpush2.msra.mxu0 0.0
  %7320 = vmatprep.subr.mxu0 0.0
  %7321 = vmatpush2.msra.mxu0 0.0
  %7322 = vmatprep.mubr.f32.mxu0 0.0
  %7323 = vmatmul.mubr.f32.gmra.mxu0 %v7256
  %v7324 = vpop.f32.mrf.mxu0
  %v7325 = vadd.f32 %v417, %v7324
  %v7326 = vpop.f32.mrf.mxu0
  %7327 = vdwg.mxu0
  %7328 = vmatprep.subr.mxu0 0.0
  %7329 = vmatpush1.msra.mxu0 0.0
  %7330 = vmatprep.subr.mxu0 0.0
  %7331 = vmatpush1.msra.mxu0 0.0
  %7332 = vmatprep.subr.mxu0 0.0
  %7333 = vmatpush1.msra.mxu0 0.0
  %7334 = vmatprep.subr.mxu0 0.0
  %7335 = vmatpush1.msra.mxu0 0.0
  %7336 = vmatprep.subr.mxu0 0.0
  %7337 = vmatpush1.msra.mxu0 0.0
  %7338 = vmatprep.subr.mxu0 0.0
  %7339 = vmatpush1.msra.mxu0 0.0
  %7340 = vmatprep.subr.mxu0 0.0
  %7341 = vmatpush1.msra.mxu0 0.0
  %7342 = vmatprep.subr.mxu0 0.0
  %7343 = vmatpush1.msra.mxu0 0.0
  %7344 = vmatprep.subr.mxu0 0.0
  %7345 = vmatpush1.msra.mxu0 0.0
  %7346 = vmatprep.subr.mxu0 0.0
  %7347 = vmatpush1.msra.mxu0 0.0
  %7348 = vmatprep.subr.mxu0 0.0
  %7349 = vmatpush1.msra.mxu0 0.0
  %7350 = vmatprep.subr.mxu0 0.0
  %7351 = vmatpush1.msra.mxu0 0.0
  %7352 = vmatprep.subr.mxu0 0.0
  %7353 = vmatpush1.msra.mxu0 0.0
  %7354 = vmatprep.subr.mxu0 0.0
  %7355 = vmatpush1.msra.mxu0 0.0
  %7356 = vmatprep.subr.mxu0 0.0
  %7357 = vmatpush1.msra.mxu0 %v420
  %7358 = vmatprep.subr.mxu0 0.0
  %7359 = vmatpush1.msra.mxu0 %v419
  %7360 = vmatprep.subr.mxu0 0.0
  %7361 = vmatpush2.msra.mxu0 0.0
  %7362 = vmatprep.subr.mxu0 0.0
  %7363 = vmatpush2.msra.mxu0 0.0
  %7364 = vmatprep.subr.mxu0 0.0
  %7365 = vmatpush2.msra.mxu0 0.0
  %7366 = vmatprep.subr.mxu0 0.0
  %7367 = vmatpush2.msra.mxu0 0.0
  %7368 = vmatprep.subr.mxu0 0.0
  %7369 = vmatpush2.msra.mxu0 0.0
  %7370 = vmatprep.subr.mxu0 0.0
  %7371 = vmatpush2.msra.mxu0 0.0
  %7372 = vmatprep.subr.mxu0 0.0
  %7373 = vmatpush2.msra.mxu0 0.0
  %7374 = vmatprep.subr.mxu0 0.0
  %7375 = vmatpush2.msra.mxu0 0.0
  %7376 = vmatprep.subr.mxu0 0.0
  %7377 = vmatpush2.msra.mxu0 0.0
  %7378 = vmatprep.subr.mxu0 0.0
  %7379 = vmatpush2.msra.mxu0 0.0
  %7380 = vmatprep.subr.mxu0 0.0
  %7381 = vmatpush2.msra.mxu0 0.0
  %7382 = vmatprep.subr.mxu0 0.0
  %7383 = vmatpush2.msra.mxu0 0.0
  %7384 = vmatprep.subr.mxu0 0.0
  %7385 = vmatpush2.msra.mxu0 0.0
  %7386 = vmatprep.subr.mxu0 0.0
  %7387 = vmatpush2.msra.mxu0 0.0
  %7388 = vmatprep.subr.mxu0 0.0
  %7389 = vmatpush2.msra.mxu0 0.0
  %7390 = vmatprep.subr.mxu0 0.0
  %7391 = vmatpush2.msra.mxu0 0.0
  %7392 = vmatprep.mubr.f32.mxu0 0.0
  %7393 = vmatmul.mubr.f32.gmra.mxu0 %v7256
  %v7394 = vpop.f32.mrf.mxu0
  %v7395 = vadd.f32 0.0, %v7394
  %v7396 = vpop.f32.mrf.mxu0
  %7397 = vdwg.mxu0
  %v7398 = vadd.f32 %v6634, %v7395
  %v7399 = vadd.f32 %v7398, %v426
  %v7400 = vsel %vm261, %v7173, 0
  %7402 = vmatprep.subr.mxu0 0.0
  %7403 = vmatpush1.msra.mxu0 0.0
  %7404 = vmatprep.subr.mxu0 0.0
  %7405 = vmatpush1.msra.mxu0 0.0
  %7406 = vmatprep.subr.mxu0 0.0
  %7407 = vmatpush1.msra.mxu0 0.0
  %7408 = vmatprep.subr.mxu0 0.0
  %7409 = vmatpush1.msra.mxu0 0.0
  %7410 = vmatprep.subr.mxu0 0.0
  %7411 = vmatpush1.msra.mxu0 0.0
  %7412 = vmatprep.subr.mxu0 0.0
  %7413 = vmatpush1.msra.mxu0 0.0
  %7414 = vmatprep.subr.mxu0 0.0
  %7415 = vmatpush1.msra.mxu0 0.0
  %7416 = vmatprep.subr.mxu0 0.0
  %7417 = vmatpush1.msra.mxu0 0.0
  %7418 = vmatprep.subr.mxu0 0.0
  %7419 = vmatpush1.msra.mxu0 0.0
  %7420 = vmatprep.subr.mxu0 0.0
  %7421 = vmatpush1.msra.mxu0 0.0
  %7422 = vmatprep.subr.mxu0 0.0
  %7423 = vmatpush1.msra.mxu0 0.0
  %7424 = vmatprep.subr.mxu0 0.0
  %7425 = vmatpush1.msra.mxu0 0.0
  %7426 = vmatprep.subr.mxu0 0.0
  %7427 = vmatpush1.msra.mxu0 0.0
  %7428 = vmatprep.subr.mxu0 0.0
  %7429 = vmatpush1.msra.mxu0 0.0
  %7430 = vmatprep.subr.mxu0 0.0
  %7431 = vmatpush1.msra.mxu0 %v366
  %7432 = vmatprep.subr.mxu0 0.0
  %7433 = vmatpush1.msra.mxu0 %v365
  %7434 = vmatprep.subr.mxu0 0.0
  %7435 = vmatpush2.msra.mxu0 0.0
  %7436 = vmatprep.subr.mxu0 0.0
  %7437 = vmatpush2.msra.mxu0 0.0
  %7438 = vmatprep.subr.mxu0 0.0
  %7439 = vmatpush2.msra.mxu0 0.0
  %7440 = vmatprep.subr.mxu0 0.0
  %7441 = vmatpush2.msra.mxu0 0.0
  %7442 = vmatprep.subr.mxu0 0.0
  %7443 = vmatpush2.msra.mxu0 0.0
  %7444 = vmatprep.subr.mxu0 0.0
  %7445 = vmatpush2.msra.mxu0 0.0
  %7446 = vmatprep.subr.mxu0 0.0
  %7447 = vmatpush2.msra.mxu0 0.0
  %7448 = vmatprep.subr.mxu0 0.0
  %7449 = vmatpush2.msra.mxu0 0.0
  %7450 = vmatprep.subr.mxu0 0.0
  %7451 = vmatpush2.msra.mxu0 0.0
  %7452 = vmatprep.subr.mxu0 0.0
  %7453 = vmatpush2.msra.mxu0 0.0
  %7454 = vmatprep.subr.mxu0 0.0
  %7455 = vmatpush2.msra.mxu0 0.0
  %7456 = vmatprep.subr.mxu0 0.0
  %7457 = vmatpush2.msra.mxu0 0.0
  %7458 = vmatprep.subr.mxu0 0.0
  %7459 = vmatpush2.msra.mxu0 0.0
  %7460 = vmatprep.subr.mxu0 0.0
  %7461 = vmatpush2.msra.mxu0 0.0
  %7462 = vmatprep.subr.mxu0 0.0
  %7463 = vmatpush2.msra.mxu0 0.0
  %7464 = vmatprep.subr.mxu0 0.0
  %7465 = vmatpush2.msra.mxu0 0.0
  %7466 = vmatprep.mubr.f32.mxu0 0.0
  %7467 = vmatmul.mubr.f32.gmra.mxu0 %v7400
  %v7468 = vpop.f32.mrf.mxu0
  %v7469 = vadd.f32 %v7325, %v7468
  %v7470 = vpop.f32.mrf.mxu0
  %7471 = vdwg.mxu0
  %v7472 = vadd.f32 %v7469, %v373
  %v7473 = vmax.f32 %v7472, 0.0
  %7474 = vmatprep.subr.mxu0 0.0
  %7475 = vmatpush1.msra.mxu0 0.0
  %7476 = vmatprep.subr.mxu0 0.0
  %7477 = vmatpush1.msra.mxu0 0.0
  %7478 = vmatprep.subr.mxu0 0.0
  %7479 = vmatpush1.msra.mxu0 0.0
  %7480 = vmatprep.subr.mxu0 0.0
  %7481 = vmatpush1.msra.mxu0 0.0
  %7482 = vmatprep.subr.mxu0 0.0
  %7483 = vmatpush1.msra.mxu0 0.0
  %7484 = vmatprep.subr.mxu0 0.0
  %7485 = vmatpush1.msra.mxu0 0.0
  %7486 = vmatprep.subr.mxu0 0.0
  %7487 = vmatpush1.msra.mxu0 0.0
  %7488 = vmatprep.subr.mxu0 0.0
  %7489 = vmatpush1.msra.mxu0 0.0
  %7490 = vmatprep.subr.mxu0 0.0
  %7491 = vmatpush1.msra.mxu0 0.0
  %7492 = vmatprep.subr.mxu0 0.0
  %7493 = vmatpush1.msra.mxu0 0.0
  %7494 = vmatprep.subr.mxu0 0.0
  %7495 = vmatpush1.msra.mxu0 0.0
  %7496 = vmatprep.subr.mxu0 0.0
  %7497 = vmatpush1.msra.mxu0 0.0
  %7498 = vmatprep.subr.mxu0 0.0
  %7499 = vmatpush1.msra.mxu0 0.0
  %7500 = vmatprep.subr.mxu0 0.0
  %7501 = vmatpush1.msra.mxu0 0.0
  %7502 = vmatprep.subr.mxu0 0.0
  %7503 = vmatpush1.msra.mxu0 %v378
  %7504 = vmatprep.subr.mxu0 0.0
  %7505 = vmatpush1.msra.mxu0 %v377
  %7506 = vmatprep.subr.mxu0 0.0
  %7507 = vmatpush2.msra.mxu0 0.0
  %7508 = vmatprep.subr.mxu0 0.0
  %7509 = vmatpush2.msra.mxu0 0.0
  %7510 = vmatprep.subr.mxu0 0.0
  %7511 = vmatpush2.msra.mxu0 0.0
  %7512 = vmatprep.subr.mxu0 0.0
  %7513 = vmatpush2.msra.mxu0 0.0
  %7514 = vmatprep.subr.mxu0 0.0
  %7515 = vmatpush2.msra.mxu0 0.0
  %7516 = vmatprep.subr.mxu0 0.0
  %7517 = vmatpush2.msra.mxu0 0.0
  %7518 = vmatprep.subr.mxu0 0.0
  %7519 = vmatpush2.msra.mxu0 0.0
  %7520 = vmatprep.subr.mxu0 0.0
  %7521 = vmatpush2.msra.mxu0 0.0
  %7522 = vmatprep.subr.mxu0 0.0
  %7523 = vmatpush2.msra.mxu0 0.0
  %7524 = vmatprep.subr.mxu0 0.0
  %7525 = vmatpush2.msra.mxu0 0.0
  %7526 = vmatprep.subr.mxu0 0.0
  %7527 = vmatpush2.msra.mxu0 0.0
  %7528 = vmatprep.subr.mxu0 0.0
  %7529 = vmatpush2.msra.mxu0 0.0
  %7530 = vmatprep.subr.mxu0 0.0
  %7531 = vmatpush2.msra.mxu0 0.0
  %7532 = vmatprep.subr.mxu0 0.0
  %7533 = vmatpush2.msra.mxu0 0.0
  %7534 = vmatprep.subr.mxu0 0.0
  %7535 = vmatpush2.msra.mxu0 0.0
  %7536 = vmatprep.subr.mxu0 0.0
  %7537 = vmatpush2.msra.mxu0 0.0
  %7538 = vmatprep.mubr.f32.mxu0 0.0
  %7539 = vmatmul.mubr.f32.gmra.mxu0 %v7027
  %v7540 = vpop.f32.mrf.mxu0
  %v7541 = vadd.f32 0.0, %v7540
  %v7542 = vpop.f32.mrf.mxu0
  %7543 = vdwg.mxu0
  %v7545 = vsel %vm261, %v7473, 0
  %7547 = vmatprep.subr.mxu0 0.0
  %7548 = vmatpush1.msra.mxu0 0.0
  %7549 = vmatprep.subr.mxu0 0.0
  %7550 = vmatpush1.msra.mxu0 0.0
  %7551 = vmatprep.subr.mxu0 0.0
  %7552 = vmatpush1.msra.mxu0 0.0
  %7553 = vmatprep.subr.mxu0 0.0
  %7554 = vmatpush1.msra.mxu0 0.0
  %7555 = vmatprep.subr.mxu0 0.0
  %7556 = vmatpush1.msra.mxu0 0.0
  %7557 = vmatprep.subr.mxu0 0.0
  %7558 = vmatpush1.msra.mxu0 0.0
  %7559 = vmatprep.subr.mxu0 0.0
  %7560 = vmatpush1.msra.mxu0 0.0
  %7561 = vmatprep.subr.mxu0 0.0
  %7562 = vmatpush1.msra.mxu0 0.0
  %7563 = vmatprep.subr.mxu0 0.0
  %7564 = vmatpush1.msra.mxu0 0.0
  %7565 = vmatprep.subr.mxu0 0.0
  %7566 = vmatpush1.msra.mxu0 0.0
  %7567 = vmatprep.subr.mxu0 0.0
  %7568 = vmatpush1.msra.mxu0 0.0
  %7569 = vmatprep.subr.mxu0 0.0
  %7570 = vmatpush1.msra.mxu0 0.0
  %7571 = vmatprep.subr.mxu0 0.0
  %7572 = vmatpush1.msra.mxu0 0.0
  %7573 = vmatprep.subr.mxu0 0.0
  %7574 = vmatpush1.msra.mxu0 0.0
  %7575 = vmatprep.subr.mxu0 0.0
  %7576 = vmatpush1.msra.mxu0 %v376
  %7577 = vmatprep.subr.mxu0 0.0
  %7578 = vmatpush1.msra.mxu0 %v375
  %7579 = vmatprep.subr.mxu0 0.0
  %7580 = vmatpush2.msra.mxu0 0.0
  %7581 = vmatprep.subr.mxu0 0.0
  %7582 = vmatpush2.msra.mxu0 0.0
  %7583 = vmatprep.subr.mxu0 0.0
  %7584 = vmatpush2.msra.mxu0 0.0
  %7585 = vmatprep.subr.mxu0 0.0
  %7586 = vmatpush2.msra.mxu0 0.0
  %7587 = vmatprep.subr.mxu0 0.0
  %7588 = vmatpush2.msra.mxu0 0.0
  %7589 = vmatprep.subr.mxu0 0.0
  %7590 = vmatpush2.msra.mxu0 0.0
  %7591 = vmatprep.subr.mxu0 0.0
  %7592 = vmatpush2.msra.mxu0 0.0
  %7593 = vmatprep.subr.mxu0 0.0
  %7594 = vmatpush2.msra.mxu0 0.0
  %7595 = vmatprep.subr.mxu0 0.0
  %7596 = vmatpush2.msra.mxu0 0.0
  %7597 = vmatprep.subr.mxu0 0.0
  %7598 = vmatpush2.msra.mxu0 0.0
  %7599 = vmatprep.subr.mxu0 0.0
  %7600 = vmatpush2.msra.mxu0 0.0
  %7601 = vmatprep.subr.mxu0 0.0
  %7602 = vmatpush2.msra.mxu0 0.0
  %7603 = vmatprep.subr.mxu0 0.0
  %7604 = vmatpush2.msra.mxu0 0.0
  %7605 = vmatprep.subr.mxu0 0.0
  %7606 = vmatpush2.msra.mxu0 0.0
  %7607 = vmatprep.subr.mxu0 0.0
  %7608 = vmatpush2.msra.mxu0 0.0
  %7609 = vmatprep.subr.mxu0 0.0
  %7610 = vmatpush2.msra.mxu0 0.0
  %7611 = vmatprep.mubr.f32.mxu0 0.0
  %7612 = vmatmul.mubr.f32.gmra.mxu0 %v7545
  %v7613 = vpop.f32.mrf.mxu0
  %v7614 = vadd.f32 %v7541, %v7613
  %v7615 = vpop.f32.mrf.mxu0
  %7616 = vdwg.mxu0
  %v7617 = vadd.f32 %v7614, %v384
  %v7618 = vxor.u32 %v7617, 2147483648
  %v7619 = vmul.f32 %v7618, 1.442695
  %v7620 = vpow.pop %v7619
  %v7621 = vadd.f32 %v7620, 1.0
  %v7622 = vrcp.pop %v7621
  %v7623 = vmul.f32 1.0, %v7622
  %v7624 = vtanh.pop %v7617
  %v7625 = vmul.f32 %v7623, %v6870
  %7627 = vrot.lane.b32.xlu0 %v7624, 96
  %v7628 = vpop.permute.xlu0 %7627
  %v7630 = vmul.f32 %v7623, %v7628
  %7632 = vrot.lane.b32.xlu0 %v7630, 16
  %v7633 = vpop.permute.xlu0 %7632
  %v7635 = vadd.f32 %v7625, %v7633
  %v7636 = vtanh.pop %v7635
  %7638 = vrot.lane.b32.xlu0 %v7636, 32
  %v7639 = vpop.permute.xlu0 %7638
  %v7641 = vmul.f32 %v7623, %v7639
  %7642 = vmatprep.subr.mxu0 0.0
  %7643 = vmatpush1.msra.mxu0 0.0
  %7644 = vmatprep.subr.mxu0 0.0
  %7645 = vmatpush1.msra.mxu0 0.0
  %7646 = vmatprep.subr.mxu0 0.0
  %7647 = vmatpush1.msra.mxu0 0.0
  %7648 = vmatprep.subr.mxu0 0.0
  %7649 = vmatpush1.msra.mxu0 0.0
  %7650 = vmatprep.subr.mxu0 0.0
  %7651 = vmatpush1.msra.mxu0 0.0
  %7652 = vmatprep.subr.mxu0 0.0
  %7653 = vmatpush1.msra.mxu0 0.0
  %7654 = vmatprep.subr.mxu0 0.0
  %7655 = vmatpush1.msra.mxu0 0.0
  %7656 = vmatprep.subr.mxu0 0.0
  %7657 = vmatpush1.msra.mxu0 0.0
  %7658 = vmatprep.subr.mxu0 0.0
  %7659 = vmatpush1.msra.mxu0 0.0
  %7660 = vmatprep.subr.mxu0 0.0
  %7661 = vmatpush1.msra.mxu0 0.0
  %7662 = vmatprep.subr.mxu0 0.0
  %7663 = vmatpush1.msra.mxu0 0.0
  %7664 = vmatprep.subr.mxu0 0.0
  %7665 = vmatpush1.msra.mxu0 0.0
  %7666 = vmatprep.subr.mxu0 0.0
  %7667 = vmatpush1.msra.mxu0 0.0
  %7668 = vmatprep.subr.mxu0 0.0
  %7669 = vmatpush1.msra.mxu0 0.0
  %7670 = vmatprep.subr.mxu0 0.0
  %7671 = vmatpush1.msra.mxu0 0.0
  %7672 = vmatprep.subr.mxu0 0.0
  %7673 = vmatpush1.msra.mxu0 %v7399
  %7674 = vmatprep.subr.mxu0 0.0
  %7675 = vmatpush2.msra.mxu0 0.0
  %7676 = vmatprep.subr.mxu0 0.0
  %7677 = vmatpush2.msra.mxu0 0.0
  %7678 = vmatprep.subr.mxu0 0.0
  %7679 = vmatpush2.msra.mxu0 0.0
  %7680 = vmatprep.subr.mxu0 0.0
  %7681 = vmatpush2.msra.mxu0 0.0
  %7682 = vmatprep.subr.mxu0 0.0
  %7683 = vmatpush2.msra.mxu0 0.0
  %7684 = vmatprep.subr.mxu0 0.0
  %7685 = vmatpush2.msra.mxu0 0.0
  %7686 = vmatprep.subr.mxu0 0.0
  %7687 = vmatpush2.msra.mxu0 0.0
  %7688 = vmatprep.subr.mxu0 0.0
  %7689 = vmatpush2.msra.mxu0 0.0
  %7690 = vmatprep.subr.mxu0 0.0
  %7691 = vmatpush2.msra.mxu0 0.0
  %7692 = vmatprep.subr.mxu0 0.0
  %7693 = vmatpush2.msra.mxu0 0.0
  %7694 = vmatprep.subr.mxu0 0.0
  %7695 = vmatpush2.msra.mxu0 0.0
  %7696 = vmatprep.subr.mxu0 0.0
  %7697 = vmatpush2.msra.mxu0 0.0
  %7698 = vmatprep.subr.mxu0 0.0
  %7699 = vmatpush2.msra.mxu0 0.0
  %7700 = vmatprep.subr.mxu0 0.0
  %7701 = vmatpush2.msra.mxu0 0.0
  %7702 = vmatprep.subr.mxu0 0.0
  %7703 = vmatpush2.msra.mxu0 0.0
  %7704 = vmatprep.subr.mxu0 0.0
  %7705 = vmatpush2.msra.mxu0 0.0
  %7706 = vmatprep.mubr.f32.mxu0 0.0
  %7707 = vmatmul.mubr.f32.gmra.mxu0 %v749
  %v7708 = vpop.f32.mrf.mxu0
  %v7709 = vadd.f32 %v392, %v7708
  %v7710 = vpop.f32.mrf.mxu0
  %7711 = vmatprep.mubr.f32.mxu0 0.0
  %7712 = vmatmul.mubr.f32.gmra.mxu0 %v752
  %v7713 = vpop.f32.mrf.mxu0
  %v7714 = vadd.f32 %v392, %v7713
  %v7715 = vpop.f32.mrf.mxu0
  %7716 = vdwg.mxu0
  %v7717 = vmax.f32 %v7709, 0.0
  %v7718 = vmax.f32 %v7714, 0.0
  %7719 = vmatprep.subr.mxu0 0.0
  %7720 = vmatpush1.msra.mxu0 0.0
  %7721 = vmatprep.subr.mxu0 0.0
  %7722 = vmatpush1.msra.mxu0 0.0
  %7723 = vmatprep.subr.mxu0 0.0
  %7724 = vmatpush1.msra.mxu0 0.0
  %7725 = vmatprep.subr.mxu0 0.0
  %7726 = vmatpush1.msra.mxu0 0.0
  %7727 = vmatprep.subr.mxu0 0.0
  %7728 = vmatpush1.msra.mxu0 0.0
  %7729 = vmatprep.subr.mxu0 0.0
  %7730 = vmatpush1.msra.mxu0 0.0
  %7731 = vmatprep.subr.mxu0 0.0
  %7732 = vmatpush1.msra.mxu0 0.0
  %7733 = vmatprep.subr.mxu0 0.0
  %7734 = vmatpush1.msra.mxu0 0.0
  %7735 = vmatprep.subr.mxu0 0.0
  %7736 = vmatpush1.msra.mxu0 0.0
  %7737 = vmatprep.subr.mxu0 0.0
  %7738 = vmatpush1.msra.mxu0 0.0
  %7739 = vmatprep.subr.mxu0 0.0
  %7740 = vmatpush1.msra.mxu0 0.0
  %7741 = vmatprep.subr.mxu0 0.0
  %7742 = vmatpush1.msra.mxu0 0.0
  %7743 = vmatprep.subr.mxu0 0.0
  %7744 = vmatpush1.msra.mxu0 0.0
  %7745 = vmatprep.subr.mxu0 0.0
  %7746 = vmatpush1.msra.mxu0 0.0
  %7747 = vmatprep.subr.mxu0 0.0
  %7748 = vmatpush1.msra.mxu0 %v7718
  %7749 = vmatprep.subr.mxu0 0.0
  %7750 = vmatpush1.msra.mxu0 %v7717
  %7751 = vmatprep.subr.mxu0 0.0
  %7752 = vmatpush2.msra.mxu0 0.0
  %7753 = vmatprep.subr.mxu0 0.0
  %7754 = vmatpush2.msra.mxu0 0.0
  %7755 = vmatprep.subr.mxu0 0.0
  %7756 = vmatpush2.msra.mxu0 0.0
  %7757 = vmatprep.subr.mxu0 0.0
  %7758 = vmatpush2.msra.mxu0 0.0
  %7759 = vmatprep.subr.mxu0 0.0
  %7760 = vmatpush2.msra.mxu0 0.0
  %7761 = vmatprep.subr.mxu0 0.0
  %7762 = vmatpush2.msra.mxu0 0.0
  %7763 = vmatprep.subr.mxu0 0.0
  %7764 = vmatpush2.msra.mxu0 0.0
  %7765 = vmatprep.subr.mxu0 0.0
  %7766 = vmatpush2.msra.mxu0 0.0
  %7767 = vmatprep.subr.mxu0 0.0
  %7768 = vmatpush2.msra.mxu0 0.0
  %7769 = vmatprep.subr.mxu0 0.0
  %7770 = vmatpush2.msra.mxu0 0.0
  %7771 = vmatprep.subr.mxu0 0.0
  %7772 = vmatpush2.msra.mxu0 0.0
  %7773 = vmatprep.subr.mxu0 0.0
  %7774 = vmatpush2.msra.mxu0 0.0
  %7775 = vmatprep.subr.mxu0 0.0
  %7776 = vmatpush2.msra.mxu0 0.0
  %7777 = vmatprep.subr.mxu0 0.0
  %7778 = vmatpush2.msra.mxu0 0.0
  %7779 = vmatprep.subr.mxu0 0.0
  %7780 = vmatpush2.msra.mxu0 0.0
  %7781 = vmatprep.subr.mxu0 0.0
  %7782 = vmatpush2.msra.mxu0 0.0
  %7783 = vmatprep.mubr.f32.mxu0 0.0
  %7784 = vmatmul.mubr.f32.gmra.mxu0 %v832
  %v7785 = vpop.f32.mrf.mxu0
  %v7786 = vadd.f32 0.0, %v7785
  %v7787 = vpop.f32.mrf.mxu0
  %7788 = vdwg.mxu0
  %7790 = vrot.lane.b32.xlu0 %v7641, 80
  %v7791 = vpop.permute.xlu0 %7790
  %v7792 = vsel %vm261, %v7791, 0
  %7794 = vmatprep.subr.mxu0 0.0
  %7795 = vmatpush1.msra.mxu0 0.0
  %7796 = vmatprep.subr.mxu0 0.0
  %7797 = vmatpush1.msra.mxu0 0.0
  %7798 = vmatprep.subr.mxu0 0.0
  %7799 = vmatpush1.msra.mxu0 0.0
  %7800 = vmatprep.subr.mxu0 0.0
  %7801 = vmatpush1.msra.mxu0 0.0
  %7802 = vmatprep.subr.mxu0 0.0
  %7803 = vmatpush1.msra.mxu0 0.0
  %7804 = vmatprep.subr.mxu0 0.0
  %7805 = vmatpush1.msra.mxu0 0.0
  %7806 = vmatprep.subr.mxu0 0.0
  %7807 = vmatpush1.msra.mxu0 0.0
  %7808 = vmatprep.subr.mxu0 0.0
  %7809 = vmatpush1.msra.mxu0 0.0
  %7810 = vmatprep.subr.mxu0 0.0
  %7811 = vmatpush1.msra.mxu0 0.0
  %7812 = vmatprep.subr.mxu0 0.0
  %7813 = vmatpush1.msra.mxu0 0.0
  %7814 = vmatprep.subr.mxu0 0.0
  %7815 = vmatpush1.msra.mxu0 0.0
  %7816 = vmatprep.subr.mxu0 0.0
  %7817 = vmatpush1.msra.mxu0 0.0
  %7818 = vmatprep.subr.mxu0 0.0
  %7819 = vmatpush1.msra.mxu0 0.0
  %7820 = vmatprep.subr.mxu0 0.0
  %7821 = vmatpush1.msra.mxu0 0.0
  %7822 = vmatprep.subr.mxu0 0.0
  %7823 = vmatpush1.msra.mxu0 %v397
  %7824 = vmatprep.subr.mxu0 0.0
  %7825 = vmatpush1.msra.mxu0 %v396
  %7826 = vmatprep.subr.mxu0 0.0
  %7827 = vmatpush2.msra.mxu0 0.0
  %7828 = vmatprep.subr.mxu0 0.0
  %7829 = vmatpush2.msra.mxu0 0.0
  %7830 = vmatprep.subr.mxu0 0.0
  %7831 = vmatpush2.msra.mxu0 0.0
  %7832 = vmatprep.subr.mxu0 0.0
  %7833 = vmatpush2.msra.mxu0 0.0
  %7834 = vmatprep.subr.mxu0 0.0
  %7835 = vmatpush2.msra.mxu0 0.0
  %7836 = vmatprep.subr.mxu0 0.0
  %7837 = vmatpush2.msra.mxu0 0.0
  %7838 = vmatprep.subr.mxu0 0.0
  %7839 = vmatpush2.msra.mxu0 0.0
  %7840 = vmatprep.subr.mxu0 0.0
  %7841 = vmatpush2.msra.mxu0 0.0
  %7842 = vmatprep.subr.mxu0 0.0
  %7843 = vmatpush2.msra.mxu0 0.0
  %7844 = vmatprep.subr.mxu0 0.0
  %7845 = vmatpush2.msra.mxu0 0.0
  %7846 = vmatprep.subr.mxu0 0.0
  %7847 = vmatpush2.msra.mxu0 0.0
  %7848 = vmatprep.subr.mxu0 0.0
  %7849 = vmatpush2.msra.mxu0 0.0
  %7850 = vmatprep.subr.mxu0 0.0
  %7851 = vmatpush2.msra.mxu0 0.0
  %7852 = vmatprep.subr.mxu0 0.0
  %7853 = vmatpush2.msra.mxu0 0.0
  %7854 = vmatprep.subr.mxu0 0.0
  %7855 = vmatpush2.msra.mxu0 0.0
  %7856 = vmatprep.subr.mxu0 0.0
  %7857 = vmatpush2.msra.mxu0 0.0
  %7858 = vmatprep.mubr.f32.mxu0 0.0
  %7859 = vmatmul.mubr.f32.gmra.mxu0 %v7792
  %v7860 = vpop.f32.mrf.mxu0
  %v7861 = vadd.f32 0.0, %v7860
  %v7862 = vpop.f32.mrf.mxu0
  %7863 = vdwg.mxu0
  %v7865 = vsel %vm261, %v7786, 0
  %7867 = vmatprep.subr.mxu0 0.0
  %7868 = vmatpush1.msra.mxu0 0.0
  %7869 = vmatprep.subr.mxu0 0.0
  %7870 = vmatpush1.msra.mxu0 0.0
  %7871 = vmatprep.subr.mxu0 0.0
  %7872 = vmatpush1.msra.mxu0 0.0
  %7873 = vmatprep.subr.mxu0 0.0
  %7874 = vmatpush1.msra.mxu0 0.0
  %7875 = vmatprep.subr.mxu0 0.0
  %7876 = vmatpush1.msra.mxu0 0.0
  %7877 = vmatprep.subr.mxu0 0.0
  %7878 = vmatpush1.msra.mxu0 0.0
  %7879 = vmatprep.subr.mxu0 0.0
  %7880 = vmatpush1.msra.mxu0 0.0
  %7881 = vmatprep.subr.mxu0 0.0
  %7882 = vmatpush1.msra.mxu0 0.0
  %7883 = vmatprep.subr.mxu0 0.0
  %7884 = vmatpush1.msra.mxu0 0.0
  %7885 = vmatprep.subr.mxu0 0.0
  %7886 = vmatpush1.msra.mxu0 0.0
  %7887 = vmatprep.subr.mxu0 0.0
  %7888 = vmatpush1.msra.mxu0 0.0
  %7889 = vmatprep.subr.mxu0 0.0
  %7890 = vmatpush1.msra.mxu0 0.0
  %7891 = vmatprep.subr.mxu0 0.0
  %7892 = vmatpush1.msra.mxu0 0.0
  %7893 = vmatprep.subr.mxu0 0.0
  %7894 = vmatpush1.msra.mxu0 0.0
  %7895 = vmatprep.subr.mxu0 0.0
  %7896 = vmatpush1.msra.mxu0 %v395
  %7897 = vmatprep.subr.mxu0 0.0
  %7898 = vmatpush1.msra.mxu0 %v394
  %7899 = vmatprep.subr.mxu0 0.0
  %7900 = vmatpush2.msra.mxu0 0.0
  %7901 = vmatprep.subr.mxu0 0.0
  %7902 = vmatpush2.msra.mxu0 0.0
  %7903 = vmatprep.subr.mxu0 0.0
  %7904 = vmatpush2.msra.mxu0 0.0
  %7905 = vmatprep.subr.mxu0 0.0
  %7906 = vmatpush2.msra.mxu0 0.0
  %7907 = vmatprep.subr.mxu0 0.0
  %7908 = vmatpush2.msra.mxu0 0.0
  %7909 = vmatprep.subr.mxu0 0.0
  %7910 = vmatpush2.msra.mxu0 0.0
  %7911 = vmatprep.subr.mxu0 0.0
  %7912 = vmatpush2.msra.mxu0 0.0
  %7913 = vmatprep.subr.mxu0 0.0
  %7914 = vmatpush2.msra.mxu0 0.0
  %7915 = vmatprep.subr.mxu0 0.0
  %7916 = vmatpush2.msra.mxu0 0.0
  %7917 = vmatprep.subr.mxu0 0.0
  %7918 = vmatpush2.msra.mxu0 0.0
  %7919 = vmatprep.subr.mxu0 0.0
  %7920 = vmatpush2.msra.mxu0 0.0
  %7921 = vmatprep.subr.mxu0 0.0
  %7922 = vmatpush2.msra.mxu0 0.0
  %7923 = vmatprep.subr.mxu0 0.0
  %7924 = vmatpush2.msra.mxu0 0.0
  %7925 = vmatprep.subr.mxu0 0.0
  %7926 = vmatpush2.msra.mxu0 0.0
  %7927 = vmatprep.subr.mxu0 0.0
  %7928 = vmatpush2.msra.mxu0 0.0
  %7929 = vmatprep.subr.mxu0 0.0
  %7930 = vmatpush2.msra.mxu0 0.0
  %7931 = vmatprep.mubr.f32.mxu0 0.0
  %7932 = vmatmul.mubr.f32.gmra.mxu0 %v7865
  %v7933 = vpop.f32.mrf.mxu0
  %v7934 = vadd.f32 %v7861, %v7933
  %v7935 = vpop.f32.mrf.mxu0
  %7936 = vdwg.mxu0
  %v7937 = vadd.f32 %v7934, %v403
  %v7938 = vmax.f32 %v7937, 0.0
  %7940 = vrot.lane.b32.xlu0 %v7938, 48
  %v7941 = vpop.permute.xlu0 %7940
  %v7943 = vadd.f32 %v7641, %v7941
  %7945 = vrot.lane.b32.xlu0 %v7943, 80
  %v7946 = vpop.permute.xlu0 %7945
  %v7947 = vsel %vm261, %v7946, 0
  %7949 = vmatprep.subr.mxu0 0.0
  %7950 = vmatpush1.msra.mxu0 0.0
  %7951 = vmatprep.subr.mxu0 0.0
  %7952 = vmatpush1.msra.mxu0 0.0
  %7953 = vmatprep.subr.mxu0 0.0
  %7954 = vmatpush1.msra.mxu0 0.0
  %7955 = vmatprep.subr.mxu0 0.0
  %7956 = vmatpush1.msra.mxu0 0.0
  %7957 = vmatprep.subr.mxu0 0.0
  %7958 = vmatpush1.msra.mxu0 0.0
  %7959 = vmatprep.subr.mxu0 0.0
  %7960 = vmatpush1.msra.mxu0 0.0
  %7961 = vmatprep.subr.mxu0 0.0
  %7962 = vmatpush1.msra.mxu0 0.0
  %7963 = vmatprep.subr.mxu0 0.0
  %7964 = vmatpush1.msra.mxu0 0.0
  %7965 = vmatprep.subr.mxu0 0.0
  %7966 = vmatpush1.msra.mxu0 0.0
  %7967 = vmatprep.subr.mxu0 0.0
  %7968 = vmatpush1.msra.mxu0 0.0
  %7969 = vmatprep.subr.mxu0 0.0
  %7970 = vmatpush1.msra.mxu0 0.0
  %7971 = vmatprep.subr.mxu0 0.0
  %7972 = vmatpush1.msra.mxu0 0.0
  %7973 = vmatprep.subr.mxu0 0.0
  %7974 = vmatpush1.msra.mxu0 0.0
  %7975 = vmatprep.subr.mxu0 0.0
  %7976 = vmatpush1.msra.mxu0 0.0
  %7977 = vmatprep.subr.mxu0 0.0
  %7978 = vmatpush1.msra.mxu0 %v406
  %7979 = vmatprep.subr.mxu0 0.0
  %7980 = vmatpush1.msra.mxu0 %v405
  %7981 = vmatprep.subr.mxu0 0.0
  %7982 = vmatpush2.msra.mxu0 0.0
  %7983 = vmatprep.subr.mxu0 0.0
  %7984 = vmatpush2.msra.mxu0 0.0
  %7985 = vmatprep.subr.mxu0 0.0
  %7986 = vmatpush2.msra.mxu0 0.0
  %7987 = vmatprep.subr.mxu0 0.0
  %7988 = vmatpush2.msra.mxu0 0.0
  %7989 = vmatprep.subr.mxu0 0.0
  %7990 = vmatpush2.msra.mxu0 0.0
  %7991 = vmatprep.subr.mxu0 0.0
  %7992 = vmatpush2.msra.mxu0 0.0
  %7993 = vmatprep.subr.mxu0 0.0
  %7994 = vmatpush2.msra.mxu0 0.0
  %7995 = vmatprep.subr.mxu0 0.0
  %7996 = vmatpush2.msra.mxu0 0.0
  %7997 = vmatprep.subr.mxu0 0.0
  %7998 = vmatpush2.msra.mxu0 0.0
  %7999 = vmatprep.subr.mxu0 0.0
  %8000 = vmatpush2.msra.mxu0 0.0
  %8001 = vmatprep.subr.mxu0 0.0
  %8002 = vmatpush2.msra.mxu0 0.0
  %8003 = vmatprep.subr.mxu0 0.0
  %8004 = vmatpush2.msra.mxu0 0.0
  %8005 = vmatprep.subr.mxu0 0.0
  %8006 = vmatpush2.msra.mxu0 0.0
  %8007 = vmatprep.subr.mxu0 0.0
  %8008 = vmatpush2.msra.mxu0 0.0
  %8009 = vmatprep.subr.mxu0 0.0
  %8010 = vmatpush2.msra.mxu0 0.0
  %8011 = vmatprep.subr.mxu0 0.0
  %8012 = vmatpush2.msra.mxu0 0.0
  %8013 = vmatprep.mubr.f32.mxu0 0.0
  %8014 = vmatmul.mubr.f32.gmra.mxu0 %v7947
  %v8015 = vpop.f32.mrf.mxu0
  %v8016 = vadd.f32 %v458, %v8015
  %v8017 = vpop.f32.mrf.mxu0
  %8018 = vdwg.mxu0
  %v8019 = vmax.f32 %v8016, 0.0
  %v8021 = vsel %vm261, %v8019, 0
  %8023 = vmatprep.subr.mxu0 0.0
  %8024 = vmatpush1.msra.mxu0 0.0
  %8025 = vmatprep.subr.mxu0 0.0
  %8026 = vmatpush1.msra.mxu0 0.0
  %8027 = vmatprep.subr.mxu0 0.0
  %8028 = vmatpush1.msra.mxu0 0.0
  %8029 = vmatprep.subr.mxu0 0.0
  %8030 = vmatpush1.msra.mxu0 0.0
  %8031 = vmatprep.subr.mxu0 0.0
  %8032 = vmatpush1.msra.mxu0 0.0
  %8033 = vmatprep.subr.mxu0 0.0
  %8034 = vmatpush1.msra.mxu0 0.0
  %8035 = vmatprep.subr.mxu0 0.0
  %8036 = vmatpush1.msra.mxu0 0.0
  %8037 = vmatprep.subr.mxu0 0.0
  %8038 = vmatpush1.msra.mxu0 0.0
  %8039 = vmatprep.subr.mxu0 0.0
  %8040 = vmatpush1.msra.mxu0 0.0
  %8041 = vmatprep.subr.mxu0 0.0
  %8042 = vmatpush1.msra.mxu0 0.0
  %8043 = vmatprep.subr.mxu0 0.0
  %8044 = vmatpush1.msra.mxu0 0.0
  %8045 = vmatprep.subr.mxu0 0.0
  %8046 = vmatpush1.msra.mxu0 0.0
  %8047 = vmatprep.subr.mxu0 0.0
  %8048 = vmatpush1.msra.mxu0 0.0
  %8049 = vmatprep.subr.mxu0 0.0
  %8050 = vmatpush1.msra.mxu0 0.0
  %8051 = vmatprep.subr.mxu0 0.0
  %8052 = vmatpush1.msra.mxu0 %v411
  %8053 = vmatprep.subr.mxu0 0.0
  %8054 = vmatpush1.msra.mxu0 %v410
  %8055 = vmatprep.subr.mxu0 0.0
  %8056 = vmatpush2.msra.mxu0 0.0
  %8057 = vmatprep.subr.mxu0 0.0
  %8058 = vmatpush2.msra.mxu0 0.0
  %8059 = vmatprep.subr.mxu0 0.0
  %8060 = vmatpush2.msra.mxu0 0.0
  %8061 = vmatprep.subr.mxu0 0.0
  %8062 = vmatpush2.msra.mxu0 0.0
  %8063 = vmatprep.subr.mxu0 0.0
  %8064 = vmatpush2.msra.mxu0 0.0
  %8065 = vmatprep.subr.mxu0 0.0
  %8066 = vmatpush2.msra.mxu0 0.0
  %8067 = vmatprep.subr.mxu0 0.0
  %8068 = vmatpush2.msra.mxu0 0.0
  %8069 = vmatprep.subr.mxu0 0.0
  %8070 = vmatpush2.msra.mxu0 0.0
  %8071 = vmatprep.subr.mxu0 0.0
  %8072 = vmatpush2.msra.mxu0 0.0
  %8073 = vmatprep.subr.mxu0 0.0
  %8074 = vmatpush2.msra.mxu0 0.0
  %8075 = vmatprep.subr.mxu0 0.0
  %8076 = vmatpush2.msra.mxu0 0.0
  %8077 = vmatprep.subr.mxu0 0.0
  %8078 = vmatpush2.msra.mxu0 0.0
  %8079 = vmatprep.subr.mxu0 0.0
  %8080 = vmatpush2.msra.mxu0 0.0
  %8081 = vmatprep.subr.mxu0 0.0
  %8082 = vmatpush2.msra.mxu0 0.0
  %8083 = vmatprep.subr.mxu0 0.0
  %8084 = vmatpush2.msra.mxu0 0.0
  %8085 = vmatprep.subr.mxu0 0.0
  %8086 = vmatpush2.msra.mxu0 0.0
  %8087 = vmatprep.mubr.f32.mxu0 0.0
  %8088 = vmatmul.mubr.f32.gmra.mxu0 %v8021
  %v8089 = vpop.f32.mrf.mxu0
  %v8090 = vadd.f32 %v417, %v8089
  %v8091 = vpop.f32.mrf.mxu0
  %8092 = vdwg.mxu0
  %8093 = vmatprep.subr.mxu0 0.0
  %8094 = vmatpush1.msra.mxu0 0.0
  %8095 = vmatprep.subr.mxu0 0.0
  %8096 = vmatpush1.msra.mxu0 0.0
  %8097 = vmatprep.subr.mxu0 0.0
  %8098 = vmatpush1.msra.mxu0 0.0
  %8099 = vmatprep.subr.mxu0 0.0
  %8100 = vmatpush1.msra.mxu0 0.0
  %8101 = vmatprep.subr.mxu0 0.0
  %8102 = vmatpush1.msra.mxu0 0.0
  %8103 = vmatprep.subr.mxu0 0.0
  %8104 = vmatpush1.msra.mxu0 0.0
  %8105 = vmatprep.subr.mxu0 0.0
  %8106 = vmatpush1.msra.mxu0 0.0
  %8107 = vmatprep.subr.mxu0 0.0
  %8108 = vmatpush1.msra.mxu0 0.0
  %8109 = vmatprep.subr.mxu0 0.0
  %8110 = vmatpush1.msra.mxu0 0.0
  %8111 = vmatprep.subr.mxu0 0.0
  %8112 = vmatpush1.msra.mxu0 0.0
  %8113 = vmatprep.subr.mxu0 0.0
  %8114 = vmatpush1.msra.mxu0 0.0
  %8115 = vmatprep.subr.mxu0 0.0
  %8116 = vmatpush1.msra.mxu0 0.0
  %8117 = vmatprep.subr.mxu0 0.0
  %8118 = vmatpush1.msra.mxu0 0.0
  %8119 = vmatprep.subr.mxu0 0.0
  %8120 = vmatpush1.msra.mxu0 0.0
  %8121 = vmatprep.subr.mxu0 0.0
  %8122 = vmatpush1.msra.mxu0 %v420
  %8123 = vmatprep.subr.mxu0 0.0
  %8124 = vmatpush1.msra.mxu0 %v419
  %8125 = vmatprep.subr.mxu0 0.0
  %8126 = vmatpush2.msra.mxu0 0.0
  %8127 = vmatprep.subr.mxu0 0.0
  %8128 = vmatpush2.msra.mxu0 0.0
  %8129 = vmatprep.subr.mxu0 0.0
  %8130 = vmatpush2.msra.mxu0 0.0
  %8131 = vmatprep.subr.mxu0 0.0
  %8132 = vmatpush2.msra.mxu0 0.0
  %8133 = vmatprep.subr.mxu0 0.0
  %8134 = vmatpush2.msra.mxu0 0.0
  %8135 = vmatprep.subr.mxu0 0.0
  %8136 = vmatpush2.msra.mxu0 0.0
  %8137 = vmatprep.subr.mxu0 0.0
  %8138 = vmatpush2.msra.mxu0 0.0
  %8139 = vmatprep.subr.mxu0 0.0
  %8140 = vmatpush2.msra.mxu0 0.0
  %8141 = vmatprep.subr.mxu0 0.0
  %8142 = vmatpush2.msra.mxu0 0.0
  %8143 = vmatprep.subr.mxu0 0.0
  %8144 = vmatpush2.msra.mxu0 0.0
  %8145 = vmatprep.subr.mxu0 0.0
  %8146 = vmatpush2.msra.mxu0 0.0
  %8147 = vmatprep.subr.mxu0 0.0
  %8148 = vmatpush2.msra.mxu0 0.0
  %8149 = vmatprep.subr.mxu0 0.0
  %8150 = vmatpush2.msra.mxu0 0.0
  %8151 = vmatprep.subr.mxu0 0.0
  %8152 = vmatpush2.msra.mxu0 0.0
  %8153 = vmatprep.subr.mxu0 0.0
  %8154 = vmatpush2.msra.mxu0 0.0
  %8155 = vmatprep.subr.mxu0 0.0
  %8156 = vmatpush2.msra.mxu0 0.0
  %8157 = vmatprep.mubr.f32.mxu0 0.0
  %8158 = vmatmul.mubr.f32.gmra.mxu0 %v8021
  %v8159 = vpop.f32.mrf.mxu0
  %v8160 = vadd.f32 0.0, %v8159
  %v8161 = vpop.f32.mrf.mxu0
  %8162 = vdwg.mxu0
  %v8163 = vadd.f32 %v7399, %v8160
  %v8164 = vadd.f32 %v8163, %v426
  %v8165 = vsel %vm261, %v7938, 0
  %8167 = vmatprep.subr.mxu0 0.0
  %8168 = vmatpush1.msra.mxu0 0.0
  %8169 = vmatprep.subr.mxu0 0.0
  %8170 = vmatpush1.msra.mxu0 0.0
  %8171 = vmatprep.subr.mxu0 0.0
  %8172 = vmatpush1.msra.mxu0 0.0
  %8173 = vmatprep.subr.mxu0 0.0
  %8174 = vmatpush1.msra.mxu0 0.0
  %8175 = vmatprep.subr.mxu0 0.0
  %8176 = vmatpush1.msra.mxu0 0.0
  %8177 = vmatprep.subr.mxu0 0.0
  %8178 = vmatpush1.msra.mxu0 0.0
  %8179 = vmatprep.subr.mxu0 0.0
  %8180 = vmatpush1.msra.mxu0 0.0
  %8181 = vmatprep.subr.mxu0 0.0
  %8182 = vmatpush1.msra.mxu0 0.0
  %8183 = vmatprep.subr.mxu0 0.0
  %8184 = vmatpush1.msra.mxu0 0.0
  %8185 = vmatprep.subr.mxu0 0.0
  %8186 = vmatpush1.msra.mxu0 0.0
  %8187 = vmatprep.subr.mxu0 0.0
  %8188 = vmatpush1.msra.mxu0 0.0
  %8189 = vmatprep.subr.mxu0 0.0
  %8190 = vmatpush1.msra.mxu0 0.0
  %8191 = vmatprep.subr.mxu0 0.0
  %8192 = vmatpush1.msra.mxu0 0.0
  %8193 = vmatprep.subr.mxu0 0.0
  %8194 = vmatpush1.msra.mxu0 0.0
  %8195 = vmatprep.subr.mxu0 0.0
  %8196 = vmatpush1.msra.mxu0 %v366
  %8197 = vmatprep.subr.mxu0 0.0
  %8198 = vmatpush1.msra.mxu0 %v365
  %8199 = vmatprep.subr.mxu0 0.0
  %8200 = vmatpush2.msra.mxu0 0.0
  %8201 = vmatprep.subr.mxu0 0.0
  %8202 = vmatpush2.msra.mxu0 0.0
  %8203 = vmatprep.subr.mxu0 0.0
  %8204 = vmatpush2.msra.mxu0 0.0
  %8205 = vmatprep.subr.mxu0 0.0
  %8206 = vmatpush2.msra.mxu0 0.0
  %8207 = vmatprep.subr.mxu0 0.0
  %8208 = vmatpush2.msra.mxu0 0.0
  %8209 = vmatprep.subr.mxu0 0.0
  %8210 = vmatpush2.msra.mxu0 0.0
  %8211 = vmatprep.subr.mxu0 0.0
  %8212 = vmatpush2.msra.mxu0 0.0
  %8213 = vmatprep.subr.mxu0 0.0
  %8214 = vmatpush2.msra.mxu0 0.0
  %8215 = vmatprep.subr.mxu0 0.0
  %8216 = vmatpush2.msra.mxu0 0.0
  %8217 = vmatprep.subr.mxu0 0.0
  %8218 = vmatpush2.msra.mxu0 0.0
  %8219 = vmatprep.subr.mxu0 0.0
  %8220 = vmatpush2.msra.mxu0 0.0
  %8221 = vmatprep.subr.mxu0 0.0
  %8222 = vmatpush2.msra.mxu0 0.0
  %8223 = vmatprep.subr.mxu0 0.0
  %8224 = vmatpush2.msra.mxu0 0.0
  %8225 = vmatprep.subr.mxu0 0.0
  %8226 = vmatpush2.msra.mxu0 0.0
  %8227 = vmatprep.subr.mxu0 0.0
  %8228 = vmatpush2.msra.mxu0 0.0
  %8229 = vmatprep.subr.mxu0 0.0
  %8230 = vmatpush2.msra.mxu0 0.0
  %8231 = vmatprep.mubr.f32.mxu0 0.0
  %8232 = vmatmul.mubr.f32.gmra.mxu0 %v8165
  %v8233 = vpop.f32.mrf.mxu0
  %v8234 = vadd.f32 %v8090, %v8233
  %v8235 = vpop.f32.mrf.mxu0
  %8236 = vdwg.mxu0
  %v8237 = vadd.f32 %v8234, %v373
  %v8238 = vmax.f32 %v8237, 0.0
  %8239 = vmatprep.subr.mxu0 0.0
  %8240 = vmatpush1.msra.mxu0 0.0
  %8241 = vmatprep.subr.mxu0 0.0
  %8242 = vmatpush1.msra.mxu0 0.0
  %8243 = vmatprep.subr.mxu0 0.0
  %8244 = vmatpush1.msra.mxu0 0.0
  %8245 = vmatprep.subr.mxu0 0.0
  %8246 = vmatpush1.msra.mxu0 0.0
  %8247 = vmatprep.subr.mxu0 0.0
  %8248 = vmatpush1.msra.mxu0 0.0
  %8249 = vmatprep.subr.mxu0 0.0
  %8250 = vmatpush1.msra.mxu0 0.0
  %8251 = vmatprep.subr.mxu0 0.0
  %8252 = vmatpush1.msra.mxu0 0.0
  %8253 = vmatprep.subr.mxu0 0.0
  %8254 = vmatpush1.msra.mxu0 0.0
  %8255 = vmatprep.subr.mxu0 0.0
  %8256 = vmatpush1.msra.mxu0 0.0
  %8257 = vmatprep.subr.mxu0 0.0
  %8258 = vmatpush1.msra.mxu0 0.0
  %8259 = vmatprep.subr.mxu0 0.0
  %8260 = vmatpush1.msra.mxu0 0.0
  %8261 = vmatprep.subr.mxu0 0.0
  %8262 = vmatpush1.msra.mxu0 0.0
  %8263 = vmatprep.subr.mxu0 0.0
  %8264 = vmatpush1.msra.mxu0 0.0
  %8265 = vmatprep.subr.mxu0 0.0
  %8266 = vmatpush1.msra.mxu0 0.0
  %8267 = vmatprep.subr.mxu0 0.0
  %8268 = vmatpush1.msra.mxu0 %v378
  %8269 = vmatprep.subr.mxu0 0.0
  %8270 = vmatpush1.msra.mxu0 %v377
  %8271 = vmatprep.subr.mxu0 0.0
  %8272 = vmatpush2.msra.mxu0 0.0
  %8273 = vmatprep.subr.mxu0 0.0
  %8274 = vmatpush2.msra.mxu0 0.0
  %8275 = vmatprep.subr.mxu0 0.0
  %8276 = vmatpush2.msra.mxu0 0.0
  %8277 = vmatprep.subr.mxu0 0.0
  %8278 = vmatpush2.msra.mxu0 0.0
  %8279 = vmatprep.subr.mxu0 0.0
  %8280 = vmatpush2.msra.mxu0 0.0
  %8281 = vmatprep.subr.mxu0 0.0
  %8282 = vmatpush2.msra.mxu0 0.0
  %8283 = vmatprep.subr.mxu0 0.0
  %8284 = vmatpush2.msra.mxu0 0.0
  %8285 = vmatprep.subr.mxu0 0.0
  %8286 = vmatpush2.msra.mxu0 0.0
  %8287 = vmatprep.subr.mxu0 0.0
  %8288 = vmatpush2.msra.mxu0 0.0
  %8289 = vmatprep.subr.mxu0 0.0
  %8290 = vmatpush2.msra.mxu0 0.0
  %8291 = vmatprep.subr.mxu0 0.0
  %8292 = vmatpush2.msra.mxu0 0.0
  %8293 = vmatprep.subr.mxu0 0.0
  %8294 = vmatpush2.msra.mxu0 0.0
  %8295 = vmatprep.subr.mxu0 0.0
  %8296 = vmatpush2.msra.mxu0 0.0
  %8297 = vmatprep.subr.mxu0 0.0
  %8298 = vmatpush2.msra.mxu0 0.0
  %8299 = vmatprep.subr.mxu0 0.0
  %8300 = vmatpush2.msra.mxu0 0.0
  %8301 = vmatprep.subr.mxu0 0.0
  %8302 = vmatpush2.msra.mxu0 0.0
  %8303 = vmatprep.mubr.f32.mxu0 0.0
  %8304 = vmatmul.mubr.f32.gmra.mxu0 %v7792
  %v8305 = vpop.f32.mrf.mxu0
  %v8306 = vadd.f32 0.0, %v8305
  %v8307 = vpop.f32.mrf.mxu0
  %8308 = vdwg.mxu0
  %v8310 = vsel %vm261, %v8238, 0
  %8312 = vmatprep.subr.mxu0 0.0
  %8313 = vmatpush1.msra.mxu0 0.0
  %8314 = vmatprep.subr.mxu0 0.0
  %8315 = vmatpush1.msra.mxu0 0.0
  %8316 = vmatprep.subr.mxu0 0.0
  %8317 = vmatpush1.msra.mxu0 0.0
  %8318 = vmatprep.subr.mxu0 0.0
  %8319 = vmatpush1.msra.mxu0 0.0
  %8320 = vmatprep.subr.mxu0 0.0
  %8321 = vmatpush1.msra.mxu0 0.0
  %8322 = vmatprep.subr.mxu0 0.0
  %8323 = vmatpush1.msra.mxu0 0.0
  %8324 = vmatprep.subr.mxu0 0.0
  %8325 = vmatpush1.msra.mxu0 0.0
  %8326 = vmatprep.subr.mxu0 0.0
  %8327 = vmatpush1.msra.mxu0 0.0
  %8328 = vmatprep.subr.mxu0 0.0
  %8329 = vmatpush1.msra.mxu0 0.0
  %8330 = vmatprep.subr.mxu0 0.0
  %8331 = vmatpush1.msra.mxu0 0.0
  %8332 = vmatprep.subr.mxu0 0.0
  %8333 = vmatpush1.msra.mxu0 0.0
  %8334 = vmatprep.subr.mxu0 0.0
  %8335 = vmatpush1.msra.mxu0 0.0
  %8336 = vmatprep.subr.mxu0 0.0
  %8337 = vmatpush1.msra.mxu0 0.0
  %8338 = vmatprep.subr.mxu0 0.0
  %8339 = vmatpush1.msra.mxu0 0.0
  %8340 = vmatprep.subr.mxu0 0.0
  %8341 = vmatpush1.msra.mxu0 %v376
  %8342 = vmatprep.subr.mxu0 0.0
  %8343 = vmatpush1.msra.mxu0 %v375
  %8344 = vmatprep.subr.mxu0 0.0
  %8345 = vmatpush2.msra.mxu0 0.0
  %8346 = vmatprep.subr.mxu0 0.0
  %8347 = vmatpush2.msra.mxu0 0.0
  %8348 = vmatprep.subr.mxu0 0.0
  %8349 = vmatpush2.msra.mxu0 0.0
  %8350 = vmatprep.subr.mxu0 0.0
  %8351 = vmatpush2.msra.mxu0 0.0
  %8352 = vmatprep.subr.mxu0 0.0
  %8353 = vmatpush2.msra.mxu0 0.0
  %8354 = vmatprep.subr.mxu0 0.0
  %8355 = vmatpush2.msra.mxu0 0.0
  %8356 = vmatprep.subr.mxu0 0.0
  %8357 = vmatpush2.msra.mxu0 0.0
  %8358 = vmatprep.subr.mxu0 0.0
  %8359 = vmatpush2.msra.mxu0 0.0
  %8360 = vmatprep.subr.mxu0 0.0
  %8361 = vmatpush2.msra.mxu0 0.0
  %8362 = vmatprep.subr.mxu0 0.0
  %8363 = vmatpush2.msra.mxu0 0.0
  %8364 = vmatprep.subr.mxu0 0.0
  %8365 = vmatpush2.msra.mxu0 0.0
  %8366 = vmatprep.subr.mxu0 0.0
  %8367 = vmatpush2.msra.mxu0 0.0
  %8368 = vmatprep.subr.mxu0 0.0
  %8369 = vmatpush2.msra.mxu0 0.0
  %8370 = vmatprep.subr.mxu0 0.0
  %8371 = vmatpush2.msra.mxu0 0.0
  %8372 = vmatprep.subr.mxu0 0.0
  %8373 = vmatpush2.msra.mxu0 0.0
  %8374 = vmatprep.subr.mxu0 0.0
  %8375 = vmatpush2.msra.mxu0 0.0
  %8376 = vmatprep.mubr.f32.mxu0 0.0
  %8377 = vmatmul.mubr.f32.gmra.mxu0 %v8310
  %v8378 = vpop.f32.mrf.mxu0
  %v8379 = vadd.f32 %v8306, %v8378
  %v8380 = vpop.f32.mrf.mxu0
  %8381 = vdwg.mxu0
  %v8382 = vadd.f32 %v8379, %v384
  %v8383 = vxor.u32 %v8382, 2147483648
  %v8384 = vmul.f32 %v8383, 1.442695
  %v8385 = vpow.pop %v8384
  %v8386 = vadd.f32 %v8385, 1.0
  %v8387 = vrcp.pop %v8386
  %v8388 = vmul.f32 1.0, %v8387
  %v8389 = vtanh.pop %v8382
  %v8390 = vmul.f32 %v8388, %v7635
  %8392 = vrot.lane.b32.xlu0 %v8389, 96
  %v8393 = vpop.permute.xlu0 %8392
  %v8395 = vmul.f32 %v8388, %v8393
  %8397 = vrot.lane.b32.xlu0 %v8395, 16
  %v8398 = vpop.permute.xlu0 %8397
  %v8400 = vadd.f32 %v8390, %v8398
  %v8401 = vtanh.pop %v8400
  %8403 = vrot.lane.b32.xlu0 %v8401, 32
  %v8404 = vpop.permute.xlu0 %8403
  %v8406 = vmul.f32 %v8388, %v8404
  %8407 = vmatprep.subr.mxu0 0.0
  %8408 = vmatpush1.msra.mxu0 0.0
  %8409 = vmatprep.subr.mxu0 0.0
  %8410 = vmatpush1.msra.mxu0 0.0
  %8411 = vmatprep.subr.mxu0 0.0
  %8412 = vmatpush1.msra.mxu0 0.0
  %8413 = vmatprep.subr.mxu0 0.0
  %8414 = vmatpush1.msra.mxu0 0.0
  %8415 = vmatprep.subr.mxu0 0.0
  %8416 = vmatpush1.msra.mxu0 0.0
  %8417 = vmatprep.subr.mxu0 0.0
  %8418 = vmatpush1.msra.mxu0 0.0
  %8419 = vmatprep.subr.mxu0 0.0
  %8420 = vmatpush1.msra.mxu0 0.0
  %8421 = vmatprep.subr.mxu0 0.0
  %8422 = vmatpush1.msra.mxu0 0.0
  %8423 = vmatprep.subr.mxu0 0.0
  %8424 = vmatpush1.msra.mxu0 0.0
  %8425 = vmatprep.subr.mxu0 0.0
  %8426 = vmatpush1.msra.mxu0 0.0
  %8427 = vmatprep.subr.mxu0 0.0
  %8428 = vmatpush1.msra.mxu0 0.0
  %8429 = vmatprep.subr.mxu0 0.0
  %8430 = vmatpush1.msra.mxu0 0.0
  %8431 = vmatprep.subr.mxu0 0.0
  %8432 = vmatpush1.msra.mxu0 0.0
  %8433 = vmatprep.subr.mxu0 0.0
  %8434 = vmatpush1.msra.mxu0 0.0
  %8435 = vmatprep.subr.mxu0 0.0
  %8436 = vmatpush1.msra.mxu0 0.0
  %8437 = vmatprep.subr.mxu0 0.0
  %8438 = vmatpush1.msra.mxu0 %v8164
  %8439 = vmatprep.subr.mxu0 0.0
  %8440 = vmatpush2.msra.mxu0 0.0
  %8441 = vmatprep.subr.mxu0 0.0
  %8442 = vmatpush2.msra.mxu0 0.0
  %8443 = vmatprep.subr.mxu0 0.0
  %8444 = vmatpush2.msra.mxu0 0.0
  %8445 = vmatprep.subr.mxu0 0.0
  %8446 = vmatpush2.msra.mxu0 0.0
  %8447 = vmatprep.subr.mxu0 0.0
  %8448 = vmatpush2.msra.mxu0 0.0
  %8449 = vmatprep.subr.mxu0 0.0
  %8450 = vmatpush2.msra.mxu0 0.0
  %8451 = vmatprep.subr.mxu0 0.0
  %8452 = vmatpush2.msra.mxu0 0.0
  %8453 = vmatprep.subr.mxu0 0.0
  %8454 = vmatpush2.msra.mxu0 0.0
  %8455 = vmatprep.subr.mxu0 0.0
  %8456 = vmatpush2.msra.mxu0 0.0
  %8457 = vmatprep.subr.mxu0 0.0
  %8458 = vmatpush2.msra.mxu0 0.0
  %8459 = vmatprep.subr.mxu0 0.0
  %8460 = vmatpush2.msra.mxu0 0.0
  %8461 = vmatprep.subr.mxu0 0.0
  %8462 = vmatpush2.msra.mxu0 0.0
  %8463 = vmatprep.subr.mxu0 0.0
  %8464 = vmatpush2.msra.mxu0 0.0
  %8465 = vmatprep.subr.mxu0 0.0
  %8466 = vmatpush2.msra.mxu0 0.0
  %8467 = vmatprep.subr.mxu0 0.0
  %8468 = vmatpush2.msra.mxu0 0.0
  %8469 = vmatprep.subr.mxu0 0.0
  %8470 = vmatpush2.msra.mxu0 0.0
  %8471 = vmatprep.mubr.f32.mxu0 0.0
  %8472 = vmatmul.mubr.f32.gmra.mxu0 %v749
  %v8473 = vpop.f32.mrf.mxu0
  %v8474 = vadd.f32 %v392, %v8473
  %v8475 = vpop.f32.mrf.mxu0
  %8476 = vmatprep.mubr.f32.mxu0 0.0
  %8477 = vmatmul.mubr.f32.gmra.mxu0 %v752
  %v8478 = vpop.f32.mrf.mxu0
  %v8479 = vadd.f32 %v392, %v8478
  %v8480 = vpop.f32.mrf.mxu0
  %8481 = vdwg.mxu0
  %v8482 = vmax.f32 %v8474, 0.0
  %v8483 = vmax.f32 %v8479, 0.0
  %8484 = vmatprep.subr.mxu0 0.0
  %8485 = vmatpush1.msra.mxu0 0.0
  %8486 = vmatprep.subr.mxu0 0.0
  %8487 = vmatpush1.msra.mxu0 0.0
  %8488 = vmatprep.subr.mxu0 0.0
  %8489 = vmatpush1.msra.mxu0 0.0
  %8490 = vmatprep.subr.mxu0 0.0
  %8491 = vmatpush1.msra.mxu0 0.0
  %8492 = vmatprep.subr.mxu0 0.0
  %8493 = vmatpush1.msra.mxu0 0.0
  %8494 = vmatprep.subr.mxu0 0.0
  %8495 = vmatpush1.msra.mxu0 0.0
  %8496 = vmatprep.subr.mxu0 0.0
  %8497 = vmatpush1.msra.mxu0 0.0
  %8498 = vmatprep.subr.mxu0 0.0
  %8499 = vmatpush1.msra.mxu0 0.0
  %8500 = vmatprep.subr.mxu0 0.0
  %8501 = vmatpush1.msra.mxu0 0.0
  %8502 = vmatprep.subr.mxu0 0.0
  %8503 = vmatpush1.msra.mxu0 0.0
  %8504 = vmatprep.subr.mxu0 0.0
  %8505 = vmatpush1.msra.mxu0 0.0
  %8506 = vmatprep.subr.mxu0 0.0
  %8507 = vmatpush1.msra.mxu0 0.0
  %8508 = vmatprep.subr.mxu0 0.0
  %8509 = vmatpush1.msra.mxu0 0.0
  %8510 = vmatprep.subr.mxu0 0.0
  %8511 = vmatpush1.msra.mxu0 0.0
  %8512 = vmatprep.subr.mxu0 0.0
  %8513 = vmatpush1.msra.mxu0 %v8483
  %8514 = vmatprep.subr.mxu0 0.0
  %8515 = vmatpush1.msra.mxu0 %v8482
  %8516 = vmatprep.subr.mxu0 0.0
  %8517 = vmatpush2.msra.mxu0 0.0
  %8518 = vmatprep.subr.mxu0 0.0
  %8519 = vmatpush2.msra.mxu0 0.0
  %8520 = vmatprep.subr.mxu0 0.0
  %8521 = vmatpush2.msra.mxu0 0.0
  %8522 = vmatprep.subr.mxu0 0.0
  %8523 = vmatpush2.msra.mxu0 0.0
  %8524 = vmatprep.subr.mxu0 0.0
  %8525 = vmatpush2.msra.mxu0 0.0
  %8526 = vmatprep.subr.mxu0 0.0
  %8527 = vmatpush2.msra.mxu0 0.0
  %8528 = vmatprep.subr.mxu0 0.0
  %8529 = vmatpush2.msra.mxu0 0.0
  %8530 = vmatprep.subr.mxu0 0.0
  %8531 = vmatpush2.msra.mxu0 0.0
  %8532 = vmatprep.subr.mxu0 0.0
  %8533 = vmatpush2.msra.mxu0 0.0
  %8534 = vmatprep.subr.mxu0 0.0
  %8535 = vmatpush2.msra.mxu0 0.0
  %8536 = vmatprep.subr.mxu0 0.0
  %8537 = vmatpush2.msra.mxu0 0.0
  %8538 = vmatprep.subr.mxu0 0.0
  %8539 = vmatpush2.msra.mxu0 0.0
  %8540 = vmatprep.subr.mxu0 0.0
  %8541 = vmatpush2.msra.mxu0 0.0
  %8542 = vmatprep.subr.mxu0 0.0
  %8543 = vmatpush2.msra.mxu0 0.0
  %8544 = vmatprep.subr.mxu0 0.0
  %8545 = vmatpush2.msra.mxu0 0.0
  %8546 = vmatprep.subr.mxu0 0.0
  %8547 = vmatpush2.msra.mxu0 0.0
  %8548 = vmatprep.mubr.f32.mxu0 0.0
  %8549 = vmatmul.mubr.f32.gmra.mxu0 %v832
  %v8550 = vpop.f32.mrf.mxu0
  %v8551 = vadd.f32 0.0, %v8550
  %v8552 = vpop.f32.mrf.mxu0
  %8553 = vdwg.mxu0
  %8555 = vrot.lane.b32.xlu0 %v8406, 80
  %v8556 = vpop.permute.xlu0 %8555
  %v8557 = vsel %vm261, %v8556, 0
  %8559 = vmatprep.subr.mxu0 0.0
  %8560 = vmatpush1.msra.mxu0 0.0
  %8561 = vmatprep.subr.mxu0 0.0
  %8562 = vmatpush1.msra.mxu0 0.0
  %8563 = vmatprep.subr.mxu0 0.0
  %8564 = vmatpush1.msra.mxu0 0.0
  %8565 = vmatprep.subr.mxu0 0.0
  %8566 = vmatpush1.msra.mxu0 0.0
  %8567 = vmatprep.subr.mxu0 0.0
  %8568 = vmatpush1.msra.mxu0 0.0
  %8569 = vmatprep.subr.mxu0 0.0
  %8570 = vmatpush1.msra.mxu0 0.0
  %8571 = vmatprep.subr.mxu0 0.0
  %8572 = vmatpush1.msra.mxu0 0.0
  %8573 = vmatprep.subr.mxu0 0.0
  %8574 = vmatpush1.msra.mxu0 0.0
  %8575 = vmatprep.subr.mxu0 0.0
  %8576 = vmatpush1.msra.mxu0 0.0
  %8577 = vmatprep.subr.mxu0 0.0
  %8578 = vmatpush1.msra.mxu0 0.0
  %8579 = vmatprep.subr.mxu0 0.0
  %8580 = vmatpush1.msra.mxu0 0.0
  %8581 = vmatprep.subr.mxu0 0.0
  %8582 = vmatpush1.msra.mxu0 0.0
  %8583 = vmatprep.subr.mxu0 0.0
  %8584 = vmatpush1.msra.mxu0 0.0
  %8585 = vmatprep.subr.mxu0 0.0
  %8586 = vmatpush1.msra.mxu0 0.0
  %8587 = vmatprep.subr.mxu0 0.0
  %8588 = vmatpush1.msra.mxu0 %v397
  %8589 = vmatprep.subr.mxu0 0.0
  %8590 = vmatpush1.msra.mxu0 %v396
  %8591 = vmatprep.subr.mxu0 0.0
  %8592 = vmatpush2.msra.mxu0 0.0
  %8593 = vmatprep.subr.mxu0 0.0
  %8594 = vmatpush2.msra.mxu0 0.0
  %8595 = vmatprep.subr.mxu0 0.0
  %8596 = vmatpush2.msra.mxu0 0.0
  %8597 = vmatprep.subr.mxu0 0.0
  %8598 = vmatpush2.msra.mxu0 0.0
  %8599 = vmatprep.subr.mxu0 0.0
  %8600 = vmatpush2.msra.mxu0 0.0
  %8601 = vmatprep.subr.mxu0 0.0
  %8602 = vmatpush2.msra.mxu0 0.0
  %8603 = vmatprep.subr.mxu0 0.0
  %8604 = vmatpush2.msra.mxu0 0.0
  %8605 = vmatprep.subr.mxu0 0.0
  %8606 = vmatpush2.msra.mxu0 0.0
  %8607 = vmatprep.subr.mxu0 0.0
  %8608 = vmatpush2.msra.mxu0 0.0
  %8609 = vmatprep.subr.mxu0 0.0
  %8610 = vmatpush2.msra.mxu0 0.0
  %8611 = vmatprep.subr.mxu0 0.0
  %8612 = vmatpush2.msra.mxu0 0.0
  %8613 = vmatprep.subr.mxu0 0.0
  %8614 = vmatpush2.msra.mxu0 0.0
  %8615 = vmatprep.subr.mxu0 0.0
  %8616 = vmatpush2.msra.mxu0 0.0
  %8617 = vmatprep.subr.mxu0 0.0
  %8618 = vmatpush2.msra.mxu0 0.0
  %8619 = vmatprep.subr.mxu0 0.0
  %8620 = vmatpush2.msra.mxu0 0.0
  %8621 = vmatprep.subr.mxu0 0.0
  %8622 = vmatpush2.msra.mxu0 0.0
  %8623 = vmatprep.mubr.f32.mxu0 0.0
  %8624 = vmatmul.mubr.f32.gmra.mxu0 %v8557
  %v8625 = vpop.f32.mrf.mxu0
  %v8626 = vadd.f32 0.0, %v8625
  %v8627 = vpop.f32.mrf.mxu0
  %8628 = vdwg.mxu0
  %v8630 = vsel %vm261, %v8551, 0
  %8632 = vmatprep.subr.mxu0 0.0
  %8633 = vmatpush1.msra.mxu0 0.0
  %8634 = vmatprep.subr.mxu0 0.0
  %8635 = vmatpush1.msra.mxu0 0.0
  %8636 = vmatprep.subr.mxu0 0.0
  %8637 = vmatpush1.msra.mxu0 0.0
  %8638 = vmatprep.subr.mxu0 0.0
  %8639 = vmatpush1.msra.mxu0 0.0
  %8640 = vmatprep.subr.mxu0 0.0
  %8641 = vmatpush1.msra.mxu0 0.0
  %8642 = vmatprep.subr.mxu0 0.0
  %8643 = vmatpush1.msra.mxu0 0.0
  %8644 = vmatprep.subr.mxu0 0.0
  %8645 = vmatpush1.msra.mxu0 0.0
  %8646 = vmatprep.subr.mxu0 0.0
  %8647 = vmatpush1.msra.mxu0 0.0
  %8648 = vmatprep.subr.mxu0 0.0
  %8649 = vmatpush1.msra.mxu0 0.0
  %8650 = vmatprep.subr.mxu0 0.0
  %8651 = vmatpush1.msra.mxu0 0.0
  %8652 = vmatprep.subr.mxu0 0.0
  %8653 = vmatpush1.msra.mxu0 0.0
  %8654 = vmatprep.subr.mxu0 0.0
  %8655 = vmatpush1.msra.mxu0 0.0
  %8656 = vmatprep.subr.mxu0 0.0
  %8657 = vmatpush1.msra.mxu0 0.0
  %8658 = vmatprep.subr.mxu0 0.0
  %8659 = vmatpush1.msra.mxu0 0.0
  %8660 = vmatprep.subr.mxu0 0.0
  %8661 = vmatpush1.msra.mxu0 %v395
  %8662 = vmatprep.subr.mxu0 0.0
  %8663 = vmatpush1.msra.mxu0 %v394
  %8664 = vmatprep.subr.mxu0 0.0
  %8665 = vmatpush2.msra.mxu0 0.0
  %8666 = vmatprep.subr.mxu0 0.0
  %8667 = vmatpush2.msra.mxu0 0.0
  %8668 = vmatprep.subr.mxu0 0.0
  %8669 = vmatpush2.msra.mxu0 0.0
  %8670 = vmatprep.subr.mxu0 0.0
  %8671 = vmatpush2.msra.mxu0 0.0
  %8672 = vmatprep.subr.mxu0 0.0
  %8673 = vmatpush2.msra.mxu0 0.0
  %8674 = vmatprep.subr.mxu0 0.0
  %8675 = vmatpush2.msra.mxu0 0.0
  %8676 = vmatprep.subr.mxu0 0.0
  %8677 = vmatpush2.msra.mxu0 0.0
  %8678 = vmatprep.subr.mxu0 0.0
  %8679 = vmatpush2.msra.mxu0 0.0
  %8680 = vmatprep.subr.mxu0 0.0
  %8681 = vmatpush2.msra.mxu0 0.0
  %8682 = vmatprep.subr.mxu0 0.0
  %8683 = vmatpush2.msra.mxu0 0.0
  %8684 = vmatprep.subr.mxu0 0.0
  %8685 = vmatpush2.msra.mxu0 0.0
  %8686 = vmatprep.subr.mxu0 0.0
  %8687 = vmatpush2.msra.mxu0 0.0
  %8688 = vmatprep.subr.mxu0 0.0
  %8689 = vmatpush2.msra.mxu0 0.0
  %8690 = vmatprep.subr.mxu0 0.0
  %8691 = vmatpush2.msra.mxu0 0.0
  %8692 = vmatprep.subr.mxu0 0.0
  %8693 = vmatpush2.msra.mxu0 0.0
  %8694 = vmatprep.subr.mxu0 0.0
  %8695 = vmatpush2.msra.mxu0 0.0
  %8696 = vmatprep.mubr.f32.mxu0 0.0
  %8697 = vmatmul.mubr.f32.gmra.mxu0 %v8630
  %v8698 = vpop.f32.mrf.mxu0
  %v8699 = vadd.f32 %v8626, %v8698
  %v8700 = vpop.f32.mrf.mxu0
  %8701 = vdwg.mxu0
  %v8702 = vadd.f32 %v8699, %v403
  %v8703 = vmax.f32 %v8702, 0.0
  %8705 = vrot.lane.b32.xlu0 %v8703, 48
  %v8706 = vpop.permute.xlu0 %8705
  %v8708 = vadd.f32 %v8406, %v8706
  %8710 = vrot.lane.b32.xlu0 %v8708, 80
  %v8711 = vpop.permute.xlu0 %8710
  %v8712 = vsel %vm261, %v8711, 0
  %8714 = vmatprep.subr.mxu0 0.0
  %8715 = vmatpush1.msra.mxu0 0.0
  %8716 = vmatprep.subr.mxu0 0.0
  %8717 = vmatpush1.msra.mxu0 0.0
  %8718 = vmatprep.subr.mxu0 0.0
  %8719 = vmatpush1.msra.mxu0 0.0
  %8720 = vmatprep.subr.mxu0 0.0
  %8721 = vmatpush1.msra.mxu0 0.0
  %8722 = vmatprep.subr.mxu0 0.0
  %8723 = vmatpush1.msra.mxu0 0.0
  %8724 = vmatprep.subr.mxu0 0.0
  %8725 = vmatpush1.msra.mxu0 0.0
  %8726 = vmatprep.subr.mxu0 0.0
  %8727 = vmatpush1.msra.mxu0 0.0
  %8728 = vmatprep.subr.mxu0 0.0
  %8729 = vmatpush1.msra.mxu0 0.0
  %8730 = vmatprep.subr.mxu0 0.0
  %8731 = vmatpush1.msra.mxu0 0.0
  %8732 = vmatprep.subr.mxu0 0.0
  %8733 = vmatpush1.msra.mxu0 0.0
  %8734 = vmatprep.subr.mxu0 0.0
  %8735 = vmatpush1.msra.mxu0 0.0
  %8736 = vmatprep.subr.mxu0 0.0
  %8737 = vmatpush1.msra.mxu0 0.0
  %8738 = vmatprep.subr.mxu0 0.0
  %8739 = vmatpush1.msra.mxu0 0.0
  %8740 = vmatprep.subr.mxu0 0.0
  %8741 = vmatpush1.msra.mxu0 0.0
  %8742 = vmatprep.subr.mxu0 0.0
  %8743 = vmatpush1.msra.mxu0 %v406
  %8744 = vmatprep.subr.mxu0 0.0
  %8745 = vmatpush1.msra.mxu0 %v405
  %8746 = vmatprep.subr.mxu0 0.0
  %8747 = vmatpush2.msra.mxu0 0.0
  %8748 = vmatprep.subr.mxu0 0.0
  %8749 = vmatpush2.msra.mxu0 0.0
  %8750 = vmatprep.subr.mxu0 0.0
  %8751 = vmatpush2.msra.mxu0 0.0
  %8752 = vmatprep.subr.mxu0 0.0
  %8753 = vmatpush2.msra.mxu0 0.0
  %8754 = vmatprep.subr.mxu0 0.0
  %8755 = vmatpush2.msra.mxu0 0.0
  %8756 = vmatprep.subr.mxu0 0.0
  %8757 = vmatpush2.msra.mxu0 0.0
  %8758 = vmatprep.subr.mxu0 0.0
  %8759 = vmatpush2.msra.mxu0 0.0
  %8760 = vmatprep.subr.mxu0 0.0
  %8761 = vmatpush2.msra.mxu0 0.0
  %8762 = vmatprep.subr.mxu0 0.0
  %8763 = vmatpush2.msra.mxu0 0.0
  %8764 = vmatprep.subr.mxu0 0.0
  %8765 = vmatpush2.msra.mxu0 0.0
  %8766 = vmatprep.subr.mxu0 0.0
  %8767 = vmatpush2.msra.mxu0 0.0
  %8768 = vmatprep.subr.mxu0 0.0
  %8769 = vmatpush2.msra.mxu0 0.0
  %8770 = vmatprep.subr.mxu0 0.0
  %8771 = vmatpush2.msra.mxu0 0.0
  %8772 = vmatprep.subr.mxu0 0.0
  %8773 = vmatpush2.msra.mxu0 0.0
  %8774 = vmatprep.subr.mxu0 0.0
  %8775 = vmatpush2.msra.mxu0 0.0
  %8776 = vmatprep.subr.mxu0 0.0
  %8777 = vmatpush2.msra.mxu0 0.0
  %8778 = vmatprep.mubr.f32.mxu0 0.0
  %8779 = vmatmul.mubr.f32.gmra.mxu0 %v8712
  %v8780 = vpop.f32.mrf.mxu0
  %v8781 = vadd.f32 %v458, %v8780
  %v8782 = vpop.f32.mrf.mxu0
  %8783 = vdwg.mxu0
  %v8784 = vmax.f32 %v8781, 0.0
  %v8786 = vsel %vm261, %v8784, 0
  %8788 = vmatprep.subr.mxu0 0.0
  %8789 = vmatpush1.msra.mxu0 0.0
  %8790 = vmatprep.subr.mxu0 0.0
  %8791 = vmatpush1.msra.mxu0 0.0
  %8792 = vmatprep.subr.mxu0 0.0
  %8793 = vmatpush1.msra.mxu0 0.0
  %8794 = vmatprep.subr.mxu0 0.0
  %8795 = vmatpush1.msra.mxu0 0.0
  %8796 = vmatprep.subr.mxu0 0.0
  %8797 = vmatpush1.msra.mxu0 0.0
  %8798 = vmatprep.subr.mxu0 0.0
  %8799 = vmatpush1.msra.mxu0 0.0
  %8800 = vmatprep.subr.mxu0 0.0
  %8801 = vmatpush1.msra.mxu0 0.0
  %8802 = vmatprep.subr.mxu0 0.0
  %8803 = vmatpush1.msra.mxu0 0.0
  %8804 = vmatprep.subr.mxu0 0.0
  %8805 = vmatpush1.msra.mxu0 0.0
  %8806 = vmatprep.subr.mxu0 0.0
  %8807 = vmatpush1.msra.mxu0 0.0
  %8808 = vmatprep.subr.mxu0 0.0
  %8809 = vmatpush1.msra.mxu0 0.0
  %8810 = vmatprep.subr.mxu0 0.0
  %8811 = vmatpush1.msra.mxu0 0.0
  %8812 = vmatprep.subr.mxu0 0.0
  %8813 = vmatpush1.msra.mxu0 0.0
  %8814 = vmatprep.subr.mxu0 0.0
  %8815 = vmatpush1.msra.mxu0 0.0
  %8816 = vmatprep.subr.mxu0 0.0
  %8817 = vmatpush1.msra.mxu0 %v411
  %8818 = vmatprep.subr.mxu0 0.0
  %8819 = vmatpush1.msra.mxu0 %v410
  %8820 = vmatprep.subr.mxu0 0.0
  %8821 = vmatpush2.msra.mxu0 0.0
  %8822 = vmatprep.subr.mxu0 0.0
  %8823 = vmatpush2.msra.mxu0 0.0
  %8824 = vmatprep.subr.mxu0 0.0
  %8825 = vmatpush2.msra.mxu0 0.0
  %8826 = vmatprep.subr.mxu0 0.0
  %8827 = vmatpush2.msra.mxu0 0.0
  %8828 = vmatprep.subr.mxu0 0.0
  %8829 = vmatpush2.msra.mxu0 0.0
  %8830 = vmatprep.subr.mxu0 0.0
  %8831 = vmatpush2.msra.mxu0 0.0
  %8832 = vmatprep.subr.mxu0 0.0
  %8833 = vmatpush2.msra.mxu0 0.0
  %8834 = vmatprep.subr.mxu0 0.0
  %8835 = vmatpush2.msra.mxu0 0.0
  %8836 = vmatprep.subr.mxu0 0.0
  %8837 = vmatpush2.msra.mxu0 0.0
  %8838 = vmatprep.subr.mxu0 0.0
  %8839 = vmatpush2.msra.mxu0 0.0
  %8840 = vmatprep.subr.mxu0 0.0
  %8841 = vmatpush2.msra.mxu0 0.0
  %8842 = vmatprep.subr.mxu0 0.0
  %8843 = vmatpush2.msra.mxu0 0.0
  %8844 = vmatprep.subr.mxu0 0.0
  %8845 = vmatpush2.msra.mxu0 0.0
  %8846 = vmatprep.subr.mxu0 0.0
  %8847 = vmatpush2.msra.mxu0 0.0
  %8848 = vmatprep.subr.mxu0 0.0
  %8849 = vmatpush2.msra.mxu0 0.0
  %8850 = vmatprep.subr.mxu0 0.0
  %8851 = vmatpush2.msra.mxu0 0.0
  %8852 = vmatprep.mubr.f32.mxu0 0.0
  %8853 = vmatmul.mubr.f32.gmra.mxu0 %v8786
  %v8854 = vpop.f32.mrf.mxu0
  %v8855 = vadd.f32 %v417, %v8854
  %v8856 = vpop.f32.mrf.mxu0
  %8857 = vdwg.mxu0
  %8858 = vmatprep.subr.mxu0 0.0
  %8859 = vmatpush1.msra.mxu0 0.0
  %8860 = vmatprep.subr.mxu0 0.0
  %8861 = vmatpush1.msra.mxu0 0.0
  %8862 = vmatprep.subr.mxu0 0.0
  %8863 = vmatpush1.msra.mxu0 0.0
  %8864 = vmatprep.subr.mxu0 0.0
  %8865 = vmatpush1.msra.mxu0 0.0
  %8866 = vmatprep.subr.mxu0 0.0
  %8867 = vmatpush1.msra.mxu0 0.0
  %8868 = vmatprep.subr.mxu0 0.0
  %8869 = vmatpush1.msra.mxu0 0.0
  %8870 = vmatprep.subr.mxu0 0.0
  %8871 = vmatpush1.msra.mxu0 0.0
  %8872 = vmatprep.subr.mxu0 0.0
  %8873 = vmatpush1.msra.mxu0 0.0
  %8874 = vmatprep.subr.mxu0 0.0
  %8875 = vmatpush1.msra.mxu0 0.0
  %8876 = vmatprep.subr.mxu0 0.0
  %8877 = vmatpush1.msra.mxu0 0.0
  %8878 = vmatprep.subr.mxu0 0.0
  %8879 = vmatpush1.msra.mxu0 0.0
  %8880 = vmatprep.subr.mxu0 0.0
  %8881 = vmatpush1.msra.mxu0 0.0
  %8882 = vmatprep.subr.mxu0 0.0
  %8883 = vmatpush1.msra.mxu0 0.0
  %8884 = vmatprep.subr.mxu0 0.0
  %8885 = vmatpush1.msra.mxu0 0.0
  %8886 = vmatprep.subr.mxu0 0.0
  %8887 = vmatpush1.msra.mxu0 %v420
  %8888 = vmatprep.subr.mxu0 0.0
  %8889 = vmatpush1.msra.mxu0 %v419
  %8890 = vmatprep.subr.mxu0 0.0
  %8891 = vmatpush2.msra.mxu0 0.0
  %8892 = vmatprep.subr.mxu0 0.0
  %8893 = vmatpush2.msra.mxu0 0.0
  %8894 = vmatprep.subr.mxu0 0.0
  %8895 = vmatpush2.msra.mxu0 0.0
  %8896 = vmatprep.subr.mxu0 0.0
  %8897 = vmatpush2.msra.mxu0 0.0
  %8898 = vmatprep.subr.mxu0 0.0
  %8899 = vmatpush2.msra.mxu0 0.0
  %8900 = vmatprep.subr.mxu0 0.0
  %8901 = vmatpush2.msra.mxu0 0.0
  %8902 = vmatprep.subr.mxu0 0.0
  %8903 = vmatpush2.msra.mxu0 0.0
  %8904 = vmatprep.subr.mxu0 0.0
  %8905 = vmatpush2.msra.mxu0 0.0
  %8906 = vmatprep.subr.mxu0 0.0
  %8907 = vmatpush2.msra.mxu0 0.0
  %8908 = vmatprep.subr.mxu0 0.0
  %8909 = vmatpush2.msra.mxu0 0.0
  %8910 = vmatprep.subr.mxu0 0.0
  %8911 = vmatpush2.msra.mxu0 0.0
  %8912 = vmatprep.subr.mxu0 0.0
  %8913 = vmatpush2.msra.mxu0 0.0
  %8914 = vmatprep.subr.mxu0 0.0
  %8915 = vmatpush2.msra.mxu0 0.0
  %8916 = vmatprep.subr.mxu0 0.0
  %8917 = vmatpush2.msra.mxu0 0.0
  %8918 = vmatprep.subr.mxu0 0.0
  %8919 = vmatpush2.msra.mxu0 0.0
  %8920 = vmatprep.subr.mxu0 0.0
  %8921 = vmatpush2.msra.mxu0 0.0
  %8922 = vmatprep.mubr.f32.mxu0 0.0
  %8923 = vmatmul.mubr.f32.gmra.mxu0 %v8786
  %v8924 = vpop.f32.mrf.mxu0
  %v8925 = vadd.f32 0.0, %v8924
  %v8926 = vpop.f32.mrf.mxu0
  %8927 = vdwg.mxu0
  %v8928 = vadd.f32 %v8164, %v8925
  %v8929 = vadd.f32 %v8928, %v426
  %v8930 = vsel %vm261, %v8703, 0
  %8932 = vmatprep.subr.mxu0 0.0
  %8933 = vmatpush1.msra.mxu0 0.0
  %8934 = vmatprep.subr.mxu0 0.0
  %8935 = vmatpush1.msra.mxu0 0.0
  %8936 = vmatprep.subr.mxu0 0.0
  %8937 = vmatpush1.msra.mxu0 0.0
  %8938 = vmatprep.subr.mxu0 0.0
  %8939 = vmatpush1.msra.mxu0 0.0
  %8940 = vmatprep.subr.mxu0 0.0
  %8941 = vmatpush1.msra.mxu0 0.0
  %8942 = vmatprep.subr.mxu0 0.0
  %8943 = vmatpush1.msra.mxu0 0.0
  %8944 = vmatprep.subr.mxu0 0.0
  %8945 = vmatpush1.msra.mxu0 0.0
  %8946 = vmatprep.subr.mxu0 0.0
  %8947 = vmatpush1.msra.mxu0 0.0
  %8948 = vmatprep.subr.mxu0 0.0
  %8949 = vmatpush1.msra.mxu0 0.0
  %8950 = vmatprep.subr.mxu0 0.0
  %8951 = vmatpush1.msra.mxu0 0.0
  %8952 = vmatprep.subr.mxu0 0.0
  %8953 = vmatpush1.msra.mxu0 0.0
  %8954 = vmatprep.subr.mxu0 0.0
  %8955 = vmatpush1.msra.mxu0 0.0
  %8956 = vmatprep.subr.mxu0 0.0
  %8957 = vmatpush1.msra.mxu0 0.0
  %8958 = vmatprep.subr.mxu0 0.0
  %8959 = vmatpush1.msra.mxu0 0.0
  %8960 = vmatprep.subr.mxu0 0.0
  %8961 = vmatpush1.msra.mxu0 %v366
  %8962 = vmatprep.subr.mxu0 0.0
  %8963 = vmatpush1.msra.mxu0 %v365
  %8964 = vmatprep.subr.mxu0 0.0
  %8965 = vmatpush2.msra.mxu0 0.0
  %8966 = vmatprep.subr.mxu0 0.0
  %8967 = vmatpush2.msra.mxu0 0.0
  %8968 = vmatprep.subr.mxu0 0.0
  %8969 = vmatpush2.msra.mxu0 0.0
  %8970 = vmatprep.subr.mxu0 0.0
  %8971 = vmatpush2.msra.mxu0 0.0
  %8972 = vmatprep.subr.mxu0 0.0
  %8973 = vmatpush2.msra.mxu0 0.0
  %8974 = vmatprep.subr.mxu0 0.0
  %8975 = vmatpush2.msra.mxu0 0.0
  %8976 = vmatprep.subr.mxu0 0.0
  %8977 = vmatpush2.msra.mxu0 0.0
  %8978 = vmatprep.subr.mxu0 0.0
  %8979 = vmatpush2.msra.mxu0 0.0
  %8980 = vmatprep.subr.mxu0 0.0
  %8981 = vmatpush2.msra.mxu0 0.0
  %8982 = vmatprep.subr.mxu0 0.0
  %8983 = vmatpush2.msra.mxu0 0.0
  %8984 = vmatprep.subr.mxu0 0.0
  %8985 = vmatpush2.msra.mxu0 0.0
  %8986 = vmatprep.subr.mxu0 0.0
  %8987 = vmatpush2.msra.mxu0 0.0
  %8988 = vmatprep.subr.mxu0 0.0
  %8989 = vmatpush2.msra.mxu0 0.0
  %8990 = vmatprep.subr.mxu0 0.0
  %8991 = vmatpush2.msra.mxu0 0.0
  %8992 = vmatprep.subr.mxu0 0.0
  %8993 = vmatpush2.msra.mxu0 0.0
  %8994 = vmatprep.subr.mxu0 0.0
  %8995 = vmatpush2.msra.mxu0 0.0
  %8996 = vmatprep.mubr.f32.mxu0 0.0
  %8997 = vmatmul.mubr.f32.gmra.mxu0 %v8930
  %v8998 = vpop.f32.mrf.mxu0
  %v8999 = vadd.f32 %v8855, %v8998
  %v9000 = vpop.f32.mrf.mxu0
  %9001 = vdwg.mxu0
  %v9002 = vadd.f32 %v8999, %v373
  %v9003 = vmax.f32 %v9002, 0.0
  %9004 = vmatprep.subr.mxu0 0.0
  %9005 = vmatpush1.msra.mxu0 0.0
  %9006 = vmatprep.subr.mxu0 0.0
  %9007 = vmatpush1.msra.mxu0 0.0
  %9008 = vmatprep.subr.mxu0 0.0
  %9009 = vmatpush1.msra.mxu0 0.0
  %9010 = vmatprep.subr.mxu0 0.0
  %9011 = vmatpush1.msra.mxu0 0.0
  %9012 = vmatprep.subr.mxu0 0.0
  %9013 = vmatpush1.msra.mxu0 0.0
  %9014 = vmatprep.subr.mxu0 0.0
  %9015 = vmatpush1.msra.mxu0 0.0
  %9016 = vmatprep.subr.mxu0 0.0
  %9017 = vmatpush1.msra.mxu0 0.0
  %9018 = vmatprep.subr.mxu0 0.0
  %9019 = vmatpush1.msra.mxu0 0.0
  %9020 = vmatprep.subr.mxu0 0.0
  %9021 = vmatpush1.msra.mxu0 0.0
  %9022 = vmatprep.subr.mxu0 0.0
  %9023 = vmatpush1.msra.mxu0 0.0
  %9024 = vmatprep.subr.mxu0 0.0
  %9025 = vmatpush1.msra.mxu0 0.0
  %9026 = vmatprep.subr.mxu0 0.0
  %9027 = vmatpush1.msra.mxu0 0.0
  %9028 = vmatprep.subr.mxu0 0.0
  %9029 = vmatpush1.msra.mxu0 0.0
  %9030 = vmatprep.subr.mxu0 0.0
  %9031 = vmatpush1.msra.mxu0 0.0
  %9032 = vmatprep.subr.mxu0 0.0
  %9033 = vmatpush1.msra.mxu0 %v378
  %9034 = vmatprep.subr.mxu0 0.0
  %9035 = vmatpush1.msra.mxu0 %v377
  %9036 = vmatprep.subr.mxu0 0.0
  %9037 = vmatpush2.msra.mxu0 0.0
  %9038 = vmatprep.subr.mxu0 0.0
  %9039 = vmatpush2.msra.mxu0 0.0
  %9040 = vmatprep.subr.mxu0 0.0
  %9041 = vmatpush2.msra.mxu0 0.0
  %9042 = vmatprep.subr.mxu0 0.0
  %9043 = vmatpush2.msra.mxu0 0.0
  %9044 = vmatprep.subr.mxu0 0.0
  %9045 = vmatpush2.msra.mxu0 0.0
  %9046 = vmatprep.subr.mxu0 0.0
  %9047 = vmatpush2.msra.mxu0 0.0
  %9048 = vmatprep.subr.mxu0 0.0
  %9049 = vmatpush2.msra.mxu0 0.0
  %9050 = vmatprep.subr.mxu0 0.0
  %9051 = vmatpush2.msra.mxu0 0.0
  %9052 = vmatprep.subr.mxu0 0.0
  %9053 = vmatpush2.msra.mxu0 0.0
  %9054 = vmatprep.subr.mxu0 0.0
  %9055 = vmatpush2.msra.mxu0 0.0
  %9056 = vmatprep.subr.mxu0 0.0
  %9057 = vmatpush2.msra.mxu0 0.0
  %9058 = vmatprep.subr.mxu0 0.0
  %9059 = vmatpush2.msra.mxu0 0.0
  %9060 = vmatprep.subr.mxu0 0.0
  %9061 = vmatpush2.msra.mxu0 0.0
  %9062 = vmatprep.subr.mxu0 0.0
  %9063 = vmatpush2.msra.mxu0 0.0
  %9064 = vmatprep.subr.mxu0 0.0
  %9065 = vmatpush2.msra.mxu0 0.0
  %9066 = vmatprep.subr.mxu0 0.0
  %9067 = vmatpush2.msra.mxu0 0.0
  %9068 = vmatprep.mubr.f32.mxu0 0.0
  %9069 = vmatmul.mubr.f32.gmra.mxu0 %v8557
  %v9070 = vpop.f32.mrf.mxu0
  %v9071 = vadd.f32 0.0, %v9070
  %v9072 = vpop.f32.mrf.mxu0
  %9073 = vdwg.mxu0
  %v9075 = vsel %vm261, %v9003, 0
  %9077 = vmatprep.subr.mxu0 0.0
  %9078 = vmatpush1.msra.mxu0 0.0
  %9079 = vmatprep.subr.mxu0 0.0
  %9080 = vmatpush1.msra.mxu0 0.0
  %9081 = vmatprep.subr.mxu0 0.0
  %9082 = vmatpush1.msra.mxu0 0.0
  %9083 = vmatprep.subr.mxu0 0.0
  %9084 = vmatpush1.msra.mxu0 0.0
  %9085 = vmatprep.subr.mxu0 0.0
  %9086 = vmatpush1.msra.mxu0 0.0
  %9087 = vmatprep.subr.mxu0 0.0
  %9088 = vmatpush1.msra.mxu0 0.0
  %9089 = vmatprep.subr.mxu0 0.0
  %9090 = vmatpush1.msra.mxu0 0.0
  %9091 = vmatprep.subr.mxu0 0.0
  %9092 = vmatpush1.msra.mxu0 0.0
  %9093 = vmatprep.subr.mxu0 0.0
  %9094 = vmatpush1.msra.mxu0 0.0
  %9095 = vmatprep.subr.mxu0 0.0
  %9096 = vmatpush1.msra.mxu0 0.0
  %9097 = vmatprep.subr.mxu0 0.0
  %9098 = vmatpush1.msra.mxu0 0.0
  %9099 = vmatprep.subr.mxu0 0.0
  %9100 = vmatpush1.msra.mxu0 0.0
  %9101 = vmatprep.subr.mxu0 0.0
  %9102 = vmatpush1.msra.mxu0 0.0
  %9103 = vmatprep.subr.mxu0 0.0
  %9104 = vmatpush1.msra.mxu0 0.0
  %9105 = vmatprep.subr.mxu0 0.0
  %9106 = vmatpush1.msra.mxu0 %v376
  %9107 = vmatprep.subr.mxu0 0.0
  %9108 = vmatpush1.msra.mxu0 %v375
  %9109 = vmatprep.subr.mxu0 0.0
  %9110 = vmatpush2.msra.mxu0 0.0
  %9111 = vmatprep.subr.mxu0 0.0
  %9112 = vmatpush2.msra.mxu0 0.0
  %9113 = vmatprep.subr.mxu0 0.0
  %9114 = vmatpush2.msra.mxu0 0.0
  %9115 = vmatprep.subr.mxu0 0.0
  %9116 = vmatpush2.msra.mxu0 0.0
  %9117 = vmatprep.subr.mxu0 0.0
  %9118 = vmatpush2.msra.mxu0 0.0
  %9119 = vmatprep.subr.mxu0 0.0
  %9120 = vmatpush2.msra.mxu0 0.0
  %9121 = vmatprep.subr.mxu0 0.0
  %9122 = vmatpush2.msra.mxu0 0.0
  %9123 = vmatprep.subr.mxu0 0.0
  %9124 = vmatpush2.msra.mxu0 0.0
  %9125 = vmatprep.subr.mxu0 0.0
  %9126 = vmatpush2.msra.mxu0 0.0
  %9127 = vmatprep.subr.mxu0 0.0
  %9128 = vmatpush2.msra.mxu0 0.0
  %9129 = vmatprep.subr.mxu0 0.0
  %9130 = vmatpush2.msra.mxu0 0.0
  %9131 = vmatprep.subr.mxu0 0.0
  %9132 = vmatpush2.msra.mxu0 0.0
  %9133 = vmatprep.subr.mxu0 0.0
  %9134 = vmatpush2.msra.mxu0 0.0
  %9135 = vmatprep.subr.mxu0 0.0
  %9136 = vmatpush2.msra.mxu0 0.0
  %9137 = vmatprep.subr.mxu0 0.0
  %9138 = vmatpush2.msra.mxu0 0.0
  %9139 = vmatprep.subr.mxu0 0.0
  %9140 = vmatpush2.msra.mxu0 0.0
  %9141 = vmatprep.mubr.f32.mxu0 0.0
  %9142 = vmatmul.mubr.f32.gmra.mxu0 %v9075
  %v9143 = vpop.f32.mrf.mxu0
  %v9144 = vadd.f32 %v9071, %v9143
  %v9145 = vpop.f32.mrf.mxu0
  %9146 = vdwg.mxu0
  %v9147 = vadd.f32 %v9144, %v384
  %v9148 = vxor.u32 %v9147, 2147483648
  %v9149 = vmul.f32 %v9148, 1.442695
  %v9150 = vpow.pop %v9149
  %v9151 = vadd.f32 %v9150, 1.0
  %v9152 = vrcp.pop %v9151
  %v9153 = vmul.f32 1.0, %v9152
  %v9154 = vtanh.pop %v9147
  %v9155 = vmul.f32 %v9153, %v8400
  %9157 = vrot.lane.b32.xlu0 %v9154, 96
  %v9158 = vpop.permute.xlu0 %9157
  %v9160 = vmul.f32 %v9153, %v9158
  %9162 = vrot.lane.b32.xlu0 %v9160, 16
  %v9163 = vpop.permute.xlu0 %9162
  %v9165 = vadd.f32 %v9155, %v9163
  %v9166 = vtanh.pop %v9165
  %9168 = vrot.lane.b32.xlu0 %v9166, 32
  %v9169 = vpop.permute.xlu0 %9168
  %v9171 = vmul.f32 %v9153, %v9169
  %9172 = vmatprep.subr.mxu0 0.0
  %9173 = vmatpush1.msra.mxu0 0.0
  %9174 = vmatprep.subr.mxu0 0.0
  %9175 = vmatpush1.msra.mxu0 0.0
  %9176 = vmatprep.subr.mxu0 0.0
  %9177 = vmatpush1.msra.mxu0 0.0
  %9178 = vmatprep.subr.mxu0 0.0
  %9179 = vmatpush1.msra.mxu0 0.0
  %9180 = vmatprep.subr.mxu0 0.0
  %9181 = vmatpush1.msra.mxu0 0.0
  %9182 = vmatprep.subr.mxu0 0.0
  %9183 = vmatpush1.msra.mxu0 0.0
  %9184 = vmatprep.subr.mxu0 0.0
  %9185 = vmatpush1.msra.mxu0 0.0
  %9186 = vmatprep.subr.mxu0 0.0
  %9187 = vmatpush1.msra.mxu0 0.0
  %9188 = vmatprep.subr.mxu0 0.0
  %9189 = vmatpush1.msra.mxu0 0.0
  %9190 = vmatprep.subr.mxu0 0.0
  %9191 = vmatpush1.msra.mxu0 0.0
  %9192 = vmatprep.subr.mxu0 0.0
  %9193 = vmatpush1.msra.mxu0 0.0
  %9194 = vmatprep.subr.mxu0 0.0
  %9195 = vmatpush1.msra.mxu0 0.0
  %9196 = vmatprep.subr.mxu0 0.0
  %9197 = vmatpush1.msra.mxu0 0.0
  %9198 = vmatprep.subr.mxu0 0.0
  %9199 = vmatpush1.msra.mxu0 0.0
  %9200 = vmatprep.subr.mxu0 0.0
  %9201 = vmatpush1.msra.mxu0 0.0
  %9202 = vmatprep.subr.mxu0 0.0
  %9203 = vmatpush1.msra.mxu0 %v8929
  %9204 = vmatprep.subr.mxu0 0.0
  %9205 = vmatpush2.msra.mxu0 0.0
  %9206 = vmatprep.subr.mxu0 0.0
  %9207 = vmatpush2.msra.mxu0 0.0
  %9208 = vmatprep.subr.mxu0 0.0
  %9209 = vmatpush2.msra.mxu0 0.0
  %9210 = vmatprep.subr.mxu0 0.0
  %9211 = vmatpush2.msra.mxu0 0.0
  %9212 = vmatprep.subr.mxu0 0.0
  %9213 = vmatpush2.msra.mxu0 0.0
  %9214 = vmatprep.subr.mxu0 0.0
  %9215 = vmatpush2.msra.mxu0 0.0
  %9216 = vmatprep.subr.mxu0 0.0
  %9217 = vmatpush2.msra.mxu0 0.0
  %9218 = vmatprep.subr.mxu0 0.0
  %9219 = vmatpush2.msra.mxu0 0.0
  %9220 = vmatprep.subr.mxu0 0.0
  %9221 = vmatpush2.msra.mxu0 0.0
  %9222 = vmatprep.subr.mxu0 0.0
  %9223 = vmatpush2.msra.mxu0 0.0
  %9224 = vmatprep.subr.mxu0 0.0
  %9225 = vmatpush2.msra.mxu0 0.0
  %9226 = vmatprep.subr.mxu0 0.0
  %9227 = vmatpush2.msra.mxu0 0.0
  %9228 = vmatprep.subr.mxu0 0.0
  %9229 = vmatpush2.msra.mxu0 0.0
  %9230 = vmatprep.subr.mxu0 0.0
  %9231 = vmatpush2.msra.mxu0 0.0
  %9232 = vmatprep.subr.mxu0 0.0
  %9233 = vmatpush2.msra.mxu0 0.0
  %9234 = vmatprep.subr.mxu0 0.0
  %9235 = vmatpush2.msra.mxu0 0.0
  %9236 = vmatprep.mubr.f32.mxu0 0.0
  %9237 = vmatmul.mubr.f32.gmra.mxu0 %v749
  %v9238 = vpop.f32.mrf.mxu0
  %v9239 = vadd.f32 %v392, %v9238
  %v9240 = vpop.f32.mrf.mxu0
  %9241 = vmatprep.mubr.f32.mxu0 0.0
  %9242 = vmatmul.mubr.f32.gmra.mxu0 %v752
  %v9243 = vpop.f32.mrf.mxu0
  %v9244 = vadd.f32 %v392, %v9243
  %v9245 = vpop.f32.mrf.mxu0
  %9246 = vdwg.mxu0
  %v9247 = vmax.f32 %v9239, 0.0
  %v9248 = vmax.f32 %v9244, 0.0
  %9249 = vmatprep.subr.mxu0 0.0
  %9250 = vmatpush1.msra.mxu0 0.0
  %9251 = vmatprep.subr.mxu0 0.0
  %9252 = vmatpush1.msra.mxu0 0.0
  %9253 = vmatprep.subr.mxu0 0.0
  %9254 = vmatpush1.msra.mxu0 0.0
  %9255 = vmatprep.subr.mxu0 0.0
  %9256 = vmatpush1.msra.mxu0 0.0
  %9257 = vmatprep.subr.mxu0 0.0
  %9258 = vmatpush1.msra.mxu0 0.0
  %9259 = vmatprep.subr.mxu0 0.0
  %9260 = vmatpush1.msra.mxu0 0.0
  %9261 = vmatprep.subr.mxu0 0.0
  %9262 = vmatpush1.msra.mxu0 0.0
  %9263 = vmatprep.subr.mxu0 0.0
  %9264 = vmatpush1.msra.mxu0 0.0
  %9265 = vmatprep.subr.mxu0 0.0
  %9266 = vmatpush1.msra.mxu0 0.0
  %9267 = vmatprep.subr.mxu0 0.0
  %9268 = vmatpush1.msra.mxu0 0.0
  %9269 = vmatprep.subr.mxu0 0.0
  %9270 = vmatpush1.msra.mxu0 0.0
  %9271 = vmatprep.subr.mxu0 0.0
  %9272 = vmatpush1.msra.mxu0 0.0
  %9273 = vmatprep.subr.mxu0 0.0
  %9274 = vmatpush1.msra.mxu0 0.0
  %9275 = vmatprep.subr.mxu0 0.0
  %9276 = vmatpush1.msra.mxu0 0.0
  %9277 = vmatprep.subr.mxu0 0.0
  %9278 = vmatpush1.msra.mxu0 %v9248
  %9279 = vmatprep.subr.mxu0 0.0
  %9280 = vmatpush1.msra.mxu0 %v9247
  %9281 = vmatprep.subr.mxu0 0.0
  %9282 = vmatpush2.msra.mxu0 0.0
  %9283 = vmatprep.subr.mxu0 0.0
  %9284 = vmatpush2.msra.mxu0 0.0
  %9285 = vmatprep.subr.mxu0 0.0
  %9286 = vmatpush2.msra.mxu0 0.0
  %9287 = vmatprep.subr.mxu0 0.0
  %9288 = vmatpush2.msra.mxu0 0.0
  %9289 = vmatprep.subr.mxu0 0.0
  %9290 = vmatpush2.msra.mxu0 0.0
  %9291 = vmatprep.subr.mxu0 0.0
  %9292 = vmatpush2.msra.mxu0 0.0
  %9293 = vmatprep.subr.mxu0 0.0
  %9294 = vmatpush2.msra.mxu0 0.0
  %9295 = vmatprep.subr.mxu0 0.0
  %9296 = vmatpush2.msra.mxu0 0.0
  %9297 = vmatprep.subr.mxu0 0.0
  %9298 = vmatpush2.msra.mxu0 0.0
  %9299 = vmatprep.subr.mxu0 0.0
  %9300 = vmatpush2.msra.mxu0 0.0
  %9301 = vmatprep.subr.mxu0 0.0
  %9302 = vmatpush2.msra.mxu0 0.0
  %9303 = vmatprep.subr.mxu0 0.0
  %9304 = vmatpush2.msra.mxu0 0.0
  %9305 = vmatprep.subr.mxu0 0.0
  %9306 = vmatpush2.msra.mxu0 0.0
  %9307 = vmatprep.subr.mxu0 0.0
  %9308 = vmatpush2.msra.mxu0 0.0
  %9309 = vmatprep.subr.mxu0 0.0
  %9310 = vmatpush2.msra.mxu0 0.0
  %9311 = vmatprep.subr.mxu0 0.0
  %9312 = vmatpush2.msra.mxu0 0.0
  %9313 = vmatprep.mubr.f32.mxu0 0.0
  %9314 = vmatmul.mubr.f32.gmra.mxu0 %v832
  %v9315 = vpop.f32.mrf.mxu0
  %v9316 = vadd.f32 0.0, %v9315
  %v9317 = vpop.f32.mrf.mxu0
  %9318 = vdwg.mxu0
  %9320 = vrot.lane.b32.xlu0 %v9171, 80
  %v9321 = vpop.permute.xlu0 %9320
  %v9322 = vsel %vm261, %v9321, 0
  %9324 = vmatprep.subr.mxu0 0.0
  %9325 = vmatpush1.msra.mxu0 0.0
  %9326 = vmatprep.subr.mxu0 0.0
  %9327 = vmatpush1.msra.mxu0 0.0
  %9328 = vmatprep.subr.mxu0 0.0
  %9329 = vmatpush1.msra.mxu0 0.0
  %9330 = vmatprep.subr.mxu0 0.0
  %9331 = vmatpush1.msra.mxu0 0.0
  %9332 = vmatprep.subr.mxu0 0.0
  %9333 = vmatpush1.msra.mxu0 0.0
  %9334 = vmatprep.subr.mxu0 0.0
  %9335 = vmatpush1.msra.mxu0 0.0
  %9336 = vmatprep.subr.mxu0 0.0
  %9337 = vmatpush1.msra.mxu0 0.0
  %9338 = vmatprep.subr.mxu0 0.0
  %9339 = vmatpush1.msra.mxu0 0.0
  %9340 = vmatprep.subr.mxu0 0.0
  %9341 = vmatpush1.msra.mxu0 0.0
  %9342 = vmatprep.subr.mxu0 0.0
  %9343 = vmatpush1.msra.mxu0 0.0
  %9344 = vmatprep.subr.mxu0 0.0
  %9345 = vmatpush1.msra.mxu0 0.0
  %9346 = vmatprep.subr.mxu0 0.0
  %9347 = vmatpush1.msra.mxu0 0.0
  %9348 = vmatprep.subr.mxu0 0.0
  %9349 = vmatpush1.msra.mxu0 0.0
  %9350 = vmatprep.subr.mxu0 0.0
  %9351 = vmatpush1.msra.mxu0 0.0
  %9352 = vmatprep.subr.mxu0 0.0
  %9353 = vmatpush1.msra.mxu0 %v397
  %9354 = vmatprep.subr.mxu0 0.0
  %9355 = vmatpush1.msra.mxu0 %v396
  %9356 = vmatprep.subr.mxu0 0.0
  %9357 = vmatpush2.msra.mxu0 0.0
  %9358 = vmatprep.subr.mxu0 0.0
  %9359 = vmatpush2.msra.mxu0 0.0
  %9360 = vmatprep.subr.mxu0 0.0
  %9361 = vmatpush2.msra.mxu0 0.0
  %9362 = vmatprep.subr.mxu0 0.0
  %9363 = vmatpush2.msra.mxu0 0.0
  %9364 = vmatprep.subr.mxu0 0.0
  %9365 = vmatpush2.msra.mxu0 0.0
  %9366 = vmatprep.subr.mxu0 0.0
  %9367 = vmatpush2.msra.mxu0 0.0
  %9368 = vmatprep.subr.mxu0 0.0
  %9369 = vmatpush2.msra.mxu0 0.0
  %9370 = vmatprep.subr.mxu0 0.0
  %9371 = vmatpush2.msra.mxu0 0.0
  %9372 = vmatprep.subr.mxu0 0.0
  %9373 = vmatpush2.msra.mxu0 0.0
  %9374 = vmatprep.subr.mxu0 0.0
  %9375 = vmatpush2.msra.mxu0 0.0
  %9376 = vmatprep.subr.mxu0 0.0
  %9377 = vmatpush2.msra.mxu0 0.0
  %9378 = vmatprep.subr.mxu0 0.0
  %9379 = vmatpush2.msra.mxu0 0.0
  %9380 = vmatprep.subr.mxu0 0.0
  %9381 = vmatpush2.msra.mxu0 0.0
  %9382 = vmatprep.subr.mxu0 0.0
  %9383 = vmatpush2.msra.mxu0 0.0
  %9384 = vmatprep.subr.mxu0 0.0
  %9385 = vmatpush2.msra.mxu0 0.0
  %9386 = vmatprep.subr.mxu0 0.0
  %9387 = vmatpush2.msra.mxu0 0.0
  %9388 = vmatprep.mubr.f32.mxu0 0.0
  %9389 = vmatmul.mubr.f32.gmra.mxu0 %v9322
  %v9390 = vpop.f32.mrf.mxu0
  %v9391 = vadd.f32 0.0, %v9390
  %v9392 = vpop.f32.mrf.mxu0
  %9393 = vdwg.mxu0
  %v9395 = vsel %vm261, %v9316, 0
  %9397 = vmatprep.subr.mxu0 0.0
  %9398 = vmatpush1.msra.mxu0 0.0
  %9399 = vmatprep.subr.mxu0 0.0
  %9400 = vmatpush1.msra.mxu0 0.0
  %9401 = vmatprep.subr.mxu0 0.0
  %9402 = vmatpush1.msra.mxu0 0.0
  %9403 = vmatprep.subr.mxu0 0.0
  %9404 = vmatpush1.msra.mxu0 0.0
  %9405 = vmatprep.subr.mxu0 0.0
  %9406 = vmatpush1.msra.mxu0 0.0
  %9407 = vmatprep.subr.mxu0 0.0
  %9408 = vmatpush1.msra.mxu0 0.0
  %9409 = vmatprep.subr.mxu0 0.0
  %9410 = vmatpush1.msra.mxu0 0.0
  %9411 = vmatprep.subr.mxu0 0.0
  %9412 = vmatpush1.msra.mxu0 0.0
  %9413 = vmatprep.subr.mxu0 0.0
  %9414 = vmatpush1.msra.mxu0 0.0
  %9415 = vmatprep.subr.mxu0 0.0
  %9416 = vmatpush1.msra.mxu0 0.0
  %9417 = vmatprep.subr.mxu0 0.0
  %9418 = vmatpush1.msra.mxu0 0.0
  %9419 = vmatprep.subr.mxu0 0.0
  %9420 = vmatpush1.msra.mxu0 0.0
  %9421 = vmatprep.subr.mxu0 0.0
  %9422 = vmatpush1.msra.mxu0 0.0
  %9423 = vmatprep.subr.mxu0 0.0
  %9424 = vmatpush1.msra.mxu0 0.0
  %9425 = vmatprep.subr.mxu0 0.0
  %9426 = vmatpush1.msra.mxu0 %v395
  %9427 = vmatprep.subr.mxu0 0.0
  %9428 = vmatpush1.msra.mxu0 %v394
  %9429 = vmatprep.subr.mxu0 0.0
  %9430 = vmatpush2.msra.mxu0 0.0
  %9431 = vmatprep.subr.mxu0 0.0
  %9432 = vmatpush2.msra.mxu0 0.0
  %9433 = vmatprep.subr.mxu0 0.0
  %9434 = vmatpush2.msra.mxu0 0.0
  %9435 = vmatprep.subr.mxu0 0.0
  %9436 = vmatpush2.msra.mxu0 0.0
  %9437 = vmatprep.subr.mxu0 0.0
  %9438 = vmatpush2.msra.mxu0 0.0
  %9439 = vmatprep.subr.mxu0 0.0
  %9440 = vmatpush2.msra.mxu0 0.0
  %9441 = vmatprep.subr.mxu0 0.0
  %9442 = vmatpush2.msra.mxu0 0.0
  %9443 = vmatprep.subr.mxu0 0.0
  %9444 = vmatpush2.msra.mxu0 0.0
  %9445 = vmatprep.subr.mxu0 0.0
  %9446 = vmatpush2.msra.mxu0 0.0
  %9447 = vmatprep.subr.mxu0 0.0
  %9448 = vmatpush2.msra.mxu0 0.0
  %9449 = vmatprep.subr.mxu0 0.0
  %9450 = vmatpush2.msra.mxu0 0.0
  %9451 = vmatprep.subr.mxu0 0.0
  %9452 = vmatpush2.msra.mxu0 0.0
  %9453 = vmatprep.subr.mxu0 0.0
  %9454 = vmatpush2.msra.mxu0 0.0
  %9455 = vmatprep.subr.mxu0 0.0
  %9456 = vmatpush2.msra.mxu0 0.0
  %9457 = vmatprep.subr.mxu0 0.0
  %9458 = vmatpush2.msra.mxu0 0.0
  %9459 = vmatprep.subr.mxu0 0.0
  %9460 = vmatpush2.msra.mxu0 0.0
  %9461 = vmatprep.mubr.f32.mxu0 0.0
  %9462 = vmatmul.mubr.f32.gmra.mxu0 %v9395
  %v9463 = vpop.f32.mrf.mxu0
  %v9464 = vadd.f32 %v9391, %v9463
  %v9465 = vpop.f32.mrf.mxu0
  %9466 = vdwg.mxu0
  %v9467 = vadd.f32 %v9464, %v403
  %v9468 = vmax.f32 %v9467, 0.0
  %9470 = vrot.lane.b32.xlu0 %v9468, 48
  %v9471 = vpop.permute.xlu0 %9470
  %v9473 = vadd.f32 %v9171, %v9471
  %9475 = vrot.lane.b32.xlu0 %v9473, 80
  %v9476 = vpop.permute.xlu0 %9475
  %v9477 = vsel %vm261, %v9476, 0
  %9479 = vmatprep.subr.mxu0 0.0
  %9480 = vmatpush1.msra.mxu0 0.0
  %9481 = vmatprep.subr.mxu0 0.0
  %9482 = vmatpush1.msra.mxu0 0.0
  %9483 = vmatprep.subr.mxu0 0.0
  %9484 = vmatpush1.msra.mxu0 0.0
  %9485 = vmatprep.subr.mxu0 0.0
  %9486 = vmatpush1.msra.mxu0 0.0
  %9487 = vmatprep.subr.mxu0 0.0
  %9488 = vmatpush1.msra.mxu0 0.0
  %9489 = vmatprep.subr.mxu0 0.0
  %9490 = vmatpush1.msra.mxu0 0.0
  %9491 = vmatprep.subr.mxu0 0.0
  %9492 = vmatpush1.msra.mxu0 0.0
  %9493 = vmatprep.subr.mxu0 0.0
  %9494 = vmatpush1.msra.mxu0 0.0
  %9495 = vmatprep.subr.mxu0 0.0
  %9496 = vmatpush1.msra.mxu0 0.0
  %9497 = vmatprep.subr.mxu0 0.0
  %9498 = vmatpush1.msra.mxu0 0.0
  %9499 = vmatprep.subr.mxu0 0.0
  %9500 = vmatpush1.msra.mxu0 0.0
  %9501 = vmatprep.subr.mxu0 0.0
  %9502 = vmatpush1.msra.mxu0 0.0
  %9503 = vmatprep.subr.mxu0 0.0
  %9504 = vmatpush1.msra.mxu0 0.0
  %9505 = vmatprep.subr.mxu0 0.0
  %9506 = vmatpush1.msra.mxu0 0.0
  %9507 = vmatprep.subr.mxu0 0.0
  %9508 = vmatpush1.msra.mxu0 %v406
  %9509 = vmatprep.subr.mxu0 0.0
  %9510 = vmatpush1.msra.mxu0 %v405
  %9511 = vmatprep.subr.mxu0 0.0
  %9512 = vmatpush2.msra.mxu0 0.0
  %9513 = vmatprep.subr.mxu0 0.0
  %9514 = vmatpush2.msra.mxu0 0.0
  %9515 = vmatprep.subr.mxu0 0.0
  %9516 = vmatpush2.msra.mxu0 0.0
  %9517 = vmatprep.subr.mxu0 0.0
  %9518 = vmatpush2.msra.mxu0 0.0
  %9519 = vmatprep.subr.mxu0 0.0
  %9520 = vmatpush2.msra.mxu0 0.0
  %9521 = vmatprep.subr.mxu0 0.0
  %9522 = vmatpush2.msra.mxu0 0.0
  %9523 = vmatprep.subr.mxu0 0.0
  %9524 = vmatpush2.msra.mxu0 0.0
  %9525 = vmatprep.subr.mxu0 0.0
  %9526 = vmatpush2.msra.mxu0 0.0
  %9527 = vmatprep.subr.mxu0 0.0
  %9528 = vmatpush2.msra.mxu0 0.0
  %9529 = vmatprep.subr.mxu0 0.0
  %9530 = vmatpush2.msra.mxu0 0.0
  %9531 = vmatprep.subr.mxu0 0.0
  %9532 = vmatpush2.msra.mxu0 0.0
  %9533 = vmatprep.subr.mxu0 0.0
  %9534 = vmatpush2.msra.mxu0 0.0
  %9535 = vmatprep.subr.mxu0 0.0
  %9536 = vmatpush2.msra.mxu0 0.0
  %9537 = vmatprep.subr.mxu0 0.0
  %9538 = vmatpush2.msra.mxu0 0.0
  %9539 = vmatprep.subr.mxu0 0.0
  %9540 = vmatpush2.msra.mxu0 0.0
  %9541 = vmatprep.subr.mxu0 0.0
  %9542 = vmatpush2.msra.mxu0 0.0
  %9543 = vmatprep.mubr.f32.mxu0 0.0
  %9544 = vmatmul.mubr.f32.gmra.mxu0 %v9477
  %v9545 = vpop.f32.mrf.mxu0
  %v9546 = vadd.f32 %v458, %v9545
  %v9547 = vpop.f32.mrf.mxu0
  %9548 = vdwg.mxu0
  %v9549 = vmax.f32 %v9546, 0.0
  %v9550 = vld [vmem:[%s49] sm:$0x1]
  %v9552 = vlaneseq
  %v9553 = vshrl.u32 %v9552, 7
  %v9554 = vsub.s32 0, %v9553
  %v9555 = vrot.slane %v9550, %v9554
  %v9558 = vsel %vm261, %v9549, 0
  %9560 = vmatprep.subr.mxu0 0.0
  %9561 = vmatpush1.msra.mxu0 0.0
  %9562 = vmatprep.subr.mxu0 0.0
  %9563 = vmatpush1.msra.mxu0 0.0
  %9564 = vmatprep.subr.mxu0 0.0
  %9565 = vmatpush1.msra.mxu0 0.0
  %9566 = vmatprep.subr.mxu0 0.0
  %9567 = vmatpush1.msra.mxu0 0.0
  %9568 = vmatprep.subr.mxu0 0.0
  %9569 = vmatpush1.msra.mxu0 0.0
  %9570 = vmatprep.subr.mxu0 0.0
  %9571 = vmatpush1.msra.mxu0 0.0
  %9572 = vmatprep.subr.mxu0 0.0
  %9573 = vmatpush1.msra.mxu0 0.0
  %9574 = vmatprep.subr.mxu0 0.0
  %9575 = vmatpush1.msra.mxu0 0.0
  %9576 = vmatprep.subr.mxu0 0.0
  %9577 = vmatpush1.msra.mxu0 0.0
  %9578 = vmatprep.subr.mxu0 0.0
  %9579 = vmatpush1.msra.mxu0 0.0
  %9580 = vmatprep.subr.mxu0 0.0
  %9581 = vmatpush1.msra.mxu0 0.0
  %9582 = vmatprep.subr.mxu0 0.0
  %9583 = vmatpush1.msra.mxu0 0.0
  %9584 = vmatprep.subr.mxu0 0.0
  %9585 = vmatpush1.msra.mxu0 0.0
  %9586 = vmatprep.subr.mxu0 0.0
  %9587 = vmatpush1.msra.mxu0 0.0
  %9588 = vmatprep.subr.mxu0 0.0
  %9589 = vmatpush1.msra.mxu0 %v409
  %9590 = vmatprep.subr.mxu0 0.0
  %9591 = vmatpush1.msra.mxu0 %v408
  %9592 = vmatprep.subr.mxu0 0.0
  %9593 = vmatpush2.msra.mxu0 0.0
  %9594 = vmatprep.subr.mxu0 0.0
  %9595 = vmatpush2.msra.mxu0 0.0
  %9596 = vmatprep.subr.mxu0 0.0
  %9597 = vmatpush2.msra.mxu0 0.0
  %9598 = vmatprep.subr.mxu0 0.0
  %9599 = vmatpush2.msra.mxu0 0.0
  %9600 = vmatprep.subr.mxu0 0.0
  %9601 = vmatpush2.msra.mxu0 0.0
  %9602 = vmatprep.subr.mxu0 0.0
  %9603 = vmatpush2.msra.mxu0 0.0
  %9604 = vmatprep.subr.mxu0 0.0
  %9605 = vmatpush2.msra.mxu0 0.0
  %9606 = vmatprep.subr.mxu0 0.0
  %9607 = vmatpush2.msra.mxu0 0.0
  %9608 = vmatprep.subr.mxu0 0.0
  %9609 = vmatpush2.msra.mxu0 0.0
  %9610 = vmatprep.subr.mxu0 0.0
  %9611 = vmatpush2.msra.mxu0 0.0
  %9612 = vmatprep.subr.mxu0 0.0
  %9613 = vmatpush2.msra.mxu0 0.0
  %9614 = vmatprep.subr.mxu0 0.0
  %9615 = vmatpush2.msra.mxu0 0.0
  %9616 = vmatprep.subr.mxu0 0.0
  %9617 = vmatpush2.msra.mxu0 0.0
  %9618 = vmatprep.subr.mxu0 0.0
  %9619 = vmatpush2.msra.mxu0 0.0
  %9620 = vmatprep.subr.mxu0 0.0
  %9621 = vmatpush2.msra.mxu0 0.0
  %9622 = vmatprep.subr.mxu0 0.0
  %9623 = vmatpush2.msra.mxu0 0.0
  %9624 = vmatprep.mubr.f32.mxu0 0.0
  %9625 = vmatmul.mubr.f32.gmra.mxu0 %v1136
  %v9626 = vpop.f32.mrf.mxu0
  %v9627 = vadd.f32 %v9555, %v9626
  %v9628 = vpop.f32.mrf.mxu0
  %9629 = vmatprep.mubr.f32.mxu0 0.0
  %9630 = vmatmul.mubr.f32.gmra.mxu0 %v1901
  %v9631 = vpop.f32.mrf.mxu0
  %v9632 = vadd.f32 %v9555, %v9631
  %v9633 = vpop.f32.mrf.mxu0
  %9634 = vmatprep.mubr.f32.mxu0 0.0
  %9635 = vmatmul.mubr.f32.gmra.mxu0 %v2666
  %v9636 = vpop.f32.mrf.mxu0
  %v9637 = vadd.f32 %v9555, %v9636
  %v9638 = vpop.f32.mrf.mxu0
  %9639 = vmatprep.mubr.f32.mxu0 0.0
  %9640 = vmatmul.mubr.f32.gmra.mxu0 %v3431
  %v9641 = vpop.f32.mrf.mxu0
  %v9642 = vadd.f32 %v9555, %v9641
  %v9643 = vpop.f32.mrf.mxu0
  %9644 = vmatprep.mubr.f32.mxu0 0.0
  %9645 = vmatmul.mubr.f32.gmra.mxu0 %v4196
  %v9646 = vpop.f32.mrf.mxu0
  %v9647 = vadd.f32 %v9555, %v9646
  %v9648 = vpop.f32.mrf.mxu0
  %9649 = vmatprep.mubr.f32.mxu0 0.0
  %9650 = vmatmul.mubr.f32.gmra.mxu0 %v4961
  %v9651 = vpop.f32.mrf.mxu0
  %v9652 = vadd.f32 %v9555, %v9651
  %v9653 = vpop.f32.mrf.mxu0
  %9654 = vmatprep.mubr.f32.mxu0 0.0
  %9655 = vmatmul.mubr.f32.gmra.mxu0 %v5726
  %v9656 = vpop.f32.mrf.mxu0
  %v9657 = vadd.f32 %v9555, %v9656
  %v9658 = vpop.f32.mrf.mxu0
  %9659 = vmatprep.mubr.f32.mxu0 0.0
  %9660 = vmatmul.mubr.f32.gmra.mxu0 %v6491
  %v9661 = vpop.f32.mrf.mxu0
  %v9662 = vadd.f32 %v9555, %v9661
  %v9663 = vpop.f32.mrf.mxu0
  %9664 = vmatprep.mubr.f32.mxu0 0.0
  %9665 = vmatmul.mubr.f32.gmra.mxu0 %v7256
  %v9666 = vpop.f32.mrf.mxu0
  %v9667 = vadd.f32 %v9555, %v9666
  %v9668 = vpop.f32.mrf.mxu0
  %9669 = vmatprep.mubr.f32.mxu0 0.0
  %9670 = vmatmul.mubr.f32.gmra.mxu0 %v8021
  %v9671 = vpop.f32.mrf.mxu0
  %v9672 = vadd.f32 %v9555, %v9671
  %v9673 = vpop.f32.mrf.mxu0
  %9674 = vmatprep.mubr.f32.mxu0 0.0
  %9675 = vmatmul.mubr.f32.gmra.mxu0 %v8786
  %v9676 = vpop.f32.mrf.mxu0
  %v9677 = vadd.f32 %v9555, %v9676
  %v9678 = vpop.f32.mrf.mxu0
  %9679 = vmatprep.mubr.f32.mxu0 0.0
  %9680 = vmatmul.mubr.f32.gmra.mxu0 %v9558
  %v9681 = vpop.f32.mrf.mxu0
  %v9682 = vadd.f32 %v9555, %v9681
  %v9683 = vpop.f32.mrf.mxu0
  %9684 = vdwg.mxu0
  %vm9685 = vcmask 15360
  %9686 = vst.msk [vmem:[%s59] sm:$0xff] %vm9685, %v9627
  %9687 = vst.msk [vmem:[%s59 + $0x8] sm:$0xff] %vm9685, %v9632
  %9688 = vst.msk [vmem:[%s59 + $0x10] sm:$0xff] %vm9685, %v9637
  %9689 = vst.msk [vmem:[%s59 + $0x18] sm:$0xff] %vm9685, %v9642
  %9690 = vst.msk [vmem:[%s59 + $0x20] sm:$0xff] %vm9685, %v9647
  %9691 = vst.msk [vmem:[%s59 + $0x28] sm:$0xff] %vm9685, %v9652
  %9692 = vst.msk [vmem:[%s59 + $0x30] sm:$0xff] %vm9685, %v9657
  %9693 = vst.msk [vmem:[%s59 + $0x38] sm:$0xff] %vm9685, %v9662
  %9694 = vst.msk [vmem:[%s59 + $0x40] sm:$0xff] %vm9685, %v9667
  %9695 = vst.msk [vmem:[%s59 + $0x48] sm:$0xff] %vm9685, %v9672
  %9696 = vst.msk [vmem:[%s59 + $0x50] sm:$0xff] %vm9685, %v9677
  %9697 = vst.msk [vmem:[%s59 + $0x58] sm:$0xff] %vm9685, %v9682
  %vm9698 = vcmask 7168
  %9699 = vst.msk [vmem:[%s61] sm:$0xff] %vm9698, 0.0
  // Predicated region
  $region118: #{trajectory_generator_ar_goal.1} parent=0 // pred_check
    _
  $region119: #{trajectory_generator_ar_goal.1} parent=0 // pred_check_branch
    %9701 = sbr.rel (0) target = $region121
  $region120: #{trajectory_generator_ar_goal.1} parent=0 // pred_region
    _
  $region121: #{trajectory_generator_ar_goal.1} parent=0 // pred_fallthru
    _
  // Predicated region
  $region122: #{trajectory_generator_ar_goal.1} parent=0 // pred_check
    _
  $region123: #{trajectory_generator_ar_goal.1} parent=0 // pred_check_branch
    %9703 = sbr.rel (0) target = $region125
  $region124: #{trajectory_generator_ar_goal.1} parent=0 // pred_region
    _
  $region125: #{trajectory_generator_ar_goal.1} parent=0 // pred_fallthru
    _
  // Predicated region
  $region126: #{trajectory_generator_ar_goal.1} parent=0 // pred_check
    _
  $region127: #{trajectory_generator_ar_goal.1} parent=0 // pred_check_branch
    %9705 = sbr.rel (0) target = $region129
  $region128: #{trajectory_generator_ar_goal.1} parent=0 // pred_region
    _
  $region129: #{trajectory_generator_ar_goal.1} parent=0 // pred_fallthru
    _
  // Predicated region
  $region130: #{trajectory_generator_ar_goal.1} parent=0 // pred_check
    _
  $region131: #{trajectory_generator_ar_goal.1} parent=0 // pred_check_branch
    %9707 = sbr.rel (0) target = $region133
  $region132: #{trajectory_generator_ar_goal.1} parent=0 // pred_region
    _
  $region133: #{trajectory_generator_ar_goal.1} parent=0 // pred_fallthru
    _

</llo_original>
